<compile_context>
chip_gen: v5e
topology: v5e:2x2
jax: 0.10.0
libtpu: 0.0.40
codegen_flags: <defaults>
</compile_context>

<pallas_src>
import functools

import jax
import jax.numpy as jnp
from jax.experimental import pallas as pl
from jax.experimental.pallas import tpu as pltpu


# ------------------------------------------------------------------ relative position bias

def make_rel_bias(table, window_size, num_heads):
    """Reproduce WindowAttention.relative_position_index and gather the bias table.

    table: ((2*Wh-1)*(2*Ww-1), num_heads)  ->  (num_heads, N, N) with N = Wh*Ww.
    """
    ws_h, ws_w = window_size
    coords = jnp.stack(jnp.meshgrid(jnp.arange(ws_h), jnp.arange(ws_w), indexing="ij"))
    coords_flat = coords.reshape(2, -1)                               # (2, N)
    rel = coords_flat[:, :, None] - coords_flat[:, None, :]           # (2, N, N)
    rel = rel.transpose(1, 2, 0)                                      # (N, N, 2)
    rel = rel.at[:, :, 0].add(ws_h - 1)
    rel = rel.at[:, :, 1].add(ws_w - 1)
    rel = rel.at[:, :, 0].multiply(2 * ws_w - 1)
    idx = rel.sum(-1)                                                 # (N, N)
    N = ws_h * ws_w
    bias = table[idx.reshape(-1)].reshape(N, N, num_heads)            # (N, N, nH)
    return bias.transpose(2, 0, 1).astype(jnp.float32)                # (nH, N, N)


# ------------------------------------------------------------------------------- kernel

def window_attention_kernel(x_ref, wqkv_ref, bqkv_ref, relb_ref, wproj_ref, bproj_ref,
                            o_ref, *, num_heads, wb, N, C):
    """W-MSA (mask=None) for a block of `wb` windows, all heads batched."""
    hd = C // num_heads
    G = num_heads * wb                                   # (head, window) batch size

    # ---- QKV projection for all wb windows at once: (wb*N, C) @ (C, 3C), bf16 in / f32 acc.
    #      qk scale pre-folded into the Q columns; K bias dropped (cancels in softmax).
    x = x_ref[...].reshape(wb * N, C).astype(jnp.bfloat16)
    qkv = (jnp.dot(x, wqkv_ref[...], preferred_element_type=jnp.float32)
           + bqkv_ref[...]).astype(jnp.bfloat16)                              # (wb*N, 3C)

    def heads_of(base):
        # Head-major batch (num_heads*wb, N, hd): 32-lane slices straight out of qkv plus a
        # single leading-dim concat (no stack, no 4-D transpose, no (..,4,32) padded tiles).
        return jnp.concatenate(
            [qkv[:, base + h * hd: base + (h + 1) * hd].reshape(wb, N, hd)
             for h in range(num_heads)], axis=0)

    qh = heads_of(0)                                     # query (already scaled)
    kh = heads_of(C)
    vh = heads_of(2 * C)

    # ---- scores for every (head, window) pair at once: (G, N, N), f32 accumulation.
    attn = jnp.einsum("gnd,gmd->gnm", qh, kh, preferred_element_type=jnp.float32)

    # ---- relative position bias: broadcast over the window dim inside the add
    #      (leading-dim reshapes are free; no materialized (G, N, N) bias copy).
    attn = (attn.reshape(num_heads, wb, N, N) + relb_ref[...][:, None]).reshape(G, N, N)

    # ---- softmax in f32 (v5e-safe); reciprocal runs on the EUP slot.
    attn = attn - jnp.max(attn, axis=-1, keepdims=True)
    p = jnp.exp(attn)
    p = p * pl.reciprocal(jnp.sum(p, axis=-1, keepdims=True), approx=True)

    # ---- attn @ v, batched over (head, window): (G, N, hd).
    out = jnp.einsum("gnm,gmd->gnd", p.astype(jnp.bfloat16), vh,
                     preferred_element_type=jnp.float32)

    # ---- merge heads back into lanes with one concat, then a single K=128 projection.
    out = out.astype(jnp.bfloat16).reshape(num_heads, wb, N, hd)
    merged = jnp.concatenate([out[h] for h in range(num_heads)], axis=-1)     # (wb, N, C)
    y = (jnp.dot(merged.reshape(wb * N, C), wproj_ref[...],
                 preferred_element_type=jnp.float32) + bproj_ref[...])

    o_ref[...] = y.reshape(wb, N, C).astype(o_ref.dtype)


# ------------------------------------------------------------------------------- wrapper

def _pick_num_blocks(B_, N):
    """Target ~512-1024 rows (wb*N) per grid step; prefer an even grid on 2-TC chips (v7x)."""
    wb = max(1, min(B_, max(1, 1024 // max(N, 1))))
    while B_ % wb:
        wb -= 1
    num_blocks = B_ // wb
    try:
        kind = jax.devices()[0].device_kind.lower()
    except Exception:
        kind = ""
    if "v7" in kind and num_blocks % 2 == 1 and B_ % (2 * num_blocks) == 0:
        num_blocks *= 2                                  # keep both v7x TensorCores busy
    return num_blocks


def window_attention(x, params, num_heads, *, num_blocks=None):
    """Equivalent of WindowAttention.forward(x, mask=None).

    x: (num_windows*B, N, C)  ->  (num_windows*B, N, C), same dtype as x.
    """
    B_, N, C = x.shape
    assert C % num_heads == 0
    hd = C // num_heads
    scale = hd ** (-0.5)

    if num_blocks is None:
        num_blocks = _pick_num_blocks(B_, N)
    assert B_ % num_blocks == 0
    wb = B_ // num_blocks

    # One-time weight prep (outside the kernel): fold the qk scale into the Q third of
    # wqkv/bqkv, drop the K bias (cancels in softmax), cast MXU operands to bf16.
    scale_cols = jnp.concatenate([jnp.full((C,), scale, jnp.float32),
                                  jnp.ones((2 * C,), jnp.float32)])
    keep_bias = jnp.concatenate([jnp.ones((C,), jnp.float32),
                                 jnp.zeros((C,), jnp.float32),       # K bias -> softmax-invariant
                                 jnp.ones((C,), jnp.float32)])
    wqkv = (params["wqkv"].astype(jnp.float32) * scale_cols[None, :]).astype(jnp.bfloat16)
    bqkv = (params["bqkv"].astype(jnp.float32) * scale_cols * keep_bias).reshape(1, 3 * C)
    relb = params["relb"].astype(jnp.float32)                                 # (nH, N, N)
    wproj = params["wproj"].astype(jnp.bfloat16)                              # (C, C)
    bproj = params["bproj"].reshape(1, C).astype(jnp.float32)

    kernel = functools.partial(window_attention_kernel, num_heads=num_heads,
                               wb=wb, N=N, C=C)

    return pl.pallas_call(
        kernel,
        out_shape=jax.ShapeDtypeStruct((B_, N, C), x.dtype),
        grid=(num_blocks,),
        in_specs=[
            pl.BlockSpec((wb, N, C), lambda i: (i, 0, 0)),            # window tokens
            # constant index maps -> parameters fetched once, not re-DMA'd per grid step
            pl.BlockSpec((C, 3 * C), lambda i: (0, 0)),               # wqkv (bf16, scale folded)
            pl.BlockSpec((1, 3 * C), lambda i: (0, 0)),               # bqkv (K third zeroed)
            pl.BlockSpec((num_heads, N, N), lambda i: (0, 0, 0)),     # relative position bias
            pl.BlockSpec((C, C), lambda i: (0, 0)),                   # wproj (bf16)
            pl.BlockSpec((1, C), lambda i: (0, 0)),                   # bproj
        ],
        out_specs=pl.BlockSpec((wb, N, C), lambda i: (i, 0, 0)),
        compiler_params=pltpu.CompilerParams(dimension_semantics=("parallel",)),
    )(x, wqkv, bqkv, relb, wproj, bproj)


# ----------------------------------------------------------------------------- reference

def window_attention_ref(x, params, num_heads):
    """Plain-JAX mirror of the PyTorch forward (mask=None), for a correctness check."""
    B_, N, C = x.shape
    hd = C // num_heads
    scale = hd ** (-0.5)
    qkv = x @ params["wqkv"] + params["bqkv"].reshape(1, 1, 3 * C)
    qkv = qkv.reshape(B_, N, 3, num_heads, hd).transpose(2, 0, 3, 1, 4)
    q, k, v = qkv[0] * scale, qkv[1], qkv[2]
    attn = jnp.einsum("bhnd,bhmd->bhnm", q, k) + params["relb"][None]
    attn = jax.nn.softmax(attn, axis=-1)
    out = jnp.einsum("bhnm,bhmd->bhnd", attn, v).transpose(0, 2, 1, 3).reshape(B_, N, C)
    return out @ params["wproj"] + params["bproj"].reshape(1, 1, C)


# -------------------------------------------------------------------------------- params

def init_params(key, dim, window_size, num_heads):
    ws_h, ws_w = window_size
    k1, k2, k3, k4, k5 = jax.random.split(key, 5)
    table = jax.random.normal(k1, ((2 * ws_h - 1) * (2 * ws_w - 1), num_heads),
                              jnp.float32) * 0.02
    return dict(
        wqkv=jax.random.normal(k2, (dim, 3 * dim), jnp.float32) * 0.02,
        bqkv=jax.random.normal(k4, (3 * dim,), jnp.float32) * 0.02,
        wproj=jax.random.normal(k3, (dim, dim), jnp.float32) * 0.02,
        bproj=jax.random.normal(k5, (dim,), jnp.float32) * 0.02,
        relb=make_rel_bias(table, window_size, num_heads),
    )


# ---------------------------------------------------------------------------------- main

if __name__ == "__main__":
    # Small shapes consistent with the module:
    #   window_size=(8,8) -> N=64 tokens/window; dim=128 (lane-dense), num_heads=4 (head_dim=32)
    #   B=2 images of 16x16 -> 4 windows each -> num_windows*B = 8
    WINDOW = (8, 8)
    DIM, NUM_HEADS = 128, 4
    B, NW = 2, 4
    B_ = B * NW
    N = WINDOW[0] * WINDOW[1]

    key = jax.random.PRNGKey(0)
    kp, kx = jax.random.split(key)
    params = init_params(kp, DIM, WINDOW, NUM_HEADS)
    x = jax.random.normal(kx, (B_, N, DIM), jnp.float32)   # (num_windows*B, N, C)

    ref = window_attention_ref(x, params, NUM_HEADS)

    # Default grid (1 step on single-TC v5e/v6e, 2 balanced "parallel" steps on v7x).
    out = jax.block_until_ready(window_attention(x, params, NUM_HEADS))
    assert out.shape == (B_, N, DIM)
    err = float(jnp.max(jnp.abs(out - ref)))
    assert err < 5e-2, f"default grid: max abs err vs reference {err}"

    # Multi-step grid path.
    out2 = jax.block_until_ready(window_attention(x, params, NUM_HEADS, num_blocks=2))
    err2 = float(jnp.max(jnp.abs(out2 - ref)))
    assert err2 < 5e-2, f"num_blocks=2: max abs err vs reference {err2}"

    # Odd window-count path (falls back to a single block, wb=3).
    x_odd = x[:3]
    out3 = jax.block_until_ready(window_attention(x_odd, params, NUM_HEADS))
    err3 = float(jnp.max(jnp.abs(out3 - window_attention_ref(x_odd, params, NUM_HEADS))))
    assert err3 < 5e-2, f"odd B_: max abs err vs reference {err3}"

    print("KERNEL_OK")
</pallas_src>

<mosaic_0001>
module attributes {stable_mosaic.version = 11 : i64} {
  func.func @window_attention_kernel(%arg0: i32, %arg1: memref<8x64x128xf32, #tpu.memory_space<vmem>>, %arg2: memref<128x384xbf16, #tpu.memory_space<vmem>>, %arg3: memref<1x384xf32, #tpu.memory_space<vmem>>, %arg4: memref<4x64x64xf32, #tpu.memory_space<vmem>>, %arg5: memref<128x128xbf16, #tpu.memory_space<vmem>>, %arg6: memref<1x128xf32, #tpu.memory_space<vmem>>, %arg7: memref<8x64x128xf32, #tpu.memory_space<vmem>>) attributes {dimension_semantics = [#tpu.dimension_semantics<parallel>], iteration_bounds = array<i64: 1>, scalar_prefetch = 0 : i64, scratch_operands = 0 : i64, tpu.core_type = #tpu.core_type<tc>, window_params = [{transform_indices = @transform_0, window_bounds = array<i64: 8, 64, 128>}, {pipeline_mode = #tpu.pipeline_mode<synchronous>, transform_indices = @transform_1, window_bounds = array<i64: 128, 384>}, {pipeline_mode = #tpu.pipeline_mode<synchronous>, transform_indices = @transform_2, window_bounds = array<i64: 1, 384>}, {pipeline_mode = #tpu.pipeline_mode<synchronous>, transform_indices = @transform_3, window_bounds = array<i64: 4, 64, 64>}, {pipeline_mode = #tpu.pipeline_mode<synchronous>, transform_indices = @transform_4, window_bounds = array<i64: 128, 128>}, {pipeline_mode = #tpu.pipeline_mode<synchronous>, transform_indices = @transform_5, window_bounds = array<i64: 1, 128>}, {transform_indices = @transform_6, window_bounds = array<i64: 8, 64, 128>}]} {
    %c0 = arith.constant 0 : index
    %c0_0 = arith.constant 0 : index
    %c0_1 = arith.constant 0 : index
    %0 = vector.load %arg1[%c0, %c0_0, %c0_1] : memref<8x64x128xf32, #tpu.memory_space<vmem>>, vector<8x64x128xf32>
    %1 = vector.shape_cast %0 : vector<8x64x128xf32> to vector<512x128xf32>
    %2 = arith.truncf %1 : vector<512x128xf32> to vector<512x128xbf16>
    %c0_2 = arith.constant 0 : index
    %c0_3 = arith.constant 0 : index
    %3 = vector.load %arg2[%c0_2, %c0_3] : memref<128x384xbf16, #tpu.memory_space<vmem>>, vector<128x384xbf16>
    %cst = arith.constant dense<0.000000e+00> : vector<512x384xf32>
    %4 = tpu.matmul %2, %3, %cst {dimension_numbers = #tpu.dot_dimension_numbers<[1], [0], [0], [1], [0, 0, 1, 1], [], []>} : vector<512x128xbf16>, vector<128x384xbf16>, vector<512x384xf32> -> vector<512x384xf32>
    %c0_4 = arith.constant 0 : index
    %c0_5 = arith.constant 0 : index
    %5 = vector.load %arg3[%c0_4, %c0_5] : memref<1x384xf32, #tpu.memory_space<vmem>>, vector<1x384xf32>
    %6 = vector.broadcast %5 : vector<1x384xf32> to vector<512x384xf32>
    %7 = arith.addf %4, %6 : vector<512x384xf32>
    %8 = arith.truncf %7 : vector<512x384xf32> to vector<512x384xbf16>
    %9 = vector.extract_strided_slice %8 {offsets = [0, 0], sizes = [512, 32], strides = [1, 1]} : vector<512x384xbf16> to vector<512x32xbf16>
    %10 = vector.shape_cast %9 : vector<512x32xbf16> to vector<8x64x32xbf16>
    %11 = vector.extract_strided_slice %8 {offsets = [0, 32], sizes = [512, 32], strides = [1, 1]} : vector<512x384xbf16> to vector<512x32xbf16>
    %12 = vector.shape_cast %11 : vector<512x32xbf16> to vector<8x64x32xbf16>
    %13 = vector.extract_strided_slice %8 {offsets = [0, 64], sizes = [512, 32], strides = [1, 1]} : vector<512x384xbf16> to vector<512x32xbf16>
    %14 = vector.shape_cast %13 : vector<512x32xbf16> to vector<8x64x32xbf16>
    %15 = vector.extract_strided_slice %8 {offsets = [0, 96], sizes = [512, 32], strides = [1, 1]} : vector<512x384xbf16> to vector<512x32xbf16>
    %16 = vector.shape_cast %15 : vector<512x32xbf16> to vector<8x64x32xbf16>
    %17 = tpu.concatenate %10, %12, %14, %16 in 0 : vector<8x64x32xbf16>, vector<8x64x32xbf16>, vector<8x64x32xbf16>, vector<8x64x32xbf16> -> vector<32x64x32xbf16>
    %18 = vector.extract_strided_slice %8 {offsets = [0, 128], sizes = [512, 32], strides = [1, 1]} : vector<512x384xbf16> to vector<512x32xbf16>
    %19 = vector.shape_cast %18 : vector<512x32xbf16> to vector<8x64x32xbf16>
    %20 = vector.extract_strided_slice %8 {offsets = [0, 160], sizes = [512, 32], strides = [1, 1]} : vector<512x384xbf16> to vector<512x32xbf16>
    %21 = vector.shape_cast %20 : vector<512x32xbf16> to vector<8x64x32xbf16>
    %22 = vector.extract_strided_slice %8 {offsets = [0, 192], sizes = [512, 32], strides = [1, 1]} : vector<512x384xbf16> to vector<512x32xbf16>
    %23 = vector.shape_cast %22 : vector<512x32xbf16> to vector<8x64x32xbf16>
    %24 = vector.extract_strided_slice %8 {offsets = [0, 224], sizes = [512, 32], strides = [1, 1]} : vector<512x384xbf16> to vector<512x32xbf16>
    %25 = vector.shape_cast %24 : vector<512x32xbf16> to vector<8x64x32xbf16>
    %26 = tpu.concatenate %19, %21, %23, %25 in 0 : vector<8x64x32xbf16>, vector<8x64x32xbf16>, vector<8x64x32xbf16>, vector<8x64x32xbf16> -> vector<32x64x32xbf16>
    %27 = vector.extract_strided_slice %8 {offsets = [0, 256], sizes = [512, 32], strides = [1, 1]} : vector<512x384xbf16> to vector<512x32xbf16>
    %28 = vector.shape_cast %27 : vector<512x32xbf16> to vector<8x64x32xbf16>
    %29 = vector.extract_strided_slice %8 {offsets = [0, 288], sizes = [512, 32], strides = [1, 1]} : vector<512x384xbf16> to vector<512x32xbf16>
    %30 = vector.shape_cast %29 : vector<512x32xbf16> to vector<8x64x32xbf16>
    %31 = vector.extract_strided_slice %8 {offsets = [0, 320], sizes = [512, 32], strides = [1, 1]} : vector<512x384xbf16> to vector<512x32xbf16>
    %32 = vector.shape_cast %31 : vector<512x32xbf16> to vector<8x64x32xbf16>
    %33 = vector.extract_strided_slice %8 {offsets = [0, 352], sizes = [512, 32], strides = [1, 1]} : vector<512x384xbf16> to vector<512x32xbf16>
    %34 = vector.shape_cast %33 : vector<512x32xbf16> to vector<8x64x32xbf16>
    %35 = tpu.concatenate %28, %30, %32, %34 in 0 : vector<8x64x32xbf16>, vector<8x64x32xbf16>, vector<8x64x32xbf16>, vector<8x64x32xbf16> -> vector<32x64x32xbf16>
    "tpu.trace_start"() <{level = 10 : i32, message = "gnd,gmd->gnm"}> : () -> ()
    %cst_6 = arith.constant dense<0.000000e+00> : vector<32x64x64xf32>
    %36 = tpu.matmul %17, %26, %cst_6 {dimension_numbers = #tpu.dot_dimension_numbers<[2], [2], [1], [1], [0, 0, 0, 1, 1, 1], [0], [0]>} : vector<32x64x32xbf16>, vector<32x64x32xbf16>, vector<32x64x64xf32> -> vector<32x64x64xf32>
    "tpu.trace_stop"() : () -> ()
    %37 = vector.shape_cast %36 : vector<32x64x64xf32> to vector<4x8x64x64xf32>
    %c0_7 = arith.constant 0 : index
    %c0_8 = arith.constant 0 : index
    %c0_9 = arith.constant 0 : index
    %38 = vector.load %arg4[%c0_7, %c0_8, %c0_9] : memref<4x64x64xf32, #tpu.memory_space<vmem>>, vector<4x64x64xf32>
    %39 = vector.shape_cast %38 : vector<4x64x64xf32> to vector<4x1x64x64xf32>
    %40 = vector.broadcast %39 : vector<4x1x64x64xf32> to vector<4x8x64x64xf32>
    %41 = arith.addf %37, %40 : vector<4x8x64x64xf32>
    %42 = vector.shape_cast %41 : vector<4x8x64x64xf32> to vector<32x64x64xf32>
    %cst_10 = arith.constant dense<0xFF800000> : vector<32x64xf32>
    %43 = vector.multi_reduction <maximumf>, %42, %cst_10 [2] : vector<32x64x64xf32> to vector<32x64xf32>
    %44 = vector.shape_cast %43 : vector<32x64xf32> to vector<32x64x1xf32>
    %45 = vector.broadcast %44 : vector<32x64x1xf32> to vector<32x64x64xf32>
    %46 = arith.subf %42, %45 : vector<32x64x64xf32>
    %47 = math.exp %46 : vector<32x64x64xf32>
    %cst_11 = arith.constant dense<0.000000e+00> : vector<32x64xf32>
    %48 = vector.multi_reduction <add>, %47, %cst_11 [2] : vector<32x64x64xf32> to vector<32x64xf32>
    %49 = vector.shape_cast %48 : vector<32x64xf32> to vector<32x64x1xf32>
    %50 = tpu.reciprocal %49 {approx = true} : vector<32x64x1xf32> -> vector<32x64x1xf32>
    %51 = vector.broadcast %50 : vector<32x64x1xf32> to vector<32x64x64xf32>
    %52 = arith.mulf %47, %51 : vector<32x64x64xf32>
    %53 = arith.truncf %52 : vector<32x64x64xf32> to vector<32x64x64xbf16>
    "tpu.trace_start"() <{level = 10 : i32, message = "gnm,gmd->gnd"}> : () -> ()
    %cst_12 = arith.constant dense<0.000000e+00> : vector<32x64x32xf32>
    %54 = tpu.matmul %53, %35, %cst_12 {dimension_numbers = #tpu.dot_dimension_numbers<[2], [1], [1], [2], [0, 0, 0, 1, 1, 2], [0], [0]>} : vector<32x64x64xbf16>, vector<32x64x32xbf16>, vector<32x64x32xf32> -> vector<32x64x32xf32>
    "tpu.trace_stop"() : () -> ()
    %55 = arith.truncf %54 : vector<32x64x32xf32> to vector<32x64x32xbf16>
    %56 = vector.shape_cast %55 : vector<32x64x32xbf16> to vector<4x8x64x32xbf16>
    %57 = vector.extract_strided_slice %56 {offsets = [0, 0, 0, 0], sizes = [1, 8, 64, 32], strides = [1, 1, 1, 1]} : vector<4x8x64x32xbf16> to vector<1x8x64x32xbf16>
    %58 = vector.shape_cast %57 : vector<1x8x64x32xbf16> to vector<8x64x32xbf16>
    %59 = vector.extract_strided_slice %56 {offsets = [1, 0, 0, 0], sizes = [1, 8, 64, 32], strides = [1, 1, 1, 1]} : vector<4x8x64x32xbf16> to vector<1x8x64x32xbf16>
    %60 = vector.shape_cast %59 : vector<1x8x64x32xbf16> to vector<8x64x32xbf16>
    %61 = vector.extract_strided_slice %56 {offsets = [2, 0, 0, 0], sizes = [1, 8, 64, 32], strides = [1, 1, 1, 1]} : vector<4x8x64x32xbf16> to vector<1x8x64x32xbf16>
    %62 = vector.shape_cast %61 : vector<1x8x64x32xbf16> to vector<8x64x32xbf16>
    %63 = vector.extract_strided_slice %56 {offsets = [3, 0, 0, 0], sizes = [1, 8, 64, 32], strides = [1, 1, 1, 1]} : vector<4x8x64x32xbf16> to vector<1x8x64x32xbf16>
    %64 = vector.shape_cast %63 : vector<1x8x64x32xbf16> to vector<8x64x32xbf16>
    %65 = tpu.concatenate %58, %60, %62, %64 in 2 : vector<8x64x32xbf16>, vector<8x64x32xbf16>, vector<8x64x32xbf16>, vector<8x64x32xbf16> -> vector<8x64x128xbf16>
    %66 = vector.shape_cast %65 : vector<8x64x128xbf16> to vector<512x128xbf16>
    %c0_13 = arith.constant 0 : index
    %c0_14 = arith.constant 0 : index
    %67 = vector.load %arg5[%c0_13, %c0_14] : memref<128x128xbf16, #tpu.memory_space<vmem>>, vector<128x128xbf16>
    %cst_15 = arith.constant dense<0.000000e+00> : vector<512x128xf32>
    %68 = tpu.matmul %66, %67, %cst_15 {dimension_numbers = #tpu.dot_dimension_numbers<[1], [0], [0], [1], [0, 0, 1, 1], [], []>} : vector<512x128xbf16>, vector<128x128xbf16>, vector<512x128xf32> -> vector<512x128xf32>
    %c0_16 = arith.constant 0 : index
    %c0_17 = arith.constant 0 : index
    %69 = vector.load %arg6[%c0_16, %c0_17] : memref<1x128xf32, #tpu.memory_space<vmem>>, vector<1x128xf32>
    %70 = vector.broadcast %69 : vector<1x128xf32> to vector<512x128xf32>
    %71 = arith.addf %68, %70 : vector<512x128xf32>
    %72 = vector.shape_cast %71 : vector<512x128xf32> to vector<8x64x128xf32>
    %c0_18 = arith.constant 0 : index
    %c0_19 = arith.constant 0 : index
    %c0_20 = arith.constant 0 : index
    %73 = vector.load %arg7[%c0_18, %c0_19, %c0_20] : memref<8x64x128xf32, #tpu.memory_space<vmem>>, vector<8x64x128xf32>
    tpu.vector_store %arg7[%c0_18, %c0_19, %c0_20], %72 {strides = array<i32>} : memref<8x64x128xf32, #tpu.memory_space<vmem>>, vector<8x64x128xf32>,
    return
  }
  func.func @transform_0(%arg0: i32) -> (i32, i32, i32) {
    %c0_i32 = arith.constant 0 : i32
    %c0_i32_0 = arith.constant 0 : i32
    %c0_i32_1 = arith.constant 0 : i32
    return %arg0, %c0_i32, %c0_i32_0 : i32, i32, i32
  }
  func.func @transform_1(%arg0: i32) -> (i32, i32) {
    %c0_i32 = arith.constant 0 : i32
    %c0_i32_0 = arith.constant 0 : i32
    %c0_i32_1 = arith.constant 0 : i32
    return %c0_i32, %c0_i32_0 : i32, i32
  }
  func.func @transform_2(%arg0: i32) -> (i32, i32) {
    %c0_i32 = arith.constant 0 : i32
    %c0_i32_0 = arith.constant 0 : i32
    %c0_i32_1 = arith.constant 0 : i32
    return %c0_i32, %c0_i32_0 : i32, i32
  }
  func.func @transform_3(%arg0: i32) -> (i32, i32, i32) {
    %c0_i32 = arith.constant 0 : i32
    %c0_i32_0 = arith.constant 0 : i32
    %c0_i32_1 = arith.constant 0 : i32
    %c0_i32_2 = arith.constant 0 : i32
    return %c0_i32, %c0_i32_0, %c0_i32_1 : i32, i32, i32
  }
  func.func @transform_4(%arg0: i32) -> (i32, i32) {
    %c0_i32 = arith.constant 0 : i32
    %c0_i32_0 = arith.constant 0 : i32
    %c0_i32_1 = arith.constant 0 : i32
    return %c0_i32, %c0_i32_0 : i32, i32
  }
  func.func @transform_5(%arg0: i32) -> (i32, i32) {
    %c0_i32 = arith.constant 0 : i32
    %c0_i32_0 = arith.constant 0 : i32
    %c0_i32_1 = arith.constant 0 : i32
    return %c0_i32, %c0_i32_0 : i32, i32
  }
  func.func @transform_6(%arg0: i32) -> (i32, i32, i32) {
    %c0_i32 = arith.constant 0 : i32
    %c0_i32_0 = arith.constant 0 : i32
    %c0_i32_1 = arith.constant 0 : i32
    return %arg0, %c0_i32, %c0_i32_0 : i32, i32, i32
  }
}

</mosaic_0001>

<llo_original>
// kernel: tpu_custom_call.1
$region0: #{tpu_custom_call.1}
  #allocation0 [shape = 'u32[]', space=smem, size = 0x4, offset = 0x4, fixed_abs, tag = 'smem constant byte address 0x4 - core index']
  #allocation1 [shape = 'u32[72,128]{1,0:T(1,128)}', space=vmem, size = 0x9000, scoped, tag = 'internal scratch']
  %s0 = inlined_call_operand.hbm [shape: f32[8,64,128], index: 0, kind: input, shape index: {}]
  %s1 = inlined_call_operand.hbm [shape: bf16[128,384], index: 1, kind: input, shape index: {}]
  %s2 = inlined_call_operand.hbm [shape: f32[1,384], index: 2, kind: input, shape index: {}]
  %s3 = inlined_call_operand.hbm [shape: f32[4,64,64], index: 3, kind: input, shape index: {}]
  %s4 = inlined_call_operand.hbm [shape: bf16[128,128], index: 4, kind: input, shape index: {}]
  %s5 = inlined_call_operand.vmem [shape: f32[1,128], index: 5, kind: input, shape index: {}]
  %s6 = inlined_call_operand.hbm [shape: f32[8,64,128], index: 6, kind: output, shape index: {}]
  %s7 = sld [smem:[#allocation0]]
  $region54: #{tpu_custom_call.1} parent=0
    _
  %s9 = ssub.s32 1, %s7
  %s10 = scalar_select 0, %s9, %s7
  $region1: #{tpu_custom_call.1} parent=0
    #allocation2 [shape = 'u8[262144]{0}', space=vmem, size = 0x40000, scoped, tag = 'input window, operand 0, single buffered']
    #allocation3 [shape = 's32[1]{0}', space=sflag, size = 0x4, scoped, tag = 'scoped memory for tpu_custom_call.1']
    #allocation4 [shape = 's32[1]{0}', space=sflag, size = 0x4, scoped, tag = 'scoped memory for tpu_custom_call.1']
    #allocation5 [shape = 'u8[98304]{0}', space=vmem, size = 0x18000, scoped, tag = 'input window, operand 1, single buffered']
    #allocation6 [shape = 's32[1]{0}', space=sflag, size = 0x4, scoped, tag = 'scoped memory for tpu_custom_call.1']
    #allocation7 [shape = 'u8[1536]{0}', space=vmem, size = 0x800, scoped, tag = 'input window, operand 2, single buffered']
    #allocation8 [shape = 'u8[131072]{0}', space=vmem, size = 0x20000, scoped, tag = 'input window, operand 3, single buffered']
    #allocation9 [shape = 's32[1]{0}', space=sflag, size = 0x4, scoped, tag = 'scoped memory for tpu_custom_call.1']
    #allocation10 [shape = 'u8[32768]{0}', space=vmem, size = 0x8000, scoped, tag = 'input window, operand 4, single buffered']
    #allocation11 [shape = 'u8[262144]{0}', space=vmem, size = 0x40000, scoped, tag = 'output window, operand 0, single buffered']
    %11 = vsyncpa [#allocation3], 0
    %12 = vsyncpa [#allocation6], 0
    %13 = vsyncpa [#allocation9], 0
    %14 = vsyncpa [#allocation4], 0
    // Predicated region
    $region2: #{tpu_custom_call.1} parent=1 // pred_check
      _
    $region3: #{tpu_custom_call.1} parent=1 // pred_check_branch
      %16 = sbr.rel (0) target = $region5
    $region4: #{tpu_custom_call.1} parent=1 // pred_region
      %18 = vsyncadd [#allocation3], 0
      %s19 = sshll.u32 %s0, 4
      %s20 = int_to_ptr.hbm [resolvable:$true] %s19
      %s21 = sshll.u32 [#allocation2], 4
      %s22 = int_to_ptr.vmem [resolvable:$true] %s21
      %27 = dma.hbm_to_vmem [thread:$0]  %s20, 8192, %s22, [#allocation3], 128, 128, 8
    $region5: #{tpu_custom_call.1} parent=1 // pred_fallthru
      _
    // Predicated region
    $region6: #{tpu_custom_call.1} parent=1 // pred_check
      _
    $region7: #{tpu_custom_call.1} parent=1 // pred_check_branch
      %29 = sbr.rel (0) target = $region9
    $region8: #{tpu_custom_call.1} parent=1 // pred_region
      %31 = vsyncadd [#allocation6], 0
      %s32 = sshll.u32 %s1, 4
      %s33 = int_to_ptr.hbm [resolvable:$true] %s32
      %s34 = sshll.u32 [#allocation5], 4
      %s35 = int_to_ptr.vmem [resolvable:$true] %s34
      %40 = dma.hbm_to_vmem [thread:$0]  %s33, 3072, %s35, [#allocation6], 192, 192, 12
    $region9: #{tpu_custom_call.1} parent=1 // pred_fallthru
      _
    // Predicated region
    $region10: #{tpu_custom_call.1} parent=1 // pred_check
      _
    $region11: #{tpu_custom_call.1} parent=1 // pred_check_branch
      %42 = sbr.rel (0) target = $region13
    $region12: #{tpu_custom_call.1} parent=1 // pred_region
      %44 = vsyncadd [#allocation6], 0
      %s46 = sshll.u32 %s2, 4
      %s47 = int_to_ptr.hbm [resolvable:$true] %s46
      %s48 = sshll.u32 [#allocation7], 4
      %s49 = int_to_ptr.vmem [resolvable:$true] %s48
      %51 = dma.hbm_to_vmem [thread:$0]  %s47, 48, %s49, [#allocation6]
    $region13: #{tpu_custom_call.1} parent=1 // pred_fallthru
      _
    // Predicated region
    $region14: #{tpu_custom_call.1} parent=1 // pred_check
      _
    $region15: #{tpu_custom_call.1} parent=1 // pred_check_branch
      %53 = sbr.rel (0) target = $region17
    $region16: #{tpu_custom_call.1} parent=1 // pred_region
      %55 = vsyncadd [#allocation9], 0
      %s56 = sshll.u32 %s3, 4
      %s57 = int_to_ptr.hbm [resolvable:$true] %s56
      %s58 = sshll.u32 [#allocation8], 4
      %s59 = int_to_ptr.vmem [resolvable:$true] %s58
      %64 = dma.hbm_to_vmem [thread:$0]  %s57, 4096, %s59, [#allocation9], 128, 128, 8
    $region17: #{tpu_custom_call.1} parent=1 // pred_fallthru
      _
    // Predicated region
    $region18: #{tpu_custom_call.1} parent=1 // pred_check
      _
    $region19: #{tpu_custom_call.1} parent=1 // pred_check_branch
      %66 = sbr.rel (0) target = $region21
    $region20: #{tpu_custom_call.1} parent=1 // pred_region
      %68 = vsyncadd [#allocation9], 0
      %s69 = sshll.u32 %s4, 4
      %s70 = int_to_ptr.hbm [resolvable:$true] %s69
      %s71 = sshll.u32 [#allocation10], 4
      %s72 = int_to_ptr.vmem [resolvable:$true] %s71
      %77 = dma.hbm_to_vmem [thread:$0]  %s70, 1024, %s72, [#allocation9], 64, 64, 4
    $region21: #{tpu_custom_call.1} parent=1 // pred_fallthru
      _
    // Predicated region
    $region22: #{tpu_custom_call.1} parent=1 // pred_check
      _
    $region23: #{tpu_custom_call.1} parent=1 // pred_check_branch
      %79 = sbr.rel (0) target = $region25
    $region24: #{tpu_custom_call.1} parent=1 // pred_region
      _
    $region25: #{tpu_custom_call.1} parent=1 // pred_fallthru
      _
    // Predicated region
    $region26: #{tpu_custom_call.1} parent=1 // pred_check
      _
    $region27: #{tpu_custom_call.1} parent=1 // pred_check_branch
      %81 = sbr.rel (0) target = $region29
    $region28: #{tpu_custom_call.1} parent=1 // pred_region
      %83 = dma.done [#allocation3], 8192
    $region29: #{tpu_custom_call.1} parent=1 // pred_fallthru
      _
    // Predicated region
    $region30: #{tpu_custom_call.1} parent=1 // pred_check
      _
    $region31: #{tpu_custom_call.1} parent=1 // pred_check_branch
      %85 = sbr.rel (0) target = $region33
    $region32: #{tpu_custom_call.1} parent=1 // pred_region
      %87 = dma.done [#allocation6], 3072
    $region33: #{tpu_custom_call.1} parent=1 // pred_fallthru
      _
    // Predicated region
    $region34: #{tpu_custom_call.1} parent=1 // pred_check
      _
    $region35: #{tpu_custom_call.1} parent=1 // pred_check_branch
      %89 = sbr.rel (0) target = $region37
    $region36: #{tpu_custom_call.1} parent=1 // pred_region
      %91 = dma.done [#allocation6], 48
    $region37: #{tpu_custom_call.1} parent=1 // pred_fallthru
      _
    // Predicated region
    $region38: #{tpu_custom_call.1} parent=1 // pred_check
      _
    $region39: #{tpu_custom_call.1} parent=1 // pred_check_branch
      %93 = sbr.rel (0) target = $region41
    $region40: #{tpu_custom_call.1} parent=1 // pred_region
      %95 = dma.done [#allocation9], 4096
    $region41: #{tpu_custom_call.1} parent=1 // pred_fallthru
      _
    // Predicated region
    $region42: #{tpu_custom_call.1} parent=1 // pred_check
      _
    $region43: #{tpu_custom_call.1} parent=1 // pred_check_branch
      %97 = sbr.rel (0) target = $region45
    $region44: #{tpu_custom_call.1} parent=1 // pred_region
      %99 = dma.done [#allocation9], 1024
    $region45: #{tpu_custom_call.1} parent=1 // pred_fallthru
      _
    %v101 = vld [vmem:[#allocation2] sm:$0xff]
    %v102 = vld [vmem:[#allocation2 + $0x8] sm:$0xff]
    %v103 = vld [vmem:[#allocation2 + $0x10] sm:$0xff]
    %v104 = vld [vmem:[#allocation2 + $0x18] sm:$0xff]
    %v105 = vld [vmem:[#allocation2 + $0x20] sm:$0xff]
    %v106 = vld [vmem:[#allocation2 + $0x28] sm:$0xff]
    %v107 = vld [vmem:[#allocation2 + $0x30] sm:$0xff]
    %v108 = vld [vmem:[#allocation2 + $0x38] sm:$0xff]
    %v109 = vld [vmem:[#allocation2 + $0x40] sm:$0xff]
    %v110 = vld [vmem:[#allocation2 + $0x48] sm:$0xff]
    %v111 = vld [vmem:[#allocation2 + $0x50] sm:$0xff]
    %v112 = vld [vmem:[#allocation2 + $0x58] sm:$0xff]
    %v113 = vld [vmem:[#allocation2 + $0x60] sm:$0xff]
    %v114 = vld [vmem:[#allocation2 + $0x68] sm:$0xff]
    %v115 = vld [vmem:[#allocation2 + $0x70] sm:$0xff]
    %v116 = vld [vmem:[#allocation2 + $0x78] sm:$0xff]
    %v117 = vld [vmem:[#allocation2 + $0x80] sm:$0xff]
    %v118 = vld [vmem:[#allocation2 + $0x88] sm:$0xff]
    %v119 = vld [vmem:[#allocation2 + $0x90] sm:$0xff]
    %v120 = vld [vmem:[#allocation2 + $0x98] sm:$0xff]
    %v121 = vld [vmem:[#allocation2 + $0xa0] sm:$0xff]
    %v122 = vld [vmem:[#allocation2 + $0xa8] sm:$0xff]
    %v123 = vld [vmem:[#allocation2 + $0xb0] sm:$0xff]
    %v124 = vld [vmem:[#allocation2 + $0xb8] sm:$0xff]
    %v125 = vld [vmem:[#allocation2 + $0xc0] sm:$0xff]
    %v126 = vld [vmem:[#allocation2 + $0xc8] sm:$0xff]
    %v127 = vld [vmem:[#allocation2 + $0xd0] sm:$0xff]
    %v128 = vld [vmem:[#allocation2 + $0xd8] sm:$0xff]
    %v129 = vld [vmem:[#allocation2 + $0xe0] sm:$0xff]
    %v130 = vld [vmem:[#allocation2 + $0xe8] sm:$0xff]
    %v131 = vld [vmem:[#allocation2 + $0xf0] sm:$0xff]
    %v132 = vld [vmem:[#allocation2 + $0xf8] sm:$0xff]
    %v133 = vld [vmem:[#allocation2 + $0x100] sm:$0xff]
    %v134 = vld [vmem:[#allocation2 + $0x108] sm:$0xff]
    %v135 = vld [vmem:[#allocation2 + $0x110] sm:$0xff]
    %v136 = vld [vmem:[#allocation2 + $0x118] sm:$0xff]
    %v137 = vld [vmem:[#allocation2 + $0x120] sm:$0xff]
    %v138 = vld [vmem:[#allocation2 + $0x128] sm:$0xff]
    %v139 = vld [vmem:[#allocation2 + $0x130] sm:$0xff]
    %v140 = vld [vmem:[#allocation2 + $0x138] sm:$0xff]
    %v141 = vld [vmem:[#allocation2 + $0x140] sm:$0xff]
    %v142 = vld [vmem:[#allocation2 + $0x148] sm:$0xff]
    %v143 = vld [vmem:[#allocation2 + $0x150] sm:$0xff]
    %v144 = vld [vmem:[#allocation2 + $0x158] sm:$0xff]
    %v145 = vld [vmem:[#allocation2 + $0x160] sm:$0xff]
    %v146 = vld [vmem:[#allocation2 + $0x168] sm:$0xff]
    %v147 = vld [vmem:[#allocation2 + $0x170] sm:$0xff]
    %v148 = vld [vmem:[#allocation2 + $0x178] sm:$0xff]
    %v149 = vld [vmem:[#allocation2 + $0x180] sm:$0xff]
    %v150 = vld [vmem:[#allocation2 + $0x188] sm:$0xff]
    %v151 = vld [vmem:[#allocation2 + $0x190] sm:$0xff]
    %v152 = vld [vmem:[#allocation2 + $0x198] sm:$0xff]
    %v153 = vld [vmem:[#allocation2 + $0x1a0] sm:$0xff]
    %v154 = vld [vmem:[#allocation2 + $0x1a8] sm:$0xff]
    %v155 = vld [vmem:[#allocation2 + $0x1b0] sm:$0xff]
    %v156 = vld [vmem:[#allocation2 + $0x1b8] sm:$0xff]
    %v157 = vld [vmem:[#allocation2 + $0x1c0] sm:$0xff]
    %v158 = vld [vmem:[#allocation2 + $0x1c8] sm:$0xff]
    %v159 = vld [vmem:[#allocation2 + $0x1d0] sm:$0xff]
    %v160 = vld [vmem:[#allocation2 + $0x1d8] sm:$0xff]
    %v161 = vld [vmem:[#allocation2 + $0x1e0] sm:$0xff]
    %v162 = vld [vmem:[#allocation2 + $0x1e8] sm:$0xff]
    %v163 = vld [vmem:[#allocation2 + $0x1f0] sm:$0xff]
    %v164 = vld [vmem:[#allocation2 + $0x1f8] sm:$0xff]
    %v165 = vpack.c.bf16 %v102, %v101
    %v166 = vpack.c.bf16 %v104, %v103
    %v167 = vpack.c.bf16 %v106, %v105
    %v168 = vpack.c.bf16 %v108, %v107
    %v169 = vpack.c.bf16 %v110, %v109
    %v170 = vpack.c.bf16 %v112, %v111
    %v171 = vpack.c.bf16 %v114, %v113
    %v172 = vpack.c.bf16 %v116, %v115
    %v173 = vpack.c.bf16 %v118, %v117
    %v174 = vpack.c.bf16 %v120, %v119
    %v175 = vpack.c.bf16 %v122, %v121
    %v176 = vpack.c.bf16 %v124, %v123
    %v177 = vpack.c.bf16 %v126, %v125
    %v178 = vpack.c.bf16 %v128, %v127
    %v179 = vpack.c.bf16 %v130, %v129
    %v180 = vpack.c.bf16 %v132, %v131
    %v181 = vpack.c.bf16 %v134, %v133
    %v182 = vpack.c.bf16 %v136, %v135
    %v183 = vpack.c.bf16 %v138, %v137
    %v184 = vpack.c.bf16 %v140, %v139
    %v185 = vpack.c.bf16 %v142, %v141
    %v186 = vpack.c.bf16 %v144, %v143
    %v187 = vpack.c.bf16 %v146, %v145
    %v188 = vpack.c.bf16 %v148, %v147
    %v189 = vpack.c.bf16 %v150, %v149
    %v190 = vpack.c.bf16 %v152, %v151
    %v191 = vpack.c.bf16 %v154, %v153
    %v192 = vpack.c.bf16 %v156, %v155
    %v193 = vpack.c.bf16 %v158, %v157
    %v194 = vpack.c.bf16 %v160, %v159
    %v195 = vpack.c.bf16 %v162, %v161
    %v196 = vpack.c.bf16 %v164, %v163
    %v197 = vld [vmem:[#allocation5] sm:$0xff]
    %v198 = vld [vmem:[#allocation5 + $0x8] sm:$0xf]
    %v199 = vld [vmem:[#allocation5 + $0xc] sm:$0xff]
    %v200 = vld [vmem:[#allocation5 + $0x14] sm:$0xf]
    %v201 = vld [vmem:[#allocation5 + $0x18] sm:$0xff]
    %v202 = vld [vmem:[#allocation5 + $0x20] sm:$0xf]
    %v203 = vld [vmem:[#allocation5 + $0x24] sm:$0xff]
    %v204 = vld [vmem:[#allocation5 + $0x2c] sm:$0xf]
    %v205 = vld [vmem:[#allocation5 + $0x30] sm:$0xff]
    %v206 = vld [vmem:[#allocation5 + $0x38] sm:$0xf]
    %v207 = vld [vmem:[#allocation5 + $0x3c] sm:$0xff]
    %v208 = vld [vmem:[#allocation5 + $0x44] sm:$0xf]
    %v209 = vld [vmem:[#allocation5 + $0x48] sm:$0xff]
    %v210 = vld [vmem:[#allocation5 + $0x50] sm:$0xf]
    %v211 = vld [vmem:[#allocation5 + $0x54] sm:$0xff]
    %v212 = vld [vmem:[#allocation5 + $0x5c] sm:$0xf]
    %v213 = vld [vmem:[#allocation5 + $0x60] sm:$0xff]
    %v214 = vld [vmem:[#allocation5 + $0x68] sm:$0xf]
    %v215 = vld [vmem:[#allocation5 + $0x6c] sm:$0xff]
    %v216 = vld [vmem:[#allocation5 + $0x74] sm:$0xf]
    %v217 = vld [vmem:[#allocation5 + $0x78] sm:$0xff]
    %v218 = vld [vmem:[#allocation5 + $0x80] sm:$0xf]
    %v219 = vld [vmem:[#allocation5 + $0x84] sm:$0xff]
    %v220 = vld [vmem:[#allocation5 + $0x8c] sm:$0xf]
    %v221 = vld [vmem:[#allocation5 + $0x90] sm:$0xff]
    %v222 = vld [vmem:[#allocation5 + $0x98] sm:$0xf]
    %v223 = vld [vmem:[#allocation5 + $0x9c] sm:$0xff]
    %v224 = vld [vmem:[#allocation5 + $0xa4] sm:$0xf]
    %v225 = vld [vmem:[#allocation5 + $0xa8] sm:$0xff]
    %v226 = vld [vmem:[#allocation5 + $0xb0] sm:$0xf]
    %v227 = vld [vmem:[#allocation5 + $0xb4] sm:$0xff]
    %v228 = vld [vmem:[#allocation5 + $0xbc] sm:$0xf]
    %v229 = vld [vmem:[#allocation7] sm:$0x7]
    %v231 = vperm.slane %v229, 0
    %v232 = vperm.slane %v229, 1
    %v233 = vperm.slane %v229, 2
    %v269 = vunpack.c.l.b16 %v197
    %v270 = vunpack.c.h.b16 %v197
    %v271 = vunpack.c.l.b16 %v198
    %v272 = vunpack.c.l.b16 %v199
    %v273 = vunpack.c.h.b16 %v199
    %v274 = vunpack.c.l.b16 %v200
    %v275 = vunpack.c.l.b16 %v201
    %v276 = vunpack.c.h.b16 %v201
    %v277 = vunpack.c.l.b16 %v202
    %v278 = vunpack.c.l.b16 %v203
    %v279 = vunpack.c.h.b16 %v203
    %v280 = vunpack.c.l.b16 %v204
    %v281 = vunpack.c.l.b16 %v205
    %v282 = vunpack.c.h.b16 %v205
    %v283 = vunpack.c.l.b16 %v206
    %v284 = vunpack.c.l.b16 %v207
    %v285 = vunpack.c.h.b16 %v207
    %v286 = vunpack.c.l.b16 %v208
    %v287 = vunpack.c.l.b16 %v209
    %v288 = vunpack.c.h.b16 %v209
    %v289 = vunpack.c.l.b16 %v210
    %v290 = vunpack.c.l.b16 %v211
    %v291 = vunpack.c.h.b16 %v211
    %v292 = vunpack.c.l.b16 %v212
    %v293 = vunpack.c.l.b16 %v213
    %v294 = vunpack.c.h.b16 %v213
    %v295 = vunpack.c.l.b16 %v214
    %v296 = vunpack.c.l.b16 %v215
    %v297 = vunpack.c.h.b16 %v215
    %v298 = vunpack.c.l.b16 %v216
    %v299 = vunpack.c.l.b16 %v217
    %v300 = vunpack.c.h.b16 %v217
    %v301 = vunpack.c.l.b16 %v218
    %v302 = vunpack.c.l.b16 %v219
    %v303 = vunpack.c.h.b16 %v219
    %v304 = vunpack.c.l.b16 %v220
    %v305 = vunpack.c.l.b16 %v221
    %v306 = vunpack.c.h.b16 %v221
    %v307 = vunpack.c.l.b16 %v222
    %v308 = vunpack.c.l.b16 %v223
    %v309 = vunpack.c.h.b16 %v223
    %v310 = vunpack.c.l.b16 %v224
    %v311 = vunpack.c.l.b16 %v225
    %v312 = vunpack.c.h.b16 %v225
    %v313 = vunpack.c.l.b16 %v226
    %v314 = vunpack.c.l.b16 %v227
    %v315 = vunpack.c.h.b16 %v227
    %v316 = vunpack.c.l.b16 %v228
    %v317 = vpack.c.b16 %v272, %v269
    %v318 = vpack.c.b16 %v273, %v270
    %v319 = vpack.c.b16 %v274, %v271
    %v320 = vpack.c.b16 %v278, %v275
    %v321 = vpack.c.b16 %v279, %v276
    %v322 = vpack.c.b16 %v280, %v277
    %v323 = vpack.c.b16 %v284, %v281
    %v324 = vpack.c.b16 %v285, %v282
    %v325 = vpack.c.b16 %v286, %v283
    %v326 = vpack.c.b16 %v290, %v287
    %v327 = vpack.c.b16 %v291, %v288
    %v328 = vpack.c.b16 %v292, %v289
    %v329 = vpack.c.b16 %v296, %v293
    %v330 = vpack.c.b16 %v297, %v294
    %v331 = vpack.c.b16 %v298, %v295
    %v332 = vpack.c.b16 %v302, %v299
    %v333 = vpack.c.b16 %v303, %v300
    %v334 = vpack.c.b16 %v304, %v301
    %v335 = vpack.c.b16 %v308, %v305
    %v336 = vpack.c.b16 %v309, %v306
    %v337 = vpack.c.b16 %v310, %v307
    %v338 = vpack.c.b16 %v314, %v311
    %v339 = vpack.c.b16 %v315, %v312
    %v340 = vpack.c.b16 %v316, %v313
    %365 = vmatpush.bf16.msra.mxu0 %v338
    %366 = vmatpush.bf16.msra.mxu0 %v335
    %367 = vmatpush.bf16.msra.mxu0 %v332
    %368 = vmatpush.bf16.msra.mxu0 %v329
    %369 = vmatpush.bf16.msra.mxu0 %v326
    %370 = vmatpush.bf16.msra.mxu0 %v323
    %371 = vmatpush.bf16.msra.mxu0 %v320
    %372 = vmatpush.bf16.msra.mxu0 %v317
    %373 = vmatmul.bf16.gmra.mxu0 %v165
    %v374 = vpop.f32.mrf.mxu0
    %v375 = vadd.f32 %v231, %v374
    %v376 = vpop.f32.mrf.mxu0
    %v377 = vadd.f32 %v231, %v376
    %378 = vmatmul.bf16.gmra.mxu0 %v166
    %v379 = vpop.f32.mrf.mxu0
    %v380 = vadd.f32 %v231, %v379
    %v381 = vpop.f32.mrf.mxu0
    %v382 = vadd.f32 %v231, %v381
    %383 = vmatmul.bf16.gmra.mxu0 %v167
    %v384 = vpop.f32.mrf.mxu0
    %v385 = vadd.f32 %v231, %v384
    %v386 = vpop.f32.mrf.mxu0
    %v387 = vadd.f32 %v231, %v386
    %388 = vmatmul.bf16.gmra.mxu0 %v168
    %v389 = vpop.f32.mrf.mxu0
    %v390 = vadd.f32 %v231, %v389
    %v391 = vpop.f32.mrf.mxu0
    %v392 = vadd.f32 %v231, %v391
    %393 = vmatmul.bf16.gmra.mxu0 %v169
    %v394 = vpop.f32.mrf.mxu0
    %v395 = vadd.f32 %v231, %v394
    %v396 = vpop.f32.mrf.mxu0
    %v397 = vadd.f32 %v231, %v396
    %398 = vmatmul.bf16.gmra.mxu0 %v170
    %v399 = vpop.f32.mrf.mxu0
    %v400 = vadd.f32 %v231, %v399
    %v401 = vpop.f32.mrf.mxu0
    %v402 = vadd.f32 %v231, %v401
    %403 = vmatmul.bf16.gmra.mxu0 %v171
    %v404 = vpop.f32.mrf.mxu0
    %v405 = vadd.f32 %v231, %v404
    %v406 = vpop.f32.mrf.mxu0
    %v407 = vadd.f32 %v231, %v406
    %408 = vmatmul.bf16.gmra.mxu0 %v172
    %v409 = vpop.f32.mrf.mxu0
    %v410 = vadd.f32 %v231, %v409
    %v411 = vpop.f32.mrf.mxu0
    %v412 = vadd.f32 %v231, %v411
    %413 = vmatmul.bf16.gmra.mxu0 %v173
    %v414 = vpop.f32.mrf.mxu0
    %v415 = vadd.f32 %v231, %v414
    %v416 = vpop.f32.mrf.mxu0
    %v417 = vadd.f32 %v231, %v416
    %418 = vmatmul.bf16.gmra.mxu0 %v174
    %v419 = vpop.f32.mrf.mxu0
    %v420 = vadd.f32 %v231, %v419
    %v421 = vpop.f32.mrf.mxu0
    %v422 = vadd.f32 %v231, %v421
    %423 = vmatmul.bf16.gmra.mxu0 %v175
    %v424 = vpop.f32.mrf.mxu0
    %v425 = vadd.f32 %v231, %v424
    %v426 = vpop.f32.mrf.mxu0
    %v427 = vadd.f32 %v231, %v426
    %428 = vmatmul.bf16.gmra.mxu0 %v176
    %v429 = vpop.f32.mrf.mxu0
    %v430 = vadd.f32 %v231, %v429
    %v431 = vpop.f32.mrf.mxu0
    %v432 = vadd.f32 %v231, %v431
    %433 = vmatmul.bf16.gmra.mxu0 %v177
    %v434 = vpop.f32.mrf.mxu0
    %v435 = vadd.f32 %v231, %v434
    %v436 = vpop.f32.mrf.mxu0
    %v437 = vadd.f32 %v231, %v436
    %438 = vmatmul.bf16.gmra.mxu0 %v178
    %v439 = vpop.f32.mrf.mxu0
    %v440 = vadd.f32 %v231, %v439
    %v441 = vpop.f32.mrf.mxu0
    %v442 = vadd.f32 %v231, %v441
    %443 = vmatmul.bf16.gmra.mxu0 %v179
    %v444 = vpop.f32.mrf.mxu0
    %v445 = vadd.f32 %v231, %v444
    %v446 = vpop.f32.mrf.mxu0
    %v447 = vadd.f32 %v231, %v446
    %448 = vmatmul.bf16.gmra.mxu0 %v180
    %v449 = vpop.f32.mrf.mxu0
    %v450 = vadd.f32 %v231, %v449
    %v451 = vpop.f32.mrf.mxu0
    %v452 = vadd.f32 %v231, %v451
    %453 = vmatmul.bf16.gmra.mxu0 %v181
    %v454 = vpop.f32.mrf.mxu0
    %v455 = vadd.f32 %v231, %v454
    %v456 = vpop.f32.mrf.mxu0
    %v457 = vadd.f32 %v231, %v456
    %458 = vmatmul.bf16.gmra.mxu0 %v182
    %v459 = vpop.f32.mrf.mxu0
    %v460 = vadd.f32 %v231, %v459
    %v461 = vpop.f32.mrf.mxu0
    %v462 = vadd.f32 %v231, %v461
    %463 = vmatmul.bf16.gmra.mxu0 %v183
    %v464 = vpop.f32.mrf.mxu0
    %v465 = vadd.f32 %v231, %v464
    %v466 = vpop.f32.mrf.mxu0
    %v467 = vadd.f32 %v231, %v466
    %468 = vmatmul.bf16.gmra.mxu0 %v184
    %v469 = vpop.f32.mrf.mxu0
    %v470 = vadd.f32 %v231, %v469
    %v471 = vpop.f32.mrf.mxu0
    %v472 = vadd.f32 %v231, %v471
    %473 = vmatmul.bf16.gmra.mxu0 %v185
    %v474 = vpop.f32.mrf.mxu0
    %v475 = vadd.f32 %v231, %v474
    %v476 = vpop.f32.mrf.mxu0
    %v477 = vadd.f32 %v231, %v476
    %478 = vmatmul.bf16.gmra.mxu0 %v186
    %v479 = vpop.f32.mrf.mxu0
    %v480 = vadd.f32 %v231, %v479
    %v481 = vpop.f32.mrf.mxu0
    %v482 = vadd.f32 %v231, %v481
    %483 = vmatmul.bf16.gmra.mxu0 %v187
    %v484 = vpop.f32.mrf.mxu0
    %v485 = vadd.f32 %v231, %v484
    %v486 = vpop.f32.mrf.mxu0
    %v487 = vadd.f32 %v231, %v486
    %488 = vmatmul.bf16.gmra.mxu0 %v188
    %v489 = vpop.f32.mrf.mxu0
    %v490 = vadd.f32 %v231, %v489
    %v491 = vpop.f32.mrf.mxu0
    %v492 = vadd.f32 %v231, %v491
    %493 = vmatmul.bf16.gmra.mxu0 %v189
    %v494 = vpop.f32.mrf.mxu0
    %v495 = vadd.f32 %v231, %v494
    %v496 = vpop.f32.mrf.mxu0
    %v497 = vadd.f32 %v231, %v496
    %498 = vmatmul.bf16.gmra.mxu0 %v190
    %v499 = vpop.f32.mrf.mxu0
    %v500 = vadd.f32 %v231, %v499
    %v501 = vpop.f32.mrf.mxu0
    %v502 = vadd.f32 %v231, %v501
    %503 = vmatmul.bf16.gmra.mxu0 %v191
    %v504 = vpop.f32.mrf.mxu0
    %v505 = vadd.f32 %v231, %v504
    %v506 = vpop.f32.mrf.mxu0
    %v507 = vadd.f32 %v231, %v506
    %508 = vmatmul.bf16.gmra.mxu0 %v192
    %v509 = vpop.f32.mrf.mxu0
    %v510 = vadd.f32 %v231, %v509
    %v511 = vpop.f32.mrf.mxu0
    %v512 = vadd.f32 %v231, %v511
    %513 = vmatmul.bf16.gmra.mxu0 %v193
    %v514 = vpop.f32.mrf.mxu0
    %v515 = vadd.f32 %v231, %v514
    %v516 = vpop.f32.mrf.mxu0
    %v517 = vadd.f32 %v231, %v516
    %518 = vmatmul.bf16.gmra.mxu0 %v194
    %v519 = vpop.f32.mrf.mxu0
    %v520 = vadd.f32 %v231, %v519
    %v521 = vpop.f32.mrf.mxu0
    %v522 = vadd.f32 %v231, %v521
    %523 = vmatmul.bf16.gmra.mxu0 %v195
    %v524 = vpop.f32.mrf.mxu0
    %v525 = vadd.f32 %v231, %v524
    %v526 = vpop.f32.mrf.mxu0
    %v527 = vadd.f32 %v231, %v526
    %528 = vmatmul.bf16.gmra.mxu0 %v196
    %v529 = vpop.f32.mrf.mxu0
    %v530 = vadd.f32 %v231, %v529
    %v531 = vpop.f32.mrf.mxu0
    %v532 = vadd.f32 %v231, %v531
    %533 = vdwg.mxu0
    %534 = vmatpush.bf16.msra.mxu0 %v339
    %535 = vmatpush.bf16.msra.mxu0 %v336
    %536 = vmatpush.bf16.msra.mxu0 %v333
    %537 = vmatpush.bf16.msra.mxu0 %v330
    %538 = vmatpush.bf16.msra.mxu0 %v327
    %539 = vmatpush.bf16.msra.mxu0 %v324
    %540 = vmatpush.bf16.msra.mxu0 %v321
    %541 = vmatpush.bf16.msra.mxu0 %v318
    %542 = vmatmul.bf16.gmra.mxu0 %v165
    %v543 = vpop.f32.mrf.mxu0
    %v544 = vadd.f32 %v232, %v543
    %v545 = vpop.f32.mrf.mxu0
    %v546 = vadd.f32 %v232, %v545
    %547 = vmatmul.bf16.gmra.mxu0 %v166
    %v548 = vpop.f32.mrf.mxu0
    %v549 = vadd.f32 %v232, %v548
    %v550 = vpop.f32.mrf.mxu0
    %v551 = vadd.f32 %v232, %v550
    %552 = vmatmul.bf16.gmra.mxu0 %v167
    %v553 = vpop.f32.mrf.mxu0
    %v554 = vadd.f32 %v232, %v553
    %v555 = vpop.f32.mrf.mxu0
    %v556 = vadd.f32 %v232, %v555
    %557 = vmatmul.bf16.gmra.mxu0 %v168
    %v558 = vpop.f32.mrf.mxu0
    %v559 = vadd.f32 %v232, %v558
    %v560 = vpop.f32.mrf.mxu0
    %v561 = vadd.f32 %v232, %v560
    %562 = vmatmul.bf16.gmra.mxu0 %v169
    %v563 = vpop.f32.mrf.mxu0
    %v564 = vadd.f32 %v232, %v563
    %v565 = vpop.f32.mrf.mxu0
    %v566 = vadd.f32 %v232, %v565
    %567 = vmatmul.bf16.gmra.mxu0 %v170
    %v568 = vpop.f32.mrf.mxu0
    %v569 = vadd.f32 %v232, %v568
    %v570 = vpop.f32.mrf.mxu0
    %v571 = vadd.f32 %v232, %v570
    %572 = vmatmul.bf16.gmra.mxu0 %v171
    %v573 = vpop.f32.mrf.mxu0
    %v574 = vadd.f32 %v232, %v573
    %v575 = vpop.f32.mrf.mxu0
    %v576 = vadd.f32 %v232, %v575
    %577 = vmatmul.bf16.gmra.mxu0 %v172
    %v578 = vpop.f32.mrf.mxu0
    %v579 = vadd.f32 %v232, %v578
    %v580 = vpop.f32.mrf.mxu0
    %v581 = vadd.f32 %v232, %v580
    %582 = vmatmul.bf16.gmra.mxu0 %v173
    %v583 = vpop.f32.mrf.mxu0
    %v584 = vadd.f32 %v232, %v583
    %v585 = vpop.f32.mrf.mxu0
    %v586 = vadd.f32 %v232, %v585
    %587 = vmatmul.bf16.gmra.mxu0 %v174
    %v588 = vpop.f32.mrf.mxu0
    %v589 = vadd.f32 %v232, %v588
    %v590 = vpop.f32.mrf.mxu0
    %v591 = vadd.f32 %v232, %v590
    %592 = vmatmul.bf16.gmra.mxu0 %v175
    %v593 = vpop.f32.mrf.mxu0
    %v594 = vadd.f32 %v232, %v593
    %v595 = vpop.f32.mrf.mxu0
    %v596 = vadd.f32 %v232, %v595
    %597 = vmatmul.bf16.gmra.mxu0 %v176
    %v598 = vpop.f32.mrf.mxu0
    %v599 = vadd.f32 %v232, %v598
    %v600 = vpop.f32.mrf.mxu0
    %v601 = vadd.f32 %v232, %v600
    %602 = vmatmul.bf16.gmra.mxu0 %v177
    %v603 = vpop.f32.mrf.mxu0
    %v604 = vadd.f32 %v232, %v603
    %v605 = vpop.f32.mrf.mxu0
    %v606 = vadd.f32 %v232, %v605
    %607 = vmatmul.bf16.gmra.mxu0 %v178
    %v608 = vpop.f32.mrf.mxu0
    %v609 = vadd.f32 %v232, %v608
    %v610 = vpop.f32.mrf.mxu0
    %v611 = vadd.f32 %v232, %v610
    %612 = vmatmul.bf16.gmra.mxu0 %v179
    %v613 = vpop.f32.mrf.mxu0
    %v614 = vadd.f32 %v232, %v613
    %v615 = vpop.f32.mrf.mxu0
    %v616 = vadd.f32 %v232, %v615
    %617 = vmatmul.bf16.gmra.mxu0 %v180
    %v618 = vpop.f32.mrf.mxu0
    %v619 = vadd.f32 %v232, %v618
    %v620 = vpop.f32.mrf.mxu0
    %v621 = vadd.f32 %v232, %v620
    %622 = vmatmul.bf16.gmra.mxu0 %v181
    %v623 = vpop.f32.mrf.mxu0
    %v624 = vadd.f32 %v232, %v623
    %v625 = vpop.f32.mrf.mxu0
    %v626 = vadd.f32 %v232, %v625
    %627 = vmatmul.bf16.gmra.mxu0 %v182
    %v628 = vpop.f32.mrf.mxu0
    %v629 = vadd.f32 %v232, %v628
    %v630 = vpop.f32.mrf.mxu0
    %v631 = vadd.f32 %v232, %v630
    %632 = vmatmul.bf16.gmra.mxu0 %v183
    %v633 = vpop.f32.mrf.mxu0
    %v634 = vadd.f32 %v232, %v633
    %v635 = vpop.f32.mrf.mxu0
    %v636 = vadd.f32 %v232, %v635
    %637 = vmatmul.bf16.gmra.mxu0 %v184
    %v638 = vpop.f32.mrf.mxu0
    %v639 = vadd.f32 %v232, %v638
    %v640 = vpop.f32.mrf.mxu0
    %v641 = vadd.f32 %v232, %v640
    %642 = vmatmul.bf16.gmra.mxu0 %v185
    %v643 = vpop.f32.mrf.mxu0
    %v644 = vadd.f32 %v232, %v643
    %v645 = vpop.f32.mrf.mxu0
    %v646 = vadd.f32 %v232, %v645
    %647 = vmatmul.bf16.gmra.mxu0 %v186
    %v648 = vpop.f32.mrf.mxu0
    %v649 = vadd.f32 %v232, %v648
    %v650 = vpop.f32.mrf.mxu0
    %v651 = vadd.f32 %v232, %v650
    %652 = vmatmul.bf16.gmra.mxu0 %v187
    %v653 = vpop.f32.mrf.mxu0
    %v654 = vadd.f32 %v232, %v653
    %v655 = vpop.f32.mrf.mxu0
    %v656 = vadd.f32 %v232, %v655
    %657 = vmatmul.bf16.gmra.mxu0 %v188
    %v658 = vpop.f32.mrf.mxu0
    %v659 = vadd.f32 %v232, %v658
    %v660 = vpop.f32.mrf.mxu0
    %v661 = vadd.f32 %v232, %v660
    %662 = vmatmul.bf16.gmra.mxu0 %v189
    %v663 = vpop.f32.mrf.mxu0
    %v664 = vadd.f32 %v232, %v663
    %v665 = vpop.f32.mrf.mxu0
    %v666 = vadd.f32 %v232, %v665
    %667 = vmatmul.bf16.gmra.mxu0 %v190
    %v668 = vpop.f32.mrf.mxu0
    %v669 = vadd.f32 %v232, %v668
    %v670 = vpop.f32.mrf.mxu0
    %v671 = vadd.f32 %v232, %v670
    %672 = vmatmul.bf16.gmra.mxu0 %v191
    %v673 = vpop.f32.mrf.mxu0
    %v674 = vadd.f32 %v232, %v673
    %v675 = vpop.f32.mrf.mxu0
    %v676 = vadd.f32 %v232, %v675
    %677 = vmatmul.bf16.gmra.mxu0 %v192
    %v678 = vpop.f32.mrf.mxu0
    %v679 = vadd.f32 %v232, %v678
    %v680 = vpop.f32.mrf.mxu0
    %v681 = vadd.f32 %v232, %v680
    %682 = vmatmul.bf16.gmra.mxu0 %v193
    %v683 = vpop.f32.mrf.mxu0
    %v684 = vadd.f32 %v232, %v683
    %v685 = vpop.f32.mrf.mxu0
    %v686 = vadd.f32 %v232, %v685
    %687 = vmatmul.bf16.gmra.mxu0 %v194
    %v688 = vpop.f32.mrf.mxu0
    %v689 = vadd.f32 %v232, %v688
    %v690 = vpop.f32.mrf.mxu0
    %v691 = vadd.f32 %v232, %v690
    %692 = vmatmul.bf16.gmra.mxu0 %v195
    %v693 = vpop.f32.mrf.mxu0
    %v694 = vadd.f32 %v232, %v693
    %v695 = vpop.f32.mrf.mxu0
    %v696 = vadd.f32 %v232, %v695
    %697 = vmatmul.bf16.gmra.mxu0 %v196
    %v698 = vpop.f32.mrf.mxu0
    %v699 = vadd.f32 %v232, %v698
    %v700 = vpop.f32.mrf.mxu0
    %v701 = vadd.f32 %v232, %v700
    %702 = vdwg.mxu0
    %703 = vmatpush.bf16.msra.mxu0 %v340
    %704 = vmatpush.bf16.msra.mxu0 %v337
    %705 = vmatpush.bf16.msra.mxu0 %v334
    %706 = vmatpush.bf16.msra.mxu0 %v331
    %707 = vmatpush.bf16.msra.mxu0 %v328
    %708 = vmatpush.bf16.msra.mxu0 %v325
    %709 = vmatpush.bf16.msra.mxu0 %v322
    %710 = vmatpush.bf16.msra.mxu0 %v319
    %711 = vmatmul.bf16.gmra.mxu0 %v165
    %v712 = vpop.f32.mrf.mxu0
    %v713 = vadd.f32 %v233, %v712
    %v714 = vpop.f32.mrf.mxu0
    %v715 = vadd.f32 %v233, %v714
    %716 = vmatmul.bf16.gmra.mxu0 %v166
    %v717 = vpop.f32.mrf.mxu0
    %v718 = vadd.f32 %v233, %v717
    %v719 = vpop.f32.mrf.mxu0
    %v720 = vadd.f32 %v233, %v719
    %721 = vmatmul.bf16.gmra.mxu0 %v167
    %v722 = vpop.f32.mrf.mxu0
    %v723 = vadd.f32 %v233, %v722
    %v724 = vpop.f32.mrf.mxu0
    %v725 = vadd.f32 %v233, %v724
    %726 = vmatmul.bf16.gmra.mxu0 %v168
    %v727 = vpop.f32.mrf.mxu0
    %v728 = vadd.f32 %v233, %v727
    %v729 = vpop.f32.mrf.mxu0
    %v730 = vadd.f32 %v233, %v729
    %731 = vmatmul.bf16.gmra.mxu0 %v169
    %v732 = vpop.f32.mrf.mxu0
    %v733 = vadd.f32 %v233, %v732
    %v734 = vpop.f32.mrf.mxu0
    %v735 = vadd.f32 %v233, %v734
    %736 = vmatmul.bf16.gmra.mxu0 %v170
    %v737 = vpop.f32.mrf.mxu0
    %v738 = vadd.f32 %v233, %v737
    %v739 = vpop.f32.mrf.mxu0
    %v740 = vadd.f32 %v233, %v739
    %741 = vmatmul.bf16.gmra.mxu0 %v171
    %v742 = vpop.f32.mrf.mxu0
    %v743 = vadd.f32 %v233, %v742
    %v744 = vpop.f32.mrf.mxu0
    %v745 = vadd.f32 %v233, %v744
    %746 = vmatmul.bf16.gmra.mxu0 %v172
    %v747 = vpop.f32.mrf.mxu0
    %v748 = vadd.f32 %v233, %v747
    %v749 = vpop.f32.mrf.mxu0
    %v750 = vadd.f32 %v233, %v749
    %751 = vmatmul.bf16.gmra.mxu0 %v173
    %v752 = vpop.f32.mrf.mxu0
    %v753 = vadd.f32 %v233, %v752
    %v754 = vpop.f32.mrf.mxu0
    %v755 = vadd.f32 %v233, %v754
    %756 = vmatmul.bf16.gmra.mxu0 %v174
    %v757 = vpop.f32.mrf.mxu0
    %v758 = vadd.f32 %v233, %v757
    %v759 = vpop.f32.mrf.mxu0
    %v760 = vadd.f32 %v233, %v759
    %761 = vmatmul.bf16.gmra.mxu0 %v175
    %v762 = vpop.f32.mrf.mxu0
    %v763 = vadd.f32 %v233, %v762
    %v764 = vpop.f32.mrf.mxu0
    %v765 = vadd.f32 %v233, %v764
    %766 = vmatmul.bf16.gmra.mxu0 %v176
    %v767 = vpop.f32.mrf.mxu0
    %v768 = vadd.f32 %v233, %v767
    %v769 = vpop.f32.mrf.mxu0
    %v770 = vadd.f32 %v233, %v769
    %771 = vmatmul.bf16.gmra.mxu0 %v177
    %v772 = vpop.f32.mrf.mxu0
    %v773 = vadd.f32 %v233, %v772
    %v774 = vpop.f32.mrf.mxu0
    %v775 = vadd.f32 %v233, %v774
    %776 = vmatmul.bf16.gmra.mxu0 %v178
    %v777 = vpop.f32.mrf.mxu0
    %v778 = vadd.f32 %v233, %v777
    %v779 = vpop.f32.mrf.mxu0
    %v780 = vadd.f32 %v233, %v779
    %781 = vmatmul.bf16.gmra.mxu0 %v179
    %v782 = vpop.f32.mrf.mxu0
    %v783 = vadd.f32 %v233, %v782
    %v784 = vpop.f32.mrf.mxu0
    %v785 = vadd.f32 %v233, %v784
    %786 = vmatmul.bf16.gmra.mxu0 %v180
    %v787 = vpop.f32.mrf.mxu0
    %v788 = vadd.f32 %v233, %v787
    %v789 = vpop.f32.mrf.mxu0
    %v790 = vadd.f32 %v233, %v789
    %791 = vmatmul.bf16.gmra.mxu0 %v181
    %v792 = vpop.f32.mrf.mxu0
    %v793 = vadd.f32 %v233, %v792
    %v794 = vpop.f32.mrf.mxu0
    %v795 = vadd.f32 %v233, %v794
    %796 = vmatmul.bf16.gmra.mxu0 %v182
    %v797 = vpop.f32.mrf.mxu0
    %v798 = vadd.f32 %v233, %v797
    %v799 = vpop.f32.mrf.mxu0
    %v800 = vadd.f32 %v233, %v799
    %801 = vmatmul.bf16.gmra.mxu0 %v183
    %v802 = vpop.f32.mrf.mxu0
    %v803 = vadd.f32 %v233, %v802
    %v804 = vpop.f32.mrf.mxu0
    %v805 = vadd.f32 %v233, %v804
    %806 = vmatmul.bf16.gmra.mxu0 %v184
    %v807 = vpop.f32.mrf.mxu0
    %v808 = vadd.f32 %v233, %v807
    %v809 = vpop.f32.mrf.mxu0
    %v810 = vadd.f32 %v233, %v809
    %811 = vmatmul.bf16.gmra.mxu0 %v185
    %v812 = vpop.f32.mrf.mxu0
    %v813 = vadd.f32 %v233, %v812
    %v814 = vpop.f32.mrf.mxu0
    %v815 = vadd.f32 %v233, %v814
    %816 = vmatmul.bf16.gmra.mxu0 %v186
    %v817 = vpop.f32.mrf.mxu0
    %v818 = vadd.f32 %v233, %v817
    %v819 = vpop.f32.mrf.mxu0
    %v820 = vadd.f32 %v233, %v819
    %821 = vmatmul.bf16.gmra.mxu0 %v187
    %v822 = vpop.f32.mrf.mxu0
    %v823 = vadd.f32 %v233, %v822
    %v824 = vpop.f32.mrf.mxu0
    %v825 = vadd.f32 %v233, %v824
    %826 = vmatmul.bf16.gmra.mxu0 %v188
    %v827 = vpop.f32.mrf.mxu0
    %v828 = vadd.f32 %v233, %v827
    %v829 = vpop.f32.mrf.mxu0
    %v830 = vadd.f32 %v233, %v829
    %831 = vmatmul.bf16.gmra.mxu0 %v189
    %v832 = vpop.f32.mrf.mxu0
    %v833 = vadd.f32 %v233, %v832
    %v834 = vpop.f32.mrf.mxu0
    %v835 = vadd.f32 %v233, %v834
    %836 = vmatmul.bf16.gmra.mxu0 %v190
    %v837 = vpop.f32.mrf.mxu0
    %v838 = vadd.f32 %v233, %v837
    %v839 = vpop.f32.mrf.mxu0
    %v840 = vadd.f32 %v233, %v839
    %841 = vmatmul.bf16.gmra.mxu0 %v191
    %v842 = vpop.f32.mrf.mxu0
    %v843 = vadd.f32 %v233, %v842
    %v844 = vpop.f32.mrf.mxu0
    %v845 = vadd.f32 %v233, %v844
    %846 = vmatmul.bf16.gmra.mxu0 %v192
    %v847 = vpop.f32.mrf.mxu0
    %v848 = vadd.f32 %v233, %v847
    %v849 = vpop.f32.mrf.mxu0
    %v850 = vadd.f32 %v233, %v849
    %851 = vmatmul.bf16.gmra.mxu0 %v193
    %v852 = vpop.f32.mrf.mxu0
    %v853 = vadd.f32 %v233, %v852
    %v854 = vpop.f32.mrf.mxu0
    %v855 = vadd.f32 %v233, %v854
    %856 = vmatmul.bf16.gmra.mxu0 %v194
    %v857 = vpop.f32.mrf.mxu0
    %v858 = vadd.f32 %v233, %v857
    %v859 = vpop.f32.mrf.mxu0
    %v860 = vadd.f32 %v233, %v859
    %861 = vmatmul.bf16.gmra.mxu0 %v195
    %v862 = vpop.f32.mrf.mxu0
    %v863 = vadd.f32 %v233, %v862
    %v864 = vpop.f32.mrf.mxu0
    %v865 = vadd.f32 %v233, %v864
    %866 = vmatmul.bf16.gmra.mxu0 %v196
    %v867 = vpop.f32.mrf.mxu0
    %v868 = vadd.f32 %v233, %v867
    %v869 = vpop.f32.mrf.mxu0
    %v870 = vadd.f32 %v233, %v869
    %871 = vdwg.mxu0
    %v872 = vpack.c.bf16 %v544, %v375
    %v873 = vpack.c.bf16 %v713, %v713
    %v874 = vpack.c.bf16 %v546, %v377
    %v875 = vpack.c.bf16 %v715, %v715
    %v876 = vpack.c.bf16 %v549, %v380
    %v877 = vpack.c.bf16 %v718, %v718
    %v878 = vpack.c.bf16 %v551, %v382
    %v879 = vpack.c.bf16 %v720, %v720
    %v880 = vpack.c.bf16 %v554, %v385
    %v881 = vpack.c.bf16 %v723, %v723
    %v882 = vpack.c.bf16 %v556, %v387
    %v883 = vpack.c.bf16 %v725, %v725
    %v884 = vpack.c.bf16 %v559, %v390
    %v885 = vpack.c.bf16 %v728, %v728
    %v886 = vpack.c.bf16 %v561, %v392
    %v887 = vpack.c.bf16 %v730, %v730
    %v888 = vpack.c.bf16 %v564, %v395
    %v889 = vpack.c.bf16 %v733, %v733
    %v890 = vpack.c.bf16 %v566, %v397
    %v891 = vpack.c.bf16 %v735, %v735
    %v892 = vpack.c.bf16 %v569, %v400
    %v893 = vpack.c.bf16 %v738, %v738
    %v894 = vpack.c.bf16 %v571, %v402
    %v895 = vpack.c.bf16 %v740, %v740
    %v896 = vpack.c.bf16 %v574, %v405
    %v897 = vpack.c.bf16 %v743, %v743
    %v898 = vpack.c.bf16 %v576, %v407
    %v899 = vpack.c.bf16 %v745, %v745
    %v900 = vpack.c.bf16 %v579, %v410
    %v901 = vpack.c.bf16 %v748, %v748
    %v902 = vpack.c.bf16 %v581, %v412
    %v903 = vpack.c.bf16 %v750, %v750
    %v904 = vpack.c.bf16 %v584, %v415
    %v905 = vpack.c.bf16 %v753, %v753
    %v906 = vpack.c.bf16 %v586, %v417
    %v907 = vpack.c.bf16 %v755, %v755
    %v908 = vpack.c.bf16 %v589, %v420
    %v909 = vpack.c.bf16 %v758, %v758
    %v910 = vpack.c.bf16 %v591, %v422
    %v911 = vpack.c.bf16 %v760, %v760
    %v912 = vpack.c.bf16 %v594, %v425
    %v913 = vpack.c.bf16 %v763, %v763
    %v914 = vpack.c.bf16 %v596, %v427
    %v915 = vpack.c.bf16 %v765, %v765
    %v916 = vpack.c.bf16 %v599, %v430
    %v917 = vpack.c.bf16 %v768, %v768
    %v918 = vpack.c.bf16 %v601, %v432
    %v919 = vpack.c.bf16 %v770, %v770
    %v920 = vpack.c.bf16 %v604, %v435
    %v921 = vpack.c.bf16 %v773, %v773
    %v922 = vpack.c.bf16 %v606, %v437
    %v923 = vpack.c.bf16 %v775, %v775
    %v924 = vpack.c.bf16 %v609, %v440
    %v925 = vpack.c.bf16 %v778, %v778
    %v926 = vpack.c.bf16 %v611, %v442
    %v927 = vpack.c.bf16 %v780, %v780
    %v928 = vpack.c.bf16 %v614, %v445
    %v929 = vpack.c.bf16 %v783, %v783
    %v930 = vpack.c.bf16 %v616, %v447
    %v931 = vpack.c.bf16 %v785, %v785
    %v932 = vpack.c.bf16 %v619, %v450
    %v933 = vpack.c.bf16 %v788, %v788
    %v934 = vpack.c.bf16 %v621, %v452
    %v935 = vpack.c.bf16 %v790, %v790
    %v936 = vpack.c.bf16 %v624, %v455
    %v937 = vpack.c.bf16 %v793, %v793
    %v938 = vpack.c.bf16 %v626, %v457
    %v939 = vpack.c.bf16 %v795, %v795
    %v940 = vpack.c.bf16 %v629, %v460
    %v941 = vpack.c.bf16 %v798, %v798
    %v942 = vpack.c.bf16 %v631, %v462
    %v943 = vpack.c.bf16 %v800, %v800
    %v944 = vpack.c.bf16 %v634, %v465
    %v945 = vpack.c.bf16 %v803, %v803
    %v946 = vpack.c.bf16 %v636, %v467
    %v947 = vpack.c.bf16 %v805, %v805
    %v948 = vpack.c.bf16 %v639, %v470
    %v949 = vpack.c.bf16 %v808, %v808
    %v950 = vpack.c.bf16 %v641, %v472
    %v951 = vpack.c.bf16 %v810, %v810
    %v952 = vpack.c.bf16 %v644, %v475
    %v953 = vpack.c.bf16 %v813, %v813
    %v954 = vpack.c.bf16 %v646, %v477
    %v955 = vpack.c.bf16 %v815, %v815
    %v956 = vpack.c.bf16 %v649, %v480
    %v957 = vpack.c.bf16 %v818, %v818
    %v958 = vpack.c.bf16 %v651, %v482
    %v959 = vpack.c.bf16 %v820, %v820
    %v960 = vpack.c.bf16 %v654, %v485
    %v961 = vpack.c.bf16 %v823, %v823
    %v962 = vpack.c.bf16 %v656, %v487
    %v963 = vpack.c.bf16 %v825, %v825
    %v964 = vpack.c.bf16 %v659, %v490
    %v965 = vpack.c.bf16 %v828, %v828
    %v966 = vpack.c.bf16 %v661, %v492
    %v967 = vpack.c.bf16 %v830, %v830
    %v968 = vpack.c.bf16 %v664, %v495
    %v969 = vpack.c.bf16 %v833, %v833
    %v970 = vpack.c.bf16 %v666, %v497
    %v971 = vpack.c.bf16 %v835, %v835
    %v972 = vpack.c.bf16 %v669, %v500
    %v973 = vpack.c.bf16 %v838, %v838
    %v974 = vpack.c.bf16 %v671, %v502
    %v975 = vpack.c.bf16 %v840, %v840
    %v976 = vpack.c.bf16 %v674, %v505
    %v977 = vpack.c.bf16 %v843, %v843
    %v978 = vpack.c.bf16 %v676, %v507
    %v979 = vpack.c.bf16 %v845, %v845
    %v980 = vpack.c.bf16 %v679, %v510
    %v981 = vpack.c.bf16 %v848, %v848
    %v982 = vpack.c.bf16 %v681, %v512
    %v983 = vpack.c.bf16 %v850, %v850
    %v984 = vpack.c.bf16 %v684, %v515
    %v985 = vpack.c.bf16 %v853, %v853
    %v986 = vpack.c.bf16 %v686, %v517
    %v987 = vpack.c.bf16 %v855, %v855
    %v988 = vpack.c.bf16 %v689, %v520
    %v989 = vpack.c.bf16 %v858, %v858
    %v990 = vpack.c.bf16 %v691, %v522
    %v991 = vpack.c.bf16 %v860, %v860
    %v992 = vpack.c.bf16 %v694, %v525
    %v993 = vpack.c.bf16 %v863, %v863
    %v994 = vpack.c.bf16 %v696, %v527
    %v995 = vpack.c.bf16 %v865, %v865
    %v996 = vpack.c.bf16 %v699, %v530
    %v997 = vpack.c.bf16 %v868, %v868
    %v998 = vpack.c.bf16 %v701, %v532
    %v999 = vpack.c.bf16 %v870, %v870
    %1064 = vrot.lane.b32.xlu0 %v872, 96
    %v1065 = vpop.permute.xlu0 %1064
    %1066 = vrot.lane.b32.xlu0 %v874, 96
    %v1067 = vpop.permute.xlu0 %1066
    %1068 = vrot.lane.b32.xlu0 %v876, 96
    %v1069 = vpop.permute.xlu0 %1068
    %1070 = vrot.lane.b32.xlu0 %v878, 96
    %v1071 = vpop.permute.xlu0 %1070
    %1072 = vrot.lane.b32.xlu0 %v880, 96
    %v1073 = vpop.permute.xlu0 %1072
    %1074 = vrot.lane.b32.xlu0 %v882, 96
    %v1075 = vpop.permute.xlu0 %1074
    %1076 = vrot.lane.b32.xlu0 %v884, 96
    %v1077 = vpop.permute.xlu0 %1076
    %1078 = vrot.lane.b32.xlu0 %v886, 96
    %v1079 = vpop.permute.xlu0 %1078
    %1080 = vrot.lane.b32.xlu0 %v888, 96
    %v1081 = vpop.permute.xlu0 %1080
    %1082 = vrot.lane.b32.xlu0 %v890, 96
    %v1083 = vpop.permute.xlu0 %1082
    %1084 = vrot.lane.b32.xlu0 %v892, 96
    %v1085 = vpop.permute.xlu0 %1084
    %1086 = vrot.lane.b32.xlu0 %v894, 96
    %v1087 = vpop.permute.xlu0 %1086
    %1088 = vrot.lane.b32.xlu0 %v896, 96
    %v1089 = vpop.permute.xlu0 %1088
    %1090 = vrot.lane.b32.xlu0 %v898, 96
    %v1091 = vpop.permute.xlu0 %1090
    %1092 = vrot.lane.b32.xlu0 %v900, 96
    %v1093 = vpop.permute.xlu0 %1092
    %1094 = vrot.lane.b32.xlu0 %v902, 96
    %v1095 = vpop.permute.xlu0 %1094
    %1096 = vrot.lane.b32.xlu0 %v904, 96
    %v1097 = vpop.permute.xlu0 %1096
    %1098 = vrot.lane.b32.xlu0 %v906, 96
    %v1099 = vpop.permute.xlu0 %1098
    %1100 = vrot.lane.b32.xlu0 %v908, 96
    %v1101 = vpop.permute.xlu0 %1100
    %1102 = vrot.lane.b32.xlu0 %v910, 96
    %v1103 = vpop.permute.xlu0 %1102
    %1104 = vrot.lane.b32.xlu0 %v912, 96
    %v1105 = vpop.permute.xlu0 %1104
    %1106 = vrot.lane.b32.xlu0 %v914, 96
    %v1107 = vpop.permute.xlu0 %1106
    %1108 = vrot.lane.b32.xlu0 %v916, 96
    %v1109 = vpop.permute.xlu0 %1108
    %1110 = vrot.lane.b32.xlu0 %v918, 96
    %v1111 = vpop.permute.xlu0 %1110
    %1112 = vrot.lane.b32.xlu0 %v920, 96
    %v1113 = vpop.permute.xlu0 %1112
    %1114 = vrot.lane.b32.xlu0 %v922, 96
    %v1115 = vpop.permute.xlu0 %1114
    %1116 = vrot.lane.b32.xlu0 %v924, 96
    %v1117 = vpop.permute.xlu0 %1116
    %1118 = vrot.lane.b32.xlu0 %v926, 96
    %v1119 = vpop.permute.xlu0 %1118
    %1120 = vrot.lane.b32.xlu0 %v928, 96
    %v1121 = vpop.permute.xlu0 %1120
    %1122 = vrot.lane.b32.xlu0 %v930, 96
    %v1123 = vpop.permute.xlu0 %1122
    %1124 = vrot.lane.b32.xlu0 %v932, 96
    %v1125 = vpop.permute.xlu0 %1124
    %1126 = vrot.lane.b32.xlu0 %v934, 96
    %v1127 = vpop.permute.xlu0 %1126
    %1128 = vrot.lane.b32.xlu0 %v936, 96
    %v1129 = vpop.permute.xlu0 %1128
    %1130 = vrot.lane.b32.xlu0 %v938, 96
    %v1131 = vpop.permute.xlu0 %1130
    %1132 = vrot.lane.b32.xlu0 %v940, 96
    %v1133 = vpop.permute.xlu0 %1132
    %1134 = vrot.lane.b32.xlu0 %v942, 96
    %v1135 = vpop.permute.xlu0 %1134
    %1136 = vrot.lane.b32.xlu0 %v944, 96
    %v1137 = vpop.permute.xlu0 %1136
    %1138 = vrot.lane.b32.xlu0 %v946, 96
    %v1139 = vpop.permute.xlu0 %1138
    %1140 = vrot.lane.b32.xlu0 %v948, 96
    %v1141 = vpop.permute.xlu0 %1140
    %1142 = vrot.lane.b32.xlu0 %v950, 96
    %v1143 = vpop.permute.xlu0 %1142
    %1144 = vrot.lane.b32.xlu0 %v952, 96
    %v1145 = vpop.permute.xlu0 %1144
    %1146 = vrot.lane.b32.xlu0 %v954, 96
    %v1147 = vpop.permute.xlu0 %1146
    %1148 = vrot.lane.b32.xlu0 %v956, 96
    %v1149 = vpop.permute.xlu0 %1148
    %1150 = vrot.lane.b32.xlu0 %v958, 96
    %v1151 = vpop.permute.xlu0 %1150
    %1152 = vrot.lane.b32.xlu0 %v960, 96
    %v1153 = vpop.permute.xlu0 %1152
    %1154 = vrot.lane.b32.xlu0 %v962, 96
    %v1155 = vpop.permute.xlu0 %1154
    %1156 = vrot.lane.b32.xlu0 %v964, 96
    %v1157 = vpop.permute.xlu0 %1156
    %1158 = vrot.lane.b32.xlu0 %v966, 96
    %v1159 = vpop.permute.xlu0 %1158
    %1160 = vrot.lane.b32.xlu0 %v968, 96
    %v1161 = vpop.permute.xlu0 %1160
    %1162 = vrot.lane.b32.xlu0 %v970, 96
    %v1163 = vpop.permute.xlu0 %1162
    %1164 = vrot.lane.b32.xlu0 %v972, 96
    %v1165 = vpop.permute.xlu0 %1164
    %1166 = vrot.lane.b32.xlu0 %v974, 96
    %v1167 = vpop.permute.xlu0 %1166
    %1168 = vrot.lane.b32.xlu0 %v976, 96
    %v1169 = vpop.permute.xlu0 %1168
    %1170 = vrot.lane.b32.xlu0 %v978, 96
    %v1171 = vpop.permute.xlu0 %1170
    %1172 = vrot.lane.b32.xlu0 %v980, 96
    %v1173 = vpop.permute.xlu0 %1172
    %1174 = vrot.lane.b32.xlu0 %v982, 96
    %v1175 = vpop.permute.xlu0 %1174
    %1176 = vrot.lane.b32.xlu0 %v984, 96
    %v1177 = vpop.permute.xlu0 %1176
    %1178 = vrot.lane.b32.xlu0 %v986, 96
    %v1179 = vpop.permute.xlu0 %1178
    %1180 = vrot.lane.b32.xlu0 %v988, 96
    %v1181 = vpop.permute.xlu0 %1180
    %1182 = vrot.lane.b32.xlu0 %v990, 96
    %v1183 = vpop.permute.xlu0 %1182
    %1184 = vrot.lane.b32.xlu0 %v992, 96
    %v1185 = vpop.permute.xlu0 %1184
    %1186 = vrot.lane.b32.xlu0 %v994, 96
    %v1187 = vpop.permute.xlu0 %1186
    %1188 = vrot.lane.b32.xlu0 %v996, 96
    %v1189 = vpop.permute.xlu0 %1188
    %1190 = vrot.lane.b32.xlu0 %v998, 96
    %v1191 = vpop.permute.xlu0 %1190
    %1192 = vrot.lane.b32.xlu0 %v872, 64
    %v1193 = vpop.permute.xlu0 %1192
    %1194 = vrot.lane.b32.xlu0 %v874, 64
    %v1195 = vpop.permute.xlu0 %1194
    %1196 = vrot.lane.b32.xlu0 %v876, 64
    %v1197 = vpop.permute.xlu0 %1196
    %1198 = vrot.lane.b32.xlu0 %v878, 64
    %v1199 = vpop.permute.xlu0 %1198
    %1200 = vrot.lane.b32.xlu0 %v880, 64
    %v1201 = vpop.permute.xlu0 %1200
    %1202 = vrot.lane.b32.xlu0 %v882, 64
    %v1203 = vpop.permute.xlu0 %1202
    %1204 = vrot.lane.b32.xlu0 %v884, 64
    %v1205 = vpop.permute.xlu0 %1204
    %1206 = vrot.lane.b32.xlu0 %v886, 64
    %v1207 = vpop.permute.xlu0 %1206
    %1208 = vrot.lane.b32.xlu0 %v888, 64
    %v1209 = vpop.permute.xlu0 %1208
    %1210 = vrot.lane.b32.xlu0 %v890, 64
    %v1211 = vpop.permute.xlu0 %1210
    %1212 = vrot.lane.b32.xlu0 %v892, 64
    %v1213 = vpop.permute.xlu0 %1212
    %1214 = vrot.lane.b32.xlu0 %v894, 64
    %v1215 = vpop.permute.xlu0 %1214
    %1216 = vrot.lane.b32.xlu0 %v896, 64
    %v1217 = vpop.permute.xlu0 %1216
    %1218 = vrot.lane.b32.xlu0 %v898, 64
    %v1219 = vpop.permute.xlu0 %1218
    %1220 = vrot.lane.b32.xlu0 %v900, 64
    %v1221 = vpop.permute.xlu0 %1220
    %1222 = vrot.lane.b32.xlu0 %v902, 64
    %v1223 = vpop.permute.xlu0 %1222
    %1224 = vrot.lane.b32.xlu0 %v904, 64
    %v1225 = vpop.permute.xlu0 %1224
    %1226 = vrot.lane.b32.xlu0 %v906, 64
    %v1227 = vpop.permute.xlu0 %1226
    %1228 = vrot.lane.b32.xlu0 %v908, 64
    %v1229 = vpop.permute.xlu0 %1228
    %1230 = vrot.lane.b32.xlu0 %v910, 64
    %v1231 = vpop.permute.xlu0 %1230
    %1232 = vrot.lane.b32.xlu0 %v912, 64
    %v1233 = vpop.permute.xlu0 %1232
    %1234 = vrot.lane.b32.xlu0 %v914, 64
    %v1235 = vpop.permute.xlu0 %1234
    %1236 = vrot.lane.b32.xlu0 %v916, 64
    %v1237 = vpop.permute.xlu0 %1236
    %1238 = vrot.lane.b32.xlu0 %v918, 64
    %v1239 = vpop.permute.xlu0 %1238
    %1240 = vrot.lane.b32.xlu0 %v920, 64
    %v1241 = vpop.permute.xlu0 %1240
    %1242 = vrot.lane.b32.xlu0 %v922, 64
    %v1243 = vpop.permute.xlu0 %1242
    %1244 = vrot.lane.b32.xlu0 %v924, 64
    %v1245 = vpop.permute.xlu0 %1244
    %1246 = vrot.lane.b32.xlu0 %v926, 64
    %v1247 = vpop.permute.xlu0 %1246
    %1248 = vrot.lane.b32.xlu0 %v928, 64
    %v1249 = vpop.permute.xlu0 %1248
    %1250 = vrot.lane.b32.xlu0 %v930, 64
    %v1251 = vpop.permute.xlu0 %1250
    %1252 = vrot.lane.b32.xlu0 %v932, 64
    %v1253 = vpop.permute.xlu0 %1252
    %1254 = vrot.lane.b32.xlu0 %v934, 64
    %v1255 = vpop.permute.xlu0 %1254
    %1256 = vrot.lane.b32.xlu0 %v936, 64
    %v1257 = vpop.permute.xlu0 %1256
    %1258 = vrot.lane.b32.xlu0 %v938, 64
    %v1259 = vpop.permute.xlu0 %1258
    %1260 = vrot.lane.b32.xlu0 %v940, 64
    %v1261 = vpop.permute.xlu0 %1260
    %1262 = vrot.lane.b32.xlu0 %v942, 64
    %v1263 = vpop.permute.xlu0 %1262
    %1264 = vrot.lane.b32.xlu0 %v944, 64
    %v1265 = vpop.permute.xlu0 %1264
    %1266 = vrot.lane.b32.xlu0 %v946, 64
    %v1267 = vpop.permute.xlu0 %1266
    %1268 = vrot.lane.b32.xlu0 %v948, 64
    %v1269 = vpop.permute.xlu0 %1268
    %1270 = vrot.lane.b32.xlu0 %v950, 64
    %v1271 = vpop.permute.xlu0 %1270
    %1272 = vrot.lane.b32.xlu0 %v952, 64
    %v1273 = vpop.permute.xlu0 %1272
    %1274 = vrot.lane.b32.xlu0 %v954, 64
    %v1275 = vpop.permute.xlu0 %1274
    %1276 = vrot.lane.b32.xlu0 %v956, 64
    %v1277 = vpop.permute.xlu0 %1276
    %1278 = vrot.lane.b32.xlu0 %v958, 64
    %v1279 = vpop.permute.xlu0 %1278
    %1280 = vrot.lane.b32.xlu0 %v960, 64
    %v1281 = vpop.permute.xlu0 %1280
    %1282 = vrot.lane.b32.xlu0 %v962, 64
    %v1283 = vpop.permute.xlu0 %1282
    %1284 = vrot.lane.b32.xlu0 %v964, 64
    %v1285 = vpop.permute.xlu0 %1284
    %1286 = vrot.lane.b32.xlu0 %v966, 64
    %v1287 = vpop.permute.xlu0 %1286
    %1288 = vrot.lane.b32.xlu0 %v968, 64
    %v1289 = vpop.permute.xlu0 %1288
    %1290 = vrot.lane.b32.xlu0 %v970, 64
    %v1291 = vpop.permute.xlu0 %1290
    %1292 = vrot.lane.b32.xlu0 %v972, 64
    %v1293 = vpop.permute.xlu0 %1292
    %1294 = vrot.lane.b32.xlu0 %v974, 64
    %v1295 = vpop.permute.xlu0 %1294
    %1296 = vrot.lane.b32.xlu0 %v976, 64
    %v1297 = vpop.permute.xlu0 %1296
    %1298 = vrot.lane.b32.xlu0 %v978, 64
    %v1299 = vpop.permute.xlu0 %1298
    %1300 = vrot.lane.b32.xlu0 %v980, 64
    %v1301 = vpop.permute.xlu0 %1300
    %1302 = vrot.lane.b32.xlu0 %v982, 64
    %v1303 = vpop.permute.xlu0 %1302
    %1304 = vrot.lane.b32.xlu0 %v984, 64
    %v1305 = vpop.permute.xlu0 %1304
    %1306 = vrot.lane.b32.xlu0 %v986, 64
    %v1307 = vpop.permute.xlu0 %1306
    %1308 = vrot.lane.b32.xlu0 %v988, 64
    %v1309 = vpop.permute.xlu0 %1308
    %1310 = vrot.lane.b32.xlu0 %v990, 64
    %v1311 = vpop.permute.xlu0 %1310
    %1312 = vrot.lane.b32.xlu0 %v992, 64
    %v1313 = vpop.permute.xlu0 %1312
    %1314 = vrot.lane.b32.xlu0 %v994, 64
    %v1315 = vpop.permute.xlu0 %1314
    %1316 = vrot.lane.b32.xlu0 %v996, 64
    %v1317 = vpop.permute.xlu0 %1316
    %1318 = vrot.lane.b32.xlu0 %v998, 64
    %v1319 = vpop.permute.xlu0 %1318
    %1320 = vrot.lane.b32.xlu0 %v872, 32
    %v1321 = vpop.permute.xlu0 %1320
    %1322 = vrot.lane.b32.xlu0 %v874, 32
    %v1323 = vpop.permute.xlu0 %1322
    %1324 = vrot.lane.b32.xlu0 %v876, 32
    %v1325 = vpop.permute.xlu0 %1324
    %1326 = vrot.lane.b32.xlu0 %v878, 32
    %v1327 = vpop.permute.xlu0 %1326
    %1328 = vrot.lane.b32.xlu0 %v880, 32
    %v1329 = vpop.permute.xlu0 %1328
    %1330 = vrot.lane.b32.xlu0 %v882, 32
    %v1331 = vpop.permute.xlu0 %1330
    %1332 = vrot.lane.b32.xlu0 %v884, 32
    %v1333 = vpop.permute.xlu0 %1332
    %1334 = vrot.lane.b32.xlu0 %v886, 32
    %v1335 = vpop.permute.xlu0 %1334
    %1336 = vrot.lane.b32.xlu0 %v888, 32
    %v1337 = vpop.permute.xlu0 %1336
    %1338 = vrot.lane.b32.xlu0 %v890, 32
    %v1339 = vpop.permute.xlu0 %1338
    %1340 = vrot.lane.b32.xlu0 %v892, 32
    %v1341 = vpop.permute.xlu0 %1340
    %1342 = vrot.lane.b32.xlu0 %v894, 32
    %v1343 = vpop.permute.xlu0 %1342
    %1344 = vrot.lane.b32.xlu0 %v896, 32
    %v1345 = vpop.permute.xlu0 %1344
    %1346 = vrot.lane.b32.xlu0 %v898, 32
    %v1347 = vpop.permute.xlu0 %1346
    %1348 = vrot.lane.b32.xlu0 %v900, 32
    %v1349 = vpop.permute.xlu0 %1348
    %1350 = vrot.lane.b32.xlu0 %v902, 32
    %v1351 = vpop.permute.xlu0 %1350
    %1352 = vrot.lane.b32.xlu0 %v904, 32
    %v1353 = vpop.permute.xlu0 %1352
    %1354 = vrot.lane.b32.xlu0 %v906, 32
    %v1355 = vpop.permute.xlu0 %1354
    %1356 = vrot.lane.b32.xlu0 %v908, 32
    %v1357 = vpop.permute.xlu0 %1356
    %1358 = vrot.lane.b32.xlu0 %v910, 32
    %v1359 = vpop.permute.xlu0 %1358
    %1360 = vrot.lane.b32.xlu0 %v912, 32
    %v1361 = vpop.permute.xlu0 %1360
    %1362 = vrot.lane.b32.xlu0 %v914, 32
    %v1363 = vpop.permute.xlu0 %1362
    %1364 = vrot.lane.b32.xlu0 %v916, 32
    %v1365 = vpop.permute.xlu0 %1364
    %1366 = vrot.lane.b32.xlu0 %v918, 32
    %v1367 = vpop.permute.xlu0 %1366
    %1368 = vrot.lane.b32.xlu0 %v920, 32
    %v1369 = vpop.permute.xlu0 %1368
    %1370 = vrot.lane.b32.xlu0 %v922, 32
    %v1371 = vpop.permute.xlu0 %1370
    %1372 = vrot.lane.b32.xlu0 %v924, 32
    %v1373 = vpop.permute.xlu0 %1372
    %1374 = vrot.lane.b32.xlu0 %v926, 32
    %v1375 = vpop.permute.xlu0 %1374
    %1376 = vrot.lane.b32.xlu0 %v928, 32
    %v1377 = vpop.permute.xlu0 %1376
    %1378 = vrot.lane.b32.xlu0 %v930, 32
    %v1379 = vpop.permute.xlu0 %1378
    %1380 = vrot.lane.b32.xlu0 %v932, 32
    %v1381 = vpop.permute.xlu0 %1380
    %1382 = vrot.lane.b32.xlu0 %v934, 32
    %v1383 = vpop.permute.xlu0 %1382
    %1384 = vrot.lane.b32.xlu0 %v936, 32
    %v1385 = vpop.permute.xlu0 %1384
    %1386 = vrot.lane.b32.xlu0 %v938, 32
    %v1387 = vpop.permute.xlu0 %1386
    %1388 = vrot.lane.b32.xlu0 %v940, 32
    %v1389 = vpop.permute.xlu0 %1388
    %1390 = vrot.lane.b32.xlu0 %v942, 32
    %v1391 = vpop.permute.xlu0 %1390
    %1392 = vrot.lane.b32.xlu0 %v944, 32
    %v1393 = vpop.permute.xlu0 %1392
    %1394 = vrot.lane.b32.xlu0 %v946, 32
    %v1395 = vpop.permute.xlu0 %1394
    %1396 = vrot.lane.b32.xlu0 %v948, 32
    %v1397 = vpop.permute.xlu0 %1396
    %1398 = vrot.lane.b32.xlu0 %v950, 32
    %v1399 = vpop.permute.xlu0 %1398
    %1400 = vrot.lane.b32.xlu0 %v952, 32
    %v1401 = vpop.permute.xlu0 %1400
    %1402 = vrot.lane.b32.xlu0 %v954, 32
    %v1403 = vpop.permute.xlu0 %1402
    %1404 = vrot.lane.b32.xlu0 %v956, 32
    %v1405 = vpop.permute.xlu0 %1404
    %1406 = vrot.lane.b32.xlu0 %v958, 32
    %v1407 = vpop.permute.xlu0 %1406
    %1408 = vrot.lane.b32.xlu0 %v960, 32
    %v1409 = vpop.permute.xlu0 %1408
    %1410 = vrot.lane.b32.xlu0 %v962, 32
    %v1411 = vpop.permute.xlu0 %1410
    %1412 = vrot.lane.b32.xlu0 %v964, 32
    %v1413 = vpop.permute.xlu0 %1412
    %1414 = vrot.lane.b32.xlu0 %v966, 32
    %v1415 = vpop.permute.xlu0 %1414
    %1416 = vrot.lane.b32.xlu0 %v968, 32
    %v1417 = vpop.permute.xlu0 %1416
    %1418 = vrot.lane.b32.xlu0 %v970, 32
    %v1419 = vpop.permute.xlu0 %1418
    %1420 = vrot.lane.b32.xlu0 %v972, 32
    %v1421 = vpop.permute.xlu0 %1420
    %1422 = vrot.lane.b32.xlu0 %v974, 32
    %v1423 = vpop.permute.xlu0 %1422
    %1424 = vrot.lane.b32.xlu0 %v976, 32
    %v1425 = vpop.permute.xlu0 %1424
    %1426 = vrot.lane.b32.xlu0 %v978, 32
    %v1427 = vpop.permute.xlu0 %1426
    %1428 = vrot.lane.b32.xlu0 %v980, 32
    %v1429 = vpop.permute.xlu0 %1428
    %1430 = vrot.lane.b32.xlu0 %v982, 32
    %v1431 = vpop.permute.xlu0 %1430
    %1432 = vrot.lane.b32.xlu0 %v984, 32
    %v1433 = vpop.permute.xlu0 %1432
    %1434 = vrot.lane.b32.xlu0 %v986, 32
    %v1435 = vpop.permute.xlu0 %1434
    %1436 = vrot.lane.b32.xlu0 %v988, 32
    %v1437 = vpop.permute.xlu0 %1436
    %1438 = vrot.lane.b32.xlu0 %v990, 32
    %v1439 = vpop.permute.xlu0 %1438
    %1440 = vrot.lane.b32.xlu0 %v992, 32
    %v1441 = vpop.permute.xlu0 %1440
    %1442 = vrot.lane.b32.xlu0 %v994, 32
    %v1443 = vpop.permute.xlu0 %1442
    %1444 = vrot.lane.b32.xlu0 %v996, 32
    %v1445 = vpop.permute.xlu0 %1444
    %1446 = vrot.lane.b32.xlu0 %v998, 32
    %v1447 = vpop.permute.xlu0 %1446
    %v1448 = vrot.slane %v872, 4
    %v1449 = vrot.slane %v874, 4
    %v1450 = vrot.slane %v876, 4
    %v1451 = vrot.slane %v878, 4
    %v1452 = vrot.slane %v880, 4
    %v1453 = vrot.slane %v882, 4
    %v1454 = vrot.slane %v884, 4
    %v1455 = vrot.slane %v886, 4
    %v1456 = vrot.slane %v888, 4
    %v1457 = vrot.slane %v890, 4
    %v1458 = vrot.slane %v892, 4
    %v1459 = vrot.slane %v894, 4
    %v1460 = vrot.slane %v896, 4
    %v1461 = vrot.slane %v898, 4
    %v1462 = vrot.slane %v900, 4
    %v1463 = vrot.slane %v902, 4
    %v1464 = vrot.slane %v904, 4
    %v1465 = vrot.slane %v906, 4
    %v1466 = vrot.slane %v908, 4
    %v1467 = vrot.slane %v910, 4
    %v1468 = vrot.slane %v912, 4
    %v1469 = vrot.slane %v914, 4
    %v1470 = vrot.slane %v916, 4
    %v1471 = vrot.slane %v918, 4
    %v1472 = vrot.slane %v920, 4
    %v1473 = vrot.slane %v922, 4
    %v1474 = vrot.slane %v924, 4
    %v1475 = vrot.slane %v926, 4
    %v1476 = vrot.slane %v928, 4
    %v1477 = vrot.slane %v930, 4
    %v1478 = vrot.slane %v932, 4
    %v1479 = vrot.slane %v934, 4
    %v1480 = vrot.slane %v936, 4
    %v1481 = vrot.slane %v938, 4
    %v1482 = vrot.slane %v940, 4
    %v1483 = vrot.slane %v942, 4
    %v1484 = vrot.slane %v944, 4
    %v1485 = vrot.slane %v946, 4
    %v1486 = vrot.slane %v948, 4
    %v1487 = vrot.slane %v950, 4
    %v1488 = vrot.slane %v952, 4
    %v1489 = vrot.slane %v954, 4
    %v1490 = vrot.slane %v956, 4
    %v1491 = vrot.slane %v958, 4
    %v1492 = vrot.slane %v960, 4
    %v1493 = vrot.slane %v962, 4
    %v1494 = vrot.slane %v964, 4
    %v1495 = vrot.slane %v966, 4
    %v1496 = vrot.slane %v968, 4
    %v1497 = vrot.slane %v970, 4
    %v1498 = vrot.slane %v972, 4
    %v1499 = vrot.slane %v974, 4
    %v1500 = vrot.slane %v976, 4
    %v1501 = vrot.slane %v978, 4
    %v1502 = vrot.slane %v980, 4
    %v1503 = vrot.slane %v982, 4
    %v1504 = vrot.slane %v984, 4
    %v1505 = vrot.slane %v986, 4
    %v1506 = vrot.slane %v988, 4
    %v1507 = vrot.slane %v990, 4
    %v1508 = vrot.slane %v992, 4
    %v1509 = vrot.slane %v994, 4
    %v1510 = vrot.slane %v996, 4
    %v1511 = vrot.slane %v998, 4
    %v1512 = vrot.slane %v1065, 4
    %v1513 = vrot.slane %v1067, 4
    %v1514 = vrot.slane %v1069, 4
    %v1515 = vrot.slane %v1071, 4
    %v1516 = vrot.slane %v1073, 4
    %v1517 = vrot.slane %v1075, 4
    %v1518 = vrot.slane %v1077, 4
    %v1519 = vrot.slane %v1079, 4
    %v1520 = vrot.slane %v1081, 4
    %v1521 = vrot.slane %v1083, 4
    %v1522 = vrot.slane %v1085, 4
    %v1523 = vrot.slane %v1087, 4
    %v1524 = vrot.slane %v1089, 4
    %v1525 = vrot.slane %v1091, 4
    %v1526 = vrot.slane %v1093, 4
    %v1527 = vrot.slane %v1095, 4
    %v1528 = vrot.slane %v1097, 4
    %v1529 = vrot.slane %v1099, 4
    %v1530 = vrot.slane %v1101, 4
    %v1531 = vrot.slane %v1103, 4
    %v1532 = vrot.slane %v1105, 4
    %v1533 = vrot.slane %v1107, 4
    %v1534 = vrot.slane %v1109, 4
    %v1535 = vrot.slane %v1111, 4
    %v1536 = vrot.slane %v1113, 4
    %v1537 = vrot.slane %v1115, 4
    %v1538 = vrot.slane %v1117, 4
    %v1539 = vrot.slane %v1119, 4
    %v1540 = vrot.slane %v1121, 4
    %v1541 = vrot.slane %v1123, 4
    %v1542 = vrot.slane %v1125, 4
    %v1543 = vrot.slane %v1127, 4
    %v1544 = vrot.slane %v1129, 4
    %v1545 = vrot.slane %v1131, 4
    %v1546 = vrot.slane %v1133, 4
    %v1547 = vrot.slane %v1135, 4
    %v1548 = vrot.slane %v1137, 4
    %v1549 = vrot.slane %v1139, 4
    %v1550 = vrot.slane %v1141, 4
    %v1551 = vrot.slane %v1143, 4
    %v1552 = vrot.slane %v1145, 4
    %v1553 = vrot.slane %v1147, 4
    %v1554 = vrot.slane %v1149, 4
    %v1555 = vrot.slane %v1151, 4
    %v1556 = vrot.slane %v1153, 4
    %v1557 = vrot.slane %v1155, 4
    %v1558 = vrot.slane %v1157, 4
    %v1559 = vrot.slane %v1159, 4
    %v1560 = vrot.slane %v1161, 4
    %v1561 = vrot.slane %v1163, 4
    %v1562 = vrot.slane %v1165, 4
    %v1563 = vrot.slane %v1167, 4
    %v1564 = vrot.slane %v1169, 4
    %v1565 = vrot.slane %v1171, 4
    %v1566 = vrot.slane %v1173, 4
    %v1567 = vrot.slane %v1175, 4
    %v1568 = vrot.slane %v1177, 4
    %v1569 = vrot.slane %v1179, 4
    %v1570 = vrot.slane %v1181, 4
    %v1571 = vrot.slane %v1183, 4
    %v1572 = vrot.slane %v1185, 4
    %v1573 = vrot.slane %v1187, 4
    %v1574 = vrot.slane %v1189, 4
    %v1575 = vrot.slane %v1191, 4
    %v1576 = vrot.slane %v1193, 4
    %v1577 = vrot.slane %v1195, 4
    %v1578 = vrot.slane %v1197, 4
    %v1579 = vrot.slane %v1199, 4
    %v1580 = vrot.slane %v1201, 4
    %v1581 = vrot.slane %v1203, 4
    %v1582 = vrot.slane %v1205, 4
    %v1583 = vrot.slane %v1207, 4
    %v1584 = vrot.slane %v1209, 4
    %v1585 = vrot.slane %v1211, 4
    %v1586 = vrot.slane %v1213, 4
    %v1587 = vrot.slane %v1215, 4
    %v1588 = vrot.slane %v1217, 4
    %v1589 = vrot.slane %v1219, 4
    %v1590 = vrot.slane %v1221, 4
    %v1591 = vrot.slane %v1223, 4
    %v1592 = vrot.slane %v1225, 4
    %v1593 = vrot.slane %v1227, 4
    %v1594 = vrot.slane %v1229, 4
    %v1595 = vrot.slane %v1231, 4
    %v1596 = vrot.slane %v1233, 4
    %v1597 = vrot.slane %v1235, 4
    %v1598 = vrot.slane %v1237, 4
    %v1599 = vrot.slane %v1239, 4
    %v1600 = vrot.slane %v1241, 4
    %v1601 = vrot.slane %v1243, 4
    %v1602 = vrot.slane %v1245, 4
    %v1603 = vrot.slane %v1247, 4
    %v1604 = vrot.slane %v1249, 4
    %v1605 = vrot.slane %v1251, 4
    %v1606 = vrot.slane %v1253, 4
    %v1607 = vrot.slane %v1255, 4
    %v1608 = vrot.slane %v1257, 4
    %v1609 = vrot.slane %v1259, 4
    %v1610 = vrot.slane %v1261, 4
    %v1611 = vrot.slane %v1263, 4
    %v1612 = vrot.slane %v1265, 4
    %v1613 = vrot.slane %v1267, 4
    %v1614 = vrot.slane %v1269, 4
    %v1615 = vrot.slane %v1271, 4
    %v1616 = vrot.slane %v1273, 4
    %v1617 = vrot.slane %v1275, 4
    %v1618 = vrot.slane %v1277, 4
    %v1619 = vrot.slane %v1279, 4
    %v1620 = vrot.slane %v1281, 4
    %v1621 = vrot.slane %v1283, 4
    %v1622 = vrot.slane %v1285, 4
    %v1623 = vrot.slane %v1287, 4
    %v1624 = vrot.slane %v1289, 4
    %v1625 = vrot.slane %v1291, 4
    %v1626 = vrot.slane %v1293, 4
    %v1627 = vrot.slane %v1295, 4
    %v1628 = vrot.slane %v1297, 4
    %v1629 = vrot.slane %v1299, 4
    %v1630 = vrot.slane %v1301, 4
    %v1631 = vrot.slane %v1303, 4
    %v1632 = vrot.slane %v1305, 4
    %v1633 = vrot.slane %v1307, 4
    %v1634 = vrot.slane %v1309, 4
    %v1635 = vrot.slane %v1311, 4
    %v1636 = vrot.slane %v1313, 4
    %v1637 = vrot.slane %v1315, 4
    %v1638 = vrot.slane %v1317, 4
    %v1639 = vrot.slane %v1319, 4
    %v1640 = vrot.slane %v1321, 4
    %v1641 = vrot.slane %v1323, 4
    %v1642 = vrot.slane %v1325, 4
    %v1643 = vrot.slane %v1327, 4
    %v1644 = vrot.slane %v1329, 4
    %v1645 = vrot.slane %v1331, 4
    %v1646 = vrot.slane %v1333, 4
    %v1647 = vrot.slane %v1335, 4
    %v1648 = vrot.slane %v1337, 4
    %v1649 = vrot.slane %v1339, 4
    %v1650 = vrot.slane %v1341, 4
    %v1651 = vrot.slane %v1343, 4
    %v1652 = vrot.slane %v1345, 4
    %v1653 = vrot.slane %v1347, 4
    %v1654 = vrot.slane %v1349, 4
    %v1655 = vrot.slane %v1351, 4
    %v1656 = vrot.slane %v1353, 4
    %v1657 = vrot.slane %v1355, 4
    %v1658 = vrot.slane %v1357, 4
    %v1659 = vrot.slane %v1359, 4
    %v1660 = vrot.slane %v1361, 4
    %v1661 = vrot.slane %v1363, 4
    %v1662 = vrot.slane %v1365, 4
    %v1663 = vrot.slane %v1367, 4
    %v1664 = vrot.slane %v1369, 4
    %v1665 = vrot.slane %v1371, 4
    %v1666 = vrot.slane %v1373, 4
    %v1667 = vrot.slane %v1375, 4
    %v1668 = vrot.slane %v1377, 4
    %v1669 = vrot.slane %v1379, 4
    %v1670 = vrot.slane %v1381, 4
    %v1671 = vrot.slane %v1383, 4
    %v1672 = vrot.slane %v1385, 4
    %v1673 = vrot.slane %v1387, 4
    %v1674 = vrot.slane %v1389, 4
    %v1675 = vrot.slane %v1391, 4
    %v1676 = vrot.slane %v1393, 4
    %v1677 = vrot.slane %v1395, 4
    %v1678 = vrot.slane %v1397, 4
    %v1679 = vrot.slane %v1399, 4
    %v1680 = vrot.slane %v1401, 4
    %v1681 = vrot.slane %v1403, 4
    %v1682 = vrot.slane %v1405, 4
    %v1683 = vrot.slane %v1407, 4
    %v1684 = vrot.slane %v1409, 4
    %v1685 = vrot.slane %v1411, 4
    %v1686 = vrot.slane %v1413, 4
    %v1687 = vrot.slane %v1415, 4
    %v1688 = vrot.slane %v1417, 4
    %v1689 = vrot.slane %v1419, 4
    %v1690 = vrot.slane %v1421, 4
    %v1691 = vrot.slane %v1423, 4
    %v1692 = vrot.slane %v1425, 4
    %v1693 = vrot.slane %v1427, 4
    %v1694 = vrot.slane %v1429, 4
    %v1695 = vrot.slane %v1431, 4
    %v1696 = vrot.slane %v1433, 4
    %v1697 = vrot.slane %v1435, 4
    %v1698 = vrot.slane %v1437, 4
    %v1699 = vrot.slane %v1439, 4
    %v1700 = vrot.slane %v1441, 4
    %v1701 = vrot.slane %v1443, 4
    %v1702 = vrot.slane %v1445, 4
    %v1703 = vrot.slane %v1447, 4
    %1768 = vrot.lane.b32.xlu0 %v873, 96
    %v1769 = vpop.permute.xlu0 %1768
    %1770 = vrot.lane.b32.xlu0 %v875, 96
    %v1771 = vpop.permute.xlu0 %1770
    %1772 = vrot.lane.b32.xlu0 %v877, 96
    %v1773 = vpop.permute.xlu0 %1772
    %1774 = vrot.lane.b32.xlu0 %v879, 96
    %v1775 = vpop.permute.xlu0 %1774
    %1776 = vrot.lane.b32.xlu0 %v881, 96
    %v1777 = vpop.permute.xlu0 %1776
    %1778 = vrot.lane.b32.xlu0 %v883, 96
    %v1779 = vpop.permute.xlu0 %1778
    %1780 = vrot.lane.b32.xlu0 %v885, 96
    %v1781 = vpop.permute.xlu0 %1780
    %1782 = vrot.lane.b32.xlu0 %v887, 96
    %v1783 = vpop.permute.xlu0 %1782
    %1784 = vrot.lane.b32.xlu0 %v889, 96
    %v1785 = vpop.permute.xlu0 %1784
    %1786 = vrot.lane.b32.xlu0 %v891, 96
    %v1787 = vpop.permute.xlu0 %1786
    %1788 = vrot.lane.b32.xlu0 %v893, 96
    %v1789 = vpop.permute.xlu0 %1788
    %1790 = vrot.lane.b32.xlu0 %v895, 96
    %v1791 = vpop.permute.xlu0 %1790
    %1792 = vrot.lane.b32.xlu0 %v897, 96
    %v1793 = vpop.permute.xlu0 %1792
    %1794 = vrot.lane.b32.xlu0 %v899, 96
    %v1795 = vpop.permute.xlu0 %1794
    %1796 = vrot.lane.b32.xlu0 %v901, 96
    %v1797 = vpop.permute.xlu0 %1796
    %1798 = vrot.lane.b32.xlu0 %v903, 96
    %v1799 = vpop.permute.xlu0 %1798
    %1800 = vrot.lane.b32.xlu0 %v905, 96
    %v1801 = vpop.permute.xlu0 %1800
    %1802 = vrot.lane.b32.xlu0 %v907, 96
    %v1803 = vpop.permute.xlu0 %1802
    %1804 = vrot.lane.b32.xlu0 %v909, 96
    %v1805 = vpop.permute.xlu0 %1804
    %1806 = vrot.lane.b32.xlu0 %v911, 96
    %v1807 = vpop.permute.xlu0 %1806
    %1808 = vrot.lane.b32.xlu0 %v913, 96
    %v1809 = vpop.permute.xlu0 %1808
    %1810 = vrot.lane.b32.xlu0 %v915, 96
    %v1811 = vpop.permute.xlu0 %1810
    %1812 = vrot.lane.b32.xlu0 %v917, 96
    %v1813 = vpop.permute.xlu0 %1812
    %1814 = vrot.lane.b32.xlu0 %v919, 96
    %v1815 = vpop.permute.xlu0 %1814
    %1816 = vrot.lane.b32.xlu0 %v921, 96
    %v1817 = vpop.permute.xlu0 %1816
    %1818 = vrot.lane.b32.xlu0 %v923, 96
    %v1819 = vpop.permute.xlu0 %1818
    %1820 = vrot.lane.b32.xlu0 %v925, 96
    %v1821 = vpop.permute.xlu0 %1820
    %1822 = vrot.lane.b32.xlu0 %v927, 96
    %v1823 = vpop.permute.xlu0 %1822
    %1824 = vrot.lane.b32.xlu0 %v929, 96
    %v1825 = vpop.permute.xlu0 %1824
    %1826 = vrot.lane.b32.xlu0 %v931, 96
    %v1827 = vpop.permute.xlu0 %1826
    %1828 = vrot.lane.b32.xlu0 %v933, 96
    %v1829 = vpop.permute.xlu0 %1828
    %1830 = vrot.lane.b32.xlu0 %v935, 96
    %v1831 = vpop.permute.xlu0 %1830
    %1832 = vrot.lane.b32.xlu0 %v937, 96
    %v1833 = vpop.permute.xlu0 %1832
    %1834 = vrot.lane.b32.xlu0 %v939, 96
    %v1835 = vpop.permute.xlu0 %1834
    %1836 = vrot.lane.b32.xlu0 %v941, 96
    %v1837 = vpop.permute.xlu0 %1836
    %1838 = vrot.lane.b32.xlu0 %v943, 96
    %v1839 = vpop.permute.xlu0 %1838
    %1840 = vrot.lane.b32.xlu0 %v945, 96
    %v1841 = vpop.permute.xlu0 %1840
    %1842 = vrot.lane.b32.xlu0 %v947, 96
    %v1843 = vpop.permute.xlu0 %1842
    %1844 = vrot.lane.b32.xlu0 %v949, 96
    %v1845 = vpop.permute.xlu0 %1844
    %1846 = vrot.lane.b32.xlu0 %v951, 96
    %v1847 = vpop.permute.xlu0 %1846
    %1848 = vrot.lane.b32.xlu0 %v953, 96
    %v1849 = vpop.permute.xlu0 %1848
    %1850 = vrot.lane.b32.xlu0 %v955, 96
    %v1851 = vpop.permute.xlu0 %1850
    %1852 = vrot.lane.b32.xlu0 %v957, 96
    %v1853 = vpop.permute.xlu0 %1852
    %1854 = vrot.lane.b32.xlu0 %v959, 96
    %v1855 = vpop.permute.xlu0 %1854
    %1856 = vrot.lane.b32.xlu0 %v961, 96
    %v1857 = vpop.permute.xlu0 %1856
    %1858 = vrot.lane.b32.xlu0 %v963, 96
    %v1859 = vpop.permute.xlu0 %1858
    %1860 = vrot.lane.b32.xlu0 %v965, 96
    %v1861 = vpop.permute.xlu0 %1860
    %1862 = vrot.lane.b32.xlu0 %v967, 96
    %v1863 = vpop.permute.xlu0 %1862
    %1864 = vrot.lane.b32.xlu0 %v969, 96
    %v1865 = vpop.permute.xlu0 %1864
    %1866 = vrot.lane.b32.xlu0 %v971, 96
    %v1867 = vpop.permute.xlu0 %1866
    %1868 = vrot.lane.b32.xlu0 %v973, 96
    %v1869 = vpop.permute.xlu0 %1868
    %1870 = vrot.lane.b32.xlu0 %v975, 96
    %v1871 = vpop.permute.xlu0 %1870
    %1872 = vrot.lane.b32.xlu0 %v977, 96
    %v1873 = vpop.permute.xlu0 %1872
    %1874 = vrot.lane.b32.xlu0 %v979, 96
    %v1875 = vpop.permute.xlu0 %1874
    %1876 = vrot.lane.b32.xlu0 %v981, 96
    %v1877 = vpop.permute.xlu0 %1876
    %1878 = vrot.lane.b32.xlu0 %v983, 96
    %v1879 = vpop.permute.xlu0 %1878
    %1880 = vrot.lane.b32.xlu0 %v985, 96
    %v1881 = vpop.permute.xlu0 %1880
    %1882 = vrot.lane.b32.xlu0 %v987, 96
    %v1883 = vpop.permute.xlu0 %1882
    %1884 = vrot.lane.b32.xlu0 %v989, 96
    %v1885 = vpop.permute.xlu0 %1884
    %1886 = vrot.lane.b32.xlu0 %v991, 96
    %v1887 = vpop.permute.xlu0 %1886
    %1888 = vrot.lane.b32.xlu0 %v993, 96
    %v1889 = vpop.permute.xlu0 %1888
    %1890 = vrot.lane.b32.xlu0 %v995, 96
    %v1891 = vpop.permute.xlu0 %1890
    %1892 = vrot.lane.b32.xlu0 %v997, 96
    %v1893 = vpop.permute.xlu0 %1892
    %1894 = vrot.lane.b32.xlu0 %v999, 96
    %v1895 = vpop.permute.xlu0 %1894
    %1896 = vrot.lane.b32.xlu0 %v873, 64
    %v1897 = vpop.permute.xlu0 %1896
    %1898 = vrot.lane.b32.xlu0 %v875, 64
    %v1899 = vpop.permute.xlu0 %1898
    %1900 = vrot.lane.b32.xlu0 %v877, 64
    %v1901 = vpop.permute.xlu0 %1900
    %1902 = vrot.lane.b32.xlu0 %v879, 64
    %v1903 = vpop.permute.xlu0 %1902
    %1904 = vrot.lane.b32.xlu0 %v881, 64
    %v1905 = vpop.permute.xlu0 %1904
    %1906 = vrot.lane.b32.xlu0 %v883, 64
    %v1907 = vpop.permute.xlu0 %1906
    %1908 = vrot.lane.b32.xlu0 %v885, 64
    %v1909 = vpop.permute.xlu0 %1908
    %1910 = vrot.lane.b32.xlu0 %v887, 64
    %v1911 = vpop.permute.xlu0 %1910
    %1912 = vrot.lane.b32.xlu0 %v889, 64
    %v1913 = vpop.permute.xlu0 %1912
    %1914 = vrot.lane.b32.xlu0 %v891, 64
    %v1915 = vpop.permute.xlu0 %1914
    %1916 = vrot.lane.b32.xlu0 %v893, 64
    %v1917 = vpop.permute.xlu0 %1916
    %1918 = vrot.lane.b32.xlu0 %v895, 64
    %v1919 = vpop.permute.xlu0 %1918
    %1920 = vrot.lane.b32.xlu0 %v897, 64
    %v1921 = vpop.permute.xlu0 %1920
    %1922 = vrot.lane.b32.xlu0 %v899, 64
    %v1923 = vpop.permute.xlu0 %1922
    %1924 = vrot.lane.b32.xlu0 %v901, 64
    %v1925 = vpop.permute.xlu0 %1924
    %1926 = vrot.lane.b32.xlu0 %v903, 64
    %v1927 = vpop.permute.xlu0 %1926
    %1928 = vrot.lane.b32.xlu0 %v905, 64
    %v1929 = vpop.permute.xlu0 %1928
    %1930 = vrot.lane.b32.xlu0 %v907, 64
    %v1931 = vpop.permute.xlu0 %1930
    %1932 = vrot.lane.b32.xlu0 %v909, 64
    %v1933 = vpop.permute.xlu0 %1932
    %1934 = vrot.lane.b32.xlu0 %v911, 64
    %v1935 = vpop.permute.xlu0 %1934
    %1936 = vrot.lane.b32.xlu0 %v913, 64
    %v1937 = vpop.permute.xlu0 %1936
    %1938 = vrot.lane.b32.xlu0 %v915, 64
    %v1939 = vpop.permute.xlu0 %1938
    %1940 = vrot.lane.b32.xlu0 %v917, 64
    %v1941 = vpop.permute.xlu0 %1940
    %1942 = vrot.lane.b32.xlu0 %v919, 64
    %v1943 = vpop.permute.xlu0 %1942
    %1944 = vrot.lane.b32.xlu0 %v921, 64
    %v1945 = vpop.permute.xlu0 %1944
    %1946 = vrot.lane.b32.xlu0 %v923, 64
    %v1947 = vpop.permute.xlu0 %1946
    %1948 = vrot.lane.b32.xlu0 %v925, 64
    %v1949 = vpop.permute.xlu0 %1948
    %1950 = vrot.lane.b32.xlu0 %v927, 64
    %v1951 = vpop.permute.xlu0 %1950
    %1952 = vrot.lane.b32.xlu0 %v929, 64
    %v1953 = vpop.permute.xlu0 %1952
    %1954 = vrot.lane.b32.xlu0 %v931, 64
    %v1955 = vpop.permute.xlu0 %1954
    %1956 = vrot.lane.b32.xlu0 %v933, 64
    %v1957 = vpop.permute.xlu0 %1956
    %1958 = vrot.lane.b32.xlu0 %v935, 64
    %v1959 = vpop.permute.xlu0 %1958
    %1960 = vrot.lane.b32.xlu0 %v937, 64
    %v1961 = vpop.permute.xlu0 %1960
    %1962 = vrot.lane.b32.xlu0 %v939, 64
    %v1963 = vpop.permute.xlu0 %1962
    %1964 = vrot.lane.b32.xlu0 %v941, 64
    %v1965 = vpop.permute.xlu0 %1964
    %1966 = vrot.lane.b32.xlu0 %v943, 64
    %v1967 = vpop.permute.xlu0 %1966
    %1968 = vrot.lane.b32.xlu0 %v945, 64
    %v1969 = vpop.permute.xlu0 %1968
    %1970 = vrot.lane.b32.xlu0 %v947, 64
    %v1971 = vpop.permute.xlu0 %1970
    %1972 = vrot.lane.b32.xlu0 %v949, 64
    %v1973 = vpop.permute.xlu0 %1972
    %1974 = vrot.lane.b32.xlu0 %v951, 64
    %v1975 = vpop.permute.xlu0 %1974
    %1976 = vrot.lane.b32.xlu0 %v953, 64
    %v1977 = vpop.permute.xlu0 %1976
    %1978 = vrot.lane.b32.xlu0 %v955, 64
    %v1979 = vpop.permute.xlu0 %1978
    %1980 = vrot.lane.b32.xlu0 %v957, 64
    %v1981 = vpop.permute.xlu0 %1980
    %1982 = vrot.lane.b32.xlu0 %v959, 64
    %v1983 = vpop.permute.xlu0 %1982
    %1984 = vrot.lane.b32.xlu0 %v961, 64
    %v1985 = vpop.permute.xlu0 %1984
    %1986 = vrot.lane.b32.xlu0 %v963, 64
    %v1987 = vpop.permute.xlu0 %1986
    %1988 = vrot.lane.b32.xlu0 %v965, 64
    %v1989 = vpop.permute.xlu0 %1988
    %1990 = vrot.lane.b32.xlu0 %v967, 64
    %v1991 = vpop.permute.xlu0 %1990
    %1992 = vrot.lane.b32.xlu0 %v969, 64
    %v1993 = vpop.permute.xlu0 %1992
    %1994 = vrot.lane.b32.xlu0 %v971, 64
    %v1995 = vpop.permute.xlu0 %1994
    %1996 = vrot.lane.b32.xlu0 %v973, 64
    %v1997 = vpop.permute.xlu0 %1996
    %1998 = vrot.lane.b32.xlu0 %v975, 64
    %v1999 = vpop.permute.xlu0 %1998
    %2000 = vrot.lane.b32.xlu0 %v977, 64
    %v2001 = vpop.permute.xlu0 %2000
    %2002 = vrot.lane.b32.xlu0 %v979, 64
    %v2003 = vpop.permute.xlu0 %2002
    %2004 = vrot.lane.b32.xlu0 %v981, 64
    %v2005 = vpop.permute.xlu0 %2004
    %2006 = vrot.lane.b32.xlu0 %v983, 64
    %v2007 = vpop.permute.xlu0 %2006
    %2008 = vrot.lane.b32.xlu0 %v985, 64
    %v2009 = vpop.permute.xlu0 %2008
    %2010 = vrot.lane.b32.xlu0 %v987, 64
    %v2011 = vpop.permute.xlu0 %2010
    %2012 = vrot.lane.b32.xlu0 %v989, 64
    %v2013 = vpop.permute.xlu0 %2012
    %2014 = vrot.lane.b32.xlu0 %v991, 64
    %v2015 = vpop.permute.xlu0 %2014
    %2016 = vrot.lane.b32.xlu0 %v993, 64
    %v2017 = vpop.permute.xlu0 %2016
    %2018 = vrot.lane.b32.xlu0 %v995, 64
    %v2019 = vpop.permute.xlu0 %2018
    %2020 = vrot.lane.b32.xlu0 %v997, 64
    %v2021 = vpop.permute.xlu0 %2020
    %2022 = vrot.lane.b32.xlu0 %v999, 64
    %v2023 = vpop.permute.xlu0 %2022
    %2024 = vrot.lane.b32.xlu0 %v873, 32
    %v2025 = vpop.permute.xlu0 %2024
    %2026 = vrot.lane.b32.xlu0 %v875, 32
    %v2027 = vpop.permute.xlu0 %2026
    %2028 = vrot.lane.b32.xlu0 %v877, 32
    %v2029 = vpop.permute.xlu0 %2028
    %2030 = vrot.lane.b32.xlu0 %v879, 32
    %v2031 = vpop.permute.xlu0 %2030
    %2032 = vrot.lane.b32.xlu0 %v881, 32
    %v2033 = vpop.permute.xlu0 %2032
    %2034 = vrot.lane.b32.xlu0 %v883, 32
    %v2035 = vpop.permute.xlu0 %2034
    %2036 = vrot.lane.b32.xlu0 %v885, 32
    %v2037 = vpop.permute.xlu0 %2036
    %2038 = vrot.lane.b32.xlu0 %v887, 32
    %v2039 = vpop.permute.xlu0 %2038
    %2040 = vrot.lane.b32.xlu0 %v889, 32
    %v2041 = vpop.permute.xlu0 %2040
    %2042 = vrot.lane.b32.xlu0 %v891, 32
    %v2043 = vpop.permute.xlu0 %2042
    %2044 = vrot.lane.b32.xlu0 %v893, 32
    %v2045 = vpop.permute.xlu0 %2044
    %2046 = vrot.lane.b32.xlu0 %v895, 32
    %v2047 = vpop.permute.xlu0 %2046
    %2048 = vrot.lane.b32.xlu0 %v897, 32
    %v2049 = vpop.permute.xlu0 %2048
    %2050 = vrot.lane.b32.xlu0 %v899, 32
    %v2051 = vpop.permute.xlu0 %2050
    %2052 = vrot.lane.b32.xlu0 %v901, 32
    %v2053 = vpop.permute.xlu0 %2052
    %2054 = vrot.lane.b32.xlu0 %v903, 32
    %v2055 = vpop.permute.xlu0 %2054
    %2056 = vrot.lane.b32.xlu0 %v905, 32
    %v2057 = vpop.permute.xlu0 %2056
    %2058 = vrot.lane.b32.xlu0 %v907, 32
    %v2059 = vpop.permute.xlu0 %2058
    %2060 = vrot.lane.b32.xlu0 %v909, 32
    %v2061 = vpop.permute.xlu0 %2060
    %2062 = vrot.lane.b32.xlu0 %v911, 32
    %v2063 = vpop.permute.xlu0 %2062
    %2064 = vrot.lane.b32.xlu0 %v913, 32
    %v2065 = vpop.permute.xlu0 %2064
    %2066 = vrot.lane.b32.xlu0 %v915, 32
    %v2067 = vpop.permute.xlu0 %2066
    %2068 = vrot.lane.b32.xlu0 %v917, 32
    %v2069 = vpop.permute.xlu0 %2068
    %2070 = vrot.lane.b32.xlu0 %v919, 32
    %v2071 = vpop.permute.xlu0 %2070
    %2072 = vrot.lane.b32.xlu0 %v921, 32
    %v2073 = vpop.permute.xlu0 %2072
    %2074 = vrot.lane.b32.xlu0 %v923, 32
    %v2075 = vpop.permute.xlu0 %2074
    %2076 = vrot.lane.b32.xlu0 %v925, 32
    %v2077 = vpop.permute.xlu0 %2076
    %2078 = vrot.lane.b32.xlu0 %v927, 32
    %v2079 = vpop.permute.xlu0 %2078
    %2080 = vrot.lane.b32.xlu0 %v929, 32
    %v2081 = vpop.permute.xlu0 %2080
    %2082 = vrot.lane.b32.xlu0 %v931, 32
    %v2083 = vpop.permute.xlu0 %2082
    %2084 = vrot.lane.b32.xlu0 %v933, 32
    %v2085 = vpop.permute.xlu0 %2084
    %2086 = vrot.lane.b32.xlu0 %v935, 32
    %v2087 = vpop.permute.xlu0 %2086
    %2088 = vrot.lane.b32.xlu0 %v937, 32
    %v2089 = vpop.permute.xlu0 %2088
    %2090 = vrot.lane.b32.xlu0 %v939, 32
    %v2091 = vpop.permute.xlu0 %2090
    %2092 = vrot.lane.b32.xlu0 %v941, 32
    %v2093 = vpop.permute.xlu0 %2092
    %2094 = vrot.lane.b32.xlu0 %v943, 32
    %v2095 = vpop.permute.xlu0 %2094
    %2096 = vrot.lane.b32.xlu0 %v945, 32
    %v2097 = vpop.permute.xlu0 %2096
    %2098 = vrot.lane.b32.xlu0 %v947, 32
    %v2099 = vpop.permute.xlu0 %2098
    %2100 = vrot.lane.b32.xlu0 %v949, 32
    %v2101 = vpop.permute.xlu0 %2100
    %2102 = vrot.lane.b32.xlu0 %v951, 32
    %v2103 = vpop.permute.xlu0 %2102
    %2104 = vrot.lane.b32.xlu0 %v953, 32
    %v2105 = vpop.permute.xlu0 %2104
    %2106 = vrot.lane.b32.xlu0 %v955, 32
    %v2107 = vpop.permute.xlu0 %2106
    %2108 = vrot.lane.b32.xlu0 %v957, 32
    %v2109 = vpop.permute.xlu0 %2108
    %2110 = vrot.lane.b32.xlu0 %v959, 32
    %v2111 = vpop.permute.xlu0 %2110
    %2112 = vrot.lane.b32.xlu0 %v961, 32
    %v2113 = vpop.permute.xlu0 %2112
    %2114 = vrot.lane.b32.xlu0 %v963, 32
    %v2115 = vpop.permute.xlu0 %2114
    %2116 = vrot.lane.b32.xlu0 %v965, 32
    %v2117 = vpop.permute.xlu0 %2116
    %2118 = vrot.lane.b32.xlu0 %v967, 32
    %v2119 = vpop.permute.xlu0 %2118
    %2120 = vrot.lane.b32.xlu0 %v969, 32
    %v2121 = vpop.permute.xlu0 %2120
    %2122 = vrot.lane.b32.xlu0 %v971, 32
    %v2123 = vpop.permute.xlu0 %2122
    %2124 = vrot.lane.b32.xlu0 %v973, 32
    %v2125 = vpop.permute.xlu0 %2124
    %2126 = vrot.lane.b32.xlu0 %v975, 32
    %v2127 = vpop.permute.xlu0 %2126
    %2128 = vrot.lane.b32.xlu0 %v977, 32
    %v2129 = vpop.permute.xlu0 %2128
    %2130 = vrot.lane.b32.xlu0 %v979, 32
    %v2131 = vpop.permute.xlu0 %2130
    %2132 = vrot.lane.b32.xlu0 %v981, 32
    %v2133 = vpop.permute.xlu0 %2132
    %2134 = vrot.lane.b32.xlu0 %v983, 32
    %v2135 = vpop.permute.xlu0 %2134
    %2136 = vrot.lane.b32.xlu0 %v985, 32
    %v2137 = vpop.permute.xlu0 %2136
    %2138 = vrot.lane.b32.xlu0 %v987, 32
    %v2139 = vpop.permute.xlu0 %2138
    %2140 = vrot.lane.b32.xlu0 %v989, 32
    %v2141 = vpop.permute.xlu0 %2140
    %2142 = vrot.lane.b32.xlu0 %v991, 32
    %v2143 = vpop.permute.xlu0 %2142
    %2144 = vrot.lane.b32.xlu0 %v993, 32
    %v2145 = vpop.permute.xlu0 %2144
    %2146 = vrot.lane.b32.xlu0 %v995, 32
    %v2147 = vpop.permute.xlu0 %2146
    %2148 = vrot.lane.b32.xlu0 %v997, 32
    %v2149 = vpop.permute.xlu0 %2148
    %2150 = vrot.lane.b32.xlu0 %v999, 32
    %v2151 = vpop.permute.xlu0 %2150
    %v2152 = vunpack.c.l.b16 %v872
    %v2153 = vunpack.c.l.b16 %v874
    %v2154 = vunpack.c.l.b16 %v876
    %v2155 = vunpack.c.l.b16 %v878
    %v2156 = vunpack.c.l.b16 %v880
    %v2157 = vunpack.c.l.b16 %v882
    %v2158 = vunpack.c.l.b16 %v884
    %v2159 = vunpack.c.l.b16 %v886
    %v2160 = vpack.c.b16 %v2153, %v2152
    %v2161 = vpack.c.b16 %v2155, %v2154
    %v2162 = vpack.c.b16 %v2157, %v2156
    %v2163 = vpack.c.b16 %v2159, %v2158
    %v2164 = vunpack.c.l.b16 %v1448
    %v2165 = vunpack.c.l.b16 %v1449
    %v2166 = vunpack.c.l.b16 %v1450
    %v2167 = vunpack.c.l.b16 %v1451
    %v2168 = vunpack.c.l.b16 %v1452
    %v2169 = vunpack.c.l.b16 %v1453
    %v2170 = vunpack.c.l.b16 %v1454
    %v2171 = vunpack.c.l.b16 %v1455
    %v2172 = vpack.c.b16 %v2165, %v2164
    %v2173 = vpack.c.b16 %v2167, %v2166
    %v2174 = vpack.c.b16 %v2169, %v2168
    %v2175 = vpack.c.b16 %v2171, %v2170
    %vm2176 = vcmask 261120
    %v2178 = vsel %vm2176, %v2160, 0
    %v2181 = vsel %vm2176, %v2161, 0
    %v2184 = vsel %vm2176, %v2162, 0
    %v2187 = vsel %vm2176, %v2163, 0
    %v2190 = vsel %vm2176, %v2172, 0
    %v2193 = vsel %vm2176, %v2173, 0
    %v2196 = vsel %vm2176, %v2174, 0
    %v2199 = vsel %vm2176, %v2175, 0
    %2201 = vmatpush.bf16.xpose.msra.mxu0 0
    %2202 = vmatpush.bf16.xpose.msra.mxu0 0
    %2203 = vmatpush.bf16.xpose.msra.mxu0 0
    %2204 = vmatpush.bf16.xpose.msra.mxu0 0
    %2205 = vmatpush.bf16.xpose.msra.mxu0 %v2199
    %2206 = vmatpush.bf16.xpose.msra.mxu0 %v2196
    %2207 = vmatpush.bf16.xpose.msra.mxu0 %v2193
    %2208 = vmatpush.bf16.xpose.msra.mxu0 %v2190
    %2209 = vmatmul.bf16.gmra.mxu0 %v2178
    %v2210 = vpop.f32.mrf.mxu0
    %v2211 = vadd.f32 0.0, %v2210
    %v2212 = vpop.f32.mrf.mxu0
    %v2213 = vadd.f32 0.0, %v2212
    %2214 = vmatmul.bf16.gmra.mxu0 %v2181
    %v2215 = vpop.f32.mrf.mxu0
    %v2216 = vadd.f32 0.0, %v2215
    %v2217 = vpop.f32.mrf.mxu0
    %v2218 = vadd.f32 0.0, %v2217
    %2219 = vmatmul.bf16.gmra.mxu0 %v2184
    %v2220 = vpop.f32.mrf.mxu0
    %v2221 = vadd.f32 0.0, %v2220
    %v2222 = vpop.f32.mrf.mxu0
    %v2223 = vadd.f32 0.0, %v2222
    %2224 = vmatmul.bf16.gmra.mxu0 %v2187
    %v2225 = vpop.f32.mrf.mxu0
    %v2226 = vadd.f32 0.0, %v2225
    %v2227 = vpop.f32.mrf.mxu0
    %v2228 = vadd.f32 0.0, %v2227
    %2229 = vdwg.mxu0
    %v2230 = vunpack.c.l.b16 %v888
    %v2231 = vunpack.c.l.b16 %v890
    %v2232 = vunpack.c.l.b16 %v892
    %v2233 = vunpack.c.l.b16 %v894
    %v2234 = vunpack.c.l.b16 %v896
    %v2235 = vunpack.c.l.b16 %v898
    %v2236 = vunpack.c.l.b16 %v900
    %v2237 = vunpack.c.l.b16 %v902
    %v2238 = vpack.c.b16 %v2231, %v2230
    %v2239 = vpack.c.b16 %v2233, %v2232
    %v2240 = vpack.c.b16 %v2235, %v2234
    %v2241 = vpack.c.b16 %v2237, %v2236
    %v2242 = vunpack.c.l.b16 %v1456
    %v2243 = vunpack.c.l.b16 %v1457
    %v2244 = vunpack.c.l.b16 %v1458
    %v2245 = vunpack.c.l.b16 %v1459
    %v2246 = vunpack.c.l.b16 %v1460
    %v2247 = vunpack.c.l.b16 %v1461
    %v2248 = vunpack.c.l.b16 %v1462
    %v2249 = vunpack.c.l.b16 %v1463
    %v2250 = vpack.c.b16 %v2243, %v2242
    %v2251 = vpack.c.b16 %v2245, %v2244
    %v2252 = vpack.c.b16 %v2247, %v2246
    %v2253 = vpack.c.b16 %v2249, %v2248
    %v2255 = vsel %vm2176, %v2238, 0
    %v2258 = vsel %vm2176, %v2239, 0
    %v2261 = vsel %vm2176, %v2240, 0
    %v2264 = vsel %vm2176, %v2241, 0
    %v2267 = vsel %vm2176, %v2250, 0
    %v2270 = vsel %vm2176, %v2251, 0
    %v2273 = vsel %vm2176, %v2252, 0
    %v2276 = vsel %vm2176, %v2253, 0
    %2278 = vmatpush.bf16.xpose.msra.mxu0 0
    %2279 = vmatpush.bf16.xpose.msra.mxu0 0
    %2280 = vmatpush.bf16.xpose.msra.mxu0 0
    %2281 = vmatpush.bf16.xpose.msra.mxu0 0
    %2282 = vmatpush.bf16.xpose.msra.mxu0 %v2276
    %2283 = vmatpush.bf16.xpose.msra.mxu0 %v2273
    %2284 = vmatpush.bf16.xpose.msra.mxu0 %v2270
    %2285 = vmatpush.bf16.xpose.msra.mxu0 %v2267
    %2286 = vmatmul.bf16.gmra.mxu0 %v2255
    %v2287 = vpop.f32.mrf.mxu0
    %v2288 = vadd.f32 0.0, %v2287
    %v2289 = vpop.f32.mrf.mxu0
    %v2290 = vadd.f32 0.0, %v2289
    %2291 = vmatmul.bf16.gmra.mxu0 %v2258
    %v2292 = vpop.f32.mrf.mxu0
    %v2293 = vadd.f32 0.0, %v2292
    %v2294 = vpop.f32.mrf.mxu0
    %v2295 = vadd.f32 0.0, %v2294
    %2296 = vmatmul.bf16.gmra.mxu0 %v2261
    %v2297 = vpop.f32.mrf.mxu0
    %v2298 = vadd.f32 0.0, %v2297
    %v2299 = vpop.f32.mrf.mxu0
    %v2300 = vadd.f32 0.0, %v2299
    %2301 = vmatmul.bf16.gmra.mxu0 %v2264
    %v2302 = vpop.f32.mrf.mxu0
    %v2303 = vadd.f32 0.0, %v2302
    %v2304 = vpop.f32.mrf.mxu0
    %v2305 = vadd.f32 0.0, %v2304
    %2306 = vdwg.mxu0
    %v2307 = vunpack.c.l.b16 %v904
    %v2308 = vunpack.c.l.b16 %v906
    %v2309 = vunpack.c.l.b16 %v908
    %v2310 = vunpack.c.l.b16 %v910
    %v2311 = vunpack.c.l.b16 %v912
    %v2312 = vunpack.c.l.b16 %v914
    %v2313 = vunpack.c.l.b16 %v916
    %v2314 = vunpack.c.l.b16 %v918
    %v2315 = vpack.c.b16 %v2308, %v2307
    %v2316 = vpack.c.b16 %v2310, %v2309
    %v2317 = vpack.c.b16 %v2312, %v2311
    %v2318 = vpack.c.b16 %v2314, %v2313
    %v2319 = vunpack.c.l.b16 %v1464
    %v2320 = vunpack.c.l.b16 %v1465
    %v2321 = vunpack.c.l.b16 %v1466
    %v2322 = vunpack.c.l.b16 %v1467
    %v2323 = vunpack.c.l.b16 %v1468
    %v2324 = vunpack.c.l.b16 %v1469
    %v2325 = vunpack.c.l.b16 %v1470
    %v2326 = vunpack.c.l.b16 %v1471
    %v2327 = vpack.c.b16 %v2320, %v2319
    %v2328 = vpack.c.b16 %v2322, %v2321
    %v2329 = vpack.c.b16 %v2324, %v2323
    %v2330 = vpack.c.b16 %v2326, %v2325
    %v2332 = vsel %vm2176, %v2315, 0
    %v2335 = vsel %vm2176, %v2316, 0
    %v2338 = vsel %vm2176, %v2317, 0
    %v2341 = vsel %vm2176, %v2318, 0
    %v2344 = vsel %vm2176, %v2327, 0
    %v2347 = vsel %vm2176, %v2328, 0
    %v2350 = vsel %vm2176, %v2329, 0
    %v2353 = vsel %vm2176, %v2330, 0
    %2355 = vmatpush.bf16.xpose.msra.mxu0 0
    %2356 = vmatpush.bf16.xpose.msra.mxu0 0
    %2357 = vmatpush.bf16.xpose.msra.mxu0 0
    %2358 = vmatpush.bf16.xpose.msra.mxu0 0
    %2359 = vmatpush.bf16.xpose.msra.mxu0 %v2353
    %2360 = vmatpush.bf16.xpose.msra.mxu0 %v2350
    %2361 = vmatpush.bf16.xpose.msra.mxu0 %v2347
    %2362 = vmatpush.bf16.xpose.msra.mxu0 %v2344
    %2363 = vmatmul.bf16.gmra.mxu0 %v2332
    %v2364 = vpop.f32.mrf.mxu0
    %v2365 = vadd.f32 0.0, %v2364
    %v2366 = vpop.f32.mrf.mxu0
    %v2367 = vadd.f32 0.0, %v2366
    %2368 = vmatmul.bf16.gmra.mxu0 %v2335
    %v2369 = vpop.f32.mrf.mxu0
    %v2370 = vadd.f32 0.0, %v2369
    %v2371 = vpop.f32.mrf.mxu0
    %v2372 = vadd.f32 0.0, %v2371
    %2373 = vmatmul.bf16.gmra.mxu0 %v2338
    %v2374 = vpop.f32.mrf.mxu0
    %v2375 = vadd.f32 0.0, %v2374
    %v2376 = vpop.f32.mrf.mxu0
    %v2377 = vadd.f32 0.0, %v2376
    %2378 = vmatmul.bf16.gmra.mxu0 %v2341
    %v2379 = vpop.f32.mrf.mxu0
    %v2380 = vadd.f32 0.0, %v2379
    %v2381 = vpop.f32.mrf.mxu0
    %v2382 = vadd.f32 0.0, %v2381
    %2383 = vdwg.mxu0
    %v2384 = vunpack.c.l.b16 %v920
    %v2385 = vunpack.c.l.b16 %v922
    %v2386 = vunpack.c.l.b16 %v924
    %v2387 = vunpack.c.l.b16 %v926
    %v2388 = vunpack.c.l.b16 %v928
    %v2389 = vunpack.c.l.b16 %v930
    %v2390 = vunpack.c.l.b16 %v932
    %v2391 = vunpack.c.l.b16 %v934
    %v2392 = vpack.c.b16 %v2385, %v2384
    %v2393 = vpack.c.b16 %v2387, %v2386
    %v2394 = vpack.c.b16 %v2389, %v2388
    %v2395 = vpack.c.b16 %v2391, %v2390
    %v2396 = vunpack.c.l.b16 %v1472
    %v2397 = vunpack.c.l.b16 %v1473
    %v2398 = vunpack.c.l.b16 %v1474
    %v2399 = vunpack.c.l.b16 %v1475
    %v2400 = vunpack.c.l.b16 %v1476
    %v2401 = vunpack.c.l.b16 %v1477
    %v2402 = vunpack.c.l.b16 %v1478
    %v2403 = vunpack.c.l.b16 %v1479
    %v2404 = vpack.c.b16 %v2397, %v2396
    %v2405 = vpack.c.b16 %v2399, %v2398
    %v2406 = vpack.c.b16 %v2401, %v2400
    %v2407 = vpack.c.b16 %v2403, %v2402
    %v2409 = vsel %vm2176, %v2392, 0
    %v2412 = vsel %vm2176, %v2393, 0
    %v2415 = vsel %vm2176, %v2394, 0
    %v2418 = vsel %vm2176, %v2395, 0
    %v2421 = vsel %vm2176, %v2404, 0
    %v2424 = vsel %vm2176, %v2405, 0
    %v2427 = vsel %vm2176, %v2406, 0
    %v2430 = vsel %vm2176, %v2407, 0
    %2432 = vmatpush.bf16.xpose.msra.mxu0 0
    %2433 = vmatpush.bf16.xpose.msra.mxu0 0
    %2434 = vmatpush.bf16.xpose.msra.mxu0 0
    %2435 = vmatpush.bf16.xpose.msra.mxu0 0
    %2436 = vmatpush.bf16.xpose.msra.mxu0 %v2430
    %2437 = vmatpush.bf16.xpose.msra.mxu0 %v2427
    %2438 = vmatpush.bf16.xpose.msra.mxu0 %v2424
    %2439 = vmatpush.bf16.xpose.msra.mxu0 %v2421
    %2440 = vmatmul.bf16.gmra.mxu0 %v2409
    %v2441 = vpop.f32.mrf.mxu0
    %v2442 = vadd.f32 0.0, %v2441
    %v2443 = vpop.f32.mrf.mxu0
    %v2444 = vadd.f32 0.0, %v2443
    %2445 = vmatmul.bf16.gmra.mxu0 %v2412
    %v2446 = vpop.f32.mrf.mxu0
    %v2447 = vadd.f32 0.0, %v2446
    %v2448 = vpop.f32.mrf.mxu0
    %v2449 = vadd.f32 0.0, %v2448
    %2450 = vmatmul.bf16.gmra.mxu0 %v2415
    %v2451 = vpop.f32.mrf.mxu0
    %v2452 = vadd.f32 0.0, %v2451
    %v2453 = vpop.f32.mrf.mxu0
    %v2454 = vadd.f32 0.0, %v2453
    %2455 = vmatmul.bf16.gmra.mxu0 %v2418
    %v2456 = vpop.f32.mrf.mxu0
    %v2457 = vadd.f32 0.0, %v2456
    %v2458 = vpop.f32.mrf.mxu0
    %v2459 = vadd.f32 0.0, %v2458
    %2460 = vdwg.mxu0
    %v2461 = vunpack.c.l.b16 %v936
    %v2462 = vunpack.c.l.b16 %v938
    %v2463 = vunpack.c.l.b16 %v940
    %v2464 = vunpack.c.l.b16 %v942
    %v2465 = vunpack.c.l.b16 %v944
    %v2466 = vunpack.c.l.b16 %v946
    %v2467 = vunpack.c.l.b16 %v948
    %v2468 = vunpack.c.l.b16 %v950
    %v2469 = vpack.c.b16 %v2462, %v2461
    %v2470 = vpack.c.b16 %v2464, %v2463
    %v2471 = vpack.c.b16 %v2466, %v2465
    %v2472 = vpack.c.b16 %v2468, %v2467
    %v2473 = vunpack.c.l.b16 %v1480
    %v2474 = vunpack.c.l.b16 %v1481
    %v2475 = vunpack.c.l.b16 %v1482
    %v2476 = vunpack.c.l.b16 %v1483
    %v2477 = vunpack.c.l.b16 %v1484
    %v2478 = vunpack.c.l.b16 %v1485
    %v2479 = vunpack.c.l.b16 %v1486
    %v2480 = vunpack.c.l.b16 %v1487
    %v2481 = vpack.c.b16 %v2474, %v2473
    %v2482 = vpack.c.b16 %v2476, %v2475
    %v2483 = vpack.c.b16 %v2478, %v2477
    %v2484 = vpack.c.b16 %v2480, %v2479
    %v2486 = vsel %vm2176, %v2469, 0
    %v2489 = vsel %vm2176, %v2470, 0
    %v2492 = vsel %vm2176, %v2471, 0
    %v2495 = vsel %vm2176, %v2472, 0
    %v2498 = vsel %vm2176, %v2481, 0
    %v2501 = vsel %vm2176, %v2482, 0
    %v2504 = vsel %vm2176, %v2483, 0
    %v2507 = vsel %vm2176, %v2484, 0
    %2509 = vmatpush.bf16.xpose.msra.mxu0 0
    %2510 = vmatpush.bf16.xpose.msra.mxu0 0
    %2511 = vmatpush.bf16.xpose.msra.mxu0 0
    %2512 = vmatpush.bf16.xpose.msra.mxu0 0
    %2513 = vmatpush.bf16.xpose.msra.mxu0 %v2507
    %2514 = vmatpush.bf16.xpose.msra.mxu0 %v2504
    %2515 = vmatpush.bf16.xpose.msra.mxu0 %v2501
    %2516 = vmatpush.bf16.xpose.msra.mxu0 %v2498
    %2517 = vmatmul.bf16.gmra.mxu0 %v2486
    %v2518 = vpop.f32.mrf.mxu0
    %v2519 = vadd.f32 0.0, %v2518
    %v2520 = vpop.f32.mrf.mxu0
    %v2521 = vadd.f32 0.0, %v2520
    %2522 = vmatmul.bf16.gmra.mxu0 %v2489
    %v2523 = vpop.f32.mrf.mxu0
    %v2524 = vadd.f32 0.0, %v2523
    %v2525 = vpop.f32.mrf.mxu0
    %v2526 = vadd.f32 0.0, %v2525
    %2527 = vmatmul.bf16.gmra.mxu0 %v2492
    %v2528 = vpop.f32.mrf.mxu0
    %v2529 = vadd.f32 0.0, %v2528
    %v2530 = vpop.f32.mrf.mxu0
    %v2531 = vadd.f32 0.0, %v2530
    %2532 = vmatmul.bf16.gmra.mxu0 %v2495
    %v2533 = vpop.f32.mrf.mxu0
    %v2534 = vadd.f32 0.0, %v2533
    %v2535 = vpop.f32.mrf.mxu0
    %v2536 = vadd.f32 0.0, %v2535
    %2537 = vdwg.mxu0
    %v2538 = vunpack.c.l.b16 %v952
    %v2539 = vunpack.c.l.b16 %v954
    %v2540 = vunpack.c.l.b16 %v956
    %v2541 = vunpack.c.l.b16 %v958
    %v2542 = vunpack.c.l.b16 %v960
    %v2543 = vunpack.c.l.b16 %v962
    %v2544 = vunpack.c.l.b16 %v964
    %v2545 = vunpack.c.l.b16 %v966
    %v2546 = vpack.c.b16 %v2539, %v2538
    %v2547 = vpack.c.b16 %v2541, %v2540
    %v2548 = vpack.c.b16 %v2543, %v2542
    %v2549 = vpack.c.b16 %v2545, %v2544
    %v2550 = vunpack.c.l.b16 %v1488
    %v2551 = vunpack.c.l.b16 %v1489
    %v2552 = vunpack.c.l.b16 %v1490
    %v2553 = vunpack.c.l.b16 %v1491
    %v2554 = vunpack.c.l.b16 %v1492
    %v2555 = vunpack.c.l.b16 %v1493
    %v2556 = vunpack.c.l.b16 %v1494
    %v2557 = vunpack.c.l.b16 %v1495
    %v2558 = vpack.c.b16 %v2551, %v2550
    %v2559 = vpack.c.b16 %v2553, %v2552
    %v2560 = vpack.c.b16 %v2555, %v2554
    %v2561 = vpack.c.b16 %v2557, %v2556
    %v2563 = vsel %vm2176, %v2546, 0
    %v2566 = vsel %vm2176, %v2547, 0
    %v2569 = vsel %vm2176, %v2548, 0
    %v2572 = vsel %vm2176, %v2549, 0
    %v2575 = vsel %vm2176, %v2558, 0
    %v2578 = vsel %vm2176, %v2559, 0
    %v2581 = vsel %vm2176, %v2560, 0
    %v2584 = vsel %vm2176, %v2561, 0
    %2586 = vmatpush.bf16.xpose.msra.mxu0 0
    %2587 = vmatpush.bf16.xpose.msra.mxu0 0
    %2588 = vmatpush.bf16.xpose.msra.mxu0 0
    %2589 = vmatpush.bf16.xpose.msra.mxu0 0
    %2590 = vmatpush.bf16.xpose.msra.mxu0 %v2584
    %2591 = vmatpush.bf16.xpose.msra.mxu0 %v2581
    %2592 = vmatpush.bf16.xpose.msra.mxu0 %v2578
    %2593 = vmatpush.bf16.xpose.msra.mxu0 %v2575
    %2594 = vmatmul.bf16.gmra.mxu0 %v2563
    %v2595 = vpop.f32.mrf.mxu0
    %v2596 = vadd.f32 0.0, %v2595
    %v2597 = vpop.f32.mrf.mxu0
    %v2598 = vadd.f32 0.0, %v2597
    %2599 = vmatmul.bf16.gmra.mxu0 %v2566
    %v2600 = vpop.f32.mrf.mxu0
    %v2601 = vadd.f32 0.0, %v2600
    %v2602 = vpop.f32.mrf.mxu0
    %v2603 = vadd.f32 0.0, %v2602
    %2604 = vmatmul.bf16.gmra.mxu0 %v2569
    %v2605 = vpop.f32.mrf.mxu0
    %v2606 = vadd.f32 0.0, %v2605
    %v2607 = vpop.f32.mrf.mxu0
    %v2608 = vadd.f32 0.0, %v2607
    %2609 = vmatmul.bf16.gmra.mxu0 %v2572
    %v2610 = vpop.f32.mrf.mxu0
    %v2611 = vadd.f32 0.0, %v2610
    %v2612 = vpop.f32.mrf.mxu0
    %v2613 = vadd.f32 0.0, %v2612
    %2614 = vdwg.mxu0
    %v2615 = vunpack.c.l.b16 %v968
    %v2616 = vunpack.c.l.b16 %v970
    %v2617 = vunpack.c.l.b16 %v972
    %v2618 = vunpack.c.l.b16 %v974
    %v2619 = vunpack.c.l.b16 %v976
    %v2620 = vunpack.c.l.b16 %v978
    %v2621 = vunpack.c.l.b16 %v980
    %v2622 = vunpack.c.l.b16 %v982
    %v2623 = vpack.c.b16 %v2616, %v2615
    %v2624 = vpack.c.b16 %v2618, %v2617
    %v2625 = vpack.c.b16 %v2620, %v2619
    %v2626 = vpack.c.b16 %v2622, %v2621
    %v2627 = vunpack.c.l.b16 %v1496
    %v2628 = vunpack.c.l.b16 %v1497
    %v2629 = vunpack.c.l.b16 %v1498
    %v2630 = vunpack.c.l.b16 %v1499
    %v2631 = vunpack.c.l.b16 %v1500
    %v2632 = vunpack.c.l.b16 %v1501
    %v2633 = vunpack.c.l.b16 %v1502
    %v2634 = vunpack.c.l.b16 %v1503
    %v2635 = vpack.c.b16 %v2628, %v2627
    %v2636 = vpack.c.b16 %v2630, %v2629
    %v2637 = vpack.c.b16 %v2632, %v2631
    %v2638 = vpack.c.b16 %v2634, %v2633
    %v2640 = vsel %vm2176, %v2623, 0
    %v2643 = vsel %vm2176, %v2624, 0
    %v2646 = vsel %vm2176, %v2625, 0
    %v2649 = vsel %vm2176, %v2626, 0
    %v2652 = vsel %vm2176, %v2635, 0
    %v2655 = vsel %vm2176, %v2636, 0
    %v2658 = vsel %vm2176, %v2637, 0
    %v2661 = vsel %vm2176, %v2638, 0
    %2663 = vmatpush.bf16.xpose.msra.mxu0 0
    %2664 = vmatpush.bf16.xpose.msra.mxu0 0
    %2665 = vmatpush.bf16.xpose.msra.mxu0 0
    %2666 = vmatpush.bf16.xpose.msra.mxu0 0
    %2667 = vmatpush.bf16.xpose.msra.mxu0 %v2661
    %2668 = vmatpush.bf16.xpose.msra.mxu0 %v2658
    %2669 = vmatpush.bf16.xpose.msra.mxu0 %v2655
    %2670 = vmatpush.bf16.xpose.msra.mxu0 %v2652
    %2671 = vmatmul.bf16.gmra.mxu0 %v2640
    %v2672 = vpop.f32.mrf.mxu0
    %v2673 = vadd.f32 0.0, %v2672
    %v2674 = vpop.f32.mrf.mxu0
    %v2675 = vadd.f32 0.0, %v2674
    %2676 = vmatmul.bf16.gmra.mxu0 %v2643
    %v2677 = vpop.f32.mrf.mxu0
    %v2678 = vadd.f32 0.0, %v2677
    %v2679 = vpop.f32.mrf.mxu0
    %v2680 = vadd.f32 0.0, %v2679
    %2681 = vmatmul.bf16.gmra.mxu0 %v2646
    %v2682 = vpop.f32.mrf.mxu0
    %v2683 = vadd.f32 0.0, %v2682
    %v2684 = vpop.f32.mrf.mxu0
    %v2685 = vadd.f32 0.0, %v2684
    %2686 = vmatmul.bf16.gmra.mxu0 %v2649
    %v2687 = vpop.f32.mrf.mxu0
    %v2688 = vadd.f32 0.0, %v2687
    %v2689 = vpop.f32.mrf.mxu0
    %v2690 = vadd.f32 0.0, %v2689
    %2691 = vdwg.mxu0
    %v2692 = vunpack.c.l.b16 %v984
    %v2693 = vunpack.c.l.b16 %v986
    %v2694 = vunpack.c.l.b16 %v988
    %v2695 = vunpack.c.l.b16 %v990
    %v2696 = vunpack.c.l.b16 %v992
    %v2697 = vunpack.c.l.b16 %v994
    %v2698 = vunpack.c.l.b16 %v996
    %v2699 = vunpack.c.l.b16 %v998
    %v2700 = vpack.c.b16 %v2693, %v2692
    %v2701 = vpack.c.b16 %v2695, %v2694
    %v2702 = vpack.c.b16 %v2697, %v2696
    %v2703 = vpack.c.b16 %v2699, %v2698
    %v2704 = vunpack.c.l.b16 %v1504
    %v2705 = vunpack.c.l.b16 %v1505
    %v2706 = vunpack.c.l.b16 %v1506
    %v2707 = vunpack.c.l.b16 %v1507
    %v2708 = vunpack.c.l.b16 %v1508
    %v2709 = vunpack.c.l.b16 %v1509
    %v2710 = vunpack.c.l.b16 %v1510
    %v2711 = vunpack.c.l.b16 %v1511
    %v2712 = vpack.c.b16 %v2705, %v2704
    %v2713 = vpack.c.b16 %v2707, %v2706
    %v2714 = vpack.c.b16 %v2709, %v2708
    %v2715 = vpack.c.b16 %v2711, %v2710
    %v2717 = vsel %vm2176, %v2700, 0
    %v2720 = vsel %vm2176, %v2701, 0
    %v2723 = vsel %vm2176, %v2702, 0
    %v2726 = vsel %vm2176, %v2703, 0
    %v2729 = vsel %vm2176, %v2712, 0
    %v2732 = vsel %vm2176, %v2713, 0
    %v2735 = vsel %vm2176, %v2714, 0
    %v2738 = vsel %vm2176, %v2715, 0
    %2740 = vmatpush.bf16.xpose.msra.mxu0 0
    %2741 = vmatpush.bf16.xpose.msra.mxu0 0
    %2742 = vmatpush.bf16.xpose.msra.mxu0 0
    %2743 = vmatpush.bf16.xpose.msra.mxu0 0
    %2744 = vmatpush.bf16.xpose.msra.mxu0 %v2738
    %2745 = vmatpush.bf16.xpose.msra.mxu0 %v2735
    %2746 = vmatpush.bf16.xpose.msra.mxu0 %v2732
    %2747 = vmatpush.bf16.xpose.msra.mxu0 %v2729
    %2748 = vmatmul.bf16.gmra.mxu0 %v2717
    %v2749 = vpop.f32.mrf.mxu0
    %v2750 = vadd.f32 0.0, %v2749
    %v2751 = vpop.f32.mrf.mxu0
    %v2752 = vadd.f32 0.0, %v2751
    %2753 = vmatmul.bf16.gmra.mxu0 %v2720
    %v2754 = vpop.f32.mrf.mxu0
    %v2755 = vadd.f32 0.0, %v2754
    %v2756 = vpop.f32.mrf.mxu0
    %v2757 = vadd.f32 0.0, %v2756
    %2758 = vmatmul.bf16.gmra.mxu0 %v2723
    %v2759 = vpop.f32.mrf.mxu0
    %v2760 = vadd.f32 0.0, %v2759
    %v2761 = vpop.f32.mrf.mxu0
    %v2762 = vadd.f32 0.0, %v2761
    %2763 = vmatmul.bf16.gmra.mxu0 %v2726
    %v2764 = vpop.f32.mrf.mxu0
    %v2765 = vadd.f32 0.0, %v2764
    %v2766 = vpop.f32.mrf.mxu0
    %v2767 = vadd.f32 0.0, %v2766
    %2768 = vdwg.mxu0
    %v2769 = vunpack.c.l.b16 %v1065
    %v2770 = vunpack.c.l.b16 %v1067
    %v2771 = vunpack.c.l.b16 %v1069
    %v2772 = vunpack.c.l.b16 %v1071
    %v2773 = vunpack.c.l.b16 %v1073
    %v2774 = vunpack.c.l.b16 %v1075
    %v2775 = vunpack.c.l.b16 %v1077
    %v2776 = vunpack.c.l.b16 %v1079
    %v2777 = vpack.c.b16 %v2770, %v2769
    %v2778 = vpack.c.b16 %v2772, %v2771
    %v2779 = vpack.c.b16 %v2774, %v2773
    %v2780 = vpack.c.b16 %v2776, %v2775
    %v2781 = vunpack.c.l.b16 %v1512
    %v2782 = vunpack.c.l.b16 %v1513
    %v2783 = vunpack.c.l.b16 %v1514
    %v2784 = vunpack.c.l.b16 %v1515
    %v2785 = vunpack.c.l.b16 %v1516
    %v2786 = vunpack.c.l.b16 %v1517
    %v2787 = vunpack.c.l.b16 %v1518
    %v2788 = vunpack.c.l.b16 %v1519
    %v2789 = vpack.c.b16 %v2782, %v2781
    %v2790 = vpack.c.b16 %v2784, %v2783
    %v2791 = vpack.c.b16 %v2786, %v2785
    %v2792 = vpack.c.b16 %v2788, %v2787
    %v2794 = vsel %vm2176, %v2777, 0
    %v2797 = vsel %vm2176, %v2778, 0
    %v2800 = vsel %vm2176, %v2779, 0
    %v2803 = vsel %vm2176, %v2780, 0
    %v2806 = vsel %vm2176, %v2789, 0
    %v2809 = vsel %vm2176, %v2790, 0
    %v2812 = vsel %vm2176, %v2791, 0
    %v2815 = vsel %vm2176, %v2792, 0
    %2817 = vmatpush.bf16.xpose.msra.mxu0 0
    %2818 = vmatpush.bf16.xpose.msra.mxu0 0
    %2819 = vmatpush.bf16.xpose.msra.mxu0 0
    %2820 = vmatpush.bf16.xpose.msra.mxu0 0
    %2821 = vmatpush.bf16.xpose.msra.mxu0 %v2815
    %2822 = vmatpush.bf16.xpose.msra.mxu0 %v2812
    %2823 = vmatpush.bf16.xpose.msra.mxu0 %v2809
    %2824 = vmatpush.bf16.xpose.msra.mxu0 %v2806
    %2825 = vmatmul.bf16.gmra.mxu0 %v2794
    %v2826 = vpop.f32.mrf.mxu0
    %v2827 = vadd.f32 0.0, %v2826
    %v2828 = vpop.f32.mrf.mxu0
    %v2829 = vadd.f32 0.0, %v2828
    %2830 = vmatmul.bf16.gmra.mxu0 %v2797
    %v2831 = vpop.f32.mrf.mxu0
    %v2832 = vadd.f32 0.0, %v2831
    %v2833 = vpop.f32.mrf.mxu0
    %v2834 = vadd.f32 0.0, %v2833
    %2835 = vmatmul.bf16.gmra.mxu0 %v2800
    %v2836 = vpop.f32.mrf.mxu0
    %v2837 = vadd.f32 0.0, %v2836
    %v2838 = vpop.f32.mrf.mxu0
    %v2839 = vadd.f32 0.0, %v2838
    %2840 = vmatmul.bf16.gmra.mxu0 %v2803
    %v2841 = vpop.f32.mrf.mxu0
    %v2842 = vadd.f32 0.0, %v2841
    %v2843 = vpop.f32.mrf.mxu0
    %v2844 = vadd.f32 0.0, %v2843
    %2845 = vdwg.mxu0
    %v2846 = vunpack.c.l.b16 %v1081
    %v2847 = vunpack.c.l.b16 %v1083
    %v2848 = vunpack.c.l.b16 %v1085
    %v2849 = vunpack.c.l.b16 %v1087
    %v2850 = vunpack.c.l.b16 %v1089
    %v2851 = vunpack.c.l.b16 %v1091
    %v2852 = vunpack.c.l.b16 %v1093
    %v2853 = vunpack.c.l.b16 %v1095
    %v2854 = vpack.c.b16 %v2847, %v2846
    %v2855 = vpack.c.b16 %v2849, %v2848
    %v2856 = vpack.c.b16 %v2851, %v2850
    %v2857 = vpack.c.b16 %v2853, %v2852
    %v2858 = vunpack.c.l.b16 %v1520
    %v2859 = vunpack.c.l.b16 %v1521
    %v2860 = vunpack.c.l.b16 %v1522
    %v2861 = vunpack.c.l.b16 %v1523
    %v2862 = vunpack.c.l.b16 %v1524
    %v2863 = vunpack.c.l.b16 %v1525
    %v2864 = vunpack.c.l.b16 %v1526
    %v2865 = vunpack.c.l.b16 %v1527
    %v2866 = vpack.c.b16 %v2859, %v2858
    %v2867 = vpack.c.b16 %v2861, %v2860
    %v2868 = vpack.c.b16 %v2863, %v2862
    %v2869 = vpack.c.b16 %v2865, %v2864
    %v2871 = vsel %vm2176, %v2854, 0
    %v2874 = vsel %vm2176, %v2855, 0
    %v2877 = vsel %vm2176, %v2856, 0
    %v2880 = vsel %vm2176, %v2857, 0
    %v2883 = vsel %vm2176, %v2866, 0
    %v2886 = vsel %vm2176, %v2867, 0
    %v2889 = vsel %vm2176, %v2868, 0
    %v2892 = vsel %vm2176, %v2869, 0
    %2894 = vmatpush.bf16.xpose.msra.mxu0 0
    %2895 = vmatpush.bf16.xpose.msra.mxu0 0
    %2896 = vmatpush.bf16.xpose.msra.mxu0 0
    %2897 = vmatpush.bf16.xpose.msra.mxu0 0
    %2898 = vmatpush.bf16.xpose.msra.mxu0 %v2892
    %2899 = vmatpush.bf16.xpose.msra.mxu0 %v2889
    %2900 = vmatpush.bf16.xpose.msra.mxu0 %v2886
    %2901 = vmatpush.bf16.xpose.msra.mxu0 %v2883
    %2902 = vmatmul.bf16.gmra.mxu0 %v2871
    %v2903 = vpop.f32.mrf.mxu0
    %v2904 = vadd.f32 0.0, %v2903
    %v2905 = vpop.f32.mrf.mxu0
    %v2906 = vadd.f32 0.0, %v2905
    %2907 = vmatmul.bf16.gmra.mxu0 %v2874
    %v2908 = vpop.f32.mrf.mxu0
    %v2909 = vadd.f32 0.0, %v2908
    %v2910 = vpop.f32.mrf.mxu0
    %v2911 = vadd.f32 0.0, %v2910
    %2912 = vmatmul.bf16.gmra.mxu0 %v2877
    %v2913 = vpop.f32.mrf.mxu0
    %v2914 = vadd.f32 0.0, %v2913
    %v2915 = vpop.f32.mrf.mxu0
    %v2916 = vadd.f32 0.0, %v2915
    %2917 = vmatmul.bf16.gmra.mxu0 %v2880
    %v2918 = vpop.f32.mrf.mxu0
    %v2919 = vadd.f32 0.0, %v2918
    %v2920 = vpop.f32.mrf.mxu0
    %v2921 = vadd.f32 0.0, %v2920
    %2922 = vdwg.mxu0
    %v2923 = vunpack.c.l.b16 %v1097
    %v2924 = vunpack.c.l.b16 %v1099
    %v2925 = vunpack.c.l.b16 %v1101
    %v2926 = vunpack.c.l.b16 %v1103
    %v2927 = vunpack.c.l.b16 %v1105
    %v2928 = vunpack.c.l.b16 %v1107
    %v2929 = vunpack.c.l.b16 %v1109
    %v2930 = vunpack.c.l.b16 %v1111
    %v2931 = vpack.c.b16 %v2924, %v2923
    %v2932 = vpack.c.b16 %v2926, %v2925
    %v2933 = vpack.c.b16 %v2928, %v2927
    %v2934 = vpack.c.b16 %v2930, %v2929
    %v2935 = vunpack.c.l.b16 %v1528
    %v2936 = vunpack.c.l.b16 %v1529
    %v2937 = vunpack.c.l.b16 %v1530
    %v2938 = vunpack.c.l.b16 %v1531
    %v2939 = vunpack.c.l.b16 %v1532
    %v2940 = vunpack.c.l.b16 %v1533
    %v2941 = vunpack.c.l.b16 %v1534
    %v2942 = vunpack.c.l.b16 %v1535
    %v2943 = vpack.c.b16 %v2936, %v2935
    %v2944 = vpack.c.b16 %v2938, %v2937
    %v2945 = vpack.c.b16 %v2940, %v2939
    %v2946 = vpack.c.b16 %v2942, %v2941
    %v2948 = vsel %vm2176, %v2931, 0
    %v2951 = vsel %vm2176, %v2932, 0
    %v2954 = vsel %vm2176, %v2933, 0
    %v2957 = vsel %vm2176, %v2934, 0
    %v2960 = vsel %vm2176, %v2943, 0
    %v2963 = vsel %vm2176, %v2944, 0
    %v2966 = vsel %vm2176, %v2945, 0
    %v2969 = vsel %vm2176, %v2946, 0
    %2971 = vmatpush.bf16.xpose.msra.mxu0 0
    %2972 = vmatpush.bf16.xpose.msra.mxu0 0
    %2973 = vmatpush.bf16.xpose.msra.mxu0 0
    %2974 = vmatpush.bf16.xpose.msra.mxu0 0
    %2975 = vmatpush.bf16.xpose.msra.mxu0 %v2969
    %2976 = vmatpush.bf16.xpose.msra.mxu0 %v2966
    %2977 = vmatpush.bf16.xpose.msra.mxu0 %v2963
    %2978 = vmatpush.bf16.xpose.msra.mxu0 %v2960
    %2979 = vmatmul.bf16.gmra.mxu0 %v2948
    %v2980 = vpop.f32.mrf.mxu0
    %v2981 = vadd.f32 0.0, %v2980
    %v2982 = vpop.f32.mrf.mxu0
    %v2983 = vadd.f32 0.0, %v2982
    %2984 = vmatmul.bf16.gmra.mxu0 %v2951
    %v2985 = vpop.f32.mrf.mxu0
    %v2986 = vadd.f32 0.0, %v2985
    %v2987 = vpop.f32.mrf.mxu0
    %v2988 = vadd.f32 0.0, %v2987
    %2989 = vmatmul.bf16.gmra.mxu0 %v2954
    %v2990 = vpop.f32.mrf.mxu0
    %v2991 = vadd.f32 0.0, %v2990
    %v2992 = vpop.f32.mrf.mxu0
    %v2993 = vadd.f32 0.0, %v2992
    %2994 = vmatmul.bf16.gmra.mxu0 %v2957
    %v2995 = vpop.f32.mrf.mxu0
    %v2996 = vadd.f32 0.0, %v2995
    %v2997 = vpop.f32.mrf.mxu0
    %v2998 = vadd.f32 0.0, %v2997
    %2999 = vdwg.mxu0
    %v3000 = vunpack.c.l.b16 %v1113
    %v3001 = vunpack.c.l.b16 %v1115
    %v3002 = vunpack.c.l.b16 %v1117
    %v3003 = vunpack.c.l.b16 %v1119
    %v3004 = vunpack.c.l.b16 %v1121
    %v3005 = vunpack.c.l.b16 %v1123
    %v3006 = vunpack.c.l.b16 %v1125
    %v3007 = vunpack.c.l.b16 %v1127
    %v3008 = vpack.c.b16 %v3001, %v3000
    %v3009 = vpack.c.b16 %v3003, %v3002
    %v3010 = vpack.c.b16 %v3005, %v3004
    %v3011 = vpack.c.b16 %v3007, %v3006
    %v3012 = vunpack.c.l.b16 %v1536
    %v3013 = vunpack.c.l.b16 %v1537
    %v3014 = vunpack.c.l.b16 %v1538
    %v3015 = vunpack.c.l.b16 %v1539
    %v3016 = vunpack.c.l.b16 %v1540
    %v3017 = vunpack.c.l.b16 %v1541
    %v3018 = vunpack.c.l.b16 %v1542
    %v3019 = vunpack.c.l.b16 %v1543
    %v3020 = vpack.c.b16 %v3013, %v3012
    %v3021 = vpack.c.b16 %v3015, %v3014
    %v3022 = vpack.c.b16 %v3017, %v3016
    %v3023 = vpack.c.b16 %v3019, %v3018
    %v3025 = vsel %vm2176, %v3008, 0
    %v3028 = vsel %vm2176, %v3009, 0
    %v3031 = vsel %vm2176, %v3010, 0
    %v3034 = vsel %vm2176, %v3011, 0
    %v3037 = vsel %vm2176, %v3020, 0
    %v3040 = vsel %vm2176, %v3021, 0
    %v3043 = vsel %vm2176, %v3022, 0
    %v3046 = vsel %vm2176, %v3023, 0
    %3048 = vmatpush.bf16.xpose.msra.mxu0 0
    %3049 = vmatpush.bf16.xpose.msra.mxu0 0
    %3050 = vmatpush.bf16.xpose.msra.mxu0 0
    %3051 = vmatpush.bf16.xpose.msra.mxu0 0
    %3052 = vmatpush.bf16.xpose.msra.mxu0 %v3046
    %3053 = vmatpush.bf16.xpose.msra.mxu0 %v3043
    %3054 = vmatpush.bf16.xpose.msra.mxu0 %v3040
    %3055 = vmatpush.bf16.xpose.msra.mxu0 %v3037
    %3056 = vmatmul.bf16.gmra.mxu0 %v3025
    %v3057 = vpop.f32.mrf.mxu0
    %v3058 = vadd.f32 0.0, %v3057
    %v3059 = vpop.f32.mrf.mxu0
    %v3060 = vadd.f32 0.0, %v3059
    %3061 = vmatmul.bf16.gmra.mxu0 %v3028
    %v3062 = vpop.f32.mrf.mxu0
    %v3063 = vadd.f32 0.0, %v3062
    %v3064 = vpop.f32.mrf.mxu0
    %v3065 = vadd.f32 0.0, %v3064
    %3066 = vmatmul.bf16.gmra.mxu0 %v3031
    %v3067 = vpop.f32.mrf.mxu0
    %v3068 = vadd.f32 0.0, %v3067
    %v3069 = vpop.f32.mrf.mxu0
    %v3070 = vadd.f32 0.0, %v3069
    %3071 = vmatmul.bf16.gmra.mxu0 %v3034
    %v3072 = vpop.f32.mrf.mxu0
    %v3073 = vadd.f32 0.0, %v3072
    %v3074 = vpop.f32.mrf.mxu0
    %v3075 = vadd.f32 0.0, %v3074
    %3076 = vdwg.mxu0
    %v3077 = vunpack.c.l.b16 %v1129
    %v3078 = vunpack.c.l.b16 %v1131
    %v3079 = vunpack.c.l.b16 %v1133
    %v3080 = vunpack.c.l.b16 %v1135
    %v3081 = vunpack.c.l.b16 %v1137
    %v3082 = vunpack.c.l.b16 %v1139
    %v3083 = vunpack.c.l.b16 %v1141
    %v3084 = vunpack.c.l.b16 %v1143
    %v3085 = vpack.c.b16 %v3078, %v3077
    %v3086 = vpack.c.b16 %v3080, %v3079
    %v3087 = vpack.c.b16 %v3082, %v3081
    %v3088 = vpack.c.b16 %v3084, %v3083
    %v3089 = vunpack.c.l.b16 %v1544
    %v3090 = vunpack.c.l.b16 %v1545
    %v3091 = vunpack.c.l.b16 %v1546
    %v3092 = vunpack.c.l.b16 %v1547
    %v3093 = vunpack.c.l.b16 %v1548
    %v3094 = vunpack.c.l.b16 %v1549
    %v3095 = vunpack.c.l.b16 %v1550
    %v3096 = vunpack.c.l.b16 %v1551
    %v3097 = vpack.c.b16 %v3090, %v3089
    %v3098 = vpack.c.b16 %v3092, %v3091
    %v3099 = vpack.c.b16 %v3094, %v3093
    %v3100 = vpack.c.b16 %v3096, %v3095
    %v3102 = vsel %vm2176, %v3085, 0
    %v3105 = vsel %vm2176, %v3086, 0
    %v3108 = vsel %vm2176, %v3087, 0
    %v3111 = vsel %vm2176, %v3088, 0
    %v3114 = vsel %vm2176, %v3097, 0
    %v3117 = vsel %vm2176, %v3098, 0
    %v3120 = vsel %vm2176, %v3099, 0
    %v3123 = vsel %vm2176, %v3100, 0
    %3125 = vmatpush.bf16.xpose.msra.mxu0 0
    %3126 = vmatpush.bf16.xpose.msra.mxu0 0
    %3127 = vmatpush.bf16.xpose.msra.mxu0 0
    %3128 = vmatpush.bf16.xpose.msra.mxu0 0
    %3129 = vmatpush.bf16.xpose.msra.mxu0 %v3123
    %3130 = vmatpush.bf16.xpose.msra.mxu0 %v3120
    %3131 = vmatpush.bf16.xpose.msra.mxu0 %v3117
    %3132 = vmatpush.bf16.xpose.msra.mxu0 %v3114
    %3133 = vmatmul.bf16.gmra.mxu0 %v3102
    %v3134 = vpop.f32.mrf.mxu0
    %v3135 = vadd.f32 0.0, %v3134
    %v3136 = vpop.f32.mrf.mxu0
    %v3137 = vadd.f32 0.0, %v3136
    %3138 = vmatmul.bf16.gmra.mxu0 %v3105
    %v3139 = vpop.f32.mrf.mxu0
    %v3140 = vadd.f32 0.0, %v3139
    %v3141 = vpop.f32.mrf.mxu0
    %v3142 = vadd.f32 0.0, %v3141
    %3143 = vmatmul.bf16.gmra.mxu0 %v3108
    %v3144 = vpop.f32.mrf.mxu0
    %v3145 = vadd.f32 0.0, %v3144
    %v3146 = vpop.f32.mrf.mxu0
    %v3147 = vadd.f32 0.0, %v3146
    %3148 = vmatmul.bf16.gmra.mxu0 %v3111
    %v3149 = vpop.f32.mrf.mxu0
    %v3150 = vadd.f32 0.0, %v3149
    %v3151 = vpop.f32.mrf.mxu0
    %v3152 = vadd.f32 0.0, %v3151
    %3153 = vdwg.mxu0
    %v3154 = vunpack.c.l.b16 %v1145
    %v3155 = vunpack.c.l.b16 %v1147
    %v3156 = vunpack.c.l.b16 %v1149
    %v3157 = vunpack.c.l.b16 %v1151
    %v3158 = vunpack.c.l.b16 %v1153
    %v3159 = vunpack.c.l.b16 %v1155
    %v3160 = vunpack.c.l.b16 %v1157
    %v3161 = vunpack.c.l.b16 %v1159
    %v3162 = vpack.c.b16 %v3155, %v3154
    %v3163 = vpack.c.b16 %v3157, %v3156
    %v3164 = vpack.c.b16 %v3159, %v3158
    %v3165 = vpack.c.b16 %v3161, %v3160
    %v3166 = vunpack.c.l.b16 %v1552
    %v3167 = vunpack.c.l.b16 %v1553
    %v3168 = vunpack.c.l.b16 %v1554
    %v3169 = vunpack.c.l.b16 %v1555
    %v3170 = vunpack.c.l.b16 %v1556
    %v3171 = vunpack.c.l.b16 %v1557
    %v3172 = vunpack.c.l.b16 %v1558
    %v3173 = vunpack.c.l.b16 %v1559
    %v3174 = vpack.c.b16 %v3167, %v3166
    %v3175 = vpack.c.b16 %v3169, %v3168
    %v3176 = vpack.c.b16 %v3171, %v3170
    %v3177 = vpack.c.b16 %v3173, %v3172
    %v3179 = vsel %vm2176, %v3162, 0
    %v3182 = vsel %vm2176, %v3163, 0
    %v3185 = vsel %vm2176, %v3164, 0
    %v3188 = vsel %vm2176, %v3165, 0
    %v3191 = vsel %vm2176, %v3174, 0
    %v3194 = vsel %vm2176, %v3175, 0
    %v3197 = vsel %vm2176, %v3176, 0
    %v3200 = vsel %vm2176, %v3177, 0
    %3202 = vmatpush.bf16.xpose.msra.mxu0 0
    %3203 = vmatpush.bf16.xpose.msra.mxu0 0
    %3204 = vmatpush.bf16.xpose.msra.mxu0 0
    %3205 = vmatpush.bf16.xpose.msra.mxu0 0
    %3206 = vmatpush.bf16.xpose.msra.mxu0 %v3200
    %3207 = vmatpush.bf16.xpose.msra.mxu0 %v3197
    %3208 = vmatpush.bf16.xpose.msra.mxu0 %v3194
    %3209 = vmatpush.bf16.xpose.msra.mxu0 %v3191
    %3210 = vmatmul.bf16.gmra.mxu0 %v3179
    %v3211 = vpop.f32.mrf.mxu0
    %v3212 = vadd.f32 0.0, %v3211
    %v3213 = vpop.f32.mrf.mxu0
    %v3214 = vadd.f32 0.0, %v3213
    %3215 = vmatmul.bf16.gmra.mxu0 %v3182
    %v3216 = vpop.f32.mrf.mxu0
    %v3217 = vadd.f32 0.0, %v3216
    %v3218 = vpop.f32.mrf.mxu0
    %v3219 = vadd.f32 0.0, %v3218
    %3220 = vmatmul.bf16.gmra.mxu0 %v3185
    %v3221 = vpop.f32.mrf.mxu0
    %v3222 = vadd.f32 0.0, %v3221
    %v3223 = vpop.f32.mrf.mxu0
    %v3224 = vadd.f32 0.0, %v3223
    %3225 = vmatmul.bf16.gmra.mxu0 %v3188
    %v3226 = vpop.f32.mrf.mxu0
    %v3227 = vadd.f32 0.0, %v3226
    %v3228 = vpop.f32.mrf.mxu0
    %v3229 = vadd.f32 0.0, %v3228
    %3230 = vdwg.mxu0
    %v3231 = vunpack.c.l.b16 %v1161
    %v3232 = vunpack.c.l.b16 %v1163
    %v3233 = vunpack.c.l.b16 %v1165
    %v3234 = vunpack.c.l.b16 %v1167
    %v3235 = vunpack.c.l.b16 %v1169
    %v3236 = vunpack.c.l.b16 %v1171
    %v3237 = vunpack.c.l.b16 %v1173
    %v3238 = vunpack.c.l.b16 %v1175
    %v3239 = vpack.c.b16 %v3232, %v3231
    %v3240 = vpack.c.b16 %v3234, %v3233
    %v3241 = vpack.c.b16 %v3236, %v3235
    %v3242 = vpack.c.b16 %v3238, %v3237
    %v3243 = vunpack.c.l.b16 %v1560
    %v3244 = vunpack.c.l.b16 %v1561
    %v3245 = vunpack.c.l.b16 %v1562
    %v3246 = vunpack.c.l.b16 %v1563
    %v3247 = vunpack.c.l.b16 %v1564
    %v3248 = vunpack.c.l.b16 %v1565
    %v3249 = vunpack.c.l.b16 %v1566
    %v3250 = vunpack.c.l.b16 %v1567
    %v3251 = vpack.c.b16 %v3244, %v3243
    %v3252 = vpack.c.b16 %v3246, %v3245
    %v3253 = vpack.c.b16 %v3248, %v3247
    %v3254 = vpack.c.b16 %v3250, %v3249
    %v3256 = vsel %vm2176, %v3239, 0
    %v3259 = vsel %vm2176, %v3240, 0
    %v3262 = vsel %vm2176, %v3241, 0
    %v3265 = vsel %vm2176, %v3242, 0
    %v3268 = vsel %vm2176, %v3251, 0
    %v3271 = vsel %vm2176, %v3252, 0
    %v3274 = vsel %vm2176, %v3253, 0
    %v3277 = vsel %vm2176, %v3254, 0
    %3279 = vmatpush.bf16.xpose.msra.mxu0 0
    %3280 = vmatpush.bf16.xpose.msra.mxu0 0
    %3281 = vmatpush.bf16.xpose.msra.mxu0 0
    %3282 = vmatpush.bf16.xpose.msra.mxu0 0
    %3283 = vmatpush.bf16.xpose.msra.mxu0 %v3277
    %3284 = vmatpush.bf16.xpose.msra.mxu0 %v3274
    %3285 = vmatpush.bf16.xpose.msra.mxu0 %v3271
    %3286 = vmatpush.bf16.xpose.msra.mxu0 %v3268
    %3287 = vmatmul.bf16.gmra.mxu0 %v3256
    %v3288 = vpop.f32.mrf.mxu0
    %v3289 = vadd.f32 0.0, %v3288
    %v3290 = vpop.f32.mrf.mxu0
    %v3291 = vadd.f32 0.0, %v3290
    %3292 = vmatmul.bf16.gmra.mxu0 %v3259
    %v3293 = vpop.f32.mrf.mxu0
    %v3294 = vadd.f32 0.0, %v3293
    %v3295 = vpop.f32.mrf.mxu0
    %v3296 = vadd.f32 0.0, %v3295
    %3297 = vmatmul.bf16.gmra.mxu0 %v3262
    %v3298 = vpop.f32.mrf.mxu0
    %v3299 = vadd.f32 0.0, %v3298
    %v3300 = vpop.f32.mrf.mxu0
    %v3301 = vadd.f32 0.0, %v3300
    %3302 = vmatmul.bf16.gmra.mxu0 %v3265
    %v3303 = vpop.f32.mrf.mxu0
    %v3304 = vadd.f32 0.0, %v3303
    %v3305 = vpop.f32.mrf.mxu0
    %v3306 = vadd.f32 0.0, %v3305
    %3307 = vdwg.mxu0
    %v3308 = vunpack.c.l.b16 %v1177
    %v3309 = vunpack.c.l.b16 %v1179
    %v3310 = vunpack.c.l.b16 %v1181
    %v3311 = vunpack.c.l.b16 %v1183
    %v3312 = vunpack.c.l.b16 %v1185
    %v3313 = vunpack.c.l.b16 %v1187
    %v3314 = vunpack.c.l.b16 %v1189
    %v3315 = vunpack.c.l.b16 %v1191
    %v3316 = vpack.c.b16 %v3309, %v3308
    %v3317 = vpack.c.b16 %v3311, %v3310
    %v3318 = vpack.c.b16 %v3313, %v3312
    %v3319 = vpack.c.b16 %v3315, %v3314
    %v3320 = vunpack.c.l.b16 %v1568
    %v3321 = vunpack.c.l.b16 %v1569
    %v3322 = vunpack.c.l.b16 %v1570
    %v3323 = vunpack.c.l.b16 %v1571
    %v3324 = vunpack.c.l.b16 %v1572
    %v3325 = vunpack.c.l.b16 %v1573
    %v3326 = vunpack.c.l.b16 %v1574
    %v3327 = vunpack.c.l.b16 %v1575
    %v3328 = vpack.c.b16 %v3321, %v3320
    %v3329 = vpack.c.b16 %v3323, %v3322
    %v3330 = vpack.c.b16 %v3325, %v3324
    %v3331 = vpack.c.b16 %v3327, %v3326
    %v3333 = vsel %vm2176, %v3316, 0
    %v3336 = vsel %vm2176, %v3317, 0
    %v3339 = vsel %vm2176, %v3318, 0
    %v3342 = vsel %vm2176, %v3319, 0
    %v3345 = vsel %vm2176, %v3328, 0
    %v3348 = vsel %vm2176, %v3329, 0
    %v3351 = vsel %vm2176, %v3330, 0
    %v3354 = vsel %vm2176, %v3331, 0
    %3356 = vmatpush.bf16.xpose.msra.mxu0 0
    %3357 = vmatpush.bf16.xpose.msra.mxu0 0
    %3358 = vmatpush.bf16.xpose.msra.mxu0 0
    %3359 = vmatpush.bf16.xpose.msra.mxu0 0
    %3360 = vmatpush.bf16.xpose.msra.mxu0 %v3354
    %3361 = vmatpush.bf16.xpose.msra.mxu0 %v3351
    %3362 = vmatpush.bf16.xpose.msra.mxu0 %v3348
    %3363 = vmatpush.bf16.xpose.msra.mxu0 %v3345
    %3364 = vmatmul.bf16.gmra.mxu0 %v3333
    %v3365 = vpop.f32.mrf.mxu0
    %v3366 = vadd.f32 0.0, %v3365
    %v3367 = vpop.f32.mrf.mxu0
    %v3368 = vadd.f32 0.0, %v3367
    %3369 = vmatmul.bf16.gmra.mxu0 %v3336
    %v3370 = vpop.f32.mrf.mxu0
    %v3371 = vadd.f32 0.0, %v3370
    %v3372 = vpop.f32.mrf.mxu0
    %v3373 = vadd.f32 0.0, %v3372
    %3374 = vmatmul.bf16.gmra.mxu0 %v3339
    %v3375 = vpop.f32.mrf.mxu0
    %v3376 = vadd.f32 0.0, %v3375
    %v3377 = vpop.f32.mrf.mxu0
    %v3378 = vadd.f32 0.0, %v3377
    %3379 = vmatmul.bf16.gmra.mxu0 %v3342
    %v3380 = vpop.f32.mrf.mxu0
    %v3381 = vadd.f32 0.0, %v3380
    %v3382 = vpop.f32.mrf.mxu0
    %v3383 = vadd.f32 0.0, %v3382
    %3384 = vdwg.mxu0
    %v3385 = vunpack.c.l.b16 %v1193
    %v3386 = vunpack.c.l.b16 %v1195
    %v3387 = vunpack.c.l.b16 %v1197
    %v3388 = vunpack.c.l.b16 %v1199
    %v3389 = vunpack.c.l.b16 %v1201
    %v3390 = vunpack.c.l.b16 %v1203
    %v3391 = vunpack.c.l.b16 %v1205
    %v3392 = vunpack.c.l.b16 %v1207
    %v3393 = vpack.c.b16 %v3386, %v3385
    %v3394 = vpack.c.b16 %v3388, %v3387
    %v3395 = vpack.c.b16 %v3390, %v3389
    %v3396 = vpack.c.b16 %v3392, %v3391
    %v3397 = vunpack.c.l.b16 %v1576
    %v3398 = vunpack.c.l.b16 %v1577
    %v3399 = vunpack.c.l.b16 %v1578
    %v3400 = vunpack.c.l.b16 %v1579
    %v3401 = vunpack.c.l.b16 %v1580
    %v3402 = vunpack.c.l.b16 %v1581
    %v3403 = vunpack.c.l.b16 %v1582
    %v3404 = vunpack.c.l.b16 %v1583
    %v3405 = vpack.c.b16 %v3398, %v3397
    %v3406 = vpack.c.b16 %v3400, %v3399
    %v3407 = vpack.c.b16 %v3402, %v3401
    %v3408 = vpack.c.b16 %v3404, %v3403
    %v3410 = vsel %vm2176, %v3393, 0
    %v3413 = vsel %vm2176, %v3394, 0
    %v3416 = vsel %vm2176, %v3395, 0
    %v3419 = vsel %vm2176, %v3396, 0
    %v3422 = vsel %vm2176, %v3405, 0
    %v3425 = vsel %vm2176, %v3406, 0
    %v3428 = vsel %vm2176, %v3407, 0
    %v3431 = vsel %vm2176, %v3408, 0
    %3433 = vmatpush.bf16.xpose.msra.mxu0 0
    %3434 = vmatpush.bf16.xpose.msra.mxu0 0
    %3435 = vmatpush.bf16.xpose.msra.mxu0 0
    %3436 = vmatpush.bf16.xpose.msra.mxu0 0
    %3437 = vmatpush.bf16.xpose.msra.mxu0 %v3431
    %3438 = vmatpush.bf16.xpose.msra.mxu0 %v3428
    %3439 = vmatpush.bf16.xpose.msra.mxu0 %v3425
    %3440 = vmatpush.bf16.xpose.msra.mxu0 %v3422
    %3441 = vmatmul.bf16.gmra.mxu0 %v3410
    %v3442 = vpop.f32.mrf.mxu0
    %v3443 = vadd.f32 0.0, %v3442
    %v3444 = vpop.f32.mrf.mxu0
    %v3445 = vadd.f32 0.0, %v3444
    %3446 = vmatmul.bf16.gmra.mxu0 %v3413
    %v3447 = vpop.f32.mrf.mxu0
    %v3448 = vadd.f32 0.0, %v3447
    %v3449 = vpop.f32.mrf.mxu0
    %v3450 = vadd.f32 0.0, %v3449
    %3451 = vmatmul.bf16.gmra.mxu0 %v3416
    %v3452 = vpop.f32.mrf.mxu0
    %v3453 = vadd.f32 0.0, %v3452
    %v3454 = vpop.f32.mrf.mxu0
    %v3455 = vadd.f32 0.0, %v3454
    %3456 = vmatmul.bf16.gmra.mxu0 %v3419
    %v3457 = vpop.f32.mrf.mxu0
    %v3458 = vadd.f32 0.0, %v3457
    %v3459 = vpop.f32.mrf.mxu0
    %v3460 = vadd.f32 0.0, %v3459
    %3461 = vdwg.mxu0
    %v3462 = vunpack.c.l.b16 %v1209
    %v3463 = vunpack.c.l.b16 %v1211
    %v3464 = vunpack.c.l.b16 %v1213
    %v3465 = vunpack.c.l.b16 %v1215
    %v3466 = vunpack.c.l.b16 %v1217
    %v3467 = vunpack.c.l.b16 %v1219
    %v3468 = vunpack.c.l.b16 %v1221
    %v3469 = vunpack.c.l.b16 %v1223
    %v3470 = vpack.c.b16 %v3463, %v3462
    %v3471 = vpack.c.b16 %v3465, %v3464
    %v3472 = vpack.c.b16 %v3467, %v3466
    %v3473 = vpack.c.b16 %v3469, %v3468
    %v3474 = vunpack.c.l.b16 %v1584
    %v3475 = vunpack.c.l.b16 %v1585
    %v3476 = vunpack.c.l.b16 %v1586
    %v3477 = vunpack.c.l.b16 %v1587
    %v3478 = vunpack.c.l.b16 %v1588
    %v3479 = vunpack.c.l.b16 %v1589
    %v3480 = vunpack.c.l.b16 %v1590
    %v3481 = vunpack.c.l.b16 %v1591
    %v3482 = vpack.c.b16 %v3475, %v3474
    %v3483 = vpack.c.b16 %v3477, %v3476
    %v3484 = vpack.c.b16 %v3479, %v3478
    %v3485 = vpack.c.b16 %v3481, %v3480
    %v3487 = vsel %vm2176, %v3470, 0
    %v3490 = vsel %vm2176, %v3471, 0
    %v3493 = vsel %vm2176, %v3472, 0
    %v3496 = vsel %vm2176, %v3473, 0
    %v3499 = vsel %vm2176, %v3482, 0
    %v3502 = vsel %vm2176, %v3483, 0
    %v3505 = vsel %vm2176, %v3484, 0
    %v3508 = vsel %vm2176, %v3485, 0
    %3510 = vmatpush.bf16.xpose.msra.mxu0 0
    %3511 = vmatpush.bf16.xpose.msra.mxu0 0
    %3512 = vmatpush.bf16.xpose.msra.mxu0 0
    %3513 = vmatpush.bf16.xpose.msra.mxu0 0
    %3514 = vmatpush.bf16.xpose.msra.mxu0 %v3508
    %3515 = vmatpush.bf16.xpose.msra.mxu0 %v3505
    %3516 = vmatpush.bf16.xpose.msra.mxu0 %v3502
    %3517 = vmatpush.bf16.xpose.msra.mxu0 %v3499
    %3518 = vmatmul.bf16.gmra.mxu0 %v3487
    %v3519 = vpop.f32.mrf.mxu0
    %v3520 = vadd.f32 0.0, %v3519
    %v3521 = vpop.f32.mrf.mxu0
    %v3522 = vadd.f32 0.0, %v3521
    %3523 = vmatmul.bf16.gmra.mxu0 %v3490
    %v3524 = vpop.f32.mrf.mxu0
    %v3525 = vadd.f32 0.0, %v3524
    %v3526 = vpop.f32.mrf.mxu0
    %v3527 = vadd.f32 0.0, %v3526
    %3528 = vmatmul.bf16.gmra.mxu0 %v3493
    %v3529 = vpop.f32.mrf.mxu0
    %v3530 = vadd.f32 0.0, %v3529
    %v3531 = vpop.f32.mrf.mxu0
    %v3532 = vadd.f32 0.0, %v3531
    %3533 = vmatmul.bf16.gmra.mxu0 %v3496
    %v3534 = vpop.f32.mrf.mxu0
    %v3535 = vadd.f32 0.0, %v3534
    %v3536 = vpop.f32.mrf.mxu0
    %v3537 = vadd.f32 0.0, %v3536
    %3538 = vdwg.mxu0
    %v3539 = vunpack.c.l.b16 %v1225
    %v3540 = vunpack.c.l.b16 %v1227
    %v3541 = vunpack.c.l.b16 %v1229
    %v3542 = vunpack.c.l.b16 %v1231
    %v3543 = vunpack.c.l.b16 %v1233
    %v3544 = vunpack.c.l.b16 %v1235
    %v3545 = vunpack.c.l.b16 %v1237
    %v3546 = vunpack.c.l.b16 %v1239
    %v3547 = vpack.c.b16 %v3540, %v3539
    %v3548 = vpack.c.b16 %v3542, %v3541
    %v3549 = vpack.c.b16 %v3544, %v3543
    %v3550 = vpack.c.b16 %v3546, %v3545
    %v3551 = vunpack.c.l.b16 %v1592
    %v3552 = vunpack.c.l.b16 %v1593
    %v3553 = vunpack.c.l.b16 %v1594
    %v3554 = vunpack.c.l.b16 %v1595
    %v3555 = vunpack.c.l.b16 %v1596
    %v3556 = vunpack.c.l.b16 %v1597
    %v3557 = vunpack.c.l.b16 %v1598
    %v3558 = vunpack.c.l.b16 %v1599
    %v3559 = vpack.c.b16 %v3552, %v3551
    %v3560 = vpack.c.b16 %v3554, %v3553
    %v3561 = vpack.c.b16 %v3556, %v3555
    %v3562 = vpack.c.b16 %v3558, %v3557
    %v3564 = vsel %vm2176, %v3547, 0
    %v3567 = vsel %vm2176, %v3548, 0
    %v3570 = vsel %vm2176, %v3549, 0
    %v3573 = vsel %vm2176, %v3550, 0
    %v3576 = vsel %vm2176, %v3559, 0
    %v3579 = vsel %vm2176, %v3560, 0
    %v3582 = vsel %vm2176, %v3561, 0
    %v3585 = vsel %vm2176, %v3562, 0
    %3587 = vmatpush.bf16.xpose.msra.mxu0 0
    %3588 = vmatpush.bf16.xpose.msra.mxu0 0
    %3589 = vmatpush.bf16.xpose.msra.mxu0 0
    %3590 = vmatpush.bf16.xpose.msra.mxu0 0
    %3591 = vmatpush.bf16.xpose.msra.mxu0 %v3585
    %3592 = vmatpush.bf16.xpose.msra.mxu0 %v3582
    %3593 = vmatpush.bf16.xpose.msra.mxu0 %v3579
    %3594 = vmatpush.bf16.xpose.msra.mxu0 %v3576
    %3595 = vmatmul.bf16.gmra.mxu0 %v3564
    %v3596 = vpop.f32.mrf.mxu0
    %v3597 = vadd.f32 0.0, %v3596
    %v3598 = vpop.f32.mrf.mxu0
    %v3599 = vadd.f32 0.0, %v3598
    %3600 = vmatmul.bf16.gmra.mxu0 %v3567
    %v3601 = vpop.f32.mrf.mxu0
    %v3602 = vadd.f32 0.0, %v3601
    %v3603 = vpop.f32.mrf.mxu0
    %v3604 = vadd.f32 0.0, %v3603
    %3605 = vmatmul.bf16.gmra.mxu0 %v3570
    %v3606 = vpop.f32.mrf.mxu0
    %v3607 = vadd.f32 0.0, %v3606
    %v3608 = vpop.f32.mrf.mxu0
    %v3609 = vadd.f32 0.0, %v3608
    %3610 = vmatmul.bf16.gmra.mxu0 %v3573
    %v3611 = vpop.f32.mrf.mxu0
    %v3612 = vadd.f32 0.0, %v3611
    %v3613 = vpop.f32.mrf.mxu0
    %v3614 = vadd.f32 0.0, %v3613
    %3615 = vdwg.mxu0
    %v3616 = vunpack.c.l.b16 %v1241
    %v3617 = vunpack.c.l.b16 %v1243
    %v3618 = vunpack.c.l.b16 %v1245
    %v3619 = vunpack.c.l.b16 %v1247
    %v3620 = vunpack.c.l.b16 %v1249
    %v3621 = vunpack.c.l.b16 %v1251
    %v3622 = vunpack.c.l.b16 %v1253
    %v3623 = vunpack.c.l.b16 %v1255
    %v3624 = vpack.c.b16 %v3617, %v3616
    %v3625 = vpack.c.b16 %v3619, %v3618
    %v3626 = vpack.c.b16 %v3621, %v3620
    %v3627 = vpack.c.b16 %v3623, %v3622
    %v3628 = vunpack.c.l.b16 %v1600
    %v3629 = vunpack.c.l.b16 %v1601
    %v3630 = vunpack.c.l.b16 %v1602
    %v3631 = vunpack.c.l.b16 %v1603
    %v3632 = vunpack.c.l.b16 %v1604
    %v3633 = vunpack.c.l.b16 %v1605
    %v3634 = vunpack.c.l.b16 %v1606
    %v3635 = vunpack.c.l.b16 %v1607
    %v3636 = vpack.c.b16 %v3629, %v3628
    %v3637 = vpack.c.b16 %v3631, %v3630
    %v3638 = vpack.c.b16 %v3633, %v3632
    %v3639 = vpack.c.b16 %v3635, %v3634
    %v3641 = vsel %vm2176, %v3624, 0
    %v3644 = vsel %vm2176, %v3625, 0
    %v3647 = vsel %vm2176, %v3626, 0
    %v3650 = vsel %vm2176, %v3627, 0
    %v3653 = vsel %vm2176, %v3636, 0
    %v3656 = vsel %vm2176, %v3637, 0
    %v3659 = vsel %vm2176, %v3638, 0
    %v3662 = vsel %vm2176, %v3639, 0
    %3664 = vmatpush.bf16.xpose.msra.mxu0 0
    %3665 = vmatpush.bf16.xpose.msra.mxu0 0
    %3666 = vmatpush.bf16.xpose.msra.mxu0 0
    %3667 = vmatpush.bf16.xpose.msra.mxu0 0
    %3668 = vmatpush.bf16.xpose.msra.mxu0 %v3662
    %3669 = vmatpush.bf16.xpose.msra.mxu0 %v3659
    %3670 = vmatpush.bf16.xpose.msra.mxu0 %v3656
    %3671 = vmatpush.bf16.xpose.msra.mxu0 %v3653
    %3672 = vmatmul.bf16.gmra.mxu0 %v3641
    %v3673 = vpop.f32.mrf.mxu0
    %v3674 = vadd.f32 0.0, %v3673
    %v3675 = vpop.f32.mrf.mxu0
    %v3676 = vadd.f32 0.0, %v3675
    %3677 = vmatmul.bf16.gmra.mxu0 %v3644
    %v3678 = vpop.f32.mrf.mxu0
    %v3679 = vadd.f32 0.0, %v3678
    %v3680 = vpop.f32.mrf.mxu0
    %v3681 = vadd.f32 0.0, %v3680
    %3682 = vmatmul.bf16.gmra.mxu0 %v3647
    %v3683 = vpop.f32.mrf.mxu0
    %v3684 = vadd.f32 0.0, %v3683
    %v3685 = vpop.f32.mrf.mxu0
    %v3686 = vadd.f32 0.0, %v3685
    %3687 = vmatmul.bf16.gmra.mxu0 %v3650
    %v3688 = vpop.f32.mrf.mxu0
    %v3689 = vadd.f32 0.0, %v3688
    %v3690 = vpop.f32.mrf.mxu0
    %v3691 = vadd.f32 0.0, %v3690
    %3692 = vdwg.mxu0
    %v3693 = vunpack.c.l.b16 %v1257
    %v3694 = vunpack.c.l.b16 %v1259
    %v3695 = vunpack.c.l.b16 %v1261
    %v3696 = vunpack.c.l.b16 %v1263
    %v3697 = vunpack.c.l.b16 %v1265
    %v3698 = vunpack.c.l.b16 %v1267
    %v3699 = vunpack.c.l.b16 %v1269
    %v3700 = vunpack.c.l.b16 %v1271
    %v3701 = vpack.c.b16 %v3694, %v3693
    %v3702 = vpack.c.b16 %v3696, %v3695
    %v3703 = vpack.c.b16 %v3698, %v3697
    %v3704 = vpack.c.b16 %v3700, %v3699
    %v3705 = vunpack.c.l.b16 %v1608
    %v3706 = vunpack.c.l.b16 %v1609
    %v3707 = vunpack.c.l.b16 %v1610
    %v3708 = vunpack.c.l.b16 %v1611
    %v3709 = vunpack.c.l.b16 %v1612
    %v3710 = vunpack.c.l.b16 %v1613
    %v3711 = vunpack.c.l.b16 %v1614
    %v3712 = vunpack.c.l.b16 %v1615
    %v3713 = vpack.c.b16 %v3706, %v3705
    %v3714 = vpack.c.b16 %v3708, %v3707
    %v3715 = vpack.c.b16 %v3710, %v3709
    %v3716 = vpack.c.b16 %v3712, %v3711
    %v3718 = vsel %vm2176, %v3701, 0
    %v3721 = vsel %vm2176, %v3702, 0
    %v3724 = vsel %vm2176, %v3703, 0
    %v3727 = vsel %vm2176, %v3704, 0
    %v3730 = vsel %vm2176, %v3713, 0
    %v3733 = vsel %vm2176, %v3714, 0
    %v3736 = vsel %vm2176, %v3715, 0
    %v3739 = vsel %vm2176, %v3716, 0
    %3741 = vmatpush.bf16.xpose.msra.mxu0 0
    %3742 = vmatpush.bf16.xpose.msra.mxu0 0
    %3743 = vmatpush.bf16.xpose.msra.mxu0 0
    %3744 = vmatpush.bf16.xpose.msra.mxu0 0
    %3745 = vmatpush.bf16.xpose.msra.mxu0 %v3739
    %3746 = vmatpush.bf16.xpose.msra.mxu0 %v3736
    %3747 = vmatpush.bf16.xpose.msra.mxu0 %v3733
    %3748 = vmatpush.bf16.xpose.msra.mxu0 %v3730
    %3749 = vmatmul.bf16.gmra.mxu0 %v3718
    %v3750 = vpop.f32.mrf.mxu0
    %v3751 = vadd.f32 0.0, %v3750
    %v3752 = vpop.f32.mrf.mxu0
    %v3753 = vadd.f32 0.0, %v3752
    %3754 = vmatmul.bf16.gmra.mxu0 %v3721
    %v3755 = vpop.f32.mrf.mxu0
    %v3756 = vadd.f32 0.0, %v3755
    %v3757 = vpop.f32.mrf.mxu0
    %v3758 = vadd.f32 0.0, %v3757
    %3759 = vmatmul.bf16.gmra.mxu0 %v3724
    %v3760 = vpop.f32.mrf.mxu0
    %v3761 = vadd.f32 0.0, %v3760
    %v3762 = vpop.f32.mrf.mxu0
    %v3763 = vadd.f32 0.0, %v3762
    %3764 = vmatmul.bf16.gmra.mxu0 %v3727
    %v3765 = vpop.f32.mrf.mxu0
    %v3766 = vadd.f32 0.0, %v3765
    %v3767 = vpop.f32.mrf.mxu0
    %v3768 = vadd.f32 0.0, %v3767
    %3769 = vdwg.mxu0
    %v3770 = vunpack.c.l.b16 %v1273
    %v3771 = vunpack.c.l.b16 %v1275
    %v3772 = vunpack.c.l.b16 %v1277
    %v3773 = vunpack.c.l.b16 %v1279
    %v3774 = vunpack.c.l.b16 %v1281
    %v3775 = vunpack.c.l.b16 %v1283
    %v3776 = vunpack.c.l.b16 %v1285
    %v3777 = vunpack.c.l.b16 %v1287
    %v3778 = vpack.c.b16 %v3771, %v3770
    %v3779 = vpack.c.b16 %v3773, %v3772
    %v3780 = vpack.c.b16 %v3775, %v3774
    %v3781 = vpack.c.b16 %v3777, %v3776
    %v3782 = vunpack.c.l.b16 %v1616
    %v3783 = vunpack.c.l.b16 %v1617
    %v3784 = vunpack.c.l.b16 %v1618
    %v3785 = vunpack.c.l.b16 %v1619
    %v3786 = vunpack.c.l.b16 %v1620
    %v3787 = vunpack.c.l.b16 %v1621
    %v3788 = vunpack.c.l.b16 %v1622
    %v3789 = vunpack.c.l.b16 %v1623
    %v3790 = vpack.c.b16 %v3783, %v3782
    %v3791 = vpack.c.b16 %v3785, %v3784
    %v3792 = vpack.c.b16 %v3787, %v3786
    %v3793 = vpack.c.b16 %v3789, %v3788
    %v3795 = vsel %vm2176, %v3778, 0
    %v3798 = vsel %vm2176, %v3779, 0
    %v3801 = vsel %vm2176, %v3780, 0
    %v3804 = vsel %vm2176, %v3781, 0
    %v3807 = vsel %vm2176, %v3790, 0
    %v3810 = vsel %vm2176, %v3791, 0
    %v3813 = vsel %vm2176, %v3792, 0
    %v3816 = vsel %vm2176, %v3793, 0
    %3818 = vmatpush.bf16.xpose.msra.mxu0 0
    %3819 = vmatpush.bf16.xpose.msra.mxu0 0
    %3820 = vmatpush.bf16.xpose.msra.mxu0 0
    %3821 = vmatpush.bf16.xpose.msra.mxu0 0
    %3822 = vmatpush.bf16.xpose.msra.mxu0 %v3816
    %3823 = vmatpush.bf16.xpose.msra.mxu0 %v3813
    %3824 = vmatpush.bf16.xpose.msra.mxu0 %v3810
    %3825 = vmatpush.bf16.xpose.msra.mxu0 %v3807
    %3826 = vmatmul.bf16.gmra.mxu0 %v3795
    %v3827 = vpop.f32.mrf.mxu0
    %v3828 = vadd.f32 0.0, %v3827
    %v3829 = vpop.f32.mrf.mxu0
    %v3830 = vadd.f32 0.0, %v3829
    %3831 = vmatmul.bf16.gmra.mxu0 %v3798
    %v3832 = vpop.f32.mrf.mxu0
    %v3833 = vadd.f32 0.0, %v3832
    %v3834 = vpop.f32.mrf.mxu0
    %v3835 = vadd.f32 0.0, %v3834
    %3836 = vmatmul.bf16.gmra.mxu0 %v3801
    %v3837 = vpop.f32.mrf.mxu0
    %v3838 = vadd.f32 0.0, %v3837
    %v3839 = vpop.f32.mrf.mxu0
    %v3840 = vadd.f32 0.0, %v3839
    %3841 = vmatmul.bf16.gmra.mxu0 %v3804
    %v3842 = vpop.f32.mrf.mxu0
    %v3843 = vadd.f32 0.0, %v3842
    %v3844 = vpop.f32.mrf.mxu0
    %v3845 = vadd.f32 0.0, %v3844
    %3846 = vdwg.mxu0
    %v3847 = vunpack.c.l.b16 %v1289
    %v3848 = vunpack.c.l.b16 %v1291
    %v3849 = vunpack.c.l.b16 %v1293
    %v3850 = vunpack.c.l.b16 %v1295
    %v3851 = vunpack.c.l.b16 %v1297
    %v3852 = vunpack.c.l.b16 %v1299
    %v3853 = vunpack.c.l.b16 %v1301
    %v3854 = vunpack.c.l.b16 %v1303
    %v3855 = vpack.c.b16 %v3848, %v3847
    %v3856 = vpack.c.b16 %v3850, %v3849
    %v3857 = vpack.c.b16 %v3852, %v3851
    %v3858 = vpack.c.b16 %v3854, %v3853
    %v3859 = vunpack.c.l.b16 %v1624
    %v3860 = vunpack.c.l.b16 %v1625
    %v3861 = vunpack.c.l.b16 %v1626
    %v3862 = vunpack.c.l.b16 %v1627
    %v3863 = vunpack.c.l.b16 %v1628
    %v3864 = vunpack.c.l.b16 %v1629
    %v3865 = vunpack.c.l.b16 %v1630
    %v3866 = vunpack.c.l.b16 %v1631
    %v3867 = vpack.c.b16 %v3860, %v3859
    %v3868 = vpack.c.b16 %v3862, %v3861
    %v3869 = vpack.c.b16 %v3864, %v3863
    %v3870 = vpack.c.b16 %v3866, %v3865
    %v3872 = vsel %vm2176, %v3855, 0
    %v3875 = vsel %vm2176, %v3856, 0
    %v3878 = vsel %vm2176, %v3857, 0
    %v3881 = vsel %vm2176, %v3858, 0
    %v3884 = vsel %vm2176, %v3867, 0
    %v3887 = vsel %vm2176, %v3868, 0
    %v3890 = vsel %vm2176, %v3869, 0
    %v3893 = vsel %vm2176, %v3870, 0
    %3895 = vmatpush.bf16.xpose.msra.mxu0 0
    %3896 = vmatpush.bf16.xpose.msra.mxu0 0
    %3897 = vmatpush.bf16.xpose.msra.mxu0 0
    %3898 = vmatpush.bf16.xpose.msra.mxu0 0
    %3899 = vmatpush.bf16.xpose.msra.mxu0 %v3893
    %3900 = vmatpush.bf16.xpose.msra.mxu0 %v3890
    %3901 = vmatpush.bf16.xpose.msra.mxu0 %v3887
    %3902 = vmatpush.bf16.xpose.msra.mxu0 %v3884
    %3903 = vmatmul.bf16.gmra.mxu0 %v3872
    %v3904 = vpop.f32.mrf.mxu0
    %v3905 = vadd.f32 0.0, %v3904
    %v3906 = vpop.f32.mrf.mxu0
    %v3907 = vadd.f32 0.0, %v3906
    %3908 = vmatmul.bf16.gmra.mxu0 %v3875
    %v3909 = vpop.f32.mrf.mxu0
    %v3910 = vadd.f32 0.0, %v3909
    %v3911 = vpop.f32.mrf.mxu0
    %v3912 = vadd.f32 0.0, %v3911
    %3913 = vmatmul.bf16.gmra.mxu0 %v3878
    %v3914 = vpop.f32.mrf.mxu0
    %v3915 = vadd.f32 0.0, %v3914
    %v3916 = vpop.f32.mrf.mxu0
    %v3917 = vadd.f32 0.0, %v3916
    %3918 = vmatmul.bf16.gmra.mxu0 %v3881
    %v3919 = vpop.f32.mrf.mxu0
    %v3920 = vadd.f32 0.0, %v3919
    %v3921 = vpop.f32.mrf.mxu0
    %v3922 = vadd.f32 0.0, %v3921
    %3923 = vdwg.mxu0
    %v3924 = vunpack.c.l.b16 %v1305
    %v3925 = vunpack.c.l.b16 %v1307
    %v3926 = vunpack.c.l.b16 %v1309
    %v3927 = vunpack.c.l.b16 %v1311
    %v3928 = vunpack.c.l.b16 %v1313
    %v3929 = vunpack.c.l.b16 %v1315
    %v3930 = vunpack.c.l.b16 %v1317
    %v3931 = vunpack.c.l.b16 %v1319
    %v3932 = vpack.c.b16 %v3925, %v3924
    %v3933 = vpack.c.b16 %v3927, %v3926
    %v3934 = vpack.c.b16 %v3929, %v3928
    %v3935 = vpack.c.b16 %v3931, %v3930
    %v3936 = vunpack.c.l.b16 %v1632
    %v3937 = vunpack.c.l.b16 %v1633
    %v3938 = vunpack.c.l.b16 %v1634
    %v3939 = vunpack.c.l.b16 %v1635
    %v3940 = vunpack.c.l.b16 %v1636
    %v3941 = vunpack.c.l.b16 %v1637
    %v3942 = vunpack.c.l.b16 %v1638
    %v3943 = vunpack.c.l.b16 %v1639
    %v3944 = vpack.c.b16 %v3937, %v3936
    %v3945 = vpack.c.b16 %v3939, %v3938
    %v3946 = vpack.c.b16 %v3941, %v3940
    %v3947 = vpack.c.b16 %v3943, %v3942
    %v3949 = vsel %vm2176, %v3932, 0
    %v3952 = vsel %vm2176, %v3933, 0
    %v3955 = vsel %vm2176, %v3934, 0
    %v3958 = vsel %vm2176, %v3935, 0
    %v3961 = vsel %vm2176, %v3944, 0
    %v3964 = vsel %vm2176, %v3945, 0
    %v3967 = vsel %vm2176, %v3946, 0
    %v3970 = vsel %vm2176, %v3947, 0
    %3972 = vmatpush.bf16.xpose.msra.mxu0 0
    %3973 = vmatpush.bf16.xpose.msra.mxu0 0
    %3974 = vmatpush.bf16.xpose.msra.mxu0 0
    %3975 = vmatpush.bf16.xpose.msra.mxu0 0
    %3976 = vmatpush.bf16.xpose.msra.mxu0 %v3970
    %3977 = vmatpush.bf16.xpose.msra.mxu0 %v3967
    %3978 = vmatpush.bf16.xpose.msra.mxu0 %v3964
    %3979 = vmatpush.bf16.xpose.msra.mxu0 %v3961
    %3980 = vmatmul.bf16.gmra.mxu0 %v3949
    %v3981 = vpop.f32.mrf.mxu0
    %v3982 = vadd.f32 0.0, %v3981
    %v3983 = vpop.f32.mrf.mxu0
    %v3984 = vadd.f32 0.0, %v3983
    %3985 = vmatmul.bf16.gmra.mxu0 %v3952
    %v3986 = vpop.f32.mrf.mxu0
    %v3987 = vadd.f32 0.0, %v3986
    %v3988 = vpop.f32.mrf.mxu0
    %v3989 = vadd.f32 0.0, %v3988
    %3990 = vmatmul.bf16.gmra.mxu0 %v3955
    %v3991 = vpop.f32.mrf.mxu0
    %v3992 = vadd.f32 0.0, %v3991
    %v3993 = vpop.f32.mrf.mxu0
    %v3994 = vadd.f32 0.0, %v3993
    %3995 = vmatmul.bf16.gmra.mxu0 %v3958
    %v3996 = vpop.f32.mrf.mxu0
    %v3997 = vadd.f32 0.0, %v3996
    %v3998 = vpop.f32.mrf.mxu0
    %v3999 = vadd.f32 0.0, %v3998
    %4000 = vdwg.mxu0
    %v4001 = vunpack.c.l.b16 %v1321
    %v4002 = vunpack.c.l.b16 %v1323
    %v4003 = vunpack.c.l.b16 %v1325
    %v4004 = vunpack.c.l.b16 %v1327
    %v4005 = vunpack.c.l.b16 %v1329
    %v4006 = vunpack.c.l.b16 %v1331
    %v4007 = vunpack.c.l.b16 %v1333
    %v4008 = vunpack.c.l.b16 %v1335
    %v4009 = vpack.c.b16 %v4002, %v4001
    %v4010 = vpack.c.b16 %v4004, %v4003
    %v4011 = vpack.c.b16 %v4006, %v4005
    %v4012 = vpack.c.b16 %v4008, %v4007
    %v4013 = vunpack.c.l.b16 %v1640
    %v4014 = vunpack.c.l.b16 %v1641
    %v4015 = vunpack.c.l.b16 %v1642
    %v4016 = vunpack.c.l.b16 %v1643
    %v4017 = vunpack.c.l.b16 %v1644
    %v4018 = vunpack.c.l.b16 %v1645
    %v4019 = vunpack.c.l.b16 %v1646
    %v4020 = vunpack.c.l.b16 %v1647
    %v4021 = vpack.c.b16 %v4014, %v4013
    %v4022 = vpack.c.b16 %v4016, %v4015
    %v4023 = vpack.c.b16 %v4018, %v4017
    %v4024 = vpack.c.b16 %v4020, %v4019
    %v4026 = vsel %vm2176, %v4009, 0
    %v4029 = vsel %vm2176, %v4010, 0
    %v4032 = vsel %vm2176, %v4011, 0
    %v4035 = vsel %vm2176, %v4012, 0
    %v4038 = vsel %vm2176, %v4021, 0
    %v4041 = vsel %vm2176, %v4022, 0
    %v4044 = vsel %vm2176, %v4023, 0
    %v4047 = vsel %vm2176, %v4024, 0
    %4049 = vmatpush.bf16.xpose.msra.mxu0 0
    %4050 = vmatpush.bf16.xpose.msra.mxu0 0
    %4051 = vmatpush.bf16.xpose.msra.mxu0 0
    %4052 = vmatpush.bf16.xpose.msra.mxu0 0
    %4053 = vmatpush.bf16.xpose.msra.mxu0 %v4047
    %4054 = vmatpush.bf16.xpose.msra.mxu0 %v4044
    %4055 = vmatpush.bf16.xpose.msra.mxu0 %v4041
    %4056 = vmatpush.bf16.xpose.msra.mxu0 %v4038
    %4057 = vmatmul.bf16.gmra.mxu0 %v4026
    %v4058 = vpop.f32.mrf.mxu0
    %v4059 = vadd.f32 0.0, %v4058
    %v4060 = vpop.f32.mrf.mxu0
    %v4061 = vadd.f32 0.0, %v4060
    %4062 = vmatmul.bf16.gmra.mxu0 %v4029
    %v4063 = vpop.f32.mrf.mxu0
    %v4064 = vadd.f32 0.0, %v4063
    %v4065 = vpop.f32.mrf.mxu0
    %v4066 = vadd.f32 0.0, %v4065
    %4067 = vmatmul.bf16.gmra.mxu0 %v4032
    %v4068 = vpop.f32.mrf.mxu0
    %v4069 = vadd.f32 0.0, %v4068
    %v4070 = vpop.f32.mrf.mxu0
    %v4071 = vadd.f32 0.0, %v4070
    %4072 = vmatmul.bf16.gmra.mxu0 %v4035
    %v4073 = vpop.f32.mrf.mxu0
    %v4074 = vadd.f32 0.0, %v4073
    %v4075 = vpop.f32.mrf.mxu0
    %v4076 = vadd.f32 0.0, %v4075
    %4077 = vdwg.mxu0
    %v4078 = vunpack.c.l.b16 %v1337
    %v4079 = vunpack.c.l.b16 %v1339
    %v4080 = vunpack.c.l.b16 %v1341
    %v4081 = vunpack.c.l.b16 %v1343
    %v4082 = vunpack.c.l.b16 %v1345
    %v4083 = vunpack.c.l.b16 %v1347
    %v4084 = vunpack.c.l.b16 %v1349
    %v4085 = vunpack.c.l.b16 %v1351
    %v4086 = vpack.c.b16 %v4079, %v4078
    %v4087 = vpack.c.b16 %v4081, %v4080
    %v4088 = vpack.c.b16 %v4083, %v4082
    %v4089 = vpack.c.b16 %v4085, %v4084
    %v4090 = vunpack.c.l.b16 %v1648
    %v4091 = vunpack.c.l.b16 %v1649
    %v4092 = vunpack.c.l.b16 %v1650
    %v4093 = vunpack.c.l.b16 %v1651
    %v4094 = vunpack.c.l.b16 %v1652
    %v4095 = vunpack.c.l.b16 %v1653
    %v4096 = vunpack.c.l.b16 %v1654
    %v4097 = vunpack.c.l.b16 %v1655
    %v4098 = vpack.c.b16 %v4091, %v4090
    %v4099 = vpack.c.b16 %v4093, %v4092
    %v4100 = vpack.c.b16 %v4095, %v4094
    %v4101 = vpack.c.b16 %v4097, %v4096
    %v4103 = vsel %vm2176, %v4086, 0
    %v4106 = vsel %vm2176, %v4087, 0
    %v4109 = vsel %vm2176, %v4088, 0
    %v4112 = vsel %vm2176, %v4089, 0
    %v4115 = vsel %vm2176, %v4098, 0
    %v4118 = vsel %vm2176, %v4099, 0
    %v4121 = vsel %vm2176, %v4100, 0
    %v4124 = vsel %vm2176, %v4101, 0
    %4126 = vmatpush.bf16.xpose.msra.mxu0 0
    %4127 = vmatpush.bf16.xpose.msra.mxu0 0
    %4128 = vmatpush.bf16.xpose.msra.mxu0 0
    %4129 = vmatpush.bf16.xpose.msra.mxu0 0
    %4130 = vmatpush.bf16.xpose.msra.mxu0 %v4124
    %4131 = vmatpush.bf16.xpose.msra.mxu0 %v4121
    %4132 = vmatpush.bf16.xpose.msra.mxu0 %v4118
    %4133 = vmatpush.bf16.xpose.msra.mxu0 %v4115
    %4134 = vmatmul.bf16.gmra.mxu0 %v4103
    %v4135 = vpop.f32.mrf.mxu0
    %v4136 = vadd.f32 0.0, %v4135
    %v4137 = vpop.f32.mrf.mxu0
    %v4138 = vadd.f32 0.0, %v4137
    %4139 = vmatmul.bf16.gmra.mxu0 %v4106
    %v4140 = vpop.f32.mrf.mxu0
    %v4141 = vadd.f32 0.0, %v4140
    %v4142 = vpop.f32.mrf.mxu0
    %v4143 = vadd.f32 0.0, %v4142
    %4144 = vmatmul.bf16.gmra.mxu0 %v4109
    %v4145 = vpop.f32.mrf.mxu0
    %v4146 = vadd.f32 0.0, %v4145
    %v4147 = vpop.f32.mrf.mxu0
    %v4148 = vadd.f32 0.0, %v4147
    %4149 = vmatmul.bf16.gmra.mxu0 %v4112
    %v4150 = vpop.f32.mrf.mxu0
    %v4151 = vadd.f32 0.0, %v4150
    %v4152 = vpop.f32.mrf.mxu0
    %v4153 = vadd.f32 0.0, %v4152
    %4154 = vdwg.mxu0
    %v4155 = vunpack.c.l.b16 %v1353
    %v4156 = vunpack.c.l.b16 %v1355
    %v4157 = vunpack.c.l.b16 %v1357
    %v4158 = vunpack.c.l.b16 %v1359
    %v4159 = vunpack.c.l.b16 %v1361
    %v4160 = vunpack.c.l.b16 %v1363
    %v4161 = vunpack.c.l.b16 %v1365
    %v4162 = vunpack.c.l.b16 %v1367
    %v4163 = vpack.c.b16 %v4156, %v4155
    %v4164 = vpack.c.b16 %v4158, %v4157
    %v4165 = vpack.c.b16 %v4160, %v4159
    %v4166 = vpack.c.b16 %v4162, %v4161
    %v4167 = vunpack.c.l.b16 %v1656
    %v4168 = vunpack.c.l.b16 %v1657
    %v4169 = vunpack.c.l.b16 %v1658
    %v4170 = vunpack.c.l.b16 %v1659
    %v4171 = vunpack.c.l.b16 %v1660
    %v4172 = vunpack.c.l.b16 %v1661
    %v4173 = vunpack.c.l.b16 %v1662
    %v4174 = vunpack.c.l.b16 %v1663
    %v4175 = vpack.c.b16 %v4168, %v4167
    %v4176 = vpack.c.b16 %v4170, %v4169
    %v4177 = vpack.c.b16 %v4172, %v4171
    %v4178 = vpack.c.b16 %v4174, %v4173
    %v4180 = vsel %vm2176, %v4163, 0
    %v4183 = vsel %vm2176, %v4164, 0
    %v4186 = vsel %vm2176, %v4165, 0
    %v4189 = vsel %vm2176, %v4166, 0
    %v4192 = vsel %vm2176, %v4175, 0
    %v4195 = vsel %vm2176, %v4176, 0
    %v4198 = vsel %vm2176, %v4177, 0
    %v4201 = vsel %vm2176, %v4178, 0
    %4203 = vmatpush.bf16.xpose.msra.mxu0 0
    %4204 = vmatpush.bf16.xpose.msra.mxu0 0
    %4205 = vmatpush.bf16.xpose.msra.mxu0 0
    %4206 = vmatpush.bf16.xpose.msra.mxu0 0
    %4207 = vmatpush.bf16.xpose.msra.mxu0 %v4201
    %4208 = vmatpush.bf16.xpose.msra.mxu0 %v4198
    %4209 = vmatpush.bf16.xpose.msra.mxu0 %v4195
    %4210 = vmatpush.bf16.xpose.msra.mxu0 %v4192
    %4211 = vmatmul.bf16.gmra.mxu0 %v4180
    %v4212 = vpop.f32.mrf.mxu0
    %v4213 = vadd.f32 0.0, %v4212
    %v4214 = vpop.f32.mrf.mxu0
    %v4215 = vadd.f32 0.0, %v4214
    %4216 = vmatmul.bf16.gmra.mxu0 %v4183
    %v4217 = vpop.f32.mrf.mxu0
    %v4218 = vadd.f32 0.0, %v4217
    %v4219 = vpop.f32.mrf.mxu0
    %v4220 = vadd.f32 0.0, %v4219
    %4221 = vmatmul.bf16.gmra.mxu0 %v4186
    %v4222 = vpop.f32.mrf.mxu0
    %v4223 = vadd.f32 0.0, %v4222
    %v4224 = vpop.f32.mrf.mxu0
    %v4225 = vadd.f32 0.0, %v4224
    %4226 = vmatmul.bf16.gmra.mxu0 %v4189
    %v4227 = vpop.f32.mrf.mxu0
    %v4228 = vadd.f32 0.0, %v4227
    %v4229 = vpop.f32.mrf.mxu0
    %v4230 = vadd.f32 0.0, %v4229
    %4231 = vdwg.mxu0
    %v4232 = vunpack.c.l.b16 %v1369
    %v4233 = vunpack.c.l.b16 %v1371
    %v4234 = vunpack.c.l.b16 %v1373
    %v4235 = vunpack.c.l.b16 %v1375
    %v4236 = vunpack.c.l.b16 %v1377
    %v4237 = vunpack.c.l.b16 %v1379
    %v4238 = vunpack.c.l.b16 %v1381
    %v4239 = vunpack.c.l.b16 %v1383
    %v4240 = vpack.c.b16 %v4233, %v4232
    %v4241 = vpack.c.b16 %v4235, %v4234
    %v4242 = vpack.c.b16 %v4237, %v4236
    %v4243 = vpack.c.b16 %v4239, %v4238
    %v4244 = vunpack.c.l.b16 %v1664
    %v4245 = vunpack.c.l.b16 %v1665
    %v4246 = vunpack.c.l.b16 %v1666
    %v4247 = vunpack.c.l.b16 %v1667
    %v4248 = vunpack.c.l.b16 %v1668
    %v4249 = vunpack.c.l.b16 %v1669
    %v4250 = vunpack.c.l.b16 %v1670
    %v4251 = vunpack.c.l.b16 %v1671
    %v4252 = vpack.c.b16 %v4245, %v4244
    %v4253 = vpack.c.b16 %v4247, %v4246
    %v4254 = vpack.c.b16 %v4249, %v4248
    %v4255 = vpack.c.b16 %v4251, %v4250
    %v4257 = vsel %vm2176, %v4240, 0
    %v4260 = vsel %vm2176, %v4241, 0
    %v4263 = vsel %vm2176, %v4242, 0
    %v4266 = vsel %vm2176, %v4243, 0
    %v4269 = vsel %vm2176, %v4252, 0
    %v4272 = vsel %vm2176, %v4253, 0
    %v4275 = vsel %vm2176, %v4254, 0
    %v4278 = vsel %vm2176, %v4255, 0
    %4280 = vmatpush.bf16.xpose.msra.mxu0 0
    %4281 = vmatpush.bf16.xpose.msra.mxu0 0
    %4282 = vmatpush.bf16.xpose.msra.mxu0 0
    %4283 = vmatpush.bf16.xpose.msra.mxu0 0
    %4284 = vmatpush.bf16.xpose.msra.mxu0 %v4278
    %4285 = vmatpush.bf16.xpose.msra.mxu0 %v4275
    %4286 = vmatpush.bf16.xpose.msra.mxu0 %v4272
    %4287 = vmatpush.bf16.xpose.msra.mxu0 %v4269
    %4288 = vmatmul.bf16.gmra.mxu0 %v4257
    %v4289 = vpop.f32.mrf.mxu0
    %v4290 = vadd.f32 0.0, %v4289
    %v4291 = vpop.f32.mrf.mxu0
    %v4292 = vadd.f32 0.0, %v4291
    %4293 = vmatmul.bf16.gmra.mxu0 %v4260
    %v4294 = vpop.f32.mrf.mxu0
    %v4295 = vadd.f32 0.0, %v4294
    %v4296 = vpop.f32.mrf.mxu0
    %v4297 = vadd.f32 0.0, %v4296
    %4298 = vmatmul.bf16.gmra.mxu0 %v4263
    %v4299 = vpop.f32.mrf.mxu0
    %v4300 = vadd.f32 0.0, %v4299
    %v4301 = vpop.f32.mrf.mxu0
    %v4302 = vadd.f32 0.0, %v4301
    %4303 = vmatmul.bf16.gmra.mxu0 %v4266
    %v4304 = vpop.f32.mrf.mxu0
    %v4305 = vadd.f32 0.0, %v4304
    %v4306 = vpop.f32.mrf.mxu0
    %v4307 = vadd.f32 0.0, %v4306
    %4308 = vdwg.mxu0
    %v4309 = vunpack.c.l.b16 %v1385
    %v4310 = vunpack.c.l.b16 %v1387
    %v4311 = vunpack.c.l.b16 %v1389
    %v4312 = vunpack.c.l.b16 %v1391
    %v4313 = vunpack.c.l.b16 %v1393
    %v4314 = vunpack.c.l.b16 %v1395
    %v4315 = vunpack.c.l.b16 %v1397
    %v4316 = vunpack.c.l.b16 %v1399
    %v4317 = vpack.c.b16 %v4310, %v4309
    %v4318 = vpack.c.b16 %v4312, %v4311
    %v4319 = vpack.c.b16 %v4314, %v4313
    %v4320 = vpack.c.b16 %v4316, %v4315
    %v4321 = vunpack.c.l.b16 %v1672
    %v4322 = vunpack.c.l.b16 %v1673
    %v4323 = vunpack.c.l.b16 %v1674
    %v4324 = vunpack.c.l.b16 %v1675
    %v4325 = vunpack.c.l.b16 %v1676
    %v4326 = vunpack.c.l.b16 %v1677
    %v4327 = vunpack.c.l.b16 %v1678
    %v4328 = vunpack.c.l.b16 %v1679
    %v4329 = vpack.c.b16 %v4322, %v4321
    %v4330 = vpack.c.b16 %v4324, %v4323
    %v4331 = vpack.c.b16 %v4326, %v4325
    %v4332 = vpack.c.b16 %v4328, %v4327
    %v4334 = vsel %vm2176, %v4317, 0
    %v4337 = vsel %vm2176, %v4318, 0
    %v4340 = vsel %vm2176, %v4319, 0
    %v4343 = vsel %vm2176, %v4320, 0
    %v4346 = vsel %vm2176, %v4329, 0
    %v4349 = vsel %vm2176, %v4330, 0
    %v4352 = vsel %vm2176, %v4331, 0
    %v4355 = vsel %vm2176, %v4332, 0
    %4357 = vmatpush.bf16.xpose.msra.mxu0 0
    %4358 = vmatpush.bf16.xpose.msra.mxu0 0
    %4359 = vmatpush.bf16.xpose.msra.mxu0 0
    %4360 = vmatpush.bf16.xpose.msra.mxu0 0
    %4361 = vmatpush.bf16.xpose.msra.mxu0 %v4355
    %4362 = vmatpush.bf16.xpose.msra.mxu0 %v4352
    %4363 = vmatpush.bf16.xpose.msra.mxu0 %v4349
    %4364 = vmatpush.bf16.xpose.msra.mxu0 %v4346
    %4365 = vmatmul.bf16.gmra.mxu0 %v4334
    %v4366 = vpop.f32.mrf.mxu0
    %v4367 = vadd.f32 0.0, %v4366
    %v4368 = vpop.f32.mrf.mxu0
    %v4369 = vadd.f32 0.0, %v4368
    %4370 = vmatmul.bf16.gmra.mxu0 %v4337
    %v4371 = vpop.f32.mrf.mxu0
    %v4372 = vadd.f32 0.0, %v4371
    %v4373 = vpop.f32.mrf.mxu0
    %v4374 = vadd.f32 0.0, %v4373
    %4375 = vmatmul.bf16.gmra.mxu0 %v4340
    %v4376 = vpop.f32.mrf.mxu0
    %v4377 = vadd.f32 0.0, %v4376
    %v4378 = vpop.f32.mrf.mxu0
    %v4379 = vadd.f32 0.0, %v4378
    %4380 = vmatmul.bf16.gmra.mxu0 %v4343
    %v4381 = vpop.f32.mrf.mxu0
    %v4382 = vadd.f32 0.0, %v4381
    %v4383 = vpop.f32.mrf.mxu0
    %v4384 = vadd.f32 0.0, %v4383
    %4385 = vdwg.mxu0
    %v4386 = vunpack.c.l.b16 %v1401
    %v4387 = vunpack.c.l.b16 %v1403
    %v4388 = vunpack.c.l.b16 %v1405
    %v4389 = vunpack.c.l.b16 %v1407
    %v4390 = vunpack.c.l.b16 %v1409
    %v4391 = vunpack.c.l.b16 %v1411
    %v4392 = vunpack.c.l.b16 %v1413
    %v4393 = vunpack.c.l.b16 %v1415
    %v4394 = vpack.c.b16 %v4387, %v4386
    %v4395 = vpack.c.b16 %v4389, %v4388
    %v4396 = vpack.c.b16 %v4391, %v4390
    %v4397 = vpack.c.b16 %v4393, %v4392
    %v4398 = vunpack.c.l.b16 %v1680
    %v4399 = vunpack.c.l.b16 %v1681
    %v4400 = vunpack.c.l.b16 %v1682
    %v4401 = vunpack.c.l.b16 %v1683
    %v4402 = vunpack.c.l.b16 %v1684
    %v4403 = vunpack.c.l.b16 %v1685
    %v4404 = vunpack.c.l.b16 %v1686
    %v4405 = vunpack.c.l.b16 %v1687
    %v4406 = vpack.c.b16 %v4399, %v4398
    %v4407 = vpack.c.b16 %v4401, %v4400
    %v4408 = vpack.c.b16 %v4403, %v4402
    %v4409 = vpack.c.b16 %v4405, %v4404
    %v4411 = vsel %vm2176, %v4394, 0
    %v4414 = vsel %vm2176, %v4395, 0
    %v4417 = vsel %vm2176, %v4396, 0
    %v4420 = vsel %vm2176, %v4397, 0
    %v4423 = vsel %vm2176, %v4406, 0
    %v4426 = vsel %vm2176, %v4407, 0
    %v4429 = vsel %vm2176, %v4408, 0
    %v4432 = vsel %vm2176, %v4409, 0
    %4434 = vmatpush.bf16.xpose.msra.mxu0 0
    %4435 = vmatpush.bf16.xpose.msra.mxu0 0
    %4436 = vmatpush.bf16.xpose.msra.mxu0 0
    %4437 = vmatpush.bf16.xpose.msra.mxu0 0
    %4438 = vmatpush.bf16.xpose.msra.mxu0 %v4432
    %4439 = vmatpush.bf16.xpose.msra.mxu0 %v4429
    %4440 = vmatpush.bf16.xpose.msra.mxu0 %v4426
    %4441 = vmatpush.bf16.xpose.msra.mxu0 %v4423
    %4442 = vmatmul.bf16.gmra.mxu0 %v4411
    %v4443 = vpop.f32.mrf.mxu0
    %v4444 = vadd.f32 0.0, %v4443
    %v4445 = vpop.f32.mrf.mxu0
    %v4446 = vadd.f32 0.0, %v4445
    %4447 = vmatmul.bf16.gmra.mxu0 %v4414
    %v4448 = vpop.f32.mrf.mxu0
    %v4449 = vadd.f32 0.0, %v4448
    %v4450 = vpop.f32.mrf.mxu0
    %v4451 = vadd.f32 0.0, %v4450
    %4452 = vmatmul.bf16.gmra.mxu0 %v4417
    %v4453 = vpop.f32.mrf.mxu0
    %v4454 = vadd.f32 0.0, %v4453
    %v4455 = vpop.f32.mrf.mxu0
    %v4456 = vadd.f32 0.0, %v4455
    %4457 = vmatmul.bf16.gmra.mxu0 %v4420
    %v4458 = vpop.f32.mrf.mxu0
    %v4459 = vadd.f32 0.0, %v4458
    %v4460 = vpop.f32.mrf.mxu0
    %v4461 = vadd.f32 0.0, %v4460
    %4462 = vdwg.mxu0
    %v4463 = vunpack.c.l.b16 %v1417
    %v4464 = vunpack.c.l.b16 %v1419
    %v4465 = vunpack.c.l.b16 %v1421
    %v4466 = vunpack.c.l.b16 %v1423
    %v4467 = vunpack.c.l.b16 %v1425
    %v4468 = vunpack.c.l.b16 %v1427
    %v4469 = vunpack.c.l.b16 %v1429
    %v4470 = vunpack.c.l.b16 %v1431
    %v4471 = vpack.c.b16 %v4464, %v4463
    %v4472 = vpack.c.b16 %v4466, %v4465
    %v4473 = vpack.c.b16 %v4468, %v4467
    %v4474 = vpack.c.b16 %v4470, %v4469
    %v4475 = vunpack.c.l.b16 %v1688
    %v4476 = vunpack.c.l.b16 %v1689
    %v4477 = vunpack.c.l.b16 %v1690
    %v4478 = vunpack.c.l.b16 %v1691
    %v4479 = vunpack.c.l.b16 %v1692
    %v4480 = vunpack.c.l.b16 %v1693
    %v4481 = vunpack.c.l.b16 %v1694
    %v4482 = vunpack.c.l.b16 %v1695
    %v4483 = vpack.c.b16 %v4476, %v4475
    %v4484 = vpack.c.b16 %v4478, %v4477
    %v4485 = vpack.c.b16 %v4480, %v4479
    %v4486 = vpack.c.b16 %v4482, %v4481
    %v4488 = vsel %vm2176, %v4471, 0
    %v4491 = vsel %vm2176, %v4472, 0
    %v4494 = vsel %vm2176, %v4473, 0
    %v4497 = vsel %vm2176, %v4474, 0
    %v4500 = vsel %vm2176, %v4483, 0
    %v4503 = vsel %vm2176, %v4484, 0
    %v4506 = vsel %vm2176, %v4485, 0
    %v4509 = vsel %vm2176, %v4486, 0
    %4511 = vmatpush.bf16.xpose.msra.mxu0 0
    %4512 = vmatpush.bf16.xpose.msra.mxu0 0
    %4513 = vmatpush.bf16.xpose.msra.mxu0 0
    %4514 = vmatpush.bf16.xpose.msra.mxu0 0
    %4515 = vmatpush.bf16.xpose.msra.mxu0 %v4509
    %4516 = vmatpush.bf16.xpose.msra.mxu0 %v4506
    %4517 = vmatpush.bf16.xpose.msra.mxu0 %v4503
    %4518 = vmatpush.bf16.xpose.msra.mxu0 %v4500
    %4519 = vmatmul.bf16.gmra.mxu0 %v4488
    %v4520 = vpop.f32.mrf.mxu0
    %v4521 = vadd.f32 0.0, %v4520
    %v4522 = vpop.f32.mrf.mxu0
    %v4523 = vadd.f32 0.0, %v4522
    %4524 = vmatmul.bf16.gmra.mxu0 %v4491
    %v4525 = vpop.f32.mrf.mxu0
    %v4526 = vadd.f32 0.0, %v4525
    %v4527 = vpop.f32.mrf.mxu0
    %v4528 = vadd.f32 0.0, %v4527
    %4529 = vmatmul.bf16.gmra.mxu0 %v4494
    %v4530 = vpop.f32.mrf.mxu0
    %v4531 = vadd.f32 0.0, %v4530
    %v4532 = vpop.f32.mrf.mxu0
    %v4533 = vadd.f32 0.0, %v4532
    %4534 = vmatmul.bf16.gmra.mxu0 %v4497
    %v4535 = vpop.f32.mrf.mxu0
    %v4536 = vadd.f32 0.0, %v4535
    %v4537 = vpop.f32.mrf.mxu0
    %v4538 = vadd.f32 0.0, %v4537
    %4539 = vdwg.mxu0
    %v4540 = vunpack.c.l.b16 %v1433
    %v4541 = vunpack.c.l.b16 %v1435
    %v4542 = vunpack.c.l.b16 %v1437
    %v4543 = vunpack.c.l.b16 %v1439
    %v4544 = vunpack.c.l.b16 %v1441
    %v4545 = vunpack.c.l.b16 %v1443
    %v4546 = vunpack.c.l.b16 %v1445
    %v4547 = vunpack.c.l.b16 %v1447
    %v4548 = vpack.c.b16 %v4541, %v4540
    %v4549 = vpack.c.b16 %v4543, %v4542
    %v4550 = vpack.c.b16 %v4545, %v4544
    %v4551 = vpack.c.b16 %v4547, %v4546
    %v4552 = vunpack.c.l.b16 %v1696
    %v4553 = vunpack.c.l.b16 %v1697
    %v4554 = vunpack.c.l.b16 %v1698
    %v4555 = vunpack.c.l.b16 %v1699
    %v4556 = vunpack.c.l.b16 %v1700
    %v4557 = vunpack.c.l.b16 %v1701
    %v4558 = vunpack.c.l.b16 %v1702
    %v4559 = vunpack.c.l.b16 %v1703
    %v4560 = vpack.c.b16 %v4553, %v4552
    %v4561 = vpack.c.b16 %v4555, %v4554
    %v4562 = vpack.c.b16 %v4557, %v4556
    %v4563 = vpack.c.b16 %v4559, %v4558
    %v4565 = vsel %vm2176, %v4548, 0
    %v4568 = vsel %vm2176, %v4549, 0
    %v4571 = vsel %vm2176, %v4550, 0
    %v4574 = vsel %vm2176, %v4551, 0
    %v4577 = vsel %vm2176, %v4560, 0
    %v4580 = vsel %vm2176, %v4561, 0
    %v4583 = vsel %vm2176, %v4562, 0
    %v4586 = vsel %vm2176, %v4563, 0
    %4588 = vmatpush.bf16.xpose.msra.mxu0 0
    %4589 = vmatpush.bf16.xpose.msra.mxu0 0
    %4590 = vmatpush.bf16.xpose.msra.mxu0 0
    %4591 = vmatpush.bf16.xpose.msra.mxu0 0
    %4592 = vmatpush.bf16.xpose.msra.mxu0 %v4586
    %4593 = vmatpush.bf16.xpose.msra.mxu0 %v4583
    %4594 = vmatpush.bf16.xpose.msra.mxu0 %v4580
    %4595 = vmatpush.bf16.xpose.msra.mxu0 %v4577
    %4596 = vmatmul.bf16.gmra.mxu0 %v4565
    %v4597 = vpop.f32.mrf.mxu0
    %v4598 = vadd.f32 0.0, %v4597
    %v4599 = vpop.f32.mrf.mxu0
    %v4600 = vadd.f32 0.0, %v4599
    %4601 = vmatmul.bf16.gmra.mxu0 %v4568
    %v4602 = vpop.f32.mrf.mxu0
    %v4603 = vadd.f32 0.0, %v4602
    %v4604 = vpop.f32.mrf.mxu0
    %v4605 = vadd.f32 0.0, %v4604
    %4606 = vmatmul.bf16.gmra.mxu0 %v4571
    %v4607 = vpop.f32.mrf.mxu0
    %v4608 = vadd.f32 0.0, %v4607
    %v4609 = vpop.f32.mrf.mxu0
    %v4610 = vadd.f32 0.0, %v4609
    %4611 = vmatmul.bf16.gmra.mxu0 %v4574
    %v4612 = vpop.f32.mrf.mxu0
    %v4613 = vadd.f32 0.0, %v4612
    %v4614 = vpop.f32.mrf.mxu0
    %v4615 = vadd.f32 0.0, %v4614
    %4616 = vdwg.mxu0
    %v4617 = vld [vmem:[#allocation8] sm:$0xff]
    %v4618 = vld [vmem:[#allocation8 + $0x8] sm:$0xff]
    %v4619 = vld [vmem:[#allocation8 + $0x10] sm:$0xff]
    %v4620 = vld [vmem:[#allocation8 + $0x18] sm:$0xff]
    %v4621 = vld [vmem:[#allocation8 + $0x20] sm:$0xff]
    %v4622 = vld [vmem:[#allocation8 + $0x28] sm:$0xff]
    %v4623 = vld [vmem:[#allocation8 + $0x30] sm:$0xff]
    %v4624 = vld [vmem:[#allocation8 + $0x38] sm:$0xff]
    %v4625 = vld [vmem:[#allocation8 + $0x40] sm:$0xff]
    %v4626 = vld [vmem:[#allocation8 + $0x48] sm:$0xff]
    %v4627 = vld [vmem:[#allocation8 + $0x50] sm:$0xff]
    %v4628 = vld [vmem:[#allocation8 + $0x58] sm:$0xff]
    %v4629 = vld [vmem:[#allocation8 + $0x60] sm:$0xff]
    %v4630 = vld [vmem:[#allocation8 + $0x68] sm:$0xff]
    %v4631 = vld [vmem:[#allocation8 + $0x70] sm:$0xff]
    %v4632 = vld [vmem:[#allocation8 + $0x78] sm:$0xff]
    %v4633 = vld [vmem:[#allocation8 + $0x80] sm:$0xff]
    %v4634 = vld [vmem:[#allocation8 + $0x88] sm:$0xff]
    %v4635 = vld [vmem:[#allocation8 + $0x90] sm:$0xff]
    %v4636 = vld [vmem:[#allocation8 + $0x98] sm:$0xff]
    %v4637 = vld [vmem:[#allocation8 + $0xa0] sm:$0xff]
    %v4638 = vld [vmem:[#allocation8 + $0xa8] sm:$0xff]
    %v4639 = vld [vmem:[#allocation8 + $0xb0] sm:$0xff]
    %v4640 = vld [vmem:[#allocation8 + $0xb8] sm:$0xff]
    %v4641 = vld [vmem:[#allocation8 + $0xc0] sm:$0xff]
    %v4642 = vld [vmem:[#allocation8 + $0xc8] sm:$0xff]
    %v4643 = vld [vmem:[#allocation8 + $0xd0] sm:$0xff]
    %v4644 = vld [vmem:[#allocation8 + $0xd8] sm:$0xff]
    %v4645 = vld [vmem:[#allocation8 + $0xe0] sm:$0xff]
    %v4646 = vld [vmem:[#allocation8 + $0xe8] sm:$0xff]
    %v4647 = vld [vmem:[#allocation8 + $0xf0] sm:$0xff]
    %v4648 = vld [vmem:[#allocation8 + $0xf8] sm:$0xff]
    %v4649 = vadd.f32 %v2211, %v4617
    %v4650 = vadd.f32 %v2213, %v4618
    %v4651 = vadd.f32 %v2216, %v4619
    %v4652 = vadd.f32 %v2218, %v4620
    %v4653 = vadd.f32 %v2221, %v4621
    %v4654 = vadd.f32 %v2223, %v4622
    %v4655 = vadd.f32 %v2226, %v4623
    %v4656 = vadd.f32 %v2228, %v4624
    %v4657 = vadd.f32 %v2288, %v4617
    %v4658 = vadd.f32 %v2290, %v4618
    %v4659 = vadd.f32 %v2293, %v4619
    %v4660 = vadd.f32 %v2295, %v4620
    %v4661 = vadd.f32 %v2298, %v4621
    %v4662 = vadd.f32 %v2300, %v4622
    %v4663 = vadd.f32 %v2303, %v4623
    %v4664 = vadd.f32 %v2305, %v4624
    %v4665 = vadd.f32 %v2365, %v4617
    %v4666 = vadd.f32 %v2367, %v4618
    %v4667 = vadd.f32 %v2370, %v4619
    %v4668 = vadd.f32 %v2372, %v4620
    %v4669 = vadd.f32 %v2375, %v4621
    %v4670 = vadd.f32 %v2377, %v4622
    %v4671 = vadd.f32 %v2380, %v4623
    %v4672 = vadd.f32 %v2382, %v4624
    %v4673 = vadd.f32 %v2442, %v4617
    %v4674 = vadd.f32 %v2444, %v4618
    %v4675 = vadd.f32 %v2447, %v4619
    %v4676 = vadd.f32 %v2449, %v4620
    %v4677 = vadd.f32 %v2452, %v4621
    %v4678 = vadd.f32 %v2454, %v4622
    %v4679 = vadd.f32 %v2457, %v4623
    %v4680 = vadd.f32 %v2459, %v4624
    %v4681 = vadd.f32 %v2519, %v4617
    %v4682 = vadd.f32 %v2521, %v4618
    %v4683 = vadd.f32 %v2524, %v4619
    %v4684 = vadd.f32 %v2526, %v4620
    %v4685 = vadd.f32 %v2529, %v4621
    %v4686 = vadd.f32 %v2531, %v4622
    %v4687 = vadd.f32 %v2534, %v4623
    %v4688 = vadd.f32 %v2536, %v4624
    %v4689 = vadd.f32 %v2596, %v4617
    %v4690 = vadd.f32 %v2598, %v4618
    %v4691 = vadd.f32 %v2601, %v4619
    %v4692 = vadd.f32 %v2603, %v4620
    %v4693 = vadd.f32 %v2606, %v4621
    %v4694 = vadd.f32 %v2608, %v4622
    %v4695 = vadd.f32 %v2611, %v4623
    %v4696 = vadd.f32 %v2613, %v4624
    %v4697 = vadd.f32 %v2673, %v4617
    %v4698 = vadd.f32 %v2675, %v4618
    %v4699 = vadd.f32 %v2678, %v4619
    %v4700 = vadd.f32 %v2680, %v4620
    %v4701 = vadd.f32 %v2683, %v4621
    %v4702 = vadd.f32 %v2685, %v4622
    %v4703 = vadd.f32 %v2688, %v4623
    %v4704 = vadd.f32 %v2690, %v4624
    %v4705 = vadd.f32 %v2750, %v4617
    %v4706 = vadd.f32 %v2752, %v4618
    %v4707 = vadd.f32 %v2755, %v4619
    %v4708 = vadd.f32 %v2757, %v4620
    %v4709 = vadd.f32 %v2760, %v4621
    %v4710 = vadd.f32 %v2762, %v4622
    %v4711 = vadd.f32 %v2765, %v4623
    %v4712 = vadd.f32 %v2767, %v4624
    %v4713 = vadd.f32 %v2827, %v4625
    %v4714 = vadd.f32 %v2829, %v4626
    %v4715 = vadd.f32 %v2832, %v4627
    %v4716 = vadd.f32 %v2834, %v4628
    %v4717 = vadd.f32 %v2837, %v4629
    %v4718 = vadd.f32 %v2839, %v4630
    %v4719 = vadd.f32 %v2842, %v4631
    %v4720 = vadd.f32 %v2844, %v4632
    %v4721 = vadd.f32 %v2904, %v4625
    %v4722 = vadd.f32 %v2906, %v4626
    %v4723 = vadd.f32 %v2909, %v4627
    %v4724 = vadd.f32 %v2911, %v4628
    %v4725 = vadd.f32 %v2914, %v4629
    %v4726 = vadd.f32 %v2916, %v4630
    %v4727 = vadd.f32 %v2919, %v4631
    %v4728 = vadd.f32 %v2921, %v4632
    %v4729 = vadd.f32 %v2981, %v4625
    %v4730 = vadd.f32 %v2983, %v4626
    %v4731 = vadd.f32 %v2986, %v4627
    %v4732 = vadd.f32 %v2988, %v4628
    %v4733 = vadd.f32 %v2991, %v4629
    %v4734 = vadd.f32 %v2993, %v4630
    %v4735 = vadd.f32 %v2996, %v4631
    %v4736 = vadd.f32 %v2998, %v4632
    %v4737 = vadd.f32 %v3058, %v4625
    %v4738 = vadd.f32 %v3060, %v4626
    %v4739 = vadd.f32 %v3063, %v4627
    %v4740 = vadd.f32 %v3065, %v4628
    %v4741 = vadd.f32 %v3068, %v4629
    %v4742 = vadd.f32 %v3070, %v4630
    %v4743 = vadd.f32 %v3073, %v4631
    %v4744 = vadd.f32 %v3075, %v4632
    %v4745 = vadd.f32 %v3135, %v4625
    %v4746 = vadd.f32 %v3137, %v4626
    %v4747 = vadd.f32 %v3140, %v4627
    %v4748 = vadd.f32 %v3142, %v4628
    %v4749 = vadd.f32 %v3145, %v4629
    %v4750 = vadd.f32 %v3147, %v4630
    %v4751 = vadd.f32 %v3150, %v4631
    %v4752 = vadd.f32 %v3152, %v4632
    %v4753 = vadd.f32 %v3212, %v4625
    %v4754 = vadd.f32 %v3214, %v4626
    %v4755 = vadd.f32 %v3217, %v4627
    %v4756 = vadd.f32 %v3219, %v4628
    %v4757 = vadd.f32 %v3222, %v4629
    %v4758 = vadd.f32 %v3224, %v4630
    %v4759 = vadd.f32 %v3227, %v4631
    %v4760 = vadd.f32 %v3229, %v4632
    %v4761 = vadd.f32 %v3289, %v4625
    %v4762 = vadd.f32 %v3291, %v4626
    %v4763 = vadd.f32 %v3294, %v4627
    %v4764 = vadd.f32 %v3296, %v4628
    %v4765 = vadd.f32 %v3299, %v4629
    %v4766 = vadd.f32 %v3301, %v4630
    %v4767 = vadd.f32 %v3304, %v4631
    %v4768 = vadd.f32 %v3306, %v4632
    %v4769 = vadd.f32 %v3366, %v4625
    %v4770 = vadd.f32 %v3368, %v4626
    %v4771 = vadd.f32 %v3371, %v4627
    %v4772 = vadd.f32 %v3373, %v4628
    %v4773 = vadd.f32 %v3376, %v4629
    %v4774 = vadd.f32 %v3378, %v4630
    %v4775 = vadd.f32 %v3381, %v4631
    %v4776 = vadd.f32 %v3383, %v4632
    %v4777 = vadd.f32 %v3443, %v4633
    %v4778 = vadd.f32 %v3445, %v4634
    %v4779 = vadd.f32 %v3448, %v4635
    %v4780 = vadd.f32 %v3450, %v4636
    %v4781 = vadd.f32 %v3453, %v4637
    %v4782 = vadd.f32 %v3455, %v4638
    %v4783 = vadd.f32 %v3458, %v4639
    %v4784 = vadd.f32 %v3460, %v4640
    %v4785 = vadd.f32 %v3520, %v4633
    %v4786 = vadd.f32 %v3522, %v4634
    %v4787 = vadd.f32 %v3525, %v4635
    %v4788 = vadd.f32 %v3527, %v4636
    %v4789 = vadd.f32 %v3530, %v4637
    %v4790 = vadd.f32 %v3532, %v4638
    %v4791 = vadd.f32 %v3535, %v4639
    %v4792 = vadd.f32 %v3537, %v4640
    %v4793 = vadd.f32 %v3597, %v4633
    %v4794 = vadd.f32 %v3599, %v4634
    %v4795 = vadd.f32 %v3602, %v4635
    %v4796 = vadd.f32 %v3604, %v4636
    %v4797 = vadd.f32 %v3607, %v4637
    %v4798 = vadd.f32 %v3609, %v4638
    %v4799 = vadd.f32 %v3612, %v4639
    %v4800 = vadd.f32 %v3614, %v4640
    %v4801 = vadd.f32 %v3674, %v4633
    %v4802 = vadd.f32 %v3676, %v4634
    %v4803 = vadd.f32 %v3679, %v4635
    %v4804 = vadd.f32 %v3681, %v4636
    %v4805 = vadd.f32 %v3684, %v4637
    %v4806 = vadd.f32 %v3686, %v4638
    %v4807 = vadd.f32 %v3689, %v4639
    %v4808 = vadd.f32 %v3691, %v4640
    %v4809 = vadd.f32 %v3751, %v4633
    %v4810 = vadd.f32 %v3753, %v4634
    %v4811 = vadd.f32 %v3756, %v4635
    %v4812 = vadd.f32 %v3758, %v4636
    %v4813 = vadd.f32 %v3761, %v4637
    %v4814 = vadd.f32 %v3763, %v4638
    %v4815 = vadd.f32 %v3766, %v4639
    %v4816 = vadd.f32 %v3768, %v4640
    %v4817 = vadd.f32 %v3828, %v4633
    %v4818 = vadd.f32 %v3830, %v4634
    %v4819 = vadd.f32 %v3833, %v4635
    %v4820 = vadd.f32 %v3835, %v4636
    %v4821 = vadd.f32 %v3838, %v4637
    %v4822 = vadd.f32 %v3840, %v4638
    %v4823 = vadd.f32 %v3843, %v4639
    %v4824 = vadd.f32 %v3845, %v4640
    %v4825 = vadd.f32 %v3905, %v4633
    %v4826 = vadd.f32 %v3907, %v4634
    %v4827 = vadd.f32 %v3910, %v4635
    %v4828 = vadd.f32 %v3912, %v4636
    %v4829 = vadd.f32 %v3915, %v4637
    %v4830 = vadd.f32 %v3917, %v4638
    %v4831 = vadd.f32 %v3920, %v4639
    %v4832 = vadd.f32 %v3922, %v4640
    %v4833 = vadd.f32 %v3982, %v4633
    %v4834 = vadd.f32 %v3984, %v4634
    %v4835 = vadd.f32 %v3987, %v4635
    %v4836 = vadd.f32 %v3989, %v4636
    %v4837 = vadd.f32 %v3992, %v4637
    %v4838 = vadd.f32 %v3994, %v4638
    %v4839 = vadd.f32 %v3997, %v4639
    %v4840 = vadd.f32 %v3999, %v4640
    %v4841 = vadd.f32 %v4059, %v4641
    %v4842 = vadd.f32 %v4061, %v4642
    %v4843 = vadd.f32 %v4064, %v4643
    %v4844 = vadd.f32 %v4066, %v4644
    %v4845 = vadd.f32 %v4069, %v4645
    %v4846 = vadd.f32 %v4071, %v4646
    %v4847 = vadd.f32 %v4074, %v4647
    %v4848 = vadd.f32 %v4076, %v4648
    %v4849 = vadd.f32 %v4136, %v4641
    %v4850 = vadd.f32 %v4138, %v4642
    %v4851 = vadd.f32 %v4141, %v4643
    %v4852 = vadd.f32 %v4143, %v4644
    %v4853 = vadd.f32 %v4146, %v4645
    %v4854 = vadd.f32 %v4148, %v4646
    %v4855 = vadd.f32 %v4151, %v4647
    %v4856 = vadd.f32 %v4153, %v4648
    %v4857 = vadd.f32 %v4213, %v4641
    %v4858 = vadd.f32 %v4215, %v4642
    %v4859 = vadd.f32 %v4218, %v4643
    %v4860 = vadd.f32 %v4220, %v4644
    %v4861 = vadd.f32 %v4223, %v4645
    %v4862 = vadd.f32 %v4225, %v4646
    %v4863 = vadd.f32 %v4228, %v4647
    %v4864 = vadd.f32 %v4230, %v4648
    %v4865 = vadd.f32 %v4290, %v4641
    %v4866 = vadd.f32 %v4292, %v4642
    %v4867 = vadd.f32 %v4295, %v4643
    %v4868 = vadd.f32 %v4297, %v4644
    %v4869 = vadd.f32 %v4300, %v4645
    %v4870 = vadd.f32 %v4302, %v4646
    %v4871 = vadd.f32 %v4305, %v4647
    %v4872 = vadd.f32 %v4307, %v4648
    %v4873 = vadd.f32 %v4367, %v4641
    %v4874 = vadd.f32 %v4369, %v4642
    %v4875 = vadd.f32 %v4372, %v4643
    %v4876 = vadd.f32 %v4374, %v4644
    %v4877 = vadd.f32 %v4377, %v4645
    %v4878 = vadd.f32 %v4379, %v4646
    %v4879 = vadd.f32 %v4382, %v4647
    %v4880 = vadd.f32 %v4384, %v4648
    %v4881 = vadd.f32 %v4444, %v4641
    %v4882 = vadd.f32 %v4446, %v4642
    %v4883 = vadd.f32 %v4449, %v4643
    %v4884 = vadd.f32 %v4451, %v4644
    %v4885 = vadd.f32 %v4454, %v4645
    %v4886 = vadd.f32 %v4456, %v4646
    %v4887 = vadd.f32 %v4459, %v4647
    %v4888 = vadd.f32 %v4461, %v4648
    %v4889 = vadd.f32 %v4521, %v4641
    %v4890 = vadd.f32 %v4523, %v4642
    %v4891 = vadd.f32 %v4526, %v4643
    %v4892 = vadd.f32 %v4528, %v4644
    %v4893 = vadd.f32 %v4531, %v4645
    %v4894 = vadd.f32 %v4533, %v4646
    %v4895 = vadd.f32 %v4536, %v4647
    %v4896 = vadd.f32 %v4538, %v4648
    %v4897 = vadd.f32 %v4598, %v4641
    %v4898 = vadd.f32 %v4600, %v4642
    %v4899 = vadd.f32 %v4603, %v4643
    %v4900 = vadd.f32 %v4605, %v4644
    %v4901 = vadd.f32 %v4608, %v4645
    %v4902 = vadd.f32 %v4610, %v4646
    %v4903 = vadd.f32 %v4613, %v4647
    %v4904 = vadd.f32 %v4615, %v4648
    %vm4905 = vcmask 523264
    %v4906 = vsel %vm4905, %v4649, -inf
    %4907 = vmax.xlane.f32.xlu0 %v4906
    %v4908 = vpop.xlane.xlu0 %4907
    %v4909 = vsel %vm4905, %v4650, -inf
    %4910 = vmax.xlane.f32.xlu0 %v4909
    %v4911 = vpop.xlane.xlu0 %4910
    %v4912 = vsel %vm4905, %v4651, -inf
    %4913 = vmax.xlane.f32.xlu0 %v4912
    %v4914 = vpop.xlane.xlu0 %4913
    %v4915 = vsel %vm4905, %v4652, -inf
    %4916 = vmax.xlane.f32.xlu0 %v4915
    %v4917 = vpop.xlane.xlu0 %4916
    %v4918 = vsel %vm4905, %v4653, -inf
    %4919 = vmax.xlane.f32.xlu0 %v4918
    %v4920 = vpop.xlane.xlu0 %4919
    %v4921 = vsel %vm4905, %v4654, -inf
    %4922 = vmax.xlane.f32.xlu0 %v4921
    %v4923 = vpop.xlane.xlu0 %4922
    %v4924 = vsel %vm4905, %v4655, -inf
    %4925 = vmax.xlane.f32.xlu0 %v4924
    %v4926 = vpop.xlane.xlu0 %4925
    %v4927 = vsel %vm4905, %v4656, -inf
    %4928 = vmax.xlane.f32.xlu0 %v4927
    %v4929 = vpop.xlane.xlu0 %4928
    %v4930 = vsel %vm4905, %v4657, -inf
    %4931 = vmax.xlane.f32.xlu0 %v4930
    %v4932 = vpop.xlane.xlu0 %4931
    %v4933 = vsel %vm4905, %v4658, -inf
    %4934 = vmax.xlane.f32.xlu0 %v4933
    %v4935 = vpop.xlane.xlu0 %4934
    %v4936 = vsel %vm4905, %v4659, -inf
    %4937 = vmax.xlane.f32.xlu0 %v4936
    %v4938 = vpop.xlane.xlu0 %4937
    %v4939 = vsel %vm4905, %v4660, -inf
    %4940 = vmax.xlane.f32.xlu0 %v4939
    %v4941 = vpop.xlane.xlu0 %4940
    %v4942 = vsel %vm4905, %v4661, -inf
    %4943 = vmax.xlane.f32.xlu0 %v4942
    %v4944 = vpop.xlane.xlu0 %4943
    %v4945 = vsel %vm4905, %v4662, -inf
    %4946 = vmax.xlane.f32.xlu0 %v4945
    %v4947 = vpop.xlane.xlu0 %4946
    %v4948 = vsel %vm4905, %v4663, -inf
    %4949 = vmax.xlane.f32.xlu0 %v4948
    %v4950 = vpop.xlane.xlu0 %4949
    %v4951 = vsel %vm4905, %v4664, -inf
    %4952 = vmax.xlane.f32.xlu0 %v4951
    %v4953 = vpop.xlane.xlu0 %4952
    %v4954 = vsel %vm4905, %v4665, -inf
    %4955 = vmax.xlane.f32.xlu0 %v4954
    %v4956 = vpop.xlane.xlu0 %4955
    %v4957 = vsel %vm4905, %v4666, -inf
    %4958 = vmax.xlane.f32.xlu0 %v4957
    %v4959 = vpop.xlane.xlu0 %4958
    %v4960 = vsel %vm4905, %v4667, -inf
    %4961 = vmax.xlane.f32.xlu0 %v4960
    %v4962 = vpop.xlane.xlu0 %4961
    %v4963 = vsel %vm4905, %v4668, -inf
    %4964 = vmax.xlane.f32.xlu0 %v4963
    %v4965 = vpop.xlane.xlu0 %4964
    %v4966 = vsel %vm4905, %v4669, -inf
    %4967 = vmax.xlane.f32.xlu0 %v4966
    %v4968 = vpop.xlane.xlu0 %4967
    %v4969 = vsel %vm4905, %v4670, -inf
    %4970 = vmax.xlane.f32.xlu0 %v4969
    %v4971 = vpop.xlane.xlu0 %4970
    %v4972 = vsel %vm4905, %v4671, -inf
    %4973 = vmax.xlane.f32.xlu0 %v4972
    %v4974 = vpop.xlane.xlu0 %4973
    %v4975 = vsel %vm4905, %v4672, -inf
    %4976 = vmax.xlane.f32.xlu0 %v4975
    %v4977 = vpop.xlane.xlu0 %4976
    %v4978 = vsel %vm4905, %v4673, -inf
    %4979 = vmax.xlane.f32.xlu0 %v4978
    %v4980 = vpop.xlane.xlu0 %4979
    %v4981 = vsel %vm4905, %v4674, -inf
    %4982 = vmax.xlane.f32.xlu0 %v4981
    %v4983 = vpop.xlane.xlu0 %4982
    %v4984 = vsel %vm4905, %v4675, -inf
    %4985 = vmax.xlane.f32.xlu0 %v4984
    %v4986 = vpop.xlane.xlu0 %4985
    %v4987 = vsel %vm4905, %v4676, -inf
    %4988 = vmax.xlane.f32.xlu0 %v4987
    %v4989 = vpop.xlane.xlu0 %4988
    %v4990 = vsel %vm4905, %v4677, -inf
    %4991 = vmax.xlane.f32.xlu0 %v4990
    %v4992 = vpop.xlane.xlu0 %4991
    %v4993 = vsel %vm4905, %v4678, -inf
    %4994 = vmax.xlane.f32.xlu0 %v4993
    %v4995 = vpop.xlane.xlu0 %4994
    %v4996 = vsel %vm4905, %v4679, -inf
    %4997 = vmax.xlane.f32.xlu0 %v4996
    %v4998 = vpop.xlane.xlu0 %4997
    %v4999 = vsel %vm4905, %v4680, -inf
    %5000 = vmax.xlane.f32.xlu0 %v4999
    %v5001 = vpop.xlane.xlu0 %5000
    %v5002 = vsel %vm4905, %v4681, -inf
    %5003 = vmax.xlane.f32.xlu0 %v5002
    %v5004 = vpop.xlane.xlu0 %5003
    %v5005 = vsel %vm4905, %v4682, -inf
    %5006 = vmax.xlane.f32.xlu0 %v5005
    %v5007 = vpop.xlane.xlu0 %5006
    %v5008 = vsel %vm4905, %v4683, -inf
    %5009 = vmax.xlane.f32.xlu0 %v5008
    %v5010 = vpop.xlane.xlu0 %5009
    %v5011 = vsel %vm4905, %v4684, -inf
    %5012 = vmax.xlane.f32.xlu0 %v5011
    %v5013 = vpop.xlane.xlu0 %5012
    %v5014 = vsel %vm4905, %v4685, -inf
    %5015 = vmax.xlane.f32.xlu0 %v5014
    %v5016 = vpop.xlane.xlu0 %5015
    %v5017 = vsel %vm4905, %v4686, -inf
    %5018 = vmax.xlane.f32.xlu0 %v5017
    %v5019 = vpop.xlane.xlu0 %5018
    %v5020 = vsel %vm4905, %v4687, -inf
    %5021 = vmax.xlane.f32.xlu0 %v5020
    %v5022 = vpop.xlane.xlu0 %5021
    %v5023 = vsel %vm4905, %v4688, -inf
    %5024 = vmax.xlane.f32.xlu0 %v5023
    %v5025 = vpop.xlane.xlu0 %5024
    %v5026 = vsel %vm4905, %v4689, -inf
    %5027 = vmax.xlane.f32.xlu0 %v5026
    %v5028 = vpop.xlane.xlu0 %5027
    %v5029 = vsel %vm4905, %v4690, -inf
    %5030 = vmax.xlane.f32.xlu0 %v5029
    %v5031 = vpop.xlane.xlu0 %5030
    %v5032 = vsel %vm4905, %v4691, -inf
    %5033 = vmax.xlane.f32.xlu0 %v5032
    %v5034 = vpop.xlane.xlu0 %5033
    %v5035 = vsel %vm4905, %v4692, -inf
    %5036 = vmax.xlane.f32.xlu0 %v5035
    %v5037 = vpop.xlane.xlu0 %5036
    %v5038 = vsel %vm4905, %v4693, -inf
    %5039 = vmax.xlane.f32.xlu0 %v5038
    %v5040 = vpop.xlane.xlu0 %5039
    %v5041 = vsel %vm4905, %v4694, -inf
    %5042 = vmax.xlane.f32.xlu0 %v5041
    %v5043 = vpop.xlane.xlu0 %5042
    %v5044 = vsel %vm4905, %v4695, -inf
    %5045 = vmax.xlane.f32.xlu0 %v5044
    %v5046 = vpop.xlane.xlu0 %5045
    %v5047 = vsel %vm4905, %v4696, -inf
    %5048 = vmax.xlane.f32.xlu0 %v5047
    %v5049 = vpop.xlane.xlu0 %5048
    %v5050 = vsel %vm4905, %v4697, -inf
    %5051 = vmax.xlane.f32.xlu0 %v5050
    %v5052 = vpop.xlane.xlu0 %5051
    %v5053 = vsel %vm4905, %v4698, -inf
    %5054 = vmax.xlane.f32.xlu0 %v5053
    %v5055 = vpop.xlane.xlu0 %5054
    %v5056 = vsel %vm4905, %v4699, -inf
    %5057 = vmax.xlane.f32.xlu0 %v5056
    %v5058 = vpop.xlane.xlu0 %5057
    %v5059 = vsel %vm4905, %v4700, -inf
    %5060 = vmax.xlane.f32.xlu0 %v5059
    %v5061 = vpop.xlane.xlu0 %5060
    %v5062 = vsel %vm4905, %v4701, -inf
    %5063 = vmax.xlane.f32.xlu0 %v5062
    %v5064 = vpop.xlane.xlu0 %5063
    %v5065 = vsel %vm4905, %v4702, -inf
    %5066 = vmax.xlane.f32.xlu0 %v5065
    %v5067 = vpop.xlane.xlu0 %5066
    %v5068 = vsel %vm4905, %v4703, -inf
    %5069 = vmax.xlane.f32.xlu0 %v5068
    %v5070 = vpop.xlane.xlu0 %5069
    %v5071 = vsel %vm4905, %v4704, -inf
    %5072 = vmax.xlane.f32.xlu0 %v5071
    %v5073 = vpop.xlane.xlu0 %5072
    %v5074 = vsel %vm4905, %v4705, -inf
    %5075 = vmax.xlane.f32.xlu0 %v5074
    %v5076 = vpop.xlane.xlu0 %5075
    %v5077 = vsel %vm4905, %v4706, -inf
    %5078 = vmax.xlane.f32.xlu0 %v5077
    %v5079 = vpop.xlane.xlu0 %5078
    %v5080 = vsel %vm4905, %v4707, -inf
    %5081 = vmax.xlane.f32.xlu0 %v5080
    %v5082 = vpop.xlane.xlu0 %5081
    %v5083 = vsel %vm4905, %v4708, -inf
    %5084 = vmax.xlane.f32.xlu0 %v5083
    %v5085 = vpop.xlane.xlu0 %5084
    %v5086 = vsel %vm4905, %v4709, -inf
    %5087 = vmax.xlane.f32.xlu0 %v5086
    %v5088 = vpop.xlane.xlu0 %5087
    %v5089 = vsel %vm4905, %v4710, -inf
    %5090 = vmax.xlane.f32.xlu0 %v5089
    %v5091 = vpop.xlane.xlu0 %5090
    %v5092 = vsel %vm4905, %v4711, -inf
    %5093 = vmax.xlane.f32.xlu0 %v5092
    %v5094 = vpop.xlane.xlu0 %5093
    %v5095 = vsel %vm4905, %v4712, -inf
    %5096 = vmax.xlane.f32.xlu0 %v5095
    %v5097 = vpop.xlane.xlu0 %5096
    %v5098 = vsel %vm4905, %v4713, -inf
    %5099 = vmax.xlane.f32.xlu0 %v5098
    %v5100 = vpop.xlane.xlu0 %5099
    %v5101 = vsel %vm4905, %v4714, -inf
    %5102 = vmax.xlane.f32.xlu0 %v5101
    %v5103 = vpop.xlane.xlu0 %5102
    %v5104 = vsel %vm4905, %v4715, -inf
    %5105 = vmax.xlane.f32.xlu0 %v5104
    %v5106 = vpop.xlane.xlu0 %5105
    %v5107 = vsel %vm4905, %v4716, -inf
    %5108 = vmax.xlane.f32.xlu0 %v5107
    %v5109 = vpop.xlane.xlu0 %5108
    %v5110 = vsel %vm4905, %v4717, -inf
    %5111 = vmax.xlane.f32.xlu0 %v5110
    %v5112 = vpop.xlane.xlu0 %5111
    %v5113 = vsel %vm4905, %v4718, -inf
    %5114 = vmax.xlane.f32.xlu0 %v5113
    %v5115 = vpop.xlane.xlu0 %5114
    %v5116 = vsel %vm4905, %v4719, -inf
    %5117 = vmax.xlane.f32.xlu0 %v5116
    %v5118 = vpop.xlane.xlu0 %5117
    %v5119 = vsel %vm4905, %v4720, -inf
    %5120 = vmax.xlane.f32.xlu0 %v5119
    %v5121 = vpop.xlane.xlu0 %5120
    %v5122 = vsel %vm4905, %v4721, -inf
    %5123 = vmax.xlane.f32.xlu0 %v5122
    %v5124 = vpop.xlane.xlu0 %5123
    %v5125 = vsel %vm4905, %v4722, -inf
    %5126 = vmax.xlane.f32.xlu0 %v5125
    %v5127 = vpop.xlane.xlu0 %5126
    %v5128 = vsel %vm4905, %v4723, -inf
    %5129 = vmax.xlane.f32.xlu0 %v5128
    %v5130 = vpop.xlane.xlu0 %5129
    %v5131 = vsel %vm4905, %v4724, -inf
    %5132 = vmax.xlane.f32.xlu0 %v5131
    %v5133 = vpop.xlane.xlu0 %5132
    %v5134 = vsel %vm4905, %v4725, -inf
    %5135 = vmax.xlane.f32.xlu0 %v5134
    %v5136 = vpop.xlane.xlu0 %5135
    %v5137 = vsel %vm4905, %v4726, -inf
    %5138 = vmax.xlane.f32.xlu0 %v5137
    %v5139 = vpop.xlane.xlu0 %5138
    %v5140 = vsel %vm4905, %v4727, -inf
    %5141 = vmax.xlane.f32.xlu0 %v5140
    %v5142 = vpop.xlane.xlu0 %5141
    %v5143 = vsel %vm4905, %v4728, -inf
    %5144 = vmax.xlane.f32.xlu0 %v5143
    %v5145 = vpop.xlane.xlu0 %5144
    %v5146 = vsel %vm4905, %v4729, -inf
    %5147 = vmax.xlane.f32.xlu0 %v5146
    %v5148 = vpop.xlane.xlu0 %5147
    %v5149 = vsel %vm4905, %v4730, -inf
    %5150 = vmax.xlane.f32.xlu0 %v5149
    %v5151 = vpop.xlane.xlu0 %5150
    %v5152 = vsel %vm4905, %v4731, -inf
    %5153 = vmax.xlane.f32.xlu0 %v5152
    %v5154 = vpop.xlane.xlu0 %5153
    %v5155 = vsel %vm4905, %v4732, -inf
    %5156 = vmax.xlane.f32.xlu0 %v5155
    %v5157 = vpop.xlane.xlu0 %5156
    %v5158 = vsel %vm4905, %v4733, -inf
    %5159 = vmax.xlane.f32.xlu0 %v5158
    %v5160 = vpop.xlane.xlu0 %5159
    %v5161 = vsel %vm4905, %v4734, -inf
    %5162 = vmax.xlane.f32.xlu0 %v5161
    %v5163 = vpop.xlane.xlu0 %5162
    %v5164 = vsel %vm4905, %v4735, -inf
    %5165 = vmax.xlane.f32.xlu0 %v5164
    %v5166 = vpop.xlane.xlu0 %5165
    %v5167 = vsel %vm4905, %v4736, -inf
    %5168 = vmax.xlane.f32.xlu0 %v5167
    %v5169 = vpop.xlane.xlu0 %5168
    %v5170 = vsel %vm4905, %v4737, -inf
    %5171 = vmax.xlane.f32.xlu0 %v5170
    %v5172 = vpop.xlane.xlu0 %5171
    %v5173 = vsel %vm4905, %v4738, -inf
    %5174 = vmax.xlane.f32.xlu0 %v5173
    %v5175 = vpop.xlane.xlu0 %5174
    %v5176 = vsel %vm4905, %v4739, -inf
    %5177 = vmax.xlane.f32.xlu0 %v5176
    %v5178 = vpop.xlane.xlu0 %5177
    %v5179 = vsel %vm4905, %v4740, -inf
    %5180 = vmax.xlane.f32.xlu0 %v5179
    %v5181 = vpop.xlane.xlu0 %5180
    %v5182 = vsel %vm4905, %v4741, -inf
    %5183 = vmax.xlane.f32.xlu0 %v5182
    %v5184 = vpop.xlane.xlu0 %5183
    %v5185 = vsel %vm4905, %v4742, -inf
    %5186 = vmax.xlane.f32.xlu0 %v5185
    %v5187 = vpop.xlane.xlu0 %5186
    %v5188 = vsel %vm4905, %v4743, -inf
    %5189 = vmax.xlane.f32.xlu0 %v5188
    %v5190 = vpop.xlane.xlu0 %5189
    %v5191 = vsel %vm4905, %v4744, -inf
    %5192 = vmax.xlane.f32.xlu0 %v5191
    %v5193 = vpop.xlane.xlu0 %5192
    %v5194 = vsel %vm4905, %v4745, -inf
    %5195 = vmax.xlane.f32.xlu0 %v5194
    %v5196 = vpop.xlane.xlu0 %5195
    %v5197 = vsel %vm4905, %v4746, -inf
    %5198 = vmax.xlane.f32.xlu0 %v5197
    %v5199 = vpop.xlane.xlu0 %5198
    %v5200 = vsel %vm4905, %v4747, -inf
    %5201 = vmax.xlane.f32.xlu0 %v5200
    %v5202 = vpop.xlane.xlu0 %5201
    %v5203 = vsel %vm4905, %v4748, -inf
    %5204 = vmax.xlane.f32.xlu0 %v5203
    %v5205 = vpop.xlane.xlu0 %5204
    %v5206 = vsel %vm4905, %v4749, -inf
    %5207 = vmax.xlane.f32.xlu0 %v5206
    %v5208 = vpop.xlane.xlu0 %5207
    %v5209 = vsel %vm4905, %v4750, -inf
    %5210 = vmax.xlane.f32.xlu0 %v5209
    %v5211 = vpop.xlane.xlu0 %5210
    %v5212 = vsel %vm4905, %v4751, -inf
    %5213 = vmax.xlane.f32.xlu0 %v5212
    %v5214 = vpop.xlane.xlu0 %5213
    %v5215 = vsel %vm4905, %v4752, -inf
    %5216 = vmax.xlane.f32.xlu0 %v5215
    %v5217 = vpop.xlane.xlu0 %5216
    %v5218 = vsel %vm4905, %v4753, -inf
    %5219 = vmax.xlane.f32.xlu0 %v5218
    %v5220 = vpop.xlane.xlu0 %5219
    %v5221 = vsel %vm4905, %v4754, -inf
    %5222 = vmax.xlane.f32.xlu0 %v5221
    %v5223 = vpop.xlane.xlu0 %5222
    %v5224 = vsel %vm4905, %v4755, -inf
    %5225 = vmax.xlane.f32.xlu0 %v5224
    %v5226 = vpop.xlane.xlu0 %5225
    %v5227 = vsel %vm4905, %v4756, -inf
    %5228 = vmax.xlane.f32.xlu0 %v5227
    %v5229 = vpop.xlane.xlu0 %5228
    %v5230 = vsel %vm4905, %v4757, -inf
    %5231 = vmax.xlane.f32.xlu0 %v5230
    %v5232 = vpop.xlane.xlu0 %5231
    %v5233 = vsel %vm4905, %v4758, -inf
    %5234 = vmax.xlane.f32.xlu0 %v5233
    %v5235 = vpop.xlane.xlu0 %5234
    %v5236 = vsel %vm4905, %v4759, -inf
    %5237 = vmax.xlane.f32.xlu0 %v5236
    %v5238 = vpop.xlane.xlu0 %5237
    %v5239 = vsel %vm4905, %v4760, -inf
    %5240 = vmax.xlane.f32.xlu0 %v5239
    %v5241 = vpop.xlane.xlu0 %5240
    %v5242 = vsel %vm4905, %v4761, -inf
    %5243 = vmax.xlane.f32.xlu0 %v5242
    %v5244 = vpop.xlane.xlu0 %5243
    %v5245 = vsel %vm4905, %v4762, -inf
    %5246 = vmax.xlane.f32.xlu0 %v5245
    %v5247 = vpop.xlane.xlu0 %5246
    %v5248 = vsel %vm4905, %v4763, -inf
    %5249 = vmax.xlane.f32.xlu0 %v5248
    %v5250 = vpop.xlane.xlu0 %5249
    %v5251 = vsel %vm4905, %v4764, -inf
    %5252 = vmax.xlane.f32.xlu0 %v5251
    %v5253 = vpop.xlane.xlu0 %5252
    %v5254 = vsel %vm4905, %v4765, -inf
    %5255 = vmax.xlane.f32.xlu0 %v5254
    %v5256 = vpop.xlane.xlu0 %5255
    %v5257 = vsel %vm4905, %v4766, -inf
    %5258 = vmax.xlane.f32.xlu0 %v5257
    %v5259 = vpop.xlane.xlu0 %5258
    %v5260 = vsel %vm4905, %v4767, -inf
    %5261 = vmax.xlane.f32.xlu0 %v5260
    %v5262 = vpop.xlane.xlu0 %5261
    %v5263 = vsel %vm4905, %v4768, -inf
    %5264 = vmax.xlane.f32.xlu0 %v5263
    %v5265 = vpop.xlane.xlu0 %5264
    %v5266 = vsel %vm4905, %v4769, -inf
    %5267 = vmax.xlane.f32.xlu0 %v5266
    %v5268 = vpop.xlane.xlu0 %5267
    %v5269 = vsel %vm4905, %v4770, -inf
    %5270 = vmax.xlane.f32.xlu0 %v5269
    %v5271 = vpop.xlane.xlu0 %5270
    %v5272 = vsel %vm4905, %v4771, -inf
    %5273 = vmax.xlane.f32.xlu0 %v5272
    %v5274 = vpop.xlane.xlu0 %5273
    %v5275 = vsel %vm4905, %v4772, -inf
    %5276 = vmax.xlane.f32.xlu0 %v5275
    %v5277 = vpop.xlane.xlu0 %5276
    %v5278 = vsel %vm4905, %v4773, -inf
    %5279 = vmax.xlane.f32.xlu0 %v5278
    %v5280 = vpop.xlane.xlu0 %5279
    %v5281 = vsel %vm4905, %v4774, -inf
    %5282 = vmax.xlane.f32.xlu0 %v5281
    %v5283 = vpop.xlane.xlu0 %5282
    %v5284 = vsel %vm4905, %v4775, -inf
    %5285 = vmax.xlane.f32.xlu0 %v5284
    %v5286 = vpop.xlane.xlu0 %5285
    %v5287 = vsel %vm4905, %v4776, -inf
    %5288 = vmax.xlane.f32.xlu0 %v5287
    %v5289 = vpop.xlane.xlu0 %5288
    %v5290 = vsel %vm4905, %v4777, -inf
    %5291 = vmax.xlane.f32.xlu0 %v5290
    %v5292 = vpop.xlane.xlu0 %5291
    %v5293 = vsel %vm4905, %v4778, -inf
    %5294 = vmax.xlane.f32.xlu0 %v5293
    %v5295 = vpop.xlane.xlu0 %5294
    %v5296 = vsel %vm4905, %v4779, -inf
    %5297 = vmax.xlane.f32.xlu0 %v5296
    %v5298 = vpop.xlane.xlu0 %5297
    %v5299 = vsel %vm4905, %v4780, -inf
    %5300 = vmax.xlane.f32.xlu0 %v5299
    %v5301 = vpop.xlane.xlu0 %5300
    %v5302 = vsel %vm4905, %v4781, -inf
    %5303 = vmax.xlane.f32.xlu0 %v5302
    %v5304 = vpop.xlane.xlu0 %5303
    %v5305 = vsel %vm4905, %v4782, -inf
    %5306 = vmax.xlane.f32.xlu0 %v5305
    %v5307 = vpop.xlane.xlu0 %5306
    %v5308 = vsel %vm4905, %v4783, -inf
    %5309 = vmax.xlane.f32.xlu0 %v5308
    %v5310 = vpop.xlane.xlu0 %5309
    %v5311 = vsel %vm4905, %v4784, -inf
    %5312 = vmax.xlane.f32.xlu0 %v5311
    %v5313 = vpop.xlane.xlu0 %5312
    %v5314 = vsel %vm4905, %v4785, -inf
    %5315 = vmax.xlane.f32.xlu0 %v5314
    %v5316 = vpop.xlane.xlu0 %5315
    %v5317 = vsel %vm4905, %v4786, -inf
    %5318 = vmax.xlane.f32.xlu0 %v5317
    %v5319 = vpop.xlane.xlu0 %5318
    %v5320 = vsel %vm4905, %v4787, -inf
    %5321 = vmax.xlane.f32.xlu0 %v5320
    %v5322 = vpop.xlane.xlu0 %5321
    %v5323 = vsel %vm4905, %v4788, -inf
    %5324 = vmax.xlane.f32.xlu0 %v5323
    %v5325 = vpop.xlane.xlu0 %5324
    %v5326 = vsel %vm4905, %v4789, -inf
    %5327 = vmax.xlane.f32.xlu0 %v5326
    %v5328 = vpop.xlane.xlu0 %5327
    %v5329 = vsel %vm4905, %v4790, -inf
    %5330 = vmax.xlane.f32.xlu0 %v5329
    %v5331 = vpop.xlane.xlu0 %5330
    %v5332 = vsel %vm4905, %v4791, -inf
    %5333 = vmax.xlane.f32.xlu0 %v5332
    %v5334 = vpop.xlane.xlu0 %5333
    %v5335 = vsel %vm4905, %v4792, -inf
    %5336 = vmax.xlane.f32.xlu0 %v5335
    %v5337 = vpop.xlane.xlu0 %5336
    %v5338 = vsel %vm4905, %v4793, -inf
    %5339 = vmax.xlane.f32.xlu0 %v5338
    %v5340 = vpop.xlane.xlu0 %5339
    %v5341 = vsel %vm4905, %v4794, -inf
    %5342 = vmax.xlane.f32.xlu0 %v5341
    %v5343 = vpop.xlane.xlu0 %5342
    %v5344 = vsel %vm4905, %v4795, -inf
    %5345 = vmax.xlane.f32.xlu0 %v5344
    %v5346 = vpop.xlane.xlu0 %5345
    %v5347 = vsel %vm4905, %v4796, -inf
    %5348 = vmax.xlane.f32.xlu0 %v5347
    %v5349 = vpop.xlane.xlu0 %5348
    %v5350 = vsel %vm4905, %v4797, -inf
    %5351 = vmax.xlane.f32.xlu0 %v5350
    %v5352 = vpop.xlane.xlu0 %5351
    %v5353 = vsel %vm4905, %v4798, -inf
    %5354 = vmax.xlane.f32.xlu0 %v5353
    %v5355 = vpop.xlane.xlu0 %5354
    %v5356 = vsel %vm4905, %v4799, -inf
    %5357 = vmax.xlane.f32.xlu0 %v5356
    %v5358 = vpop.xlane.xlu0 %5357
    %v5359 = vsel %vm4905, %v4800, -inf
    %5360 = vmax.xlane.f32.xlu0 %v5359
    %v5361 = vpop.xlane.xlu0 %5360
    %v5362 = vsel %vm4905, %v4801, -inf
    %5363 = vmax.xlane.f32.xlu0 %v5362
    %v5364 = vpop.xlane.xlu0 %5363
    %v5365 = vsel %vm4905, %v4802, -inf
    %5366 = vmax.xlane.f32.xlu0 %v5365
    %v5367 = vpop.xlane.xlu0 %5366
    %v5368 = vsel %vm4905, %v4803, -inf
    %5369 = vmax.xlane.f32.xlu0 %v5368
    %v5370 = vpop.xlane.xlu0 %5369
    %v5371 = vsel %vm4905, %v4804, -inf
    %5372 = vmax.xlane.f32.xlu0 %v5371
    %v5373 = vpop.xlane.xlu0 %5372
    %v5374 = vsel %vm4905, %v4805, -inf
    %5375 = vmax.xlane.f32.xlu0 %v5374
    %v5376 = vpop.xlane.xlu0 %5375
    %v5377 = vsel %vm4905, %v4806, -inf
    %5378 = vmax.xlane.f32.xlu0 %v5377
    %v5379 = vpop.xlane.xlu0 %5378
    %v5380 = vsel %vm4905, %v4807, -inf
    %5381 = vmax.xlane.f32.xlu0 %v5380
    %v5382 = vpop.xlane.xlu0 %5381
    %v5383 = vsel %vm4905, %v4808, -inf
    %5384 = vmax.xlane.f32.xlu0 %v5383
    %v5385 = vpop.xlane.xlu0 %5384
    %v5386 = vsel %vm4905, %v4809, -inf
    %5387 = vmax.xlane.f32.xlu0 %v5386
    %v5388 = vpop.xlane.xlu0 %5387
    %v5389 = vsel %vm4905, %v4810, -inf
    %5390 = vmax.xlane.f32.xlu0 %v5389
    %v5391 = vpop.xlane.xlu0 %5390
    %v5392 = vsel %vm4905, %v4811, -inf
    %5393 = vmax.xlane.f32.xlu0 %v5392
    %v5394 = vpop.xlane.xlu0 %5393
    %v5395 = vsel %vm4905, %v4812, -inf
    %5396 = vmax.xlane.f32.xlu0 %v5395
    %v5397 = vpop.xlane.xlu0 %5396
    %v5398 = vsel %vm4905, %v4813, -inf
    %5399 = vmax.xlane.f32.xlu0 %v5398
    %v5400 = vpop.xlane.xlu0 %5399
    %v5401 = vsel %vm4905, %v4814, -inf
    %5402 = vmax.xlane.f32.xlu0 %v5401
    %v5403 = vpop.xlane.xlu0 %5402
    %v5404 = vsel %vm4905, %v4815, -inf
    %5405 = vmax.xlane.f32.xlu0 %v5404
    %v5406 = vpop.xlane.xlu0 %5405
    %v5407 = vsel %vm4905, %v4816, -inf
    %5408 = vmax.xlane.f32.xlu0 %v5407
    %v5409 = vpop.xlane.xlu0 %5408
    %v5410 = vsel %vm4905, %v4817, -inf
    %5411 = vmax.xlane.f32.xlu0 %v5410
    %v5412 = vpop.xlane.xlu0 %5411
    %v5413 = vsel %vm4905, %v4818, -inf
    %5414 = vmax.xlane.f32.xlu0 %v5413
    %v5415 = vpop.xlane.xlu0 %5414
    %v5416 = vsel %vm4905, %v4819, -inf
    %5417 = vmax.xlane.f32.xlu0 %v5416
    %v5418 = vpop.xlane.xlu0 %5417
    %v5419 = vsel %vm4905, %v4820, -inf
    %5420 = vmax.xlane.f32.xlu0 %v5419
    %v5421 = vpop.xlane.xlu0 %5420
    %v5422 = vsel %vm4905, %v4821, -inf
    %5423 = vmax.xlane.f32.xlu0 %v5422
    %v5424 = vpop.xlane.xlu0 %5423
    %v5425 = vsel %vm4905, %v4822, -inf
    %5426 = vmax.xlane.f32.xlu0 %v5425
    %v5427 = vpop.xlane.xlu0 %5426
    %v5428 = vsel %vm4905, %v4823, -inf
    %5429 = vmax.xlane.f32.xlu0 %v5428
    %v5430 = vpop.xlane.xlu0 %5429
    %v5431 = vsel %vm4905, %v4824, -inf
    %5432 = vmax.xlane.f32.xlu0 %v5431
    %v5433 = vpop.xlane.xlu0 %5432
    %v5434 = vsel %vm4905, %v4825, -inf
    %5435 = vmax.xlane.f32.xlu0 %v5434
    %v5436 = vpop.xlane.xlu0 %5435
    %v5437 = vsel %vm4905, %v4826, -inf
    %5438 = vmax.xlane.f32.xlu0 %v5437
    %v5439 = vpop.xlane.xlu0 %5438
    %v5440 = vsel %vm4905, %v4827, -inf
    %5441 = vmax.xlane.f32.xlu0 %v5440
    %v5442 = vpop.xlane.xlu0 %5441
    %v5443 = vsel %vm4905, %v4828, -inf
    %5444 = vmax.xlane.f32.xlu0 %v5443
    %v5445 = vpop.xlane.xlu0 %5444
    %v5446 = vsel %vm4905, %v4829, -inf
    %5447 = vmax.xlane.f32.xlu0 %v5446
    %v5448 = vpop.xlane.xlu0 %5447
    %v5449 = vsel %vm4905, %v4830, -inf
    %5450 = vmax.xlane.f32.xlu0 %v5449
    %v5451 = vpop.xlane.xlu0 %5450
    %v5452 = vsel %vm4905, %v4831, -inf
    %5453 = vmax.xlane.f32.xlu0 %v5452
    %v5454 = vpop.xlane.xlu0 %5453
    %v5455 = vsel %vm4905, %v4832, -inf
    %5456 = vmax.xlane.f32.xlu0 %v5455
    %v5457 = vpop.xlane.xlu0 %5456
    %v5458 = vsel %vm4905, %v4833, -inf
    %5459 = vmax.xlane.f32.xlu0 %v5458
    %v5460 = vpop.xlane.xlu0 %5459
    %v5461 = vsel %vm4905, %v4834, -inf
    %5462 = vmax.xlane.f32.xlu0 %v5461
    %v5463 = vpop.xlane.xlu0 %5462
    %v5464 = vsel %vm4905, %v4835, -inf
    %5465 = vmax.xlane.f32.xlu0 %v5464
    %v5466 = vpop.xlane.xlu0 %5465
    %v5467 = vsel %vm4905, %v4836, -inf
    %5468 = vmax.xlane.f32.xlu0 %v5467
    %v5469 = vpop.xlane.xlu0 %5468
    %v5470 = vsel %vm4905, %v4837, -inf
    %5471 = vmax.xlane.f32.xlu0 %v5470
    %v5472 = vpop.xlane.xlu0 %5471
    %v5473 = vsel %vm4905, %v4838, -inf
    %5474 = vmax.xlane.f32.xlu0 %v5473
    %v5475 = vpop.xlane.xlu0 %5474
    %v5476 = vsel %vm4905, %v4839, -inf
    %5477 = vmax.xlane.f32.xlu0 %v5476
    %v5478 = vpop.xlane.xlu0 %5477
    %v5479 = vsel %vm4905, %v4840, -inf
    %5480 = vmax.xlane.f32.xlu0 %v5479
    %v5481 = vpop.xlane.xlu0 %5480
    %v5482 = vsel %vm4905, %v4841, -inf
    %5483 = vmax.xlane.f32.xlu0 %v5482
    %v5484 = vpop.xlane.xlu0 %5483
    %v5485 = vsel %vm4905, %v4842, -inf
    %5486 = vmax.xlane.f32.xlu0 %v5485
    %v5487 = vpop.xlane.xlu0 %5486
    %v5488 = vsel %vm4905, %v4843, -inf
    %5489 = vmax.xlane.f32.xlu0 %v5488
    %v5490 = vpop.xlane.xlu0 %5489
    %v5491 = vsel %vm4905, %v4844, -inf
    %5492 = vmax.xlane.f32.xlu0 %v5491
    %v5493 = vpop.xlane.xlu0 %5492
    %v5494 = vsel %vm4905, %v4845, -inf
    %5495 = vmax.xlane.f32.xlu0 %v5494
    %v5496 = vpop.xlane.xlu0 %5495
    %v5497 = vsel %vm4905, %v4846, -inf
    %5498 = vmax.xlane.f32.xlu0 %v5497
    %v5499 = vpop.xlane.xlu0 %5498
    %v5500 = vsel %vm4905, %v4847, -inf
    %5501 = vmax.xlane.f32.xlu0 %v5500
    %v5502 = vpop.xlane.xlu0 %5501
    %v5503 = vsel %vm4905, %v4848, -inf
    %5504 = vmax.xlane.f32.xlu0 %v5503
    %v5505 = vpop.xlane.xlu0 %5504
    %v5506 = vsel %vm4905, %v4849, -inf
    %5507 = vmax.xlane.f32.xlu0 %v5506
    %v5508 = vpop.xlane.xlu0 %5507
    %v5509 = vsel %vm4905, %v4850, -inf
    %5510 = vmax.xlane.f32.xlu0 %v5509
    %v5511 = vpop.xlane.xlu0 %5510
    %v5512 = vsel %vm4905, %v4851, -inf
    %5513 = vmax.xlane.f32.xlu0 %v5512
    %v5514 = vpop.xlane.xlu0 %5513
    %v5515 = vsel %vm4905, %v4852, -inf
    %5516 = vmax.xlane.f32.xlu0 %v5515
    %v5517 = vpop.xlane.xlu0 %5516
    %v5518 = vsel %vm4905, %v4853, -inf
    %5519 = vmax.xlane.f32.xlu0 %v5518
    %v5520 = vpop.xlane.xlu0 %5519
    %v5521 = vsel %vm4905, %v4854, -inf
    %5522 = vmax.xlane.f32.xlu0 %v5521
    %v5523 = vpop.xlane.xlu0 %5522
    %v5524 = vsel %vm4905, %v4855, -inf
    %5525 = vmax.xlane.f32.xlu0 %v5524
    %v5526 = vpop.xlane.xlu0 %5525
    %v5527 = vsel %vm4905, %v4856, -inf
    %5528 = vmax.xlane.f32.xlu0 %v5527
    %v5529 = vpop.xlane.xlu0 %5528
    %v5530 = vsel %vm4905, %v4857, -inf
    %5531 = vmax.xlane.f32.xlu0 %v5530
    %v5532 = vpop.xlane.xlu0 %5531
    %v5533 = vsel %vm4905, %v4858, -inf
    %5534 = vmax.xlane.f32.xlu0 %v5533
    %v5535 = vpop.xlane.xlu0 %5534
    %v5536 = vsel %vm4905, %v4859, -inf
    %5537 = vmax.xlane.f32.xlu0 %v5536
    %v5538 = vpop.xlane.xlu0 %5537
    %v5539 = vsel %vm4905, %v4860, -inf
    %5540 = vmax.xlane.f32.xlu0 %v5539
    %v5541 = vpop.xlane.xlu0 %5540
    %v5542 = vsel %vm4905, %v4861, -inf
    %5543 = vmax.xlane.f32.xlu0 %v5542
    %v5544 = vpop.xlane.xlu0 %5543
    %v5545 = vsel %vm4905, %v4862, -inf
    %5546 = vmax.xlane.f32.xlu0 %v5545
    %v5547 = vpop.xlane.xlu0 %5546
    %v5548 = vsel %vm4905, %v4863, -inf
    %5549 = vmax.xlane.f32.xlu0 %v5548
    %v5550 = vpop.xlane.xlu0 %5549
    %v5551 = vsel %vm4905, %v4864, -inf
    %5552 = vmax.xlane.f32.xlu0 %v5551
    %v5553 = vpop.xlane.xlu0 %5552
    %v5554 = vsel %vm4905, %v4865, -inf
    %5555 = vmax.xlane.f32.xlu0 %v5554
    %v5556 = vpop.xlane.xlu0 %5555
    %v5557 = vsel %vm4905, %v4866, -inf
    %5558 = vmax.xlane.f32.xlu0 %v5557
    %v5559 = vpop.xlane.xlu0 %5558
    %v5560 = vsel %vm4905, %v4867, -inf
    %5561 = vmax.xlane.f32.xlu0 %v5560
    %v5562 = vpop.xlane.xlu0 %5561
    %v5563 = vsel %vm4905, %v4868, -inf
    %5564 = vmax.xlane.f32.xlu0 %v5563
    %v5565 = vpop.xlane.xlu0 %5564
    %v5566 = vsel %vm4905, %v4869, -inf
    %5567 = vmax.xlane.f32.xlu0 %v5566
    %v5568 = vpop.xlane.xlu0 %5567
    %v5569 = vsel %vm4905, %v4870, -inf
    %5570 = vmax.xlane.f32.xlu0 %v5569
    %v5571 = vpop.xlane.xlu0 %5570
    %v5572 = vsel %vm4905, %v4871, -inf
    %5573 = vmax.xlane.f32.xlu0 %v5572
    %v5574 = vpop.xlane.xlu0 %5573
    %v5575 = vsel %vm4905, %v4872, -inf
    %5576 = vmax.xlane.f32.xlu0 %v5575
    %v5577 = vpop.xlane.xlu0 %5576
    %v5578 = vsel %vm4905, %v4873, -inf
    %5579 = vmax.xlane.f32.xlu0 %v5578
    %v5580 = vpop.xlane.xlu0 %5579
    %v5581 = vsel %vm4905, %v4874, -inf
    %5582 = vmax.xlane.f32.xlu0 %v5581
    %v5583 = vpop.xlane.xlu0 %5582
    %v5584 = vsel %vm4905, %v4875, -inf
    %5585 = vmax.xlane.f32.xlu0 %v5584
    %v5586 = vpop.xlane.xlu0 %5585
    %v5587 = vsel %vm4905, %v4876, -inf
    %5588 = vmax.xlane.f32.xlu0 %v5587
    %v5589 = vpop.xlane.xlu0 %5588
    %v5590 = vsel %vm4905, %v4877, -inf
    %5591 = vmax.xlane.f32.xlu0 %v5590
    %v5592 = vpop.xlane.xlu0 %5591
    %v5593 = vsel %vm4905, %v4878, -inf
    %5594 = vmax.xlane.f32.xlu0 %v5593
    %v5595 = vpop.xlane.xlu0 %5594
    %v5596 = vsel %vm4905, %v4879, -inf
    %5597 = vmax.xlane.f32.xlu0 %v5596
    %v5598 = vpop.xlane.xlu0 %5597
    %v5599 = vsel %vm4905, %v4880, -inf
    %5600 = vmax.xlane.f32.xlu0 %v5599
    %v5601 = vpop.xlane.xlu0 %5600
    %v5602 = vsel %vm4905, %v4881, -inf
    %5603 = vmax.xlane.f32.xlu0 %v5602
    %v5604 = vpop.xlane.xlu0 %5603
    %v5605 = vsel %vm4905, %v4882, -inf
    %5606 = vmax.xlane.f32.xlu0 %v5605
    %v5607 = vpop.xlane.xlu0 %5606
    %v5608 = vsel %vm4905, %v4883, -inf
    %5609 = vmax.xlane.f32.xlu0 %v5608
    %v5610 = vpop.xlane.xlu0 %5609
    %v5611 = vsel %vm4905, %v4884, -inf
    %5612 = vmax.xlane.f32.xlu0 %v5611
    %v5613 = vpop.xlane.xlu0 %5612
    %v5614 = vsel %vm4905, %v4885, -inf
    %5615 = vmax.xlane.f32.xlu0 %v5614
    %v5616 = vpop.xlane.xlu0 %5615
    %v5617 = vsel %vm4905, %v4886, -inf
    %5618 = vmax.xlane.f32.xlu0 %v5617
    %v5619 = vpop.xlane.xlu0 %5618
    %v5620 = vsel %vm4905, %v4887, -inf
    %5621 = vmax.xlane.f32.xlu0 %v5620
    %v5622 = vpop.xlane.xlu0 %5621
    %v5623 = vsel %vm4905, %v4888, -inf
    %5624 = vmax.xlane.f32.xlu0 %v5623
    %v5625 = vpop.xlane.xlu0 %5624
    %v5626 = vsel %vm4905, %v4889, -inf
    %5627 = vmax.xlane.f32.xlu0 %v5626
    %v5628 = vpop.xlane.xlu0 %5627
    %v5629 = vsel %vm4905, %v4890, -inf
    %5630 = vmax.xlane.f32.xlu0 %v5629
    %v5631 = vpop.xlane.xlu0 %5630
    %v5632 = vsel %vm4905, %v4891, -inf
    %5633 = vmax.xlane.f32.xlu0 %v5632
    %v5634 = vpop.xlane.xlu0 %5633
    %v5635 = vsel %vm4905, %v4892, -inf
    %5636 = vmax.xlane.f32.xlu0 %v5635
    %v5637 = vpop.xlane.xlu0 %5636
    %v5638 = vsel %vm4905, %v4893, -inf
    %5639 = vmax.xlane.f32.xlu0 %v5638
    %v5640 = vpop.xlane.xlu0 %5639
    %v5641 = vsel %vm4905, %v4894, -inf
    %5642 = vmax.xlane.f32.xlu0 %v5641
    %v5643 = vpop.xlane.xlu0 %5642
    %v5644 = vsel %vm4905, %v4895, -inf
    %5645 = vmax.xlane.f32.xlu0 %v5644
    %v5646 = vpop.xlane.xlu0 %5645
    %v5647 = vsel %vm4905, %v4896, -inf
    %5648 = vmax.xlane.f32.xlu0 %v5647
    %v5649 = vpop.xlane.xlu0 %5648
    %v5650 = vsel %vm4905, %v4897, -inf
    %5651 = vmax.xlane.f32.xlu0 %v5650
    %v5652 = vpop.xlane.xlu0 %5651
    %v5653 = vsel %vm4905, %v4898, -inf
    %5654 = vmax.xlane.f32.xlu0 %v5653
    %v5655 = vpop.xlane.xlu0 %5654
    %v5656 = vsel %vm4905, %v4899, -inf
    %5657 = vmax.xlane.f32.xlu0 %v5656
    %v5658 = vpop.xlane.xlu0 %5657
    %v5659 = vsel %vm4905, %v4900, -inf
    %5660 = vmax.xlane.f32.xlu0 %v5659
    %v5661 = vpop.xlane.xlu0 %5660
    %v5662 = vsel %vm4905, %v4901, -inf
    %5663 = vmax.xlane.f32.xlu0 %v5662
    %v5664 = vpop.xlane.xlu0 %5663
    %v5665 = vsel %vm4905, %v4902, -inf
    %5666 = vmax.xlane.f32.xlu0 %v5665
    %v5667 = vpop.xlane.xlu0 %5666
    %v5668 = vsel %vm4905, %v4903, -inf
    %5669 = vmax.xlane.f32.xlu0 %v5668
    %v5670 = vpop.xlane.xlu0 %5669
    %v5671 = vsel %vm4905, %v4904, -inf
    %5672 = vmax.xlane.f32.xlu0 %v5671
    %v5673 = vpop.xlane.xlu0 %5672
    %v5674 = vsub.f32 %v4649, %v4908
    %v5675 = vsub.f32 %v4650, %v4911
    %v5676 = vsub.f32 %v4651, %v4914
    %v5677 = vsub.f32 %v4652, %v4917
    %v5678 = vsub.f32 %v4653, %v4920
    %v5679 = vsub.f32 %v4654, %v4923
    %v5680 = vsub.f32 %v4655, %v4926
    %v5681 = vsub.f32 %v4656, %v4929
    %v5682 = vsub.f32 %v4657, %v4932
    %v5683 = vsub.f32 %v4658, %v4935
    %v5684 = vsub.f32 %v4659, %v4938
    %v5685 = vsub.f32 %v4660, %v4941
    %v5686 = vsub.f32 %v4661, %v4944
    %v5687 = vsub.f32 %v4662, %v4947
    %v5688 = vsub.f32 %v4663, %v4950
    %v5689 = vsub.f32 %v4664, %v4953
    %v5690 = vsub.f32 %v4665, %v4956
    %v5691 = vsub.f32 %v4666, %v4959
    %v5692 = vsub.f32 %v4667, %v4962
    %v5693 = vsub.f32 %v4668, %v4965
    %v5694 = vsub.f32 %v4669, %v4968
    %v5695 = vsub.f32 %v4670, %v4971
    %v5696 = vsub.f32 %v4671, %v4974
    %v5697 = vsub.f32 %v4672, %v4977
    %v5698 = vsub.f32 %v4673, %v4980
    %v5699 = vsub.f32 %v4674, %v4983
    %v5700 = vsub.f32 %v4675, %v4986
    %v5701 = vsub.f32 %v4676, %v4989
    %v5702 = vsub.f32 %v4677, %v4992
    %v5703 = vsub.f32 %v4678, %v4995
    %v5704 = vsub.f32 %v4679, %v4998
    %v5705 = vsub.f32 %v4680, %v5001
    %v5706 = vsub.f32 %v4681, %v5004
    %v5707 = vsub.f32 %v4682, %v5007
    %v5708 = vsub.f32 %v4683, %v5010
    %v5709 = vsub.f32 %v4684, %v5013
    %v5710 = vsub.f32 %v4685, %v5016
    %v5711 = vsub.f32 %v4686, %v5019
    %v5712 = vsub.f32 %v4687, %v5022
    %v5713 = vsub.f32 %v4688, %v5025
    %v5714 = vsub.f32 %v4689, %v5028
    %v5715 = vsub.f32 %v4690, %v5031
    %v5716 = vsub.f32 %v4691, %v5034
    %v5717 = vsub.f32 %v4692, %v5037
    %v5718 = vsub.f32 %v4693, %v5040
    %v5719 = vsub.f32 %v4694, %v5043
    %v5720 = vsub.f32 %v4695, %v5046
    %v5721 = vsub.f32 %v4696, %v5049
    %v5722 = vsub.f32 %v4697, %v5052
    %v5723 = vsub.f32 %v4698, %v5055
    %v5724 = vsub.f32 %v4699, %v5058
    %v5725 = vsub.f32 %v4700, %v5061
    %v5726 = vsub.f32 %v4701, %v5064
    %v5727 = vsub.f32 %v4702, %v5067
    %v5728 = vsub.f32 %v4703, %v5070
    %v5729 = vsub.f32 %v4704, %v5073
    %v5730 = vsub.f32 %v4705, %v5076
    %v5731 = vsub.f32 %v4706, %v5079
    %v5732 = vsub.f32 %v4707, %v5082
    %v5733 = vsub.f32 %v4708, %v5085
    %v5734 = vsub.f32 %v4709, %v5088
    %v5735 = vsub.f32 %v4710, %v5091
    %v5736 = vsub.f32 %v4711, %v5094
    %v5737 = vsub.f32 %v4712, %v5097
    %v5738 = vsub.f32 %v4713, %v5100
    %v5739 = vsub.f32 %v4714, %v5103
    %v5740 = vsub.f32 %v4715, %v5106
    %v5741 = vsub.f32 %v4716, %v5109
    %v5742 = vsub.f32 %v4717, %v5112
    %v5743 = vsub.f32 %v4718, %v5115
    %v5744 = vsub.f32 %v4719, %v5118
    %v5745 = vsub.f32 %v4720, %v5121
    %v5746 = vsub.f32 %v4721, %v5124
    %v5747 = vsub.f32 %v4722, %v5127
    %v5748 = vsub.f32 %v4723, %v5130
    %v5749 = vsub.f32 %v4724, %v5133
    %v5750 = vsub.f32 %v4725, %v5136
    %v5751 = vsub.f32 %v4726, %v5139
    %v5752 = vsub.f32 %v4727, %v5142
    %v5753 = vsub.f32 %v4728, %v5145
    %v5754 = vsub.f32 %v4729, %v5148
    %v5755 = vsub.f32 %v4730, %v5151
    %v5756 = vsub.f32 %v4731, %v5154
    %v5757 = vsub.f32 %v4732, %v5157
    %v5758 = vsub.f32 %v4733, %v5160
    %v5759 = vsub.f32 %v4734, %v5163
    %v5760 = vsub.f32 %v4735, %v5166
    %v5761 = vsub.f32 %v4736, %v5169
    %v5762 = vsub.f32 %v4737, %v5172
    %v5763 = vsub.f32 %v4738, %v5175
    %v5764 = vsub.f32 %v4739, %v5178
    %v5765 = vsub.f32 %v4740, %v5181
    %v5766 = vsub.f32 %v4741, %v5184
    %v5767 = vsub.f32 %v4742, %v5187
    %v5768 = vsub.f32 %v4743, %v5190
    %v5769 = vsub.f32 %v4744, %v5193
    %v5770 = vsub.f32 %v4745, %v5196
    %v5771 = vsub.f32 %v4746, %v5199
    %v5772 = vsub.f32 %v4747, %v5202
    %v5773 = vsub.f32 %v4748, %v5205
    %v5774 = vsub.f32 %v4749, %v5208
    %v5775 = vsub.f32 %v4750, %v5211
    %v5776 = vsub.f32 %v4751, %v5214
    %v5777 = vsub.f32 %v4752, %v5217
    %v5778 = vsub.f32 %v4753, %v5220
    %v5779 = vsub.f32 %v4754, %v5223
    %v5780 = vsub.f32 %v4755, %v5226
    %v5781 = vsub.f32 %v4756, %v5229
    %v5782 = vsub.f32 %v4757, %v5232
    %v5783 = vsub.f32 %v4758, %v5235
    %v5784 = vsub.f32 %v4759, %v5238
    %v5785 = vsub.f32 %v4760, %v5241
    %v5786 = vsub.f32 %v4761, %v5244
    %v5787 = vsub.f32 %v4762, %v5247
    %v5788 = vsub.f32 %v4763, %v5250
    %v5789 = vsub.f32 %v4764, %v5253
    %v5790 = vsub.f32 %v4765, %v5256
    %v5791 = vsub.f32 %v4766, %v5259
    %v5792 = vsub.f32 %v4767, %v5262
    %v5793 = vsub.f32 %v4768, %v5265
    %v5794 = vsub.f32 %v4769, %v5268
    %v5795 = vsub.f32 %v4770, %v5271
    %v5796 = vsub.f32 %v4771, %v5274
    %v5797 = vsub.f32 %v4772, %v5277
    %v5798 = vsub.f32 %v4773, %v5280
    %v5799 = vsub.f32 %v4774, %v5283
    %v5800 = vsub.f32 %v4775, %v5286
    %v5801 = vsub.f32 %v4776, %v5289
    %v5802 = vsub.f32 %v4777, %v5292
    %v5803 = vsub.f32 %v4778, %v5295
    %v5804 = vsub.f32 %v4779, %v5298
    %v5805 = vsub.f32 %v4780, %v5301
    %v5806 = vsub.f32 %v4781, %v5304
    %v5807 = vsub.f32 %v4782, %v5307
    %v5808 = vsub.f32 %v4783, %v5310
    %v5809 = vsub.f32 %v4784, %v5313
    %v5810 = vsub.f32 %v4785, %v5316
    %v5811 = vsub.f32 %v4786, %v5319
    %v5812 = vsub.f32 %v4787, %v5322
    %v5813 = vsub.f32 %v4788, %v5325
    %v5814 = vsub.f32 %v4789, %v5328
    %v5815 = vsub.f32 %v4790, %v5331
    %v5816 = vsub.f32 %v4791, %v5334
    %v5817 = vsub.f32 %v4792, %v5337
    %v5818 = vsub.f32 %v4793, %v5340
    %v5819 = vsub.f32 %v4794, %v5343
    %v5820 = vsub.f32 %v4795, %v5346
    %v5821 = vsub.f32 %v4796, %v5349
    %v5822 = vsub.f32 %v4797, %v5352
    %v5823 = vsub.f32 %v4798, %v5355
    %v5824 = vsub.f32 %v4799, %v5358
    %v5825 = vsub.f32 %v4800, %v5361
    %v5826 = vsub.f32 %v4801, %v5364
    %v5827 = vsub.f32 %v4802, %v5367
    %v5828 = vsub.f32 %v4803, %v5370
    %v5829 = vsub.f32 %v4804, %v5373
    %v5830 = vsub.f32 %v4805, %v5376
    %v5831 = vsub.f32 %v4806, %v5379
    %v5832 = vsub.f32 %v4807, %v5382
    %v5833 = vsub.f32 %v4808, %v5385
    %v5834 = vsub.f32 %v4809, %v5388
    %v5835 = vsub.f32 %v4810, %v5391
    %v5836 = vsub.f32 %v4811, %v5394
    %v5837 = vsub.f32 %v4812, %v5397
    %v5838 = vsub.f32 %v4813, %v5400
    %v5839 = vsub.f32 %v4814, %v5403
    %v5840 = vsub.f32 %v4815, %v5406
    %v5841 = vsub.f32 %v4816, %v5409
    %v5842 = vsub.f32 %v4817, %v5412
    %v5843 = vsub.f32 %v4818, %v5415
    %v5844 = vsub.f32 %v4819, %v5418
    %v5845 = vsub.f32 %v4820, %v5421
    %v5846 = vsub.f32 %v4821, %v5424
    %v5847 = vsub.f32 %v4822, %v5427
    %v5848 = vsub.f32 %v4823, %v5430
    %v5849 = vsub.f32 %v4824, %v5433
    %v5850 = vsub.f32 %v4825, %v5436
    %v5851 = vsub.f32 %v4826, %v5439
    %v5852 = vsub.f32 %v4827, %v5442
    %v5853 = vsub.f32 %v4828, %v5445
    %v5854 = vsub.f32 %v4829, %v5448
    %v5855 = vsub.f32 %v4830, %v5451
    %v5856 = vsub.f32 %v4831, %v5454
    %v5857 = vsub.f32 %v4832, %v5457
    %v5858 = vsub.f32 %v4833, %v5460
    %v5859 = vsub.f32 %v4834, %v5463
    %v5860 = vsub.f32 %v4835, %v5466
    %v5861 = vsub.f32 %v4836, %v5469
    %v5862 = vsub.f32 %v4837, %v5472
    %v5863 = vsub.f32 %v4838, %v5475
    %v5864 = vsub.f32 %v4839, %v5478
    %v5865 = vsub.f32 %v4840, %v5481
    %v5866 = vsub.f32 %v4841, %v5484
    %v5867 = vsub.f32 %v4842, %v5487
    %v5868 = vsub.f32 %v4843, %v5490
    %v5869 = vsub.f32 %v4844, %v5493
    %v5870 = vsub.f32 %v4845, %v5496
    %v5871 = vsub.f32 %v4846, %v5499
    %v5872 = vsub.f32 %v4847, %v5502
    %v5873 = vsub.f32 %v4848, %v5505
    %v5874 = vsub.f32 %v4849, %v5508
    %v5875 = vsub.f32 %v4850, %v5511
    %v5876 = vsub.f32 %v4851, %v5514
    %v5877 = vsub.f32 %v4852, %v5517
    %v5878 = vsub.f32 %v4853, %v5520
    %v5879 = vsub.f32 %v4854, %v5523
    %v5880 = vsub.f32 %v4855, %v5526
    %v5881 = vsub.f32 %v4856, %v5529
    %v5882 = vsub.f32 %v4857, %v5532
    %v5883 = vsub.f32 %v4858, %v5535
    %v5884 = vsub.f32 %v4859, %v5538
    %v5885 = vsub.f32 %v4860, %v5541
    %v5886 = vsub.f32 %v4861, %v5544
    %v5887 = vsub.f32 %v4862, %v5547
    %v5888 = vsub.f32 %v4863, %v5550
    %v5889 = vsub.f32 %v4864, %v5553
    %v5890 = vsub.f32 %v4865, %v5556
    %v5891 = vsub.f32 %v4866, %v5559
    %v5892 = vsub.f32 %v4867, %v5562
    %v5893 = vsub.f32 %v4868, %v5565
    %v5894 = vsub.f32 %v4869, %v5568
    %v5895 = vsub.f32 %v4870, %v5571
    %v5896 = vsub.f32 %v4871, %v5574
    %v5897 = vsub.f32 %v4872, %v5577
    %v5898 = vsub.f32 %v4873, %v5580
    %v5899 = vsub.f32 %v4874, %v5583
    %v5900 = vsub.f32 %v4875, %v5586
    %v5901 = vsub.f32 %v4876, %v5589
    %v5902 = vsub.f32 %v4877, %v5592
    %v5903 = vsub.f32 %v4878, %v5595
    %v5904 = vsub.f32 %v4879, %v5598
    %v5905 = vsub.f32 %v4880, %v5601
    %v5906 = vsub.f32 %v4881, %v5604
    %v5907 = vsub.f32 %v4882, %v5607
    %v5908 = vsub.f32 %v4883, %v5610
    %v5909 = vsub.f32 %v4884, %v5613
    %v5910 = vsub.f32 %v4885, %v5616
    %v5911 = vsub.f32 %v4886, %v5619
    %v5912 = vsub.f32 %v4887, %v5622
    %v5913 = vsub.f32 %v4888, %v5625
    %v5914 = vsub.f32 %v4889, %v5628
    %v5915 = vsub.f32 %v4890, %v5631
    %v5916 = vsub.f32 %v4891, %v5634
    %v5917 = vsub.f32 %v4892, %v5637
    %v5918 = vsub.f32 %v4893, %v5640
    %v5919 = vsub.f32 %v4894, %v5643
    %v5920 = vsub.f32 %v4895, %v5646
    %v5921 = vsub.f32 %v4896, %v5649
    %v5922 = vsub.f32 %v4897, %v5652
    %v5923 = vsub.f32 %v4898, %v5655
    %v5924 = vsub.f32 %v4899, %v5658
    %v5925 = vsub.f32 %v4900, %v5661
    %v5926 = vsub.f32 %v4901, %v5664
    %v5927 = vsub.f32 %v4902, %v5667
    %v5928 = vsub.f32 %v4903, %v5670
    %v5929 = vsub.f32 %v4904, %v5673
    %v5930 = vmul.f32 %v5674, 1.442695
    %v5931 = vpow.pop %v5930
    %v5932 = vmul.f32 %v5675, 1.442695
    %v5933 = vpow.pop %v5932
    %v5934 = vmul.f32 %v5676, 1.442695
    %v5935 = vpow.pop %v5934
    %v5936 = vmul.f32 %v5677, 1.442695
    %v5937 = vpow.pop %v5936
    %v5938 = vmul.f32 %v5678, 1.442695
    %v5939 = vpow.pop %v5938
    %v5940 = vmul.f32 %v5679, 1.442695
    %v5941 = vpow.pop %v5940
    %v5942 = vmul.f32 %v5680, 1.442695
    %v5943 = vpow.pop %v5942
    %v5944 = vmul.f32 %v5681, 1.442695
    %v5945 = vpow.pop %v5944
    %v5946 = vmul.f32 %v5682, 1.442695
    %v5947 = vpow.pop %v5946
    %v5948 = vmul.f32 %v5683, 1.442695
    %v5949 = vpow.pop %v5948
    %v5950 = vmul.f32 %v5684, 1.442695
    %v5951 = vpow.pop %v5950
    %v5952 = vmul.f32 %v5685, 1.442695
    %v5953 = vpow.pop %v5952
    %v5954 = vmul.f32 %v5686, 1.442695
    %v5955 = vpow.pop %v5954
    %v5956 = vmul.f32 %v5687, 1.442695
    %v5957 = vpow.pop %v5956
    %v5958 = vmul.f32 %v5688, 1.442695
    %v5959 = vpow.pop %v5958
    %v5960 = vmul.f32 %v5689, 1.442695
    %v5961 = vpow.pop %v5960
    %v5962 = vmul.f32 %v5690, 1.442695
    %v5963 = vpow.pop %v5962
    %v5964 = vmul.f32 %v5691, 1.442695
    %v5965 = vpow.pop %v5964
    %v5966 = vmul.f32 %v5692, 1.442695
    %v5967 = vpow.pop %v5966
    %v5968 = vmul.f32 %v5693, 1.442695
    %v5969 = vpow.pop %v5968
    %v5970 = vmul.f32 %v5694, 1.442695
    %v5971 = vpow.pop %v5970
    %v5972 = vmul.f32 %v5695, 1.442695
    %v5973 = vpow.pop %v5972
    %v5974 = vmul.f32 %v5696, 1.442695
    %v5975 = vpow.pop %v5974
    %v5976 = vmul.f32 %v5697, 1.442695
    %v5977 = vpow.pop %v5976
    %v5978 = vmul.f32 %v5698, 1.442695
    %v5979 = vpow.pop %v5978
    %v5980 = vmul.f32 %v5699, 1.442695
    %v5981 = vpow.pop %v5980
    %v5982 = vmul.f32 %v5700, 1.442695
    %v5983 = vpow.pop %v5982
    %v5984 = vmul.f32 %v5701, 1.442695
    %v5985 = vpow.pop %v5984
    %v5986 = vmul.f32 %v5702, 1.442695
    %v5987 = vpow.pop %v5986
    %v5988 = vmul.f32 %v5703, 1.442695
    %v5989 = vpow.pop %v5988
    %v5990 = vmul.f32 %v5704, 1.442695
    %v5991 = vpow.pop %v5990
    %v5992 = vmul.f32 %v5705, 1.442695
    %v5993 = vpow.pop %v5992
    %v5994 = vmul.f32 %v5706, 1.442695
    %v5995 = vpow.pop %v5994
    %v5996 = vmul.f32 %v5707, 1.442695
    %v5997 = vpow.pop %v5996
    %v5998 = vmul.f32 %v5708, 1.442695
    %v5999 = vpow.pop %v5998
    %v6000 = vmul.f32 %v5709, 1.442695
    %v6001 = vpow.pop %v6000
    %v6002 = vmul.f32 %v5710, 1.442695
    %v6003 = vpow.pop %v6002
    %v6004 = vmul.f32 %v5711, 1.442695
    %v6005 = vpow.pop %v6004
    %v6006 = vmul.f32 %v5712, 1.442695
    %v6007 = vpow.pop %v6006
    %v6008 = vmul.f32 %v5713, 1.442695
    %v6009 = vpow.pop %v6008
    %v6010 = vmul.f32 %v5714, 1.442695
    %v6011 = vpow.pop %v6010
    %v6012 = vmul.f32 %v5715, 1.442695
    %v6013 = vpow.pop %v6012
    %v6014 = vmul.f32 %v5716, 1.442695
    %v6015 = vpow.pop %v6014
    %v6016 = vmul.f32 %v5717, 1.442695
    %v6017 = vpow.pop %v6016
    %v6018 = vmul.f32 %v5718, 1.442695
    %v6019 = vpow.pop %v6018
    %v6020 = vmul.f32 %v5719, 1.442695
    %v6021 = vpow.pop %v6020
    %v6022 = vmul.f32 %v5720, 1.442695
    %v6023 = vpow.pop %v6022
    %v6024 = vmul.f32 %v5721, 1.442695
    %v6025 = vpow.pop %v6024
    %v6026 = vmul.f32 %v5722, 1.442695
    %v6027 = vpow.pop %v6026
    %v6028 = vmul.f32 %v5723, 1.442695
    %v6029 = vpow.pop %v6028
    %v6030 = vmul.f32 %v5724, 1.442695
    %v6031 = vpow.pop %v6030
    %v6032 = vmul.f32 %v5725, 1.442695
    %v6033 = vpow.pop %v6032
    %v6034 = vmul.f32 %v5726, 1.442695
    %v6035 = vpow.pop %v6034
    %v6036 = vmul.f32 %v5727, 1.442695
    %v6037 = vpow.pop %v6036
    %v6038 = vmul.f32 %v5728, 1.442695
    %v6039 = vpow.pop %v6038
    %v6040 = vmul.f32 %v5729, 1.442695
    %v6041 = vpow.pop %v6040
    %v6042 = vmul.f32 %v5730, 1.442695
    %v6043 = vpow.pop %v6042
    %v6044 = vmul.f32 %v5731, 1.442695
    %v6045 = vpow.pop %v6044
    %v6046 = vmul.f32 %v5732, 1.442695
    %v6047 = vpow.pop %v6046
    %v6048 = vmul.f32 %v5733, 1.442695
    %v6049 = vpow.pop %v6048
    %v6050 = vmul.f32 %v5734, 1.442695
    %v6051 = vpow.pop %v6050
    %v6052 = vmul.f32 %v5735, 1.442695
    %v6053 = vpow.pop %v6052
    %v6054 = vmul.f32 %v5736, 1.442695
    %v6055 = vpow.pop %v6054
    %v6056 = vmul.f32 %v5737, 1.442695
    %v6057 = vpow.pop %v6056
    %v6058 = vmul.f32 %v5738, 1.442695
    %v6059 = vpow.pop %v6058
    %v6060 = vmul.f32 %v5739, 1.442695
    %v6061 = vpow.pop %v6060
    %v6062 = vmul.f32 %v5740, 1.442695
    %v6063 = vpow.pop %v6062
    %v6064 = vmul.f32 %v5741, 1.442695
    %v6065 = vpow.pop %v6064
    %v6066 = vmul.f32 %v5742, 1.442695
    %v6067 = vpow.pop %v6066
    %v6068 = vmul.f32 %v5743, 1.442695
    %v6069 = vpow.pop %v6068
    %v6070 = vmul.f32 %v5744, 1.442695
    %v6071 = vpow.pop %v6070
    %v6072 = vmul.f32 %v5745, 1.442695
    %v6073 = vpow.pop %v6072
    %v6074 = vmul.f32 %v5746, 1.442695
    %v6075 = vpow.pop %v6074
    %v6076 = vmul.f32 %v5747, 1.442695
    %v6077 = vpow.pop %v6076
    %v6078 = vmul.f32 %v5748, 1.442695
    %v6079 = vpow.pop %v6078
    %v6080 = vmul.f32 %v5749, 1.442695
    %v6081 = vpow.pop %v6080
    %v6082 = vmul.f32 %v5750, 1.442695
    %v6083 = vpow.pop %v6082
    %v6084 = vmul.f32 %v5751, 1.442695
    %v6085 = vpow.pop %v6084
    %v6086 = vmul.f32 %v5752, 1.442695
    %v6087 = vpow.pop %v6086
    %v6088 = vmul.f32 %v5753, 1.442695
    %v6089 = vpow.pop %v6088
    %v6090 = vmul.f32 %v5754, 1.442695
    %v6091 = vpow.pop %v6090
    %v6092 = vmul.f32 %v5755, 1.442695
    %v6093 = vpow.pop %v6092
    %v6094 = vmul.f32 %v5756, 1.442695
    %v6095 = vpow.pop %v6094
    %v6096 = vmul.f32 %v5757, 1.442695
    %v6097 = vpow.pop %v6096
    %v6098 = vmul.f32 %v5758, 1.442695
    %v6099 = vpow.pop %v6098
    %v6100 = vmul.f32 %v5759, 1.442695
    %v6101 = vpow.pop %v6100
    %v6102 = vmul.f32 %v5760, 1.442695
    %v6103 = vpow.pop %v6102
    %v6104 = vmul.f32 %v5761, 1.442695
    %v6105 = vpow.pop %v6104
    %v6106 = vmul.f32 %v5762, 1.442695
    %v6107 = vpow.pop %v6106
    %v6108 = vmul.f32 %v5763, 1.442695
    %v6109 = vpow.pop %v6108
    %v6110 = vmul.f32 %v5764, 1.442695
    %v6111 = vpow.pop %v6110
    %v6112 = vmul.f32 %v5765, 1.442695
    %v6113 = vpow.pop %v6112
    %v6114 = vmul.f32 %v5766, 1.442695
    %v6115 = vpow.pop %v6114
    %v6116 = vmul.f32 %v5767, 1.442695
    %v6117 = vpow.pop %v6116
    %v6118 = vmul.f32 %v5768, 1.442695
    %v6119 = vpow.pop %v6118
    %v6120 = vmul.f32 %v5769, 1.442695
    %v6121 = vpow.pop %v6120
    %v6122 = vmul.f32 %v5770, 1.442695
    %v6123 = vpow.pop %v6122
    %v6124 = vmul.f32 %v5771, 1.442695
    %v6125 = vpow.pop %v6124
    %v6126 = vmul.f32 %v5772, 1.442695
    %v6127 = vpow.pop %v6126
    %v6128 = vmul.f32 %v5773, 1.442695
    %v6129 = vpow.pop %v6128
    %v6130 = vmul.f32 %v5774, 1.442695
    %v6131 = vpow.pop %v6130
    %v6132 = vmul.f32 %v5775, 1.442695
    %v6133 = vpow.pop %v6132
    %v6134 = vmul.f32 %v5776, 1.442695
    %v6135 = vpow.pop %v6134
    %v6136 = vmul.f32 %v5777, 1.442695
    %v6137 = vpow.pop %v6136
    %v6138 = vmul.f32 %v5778, 1.442695
    %v6139 = vpow.pop %v6138
    %v6140 = vmul.f32 %v5779, 1.442695
    %v6141 = vpow.pop %v6140
    %v6142 = vmul.f32 %v5780, 1.442695
    %v6143 = vpow.pop %v6142
    %v6144 = vmul.f32 %v5781, 1.442695
    %v6145 = vpow.pop %v6144
    %v6146 = vmul.f32 %v5782, 1.442695
    %v6147 = vpow.pop %v6146
    %v6148 = vmul.f32 %v5783, 1.442695
    %v6149 = vpow.pop %v6148
    %v6150 = vmul.f32 %v5784, 1.442695
    %v6151 = vpow.pop %v6150
    %v6152 = vmul.f32 %v5785, 1.442695
    %v6153 = vpow.pop %v6152
    %v6154 = vmul.f32 %v5786, 1.442695
    %v6155 = vpow.pop %v6154
    %v6156 = vmul.f32 %v5787, 1.442695
    %v6157 = vpow.pop %v6156
    %v6158 = vmul.f32 %v5788, 1.442695
    %v6159 = vpow.pop %v6158
    %v6160 = vmul.f32 %v5789, 1.442695
    %v6161 = vpow.pop %v6160
    %v6162 = vmul.f32 %v5790, 1.442695
    %v6163 = vpow.pop %v6162
    %v6164 = vmul.f32 %v5791, 1.442695
    %v6165 = vpow.pop %v6164
    %v6166 = vmul.f32 %v5792, 1.442695
    %v6167 = vpow.pop %v6166
    %v6168 = vmul.f32 %v5793, 1.442695
    %v6169 = vpow.pop %v6168
    %v6170 = vmul.f32 %v5794, 1.442695
    %v6171 = vpow.pop %v6170
    %v6172 = vmul.f32 %v5795, 1.442695
    %v6173 = vpow.pop %v6172
    %v6174 = vmul.f32 %v5796, 1.442695
    %v6175 = vpow.pop %v6174
    %v6176 = vmul.f32 %v5797, 1.442695
    %v6177 = vpow.pop %v6176
    %v6178 = vmul.f32 %v5798, 1.442695
    %v6179 = vpow.pop %v6178
    %v6180 = vmul.f32 %v5799, 1.442695
    %v6181 = vpow.pop %v6180
    %v6182 = vmul.f32 %v5800, 1.442695
    %v6183 = vpow.pop %v6182
    %v6184 = vmul.f32 %v5801, 1.442695
    %v6185 = vpow.pop %v6184
    %v6186 = vmul.f32 %v5802, 1.442695
    %v6187 = vpow.pop %v6186
    %v6188 = vmul.f32 %v5803, 1.442695
    %v6189 = vpow.pop %v6188
    %v6190 = vmul.f32 %v5804, 1.442695
    %v6191 = vpow.pop %v6190
    %v6192 = vmul.f32 %v5805, 1.442695
    %v6193 = vpow.pop %v6192
    %v6194 = vmul.f32 %v5806, 1.442695
    %v6195 = vpow.pop %v6194
    %v6196 = vmul.f32 %v5807, 1.442695
    %v6197 = vpow.pop %v6196
    %v6198 = vmul.f32 %v5808, 1.442695
    %v6199 = vpow.pop %v6198
    %v6200 = vmul.f32 %v5809, 1.442695
    %v6201 = vpow.pop %v6200
    %v6202 = vmul.f32 %v5810, 1.442695
    %v6203 = vpow.pop %v6202
    %v6204 = vmul.f32 %v5811, 1.442695
    %v6205 = vpow.pop %v6204
    %v6206 = vmul.f32 %v5812, 1.442695
    %v6207 = vpow.pop %v6206
    %v6208 = vmul.f32 %v5813, 1.442695
    %v6209 = vpow.pop %v6208
    %v6210 = vmul.f32 %v5814, 1.442695
    %v6211 = vpow.pop %v6210
    %v6212 = vmul.f32 %v5815, 1.442695
    %v6213 = vpow.pop %v6212
    %v6214 = vmul.f32 %v5816, 1.442695
    %v6215 = vpow.pop %v6214
    %v6216 = vmul.f32 %v5817, 1.442695
    %v6217 = vpow.pop %v6216
    %v6218 = vmul.f32 %v5818, 1.442695
    %v6219 = vpow.pop %v6218
    %v6220 = vmul.f32 %v5819, 1.442695
    %v6221 = vpow.pop %v6220
    %v6222 = vmul.f32 %v5820, 1.442695
    %v6223 = vpow.pop %v6222
    %v6224 = vmul.f32 %v5821, 1.442695
    %v6225 = vpow.pop %v6224
    %v6226 = vmul.f32 %v5822, 1.442695
    %v6227 = vpow.pop %v6226
    %v6228 = vmul.f32 %v5823, 1.442695
    %v6229 = vpow.pop %v6228
    %v6230 = vmul.f32 %v5824, 1.442695
    %v6231 = vpow.pop %v6230
    %v6232 = vmul.f32 %v5825, 1.442695
    %v6233 = vpow.pop %v6232
    %v6234 = vmul.f32 %v5826, 1.442695
    %v6235 = vpow.pop %v6234
    %v6236 = vmul.f32 %v5827, 1.442695
    %v6237 = vpow.pop %v6236
    %v6238 = vmul.f32 %v5828, 1.442695
    %v6239 = vpow.pop %v6238
    %v6240 = vmul.f32 %v5829, 1.442695
    %v6241 = vpow.pop %v6240
    %v6242 = vmul.f32 %v5830, 1.442695
    %v6243 = vpow.pop %v6242
    %v6244 = vmul.f32 %v5831, 1.442695
    %v6245 = vpow.pop %v6244
    %v6246 = vmul.f32 %v5832, 1.442695
    %v6247 = vpow.pop %v6246
    %v6248 = vmul.f32 %v5833, 1.442695
    %v6249 = vpow.pop %v6248
    %v6250 = vmul.f32 %v5834, 1.442695
    %v6251 = vpow.pop %v6250
    %v6252 = vmul.f32 %v5835, 1.442695
    %v6253 = vpow.pop %v6252
    %v6254 = vmul.f32 %v5836, 1.442695
    %v6255 = vpow.pop %v6254
    %v6256 = vmul.f32 %v5837, 1.442695
    %v6257 = vpow.pop %v6256
    %v6258 = vmul.f32 %v5838, 1.442695
    %v6259 = vpow.pop %v6258
    %v6260 = vmul.f32 %v5839, 1.442695
    %v6261 = vpow.pop %v6260
    %v6262 = vmul.f32 %v5840, 1.442695
    %v6263 = vpow.pop %v6262
    %v6264 = vmul.f32 %v5841, 1.442695
    %v6265 = vpow.pop %v6264
    %v6266 = vmul.f32 %v5842, 1.442695
    %v6267 = vpow.pop %v6266
    %v6268 = vmul.f32 %v5843, 1.442695
    %v6269 = vpow.pop %v6268
    %v6270 = vmul.f32 %v5844, 1.442695
    %v6271 = vpow.pop %v6270
    %v6272 = vmul.f32 %v5845, 1.442695
    %v6273 = vpow.pop %v6272
    %v6274 = vmul.f32 %v5846, 1.442695
    %v6275 = vpow.pop %v6274
    %v6276 = vmul.f32 %v5847, 1.442695
    %v6277 = vpow.pop %v6276
    %v6278 = vmul.f32 %v5848, 1.442695
    %v6279 = vpow.pop %v6278
    %v6280 = vmul.f32 %v5849, 1.442695
    %v6281 = vpow.pop %v6280
    %v6282 = vmul.f32 %v5850, 1.442695
    %v6283 = vpow.pop %v6282
    %v6284 = vmul.f32 %v5851, 1.442695
    %v6285 = vpow.pop %v6284
    %v6286 = vmul.f32 %v5852, 1.442695
    %v6287 = vpow.pop %v6286
    %v6288 = vmul.f32 %v5853, 1.442695
    %v6289 = vpow.pop %v6288
    %v6290 = vmul.f32 %v5854, 1.442695
    %v6291 = vpow.pop %v6290
    %v6292 = vmul.f32 %v5855, 1.442695
    %v6293 = vpow.pop %v6292
    %v6294 = vmul.f32 %v5856, 1.442695
    %v6295 = vpow.pop %v6294
    %v6296 = vmul.f32 %v5857, 1.442695
    %v6297 = vpow.pop %v6296
    %v6298 = vmul.f32 %v5858, 1.442695
    %v6299 = vpow.pop %v6298
    %v6300 = vmul.f32 %v5859, 1.442695
    %v6301 = vpow.pop %v6300
    %v6302 = vmul.f32 %v5860, 1.442695
    %v6303 = vpow.pop %v6302
    %v6304 = vmul.f32 %v5861, 1.442695
    %v6305 = vpow.pop %v6304
    %v6306 = vmul.f32 %v5862, 1.442695
    %v6307 = vpow.pop %v6306
    %v6308 = vmul.f32 %v5863, 1.442695
    %v6309 = vpow.pop %v6308
    %v6310 = vmul.f32 %v5864, 1.442695
    %v6311 = vpow.pop %v6310
    %v6312 = vmul.f32 %v5865, 1.442695
    %v6313 = vpow.pop %v6312
    %v6314 = vmul.f32 %v5866, 1.442695
    %v6315 = vpow.pop %v6314
    %v6316 = vmul.f32 %v5867, 1.442695
    %v6317 = vpow.pop %v6316
    %v6318 = vmul.f32 %v5868, 1.442695
    %v6319 = vpow.pop %v6318
    %v6320 = vmul.f32 %v5869, 1.442695
    %v6321 = vpow.pop %v6320
    %v6322 = vmul.f32 %v5870, 1.442695
    %v6323 = vpow.pop %v6322
    %v6324 = vmul.f32 %v5871, 1.442695
    %v6325 = vpow.pop %v6324
    %v6326 = vmul.f32 %v5872, 1.442695
    %v6327 = vpow.pop %v6326
    %v6328 = vmul.f32 %v5873, 1.442695
    %v6329 = vpow.pop %v6328
    %v6330 = vmul.f32 %v5874, 1.442695
    %v6331 = vpow.pop %v6330
    %v6332 = vmul.f32 %v5875, 1.442695
    %v6333 = vpow.pop %v6332
    %v6334 = vmul.f32 %v5876, 1.442695
    %v6335 = vpow.pop %v6334
    %v6336 = vmul.f32 %v5877, 1.442695
    %v6337 = vpow.pop %v6336
    %v6338 = vmul.f32 %v5878, 1.442695
    %v6339 = vpow.pop %v6338
    %v6340 = vmul.f32 %v5879, 1.442695
    %v6341 = vpow.pop %v6340
    %v6342 = vmul.f32 %v5880, 1.442695
    %v6343 = vpow.pop %v6342
    %v6344 = vmul.f32 %v5881, 1.442695
    %v6345 = vpow.pop %v6344
    %v6346 = vmul.f32 %v5882, 1.442695
    %v6347 = vpow.pop %v6346
    %v6348 = vmul.f32 %v5883, 1.442695
    %v6349 = vpow.pop %v6348
    %v6350 = vmul.f32 %v5884, 1.442695
    %v6351 = vpow.pop %v6350
    %v6352 = vmul.f32 %v5885, 1.442695
    %v6353 = vpow.pop %v6352
    %v6354 = vmul.f32 %v5886, 1.442695
    %v6355 = vpow.pop %v6354
    %v6356 = vmul.f32 %v5887, 1.442695
    %v6357 = vpow.pop %v6356
    %v6358 = vmul.f32 %v5888, 1.442695
    %v6359 = vpow.pop %v6358
    %v6360 = vmul.f32 %v5889, 1.442695
    %v6361 = vpow.pop %v6360
    %v6362 = vmul.f32 %v5890, 1.442695
    %v6363 = vpow.pop %v6362
    %v6364 = vmul.f32 %v5891, 1.442695
    %v6365 = vpow.pop %v6364
    %v6366 = vmul.f32 %v5892, 1.442695
    %v6367 = vpow.pop %v6366
    %v6368 = vmul.f32 %v5893, 1.442695
    %v6369 = vpow.pop %v6368
    %v6370 = vmul.f32 %v5894, 1.442695
    %v6371 = vpow.pop %v6370
    %v6372 = vmul.f32 %v5895, 1.442695
    %v6373 = vpow.pop %v6372
    %v6374 = vmul.f32 %v5896, 1.442695
    %v6375 = vpow.pop %v6374
    %v6376 = vmul.f32 %v5897, 1.442695
    %v6377 = vpow.pop %v6376
    %v6378 = vmul.f32 %v5898, 1.442695
    %v6379 = vpow.pop %v6378
    %v6380 = vmul.f32 %v5899, 1.442695
    %v6381 = vpow.pop %v6380
    %v6382 = vmul.f32 %v5900, 1.442695
    %v6383 = vpow.pop %v6382
    %v6384 = vmul.f32 %v5901, 1.442695
    %v6385 = vpow.pop %v6384
    %v6386 = vmul.f32 %v5902, 1.442695
    %v6387 = vpow.pop %v6386
    %v6388 = vmul.f32 %v5903, 1.442695
    %v6389 = vpow.pop %v6388
    %v6390 = vmul.f32 %v5904, 1.442695
    %v6391 = vpow.pop %v6390
    %v6392 = vmul.f32 %v5905, 1.442695
    %v6393 = vpow.pop %v6392
    %v6394 = vmul.f32 %v5906, 1.442695
    %v6395 = vpow.pop %v6394
    %v6396 = vmul.f32 %v5907, 1.442695
    %v6397 = vpow.pop %v6396
    %v6398 = vmul.f32 %v5908, 1.442695
    %v6399 = vpow.pop %v6398
    %v6400 = vmul.f32 %v5909, 1.442695
    %v6401 = vpow.pop %v6400
    %v6402 = vmul.f32 %v5910, 1.442695
    %v6403 = vpow.pop %v6402
    %v6404 = vmul.f32 %v5911, 1.442695
    %v6405 = vpow.pop %v6404
    %v6406 = vmul.f32 %v5912, 1.442695
    %v6407 = vpow.pop %v6406
    %v6408 = vmul.f32 %v5913, 1.442695
    %v6409 = vpow.pop %v6408
    %v6410 = vmul.f32 %v5914, 1.442695
    %v6411 = vpow.pop %v6410
    %v6412 = vmul.f32 %v5915, 1.442695
    %v6413 = vpow.pop %v6412
    %v6414 = vmul.f32 %v5916, 1.442695
    %v6415 = vpow.pop %v6414
    %v6416 = vmul.f32 %v5917, 1.442695
    %v6417 = vpow.pop %v6416
    %v6418 = vmul.f32 %v5918, 1.442695
    %v6419 = vpow.pop %v6418
    %v6420 = vmul.f32 %v5919, 1.442695
    %v6421 = vpow.pop %v6420
    %v6422 = vmul.f32 %v5920, 1.442695
    %v6423 = vpow.pop %v6422
    %v6424 = vmul.f32 %v5921, 1.442695
    %v6425 = vpow.pop %v6424
    %v6426 = vmul.f32 %v5922, 1.442695
    %v6427 = vpow.pop %v6426
    %v6428 = vmul.f32 %v5923, 1.442695
    %v6429 = vpow.pop %v6428
    %v6430 = vmul.f32 %v5924, 1.442695
    %v6431 = vpow.pop %v6430
    %v6432 = vmul.f32 %v5925, 1.442695
    %v6433 = vpow.pop %v6432
    %v6434 = vmul.f32 %v5926, 1.442695
    %v6435 = vpow.pop %v6434
    %v6436 = vmul.f32 %v5927, 1.442695
    %v6437 = vpow.pop %v6436
    %v6438 = vmul.f32 %v5928, 1.442695
    %v6439 = vpow.pop %v6438
    %v6440 = vmul.f32 %v5929, 1.442695
    %v6441 = vpow.pop %v6440
    %v6442 = vsel %vm4905, %v5931, 0.0
    %6443 = vadd.xlane.f32.xlu0 %v6442
    %v6444 = vpop.xlane.xlu0 %6443
    %v6445 = vsel %vm4905, %v5933, 0.0
    %6446 = vadd.xlane.f32.xlu0 %v6445
    %v6447 = vpop.xlane.xlu0 %6446
    %v6448 = vsel %vm4905, %v5935, 0.0
    %6449 = vadd.xlane.f32.xlu0 %v6448
    %v6450 = vpop.xlane.xlu0 %6449
    %v6451 = vsel %vm4905, %v5937, 0.0
    %6452 = vadd.xlane.f32.xlu0 %v6451
    %v6453 = vpop.xlane.xlu0 %6452
    %v6454 = vsel %vm4905, %v5939, 0.0
    %6455 = vadd.xlane.f32.xlu0 %v6454
    %v6456 = vpop.xlane.xlu0 %6455
    %v6457 = vsel %vm4905, %v5941, 0.0
    %6458 = vadd.xlane.f32.xlu0 %v6457
    %v6459 = vpop.xlane.xlu0 %6458
    %v6460 = vsel %vm4905, %v5943, 0.0
    %6461 = vadd.xlane.f32.xlu0 %v6460
    %v6462 = vpop.xlane.xlu0 %6461
    %v6463 = vsel %vm4905, %v5945, 0.0
    %6464 = vadd.xlane.f32.xlu0 %v6463
    %v6465 = vpop.xlane.xlu0 %6464
    %v6466 = vsel %vm4905, %v5947, 0.0
    %6467 = vadd.xlane.f32.xlu0 %v6466
    %v6468 = vpop.xlane.xlu0 %6467
    %v6469 = vsel %vm4905, %v5949, 0.0
    %6470 = vadd.xlane.f32.xlu0 %v6469
    %v6471 = vpop.xlane.xlu0 %6470
    %v6472 = vsel %vm4905, %v5951, 0.0
    %6473 = vadd.xlane.f32.xlu0 %v6472
    %v6474 = vpop.xlane.xlu0 %6473
    %v6475 = vsel %vm4905, %v5953, 0.0
    %6476 = vadd.xlane.f32.xlu0 %v6475
    %v6477 = vpop.xlane.xlu0 %6476
    %v6478 = vsel %vm4905, %v5955, 0.0
    %6479 = vadd.xlane.f32.xlu0 %v6478
    %v6480 = vpop.xlane.xlu0 %6479
    %v6481 = vsel %vm4905, %v5957, 0.0
    %6482 = vadd.xlane.f32.xlu0 %v6481
    %v6483 = vpop.xlane.xlu0 %6482
    %v6484 = vsel %vm4905, %v5959, 0.0
    %6485 = vadd.xlane.f32.xlu0 %v6484
    %v6486 = vpop.xlane.xlu0 %6485
    %v6487 = vsel %vm4905, %v5961, 0.0
    %6488 = vadd.xlane.f32.xlu0 %v6487
    %v6489 = vpop.xlane.xlu0 %6488
    %v6490 = vsel %vm4905, %v5963, 0.0
    %6491 = vadd.xlane.f32.xlu0 %v6490
    %v6492 = vpop.xlane.xlu0 %6491
    %v6493 = vsel %vm4905, %v5965, 0.0
    %6494 = vadd.xlane.f32.xlu0 %v6493
    %v6495 = vpop.xlane.xlu0 %6494
    %v6496 = vsel %vm4905, %v5967, 0.0
    %6497 = vadd.xlane.f32.xlu0 %v6496
    %v6498 = vpop.xlane.xlu0 %6497
    %v6499 = vsel %vm4905, %v5969, 0.0
    %6500 = vadd.xlane.f32.xlu0 %v6499
    %v6501 = vpop.xlane.xlu0 %6500
    %v6502 = vsel %vm4905, %v5971, 0.0
    %6503 = vadd.xlane.f32.xlu0 %v6502
    %v6504 = vpop.xlane.xlu0 %6503
    %v6505 = vsel %vm4905, %v5973, 0.0
    %6506 = vadd.xlane.f32.xlu0 %v6505
    %v6507 = vpop.xlane.xlu0 %6506
    %v6508 = vsel %vm4905, %v5975, 0.0
    %6509 = vadd.xlane.f32.xlu0 %v6508
    %v6510 = vpop.xlane.xlu0 %6509
    %v6511 = vsel %vm4905, %v5977, 0.0
    %6512 = vadd.xlane.f32.xlu0 %v6511
    %v6513 = vpop.xlane.xlu0 %6512
    %v6514 = vsel %vm4905, %v5979, 0.0
    %6515 = vadd.xlane.f32.xlu0 %v6514
    %v6516 = vpop.xlane.xlu0 %6515
    %v6517 = vsel %vm4905, %v5981, 0.0
    %6518 = vadd.xlane.f32.xlu0 %v6517
    %v6519 = vpop.xlane.xlu0 %6518
    %v6520 = vsel %vm4905, %v5983, 0.0
    %6521 = vadd.xlane.f32.xlu0 %v6520
    %v6522 = vpop.xlane.xlu0 %6521
    %v6523 = vsel %vm4905, %v5985, 0.0
    %6524 = vadd.xlane.f32.xlu0 %v6523
    %v6525 = vpop.xlane.xlu0 %6524
    %v6526 = vsel %vm4905, %v5987, 0.0
    %6527 = vadd.xlane.f32.xlu0 %v6526
    %v6528 = vpop.xlane.xlu0 %6527
    %v6529 = vsel %vm4905, %v5989, 0.0
    %6530 = vadd.xlane.f32.xlu0 %v6529
    %v6531 = vpop.xlane.xlu0 %6530
    %v6532 = vsel %vm4905, %v5991, 0.0
    %6533 = vadd.xlane.f32.xlu0 %v6532
    %v6534 = vpop.xlane.xlu0 %6533
    %v6535 = vsel %vm4905, %v5993, 0.0
    %6536 = vadd.xlane.f32.xlu0 %v6535
    %v6537 = vpop.xlane.xlu0 %6536
    %v6538 = vsel %vm4905, %v5995, 0.0
    %6539 = vadd.xlane.f32.xlu0 %v6538
    %v6540 = vpop.xlane.xlu0 %6539
    %v6541 = vsel %vm4905, %v5997, 0.0
    %6542 = vadd.xlane.f32.xlu0 %v6541
    %v6543 = vpop.xlane.xlu0 %6542
    %v6544 = vsel %vm4905, %v5999, 0.0
    %6545 = vadd.xlane.f32.xlu0 %v6544
    %v6546 = vpop.xlane.xlu0 %6545
    %v6547 = vsel %vm4905, %v6001, 0.0
    %6548 = vadd.xlane.f32.xlu0 %v6547
    %v6549 = vpop.xlane.xlu0 %6548
    %v6550 = vsel %vm4905, %v6003, 0.0
    %6551 = vadd.xlane.f32.xlu0 %v6550
    %v6552 = vpop.xlane.xlu0 %6551
    %v6553 = vsel %vm4905, %v6005, 0.0
    %6554 = vadd.xlane.f32.xlu0 %v6553
    %v6555 = vpop.xlane.xlu0 %6554
    %v6556 = vsel %vm4905, %v6007, 0.0
    %6557 = vadd.xlane.f32.xlu0 %v6556
    %v6558 = vpop.xlane.xlu0 %6557
    %v6559 = vsel %vm4905, %v6009, 0.0
    %6560 = vadd.xlane.f32.xlu0 %v6559
    %v6561 = vpop.xlane.xlu0 %6560
    %v6562 = vsel %vm4905, %v6011, 0.0
    %6563 = vadd.xlane.f32.xlu0 %v6562
    %v6564 = vpop.xlane.xlu0 %6563
    %v6565 = vsel %vm4905, %v6013, 0.0
    %6566 = vadd.xlane.f32.xlu0 %v6565
    %v6567 = vpop.xlane.xlu0 %6566
    %v6568 = vsel %vm4905, %v6015, 0.0
    %6569 = vadd.xlane.f32.xlu0 %v6568
    %v6570 = vpop.xlane.xlu0 %6569
    %v6571 = vsel %vm4905, %v6017, 0.0
    %6572 = vadd.xlane.f32.xlu0 %v6571
    %v6573 = vpop.xlane.xlu0 %6572
    %v6574 = vsel %vm4905, %v6019, 0.0
    %6575 = vadd.xlane.f32.xlu0 %v6574
    %v6576 = vpop.xlane.xlu0 %6575
    %v6577 = vsel %vm4905, %v6021, 0.0
    %6578 = vadd.xlane.f32.xlu0 %v6577
    %v6579 = vpop.xlane.xlu0 %6578
    %v6580 = vsel %vm4905, %v6023, 0.0
    %6581 = vadd.xlane.f32.xlu0 %v6580
    %v6582 = vpop.xlane.xlu0 %6581
    %v6583 = vsel %vm4905, %v6025, 0.0
    %6584 = vadd.xlane.f32.xlu0 %v6583
    %v6585 = vpop.xlane.xlu0 %6584
    %v6586 = vsel %vm4905, %v6027, 0.0
    %6587 = vadd.xlane.f32.xlu0 %v6586
    %v6588 = vpop.xlane.xlu0 %6587
    %v6589 = vsel %vm4905, %v6029, 0.0
    %6590 = vadd.xlane.f32.xlu0 %v6589
    %v6591 = vpop.xlane.xlu0 %6590
    %v6592 = vsel %vm4905, %v6031, 0.0
    %6593 = vadd.xlane.f32.xlu0 %v6592
    %v6594 = vpop.xlane.xlu0 %6593
    %v6595 = vsel %vm4905, %v6033, 0.0
    %6596 = vadd.xlane.f32.xlu0 %v6595
    %v6597 = vpop.xlane.xlu0 %6596
    %v6598 = vsel %vm4905, %v6035, 0.0
    %6599 = vadd.xlane.f32.xlu0 %v6598
    %v6600 = vpop.xlane.xlu0 %6599
    %v6601 = vsel %vm4905, %v6037, 0.0
    %6602 = vadd.xlane.f32.xlu0 %v6601
    %v6603 = vpop.xlane.xlu0 %6602
    %v6604 = vsel %vm4905, %v6039, 0.0
    %6605 = vadd.xlane.f32.xlu0 %v6604
    %v6606 = vpop.xlane.xlu0 %6605
    %v6607 = vsel %vm4905, %v6041, 0.0
    %6608 = vadd.xlane.f32.xlu0 %v6607
    %v6609 = vpop.xlane.xlu0 %6608
    %v6610 = vsel %vm4905, %v6043, 0.0
    %6611 = vadd.xlane.f32.xlu0 %v6610
    %v6612 = vpop.xlane.xlu0 %6611
    %v6613 = vsel %vm4905, %v6045, 0.0
    %6614 = vadd.xlane.f32.xlu0 %v6613
    %v6615 = vpop.xlane.xlu0 %6614
    %v6616 = vsel %vm4905, %v6047, 0.0
    %6617 = vadd.xlane.f32.xlu0 %v6616
    %v6618 = vpop.xlane.xlu0 %6617
    %v6619 = vsel %vm4905, %v6049, 0.0
    %6620 = vadd.xlane.f32.xlu0 %v6619
    %v6621 = vpop.xlane.xlu0 %6620
    %v6622 = vsel %vm4905, %v6051, 0.0
    %6623 = vadd.xlane.f32.xlu0 %v6622
    %v6624 = vpop.xlane.xlu0 %6623
    %v6625 = vsel %vm4905, %v6053, 0.0
    %6626 = vadd.xlane.f32.xlu0 %v6625
    %v6627 = vpop.xlane.xlu0 %6626
    %v6628 = vsel %vm4905, %v6055, 0.0
    %6629 = vadd.xlane.f32.xlu0 %v6628
    %v6630 = vpop.xlane.xlu0 %6629
    %v6631 = vsel %vm4905, %v6057, 0.0
    %6632 = vadd.xlane.f32.xlu0 %v6631
    %v6633 = vpop.xlane.xlu0 %6632
    %v6634 = vsel %vm4905, %v6059, 0.0
    %6635 = vadd.xlane.f32.xlu0 %v6634
    %v6636 = vpop.xlane.xlu0 %6635
    %v6637 = vsel %vm4905, %v6061, 0.0
    %6638 = vadd.xlane.f32.xlu0 %v6637
    %v6639 = vpop.xlane.xlu0 %6638
    %v6640 = vsel %vm4905, %v6063, 0.0
    %6641 = vadd.xlane.f32.xlu0 %v6640
    %v6642 = vpop.xlane.xlu0 %6641
    %v6643 = vsel %vm4905, %v6065, 0.0
    %6644 = vadd.xlane.f32.xlu0 %v6643
    %v6645 = vpop.xlane.xlu0 %6644
    %v6646 = vsel %vm4905, %v6067, 0.0
    %6647 = vadd.xlane.f32.xlu0 %v6646
    %v6648 = vpop.xlane.xlu0 %6647
    %v6649 = vsel %vm4905, %v6069, 0.0
    %6650 = vadd.xlane.f32.xlu0 %v6649
    %v6651 = vpop.xlane.xlu0 %6650
    %v6652 = vsel %vm4905, %v6071, 0.0
    %6653 = vadd.xlane.f32.xlu0 %v6652
    %v6654 = vpop.xlane.xlu0 %6653
    %v6655 = vsel %vm4905, %v6073, 0.0
    %6656 = vadd.xlane.f32.xlu0 %v6655
    %v6657 = vpop.xlane.xlu0 %6656
    %v6658 = vsel %vm4905, %v6075, 0.0
    %6659 = vadd.xlane.f32.xlu0 %v6658
    %v6660 = vpop.xlane.xlu0 %6659
    %v6661 = vsel %vm4905, %v6077, 0.0
    %6662 = vadd.xlane.f32.xlu0 %v6661
    %v6663 = vpop.xlane.xlu0 %6662
    %v6664 = vsel %vm4905, %v6079, 0.0
    %6665 = vadd.xlane.f32.xlu0 %v6664
    %v6666 = vpop.xlane.xlu0 %6665
    %v6667 = vsel %vm4905, %v6081, 0.0
    %6668 = vadd.xlane.f32.xlu0 %v6667
    %v6669 = vpop.xlane.xlu0 %6668
    %v6670 = vsel %vm4905, %v6083, 0.0
    %6671 = vadd.xlane.f32.xlu0 %v6670
    %v6672 = vpop.xlane.xlu0 %6671
    %v6673 = vsel %vm4905, %v6085, 0.0
    %6674 = vadd.xlane.f32.xlu0 %v6673
    %v6675 = vpop.xlane.xlu0 %6674
    %v6676 = vsel %vm4905, %v6087, 0.0
    %6677 = vadd.xlane.f32.xlu0 %v6676
    %v6678 = vpop.xlane.xlu0 %6677
    %v6679 = vsel %vm4905, %v6089, 0.0
    %6680 = vadd.xlane.f32.xlu0 %v6679
    %v6681 = vpop.xlane.xlu0 %6680
    %v6682 = vsel %vm4905, %v6091, 0.0
    %6683 = vadd.xlane.f32.xlu0 %v6682
    %v6684 = vpop.xlane.xlu0 %6683
    %v6685 = vsel %vm4905, %v6093, 0.0
    %6686 = vadd.xlane.f32.xlu0 %v6685
    %v6687 = vpop.xlane.xlu0 %6686
    %v6688 = vsel %vm4905, %v6095, 0.0
    %6689 = vadd.xlane.f32.xlu0 %v6688
    %v6690 = vpop.xlane.xlu0 %6689
    %v6691 = vsel %vm4905, %v6097, 0.0
    %6692 = vadd.xlane.f32.xlu0 %v6691
    %v6693 = vpop.xlane.xlu0 %6692
    %v6694 = vsel %vm4905, %v6099, 0.0
    %6695 = vadd.xlane.f32.xlu0 %v6694
    %v6696 = vpop.xlane.xlu0 %6695
    %v6697 = vsel %vm4905, %v6101, 0.0
    %6698 = vadd.xlane.f32.xlu0 %v6697
    %v6699 = vpop.xlane.xlu0 %6698
    %v6700 = vsel %vm4905, %v6103, 0.0
    %6701 = vadd.xlane.f32.xlu0 %v6700
    %v6702 = vpop.xlane.xlu0 %6701
    %v6703 = vsel %vm4905, %v6105, 0.0
    %6704 = vadd.xlane.f32.xlu0 %v6703
    %v6705 = vpop.xlane.xlu0 %6704
    %v6706 = vsel %vm4905, %v6107, 0.0
    %6707 = vadd.xlane.f32.xlu0 %v6706
    %v6708 = vpop.xlane.xlu0 %6707
    %v6709 = vsel %vm4905, %v6109, 0.0
    %6710 = vadd.xlane.f32.xlu0 %v6709
    %v6711 = vpop.xlane.xlu0 %6710
    %v6712 = vsel %vm4905, %v6111, 0.0
    %6713 = vadd.xlane.f32.xlu0 %v6712
    %v6714 = vpop.xlane.xlu0 %6713
    %v6715 = vsel %vm4905, %v6113, 0.0
    %6716 = vadd.xlane.f32.xlu0 %v6715
    %v6717 = vpop.xlane.xlu0 %6716
    %v6718 = vsel %vm4905, %v6115, 0.0
    %6719 = vadd.xlane.f32.xlu0 %v6718
    %v6720 = vpop.xlane.xlu0 %6719
    %v6721 = vsel %vm4905, %v6117, 0.0
    %6722 = vadd.xlane.f32.xlu0 %v6721
    %v6723 = vpop.xlane.xlu0 %6722
    %v6724 = vsel %vm4905, %v6119, 0.0
    %6725 = vadd.xlane.f32.xlu0 %v6724
    %v6726 = vpop.xlane.xlu0 %6725
    %v6727 = vsel %vm4905, %v6121, 0.0
    %6728 = vadd.xlane.f32.xlu0 %v6727
    %v6729 = vpop.xlane.xlu0 %6728
    %v6730 = vsel %vm4905, %v6123, 0.0
    %6731 = vadd.xlane.f32.xlu0 %v6730
    %v6732 = vpop.xlane.xlu0 %6731
    %v6733 = vsel %vm4905, %v6125, 0.0
    %6734 = vadd.xlane.f32.xlu0 %v6733
    %v6735 = vpop.xlane.xlu0 %6734
    %v6736 = vsel %vm4905, %v6127, 0.0
    %6737 = vadd.xlane.f32.xlu0 %v6736
    %v6738 = vpop.xlane.xlu0 %6737
    %v6739 = vsel %vm4905, %v6129, 0.0
    %6740 = vadd.xlane.f32.xlu0 %v6739
    %v6741 = vpop.xlane.xlu0 %6740
    %v6742 = vsel %vm4905, %v6131, 0.0
    %6743 = vadd.xlane.f32.xlu0 %v6742
    %v6744 = vpop.xlane.xlu0 %6743
    %v6745 = vsel %vm4905, %v6133, 0.0
    %6746 = vadd.xlane.f32.xlu0 %v6745
    %v6747 = vpop.xlane.xlu0 %6746
    %v6748 = vsel %vm4905, %v6135, 0.0
    %6749 = vadd.xlane.f32.xlu0 %v6748
    %v6750 = vpop.xlane.xlu0 %6749
    %v6751 = vsel %vm4905, %v6137, 0.0
    %6752 = vadd.xlane.f32.xlu0 %v6751
    %v6753 = vpop.xlane.xlu0 %6752
    %v6754 = vsel %vm4905, %v6139, 0.0
    %6755 = vadd.xlane.f32.xlu0 %v6754
    %v6756 = vpop.xlane.xlu0 %6755
    %v6757 = vsel %vm4905, %v6141, 0.0
    %6758 = vadd.xlane.f32.xlu0 %v6757
    %v6759 = vpop.xlane.xlu0 %6758
    %v6760 = vsel %vm4905, %v6143, 0.0
    %6761 = vadd.xlane.f32.xlu0 %v6760
    %v6762 = vpop.xlane.xlu0 %6761
    %v6763 = vsel %vm4905, %v6145, 0.0
    %6764 = vadd.xlane.f32.xlu0 %v6763
    %v6765 = vpop.xlane.xlu0 %6764
    %v6766 = vsel %vm4905, %v6147, 0.0
    %6767 = vadd.xlane.f32.xlu0 %v6766
    %v6768 = vpop.xlane.xlu0 %6767
    %v6769 = vsel %vm4905, %v6149, 0.0
    %6770 = vadd.xlane.f32.xlu0 %v6769
    %v6771 = vpop.xlane.xlu0 %6770
    %v6772 = vsel %vm4905, %v6151, 0.0
    %6773 = vadd.xlane.f32.xlu0 %v6772
    %v6774 = vpop.xlane.xlu0 %6773
    %v6775 = vsel %vm4905, %v6153, 0.0
    %6776 = vadd.xlane.f32.xlu0 %v6775
    %v6777 = vpop.xlane.xlu0 %6776
    %v6778 = vsel %vm4905, %v6155, 0.0
    %6779 = vadd.xlane.f32.xlu0 %v6778
    %v6780 = vpop.xlane.xlu0 %6779
    %v6781 = vsel %vm4905, %v6157, 0.0
    %6782 = vadd.xlane.f32.xlu0 %v6781
    %v6783 = vpop.xlane.xlu0 %6782
    %v6784 = vsel %vm4905, %v6159, 0.0
    %6785 = vadd.xlane.f32.xlu0 %v6784
    %v6786 = vpop.xlane.xlu0 %6785
    %v6787 = vsel %vm4905, %v6161, 0.0
    %6788 = vadd.xlane.f32.xlu0 %v6787
    %v6789 = vpop.xlane.xlu0 %6788
    %v6790 = vsel %vm4905, %v6163, 0.0
    %6791 = vadd.xlane.f32.xlu0 %v6790
    %v6792 = vpop.xlane.xlu0 %6791
    %v6793 = vsel %vm4905, %v6165, 0.0
    %6794 = vadd.xlane.f32.xlu0 %v6793
    %v6795 = vpop.xlane.xlu0 %6794
    %v6796 = vsel %vm4905, %v6167, 0.0
    %6797 = vadd.xlane.f32.xlu0 %v6796
    %v6798 = vpop.xlane.xlu0 %6797
    %v6799 = vsel %vm4905, %v6169, 0.0
    %6800 = vadd.xlane.f32.xlu0 %v6799
    %v6801 = vpop.xlane.xlu0 %6800
    %v6802 = vsel %vm4905, %v6171, 0.0
    %6803 = vadd.xlane.f32.xlu0 %v6802
    %v6804 = vpop.xlane.xlu0 %6803
    %v6805 = vsel %vm4905, %v6173, 0.0
    %6806 = vadd.xlane.f32.xlu0 %v6805
    %v6807 = vpop.xlane.xlu0 %6806
    %v6808 = vsel %vm4905, %v6175, 0.0
    %6809 = vadd.xlane.f32.xlu0 %v6808
    %v6810 = vpop.xlane.xlu0 %6809
    %v6811 = vsel %vm4905, %v6177, 0.0
    %6812 = vadd.xlane.f32.xlu0 %v6811
    %v6813 = vpop.xlane.xlu0 %6812
    %v6814 = vsel %vm4905, %v6179, 0.0
    %6815 = vadd.xlane.f32.xlu0 %v6814
    %v6816 = vpop.xlane.xlu0 %6815
    %v6817 = vsel %vm4905, %v6181, 0.0
    %6818 = vadd.xlane.f32.xlu0 %v6817
    %v6819 = vpop.xlane.xlu0 %6818
    %v6820 = vsel %vm4905, %v6183, 0.0
    %6821 = vadd.xlane.f32.xlu0 %v6820
    %v6822 = vpop.xlane.xlu0 %6821
    %v6823 = vsel %vm4905, %v6185, 0.0
    %6824 = vadd.xlane.f32.xlu0 %v6823
    %v6825 = vpop.xlane.xlu0 %6824
    %v6826 = vsel %vm4905, %v6187, 0.0
    %6827 = vadd.xlane.f32.xlu0 %v6826
    %v6828 = vpop.xlane.xlu0 %6827
    %v6829 = vsel %vm4905, %v6189, 0.0
    %6830 = vadd.xlane.f32.xlu0 %v6829
    %v6831 = vpop.xlane.xlu0 %6830
    %v6832 = vsel %vm4905, %v6191, 0.0
    %6833 = vadd.xlane.f32.xlu0 %v6832
    %v6834 = vpop.xlane.xlu0 %6833
    %v6835 = vsel %vm4905, %v6193, 0.0
    %6836 = vadd.xlane.f32.xlu0 %v6835
    %v6837 = vpop.xlane.xlu0 %6836
    %v6838 = vsel %vm4905, %v6195, 0.0
    %6839 = vadd.xlane.f32.xlu0 %v6838
    %v6840 = vpop.xlane.xlu0 %6839
    %v6841 = vsel %vm4905, %v6197, 0.0
    %6842 = vadd.xlane.f32.xlu0 %v6841
    %v6843 = vpop.xlane.xlu0 %6842
    %v6844 = vsel %vm4905, %v6199, 0.0
    %6845 = vadd.xlane.f32.xlu0 %v6844
    %v6846 = vpop.xlane.xlu0 %6845
    %v6847 = vsel %vm4905, %v6201, 0.0
    %6848 = vadd.xlane.f32.xlu0 %v6847
    %v6849 = vpop.xlane.xlu0 %6848
    %v6850 = vsel %vm4905, %v6203, 0.0
    %6851 = vadd.xlane.f32.xlu0 %v6850
    %v6852 = vpop.xlane.xlu0 %6851
    %v6853 = vsel %vm4905, %v6205, 0.0
    %6854 = vadd.xlane.f32.xlu0 %v6853
    %v6855 = vpop.xlane.xlu0 %6854
    %v6856 = vsel %vm4905, %v6207, 0.0
    %6857 = vadd.xlane.f32.xlu0 %v6856
    %v6858 = vpop.xlane.xlu0 %6857
    %v6859 = vsel %vm4905, %v6209, 0.0
    %6860 = vadd.xlane.f32.xlu0 %v6859
    %v6861 = vpop.xlane.xlu0 %6860
    %v6862 = vsel %vm4905, %v6211, 0.0
    %6863 = vadd.xlane.f32.xlu0 %v6862
    %v6864 = vpop.xlane.xlu0 %6863
    %v6865 = vsel %vm4905, %v6213, 0.0
    %6866 = vadd.xlane.f32.xlu0 %v6865
    %v6867 = vpop.xlane.xlu0 %6866
    %v6868 = vsel %vm4905, %v6215, 0.0
    %6869 = vadd.xlane.f32.xlu0 %v6868
    %v6870 = vpop.xlane.xlu0 %6869
    %v6871 = vsel %vm4905, %v6217, 0.0
    %6872 = vadd.xlane.f32.xlu0 %v6871
    %v6873 = vpop.xlane.xlu0 %6872
    %v6874 = vsel %vm4905, %v6219, 0.0
    %6875 = vadd.xlane.f32.xlu0 %v6874
    %v6876 = vpop.xlane.xlu0 %6875
    %v6877 = vsel %vm4905, %v6221, 0.0
    %6878 = vadd.xlane.f32.xlu0 %v6877
    %v6879 = vpop.xlane.xlu0 %6878
    %v6880 = vsel %vm4905, %v6223, 0.0
    %6881 = vadd.xlane.f32.xlu0 %v6880
    %v6882 = vpop.xlane.xlu0 %6881
    %v6883 = vsel %vm4905, %v6225, 0.0
    %6884 = vadd.xlane.f32.xlu0 %v6883
    %v6885 = vpop.xlane.xlu0 %6884
    %v6886 = vsel %vm4905, %v6227, 0.0
    %6887 = vadd.xlane.f32.xlu0 %v6886
    %v6888 = vpop.xlane.xlu0 %6887
    %v6889 = vsel %vm4905, %v6229, 0.0
    %6890 = vadd.xlane.f32.xlu0 %v6889
    %v6891 = vpop.xlane.xlu0 %6890
    %v6892 = vsel %vm4905, %v6231, 0.0
    %6893 = vadd.xlane.f32.xlu0 %v6892
    %v6894 = vpop.xlane.xlu0 %6893
    %v6895 = vsel %vm4905, %v6233, 0.0
    %6896 = vadd.xlane.f32.xlu0 %v6895
    %v6897 = vpop.xlane.xlu0 %6896
    %v6898 = vsel %vm4905, %v6235, 0.0
    %6899 = vadd.xlane.f32.xlu0 %v6898
    %v6900 = vpop.xlane.xlu0 %6899
    %v6901 = vsel %vm4905, %v6237, 0.0
    %6902 = vadd.xlane.f32.xlu0 %v6901
    %v6903 = vpop.xlane.xlu0 %6902
    %v6904 = vsel %vm4905, %v6239, 0.0
    %6905 = vadd.xlane.f32.xlu0 %v6904
    %v6906 = vpop.xlane.xlu0 %6905
    %v6907 = vsel %vm4905, %v6241, 0.0
    %6908 = vadd.xlane.f32.xlu0 %v6907
    %v6909 = vpop.xlane.xlu0 %6908
    %v6910 = vsel %vm4905, %v6243, 0.0
    %6911 = vadd.xlane.f32.xlu0 %v6910
    %v6912 = vpop.xlane.xlu0 %6911
    %v6913 = vsel %vm4905, %v6245, 0.0
    %6914 = vadd.xlane.f32.xlu0 %v6913
    %v6915 = vpop.xlane.xlu0 %6914
    %v6916 = vsel %vm4905, %v6247, 0.0
    %6917 = vadd.xlane.f32.xlu0 %v6916
    %v6918 = vpop.xlane.xlu0 %6917
    %v6919 = vsel %vm4905, %v6249, 0.0
    %6920 = vadd.xlane.f32.xlu0 %v6919
    %v6921 = vpop.xlane.xlu0 %6920
    %v6922 = vsel %vm4905, %v6251, 0.0
    %6923 = vadd.xlane.f32.xlu0 %v6922
    %v6924 = vpop.xlane.xlu0 %6923
    %v6925 = vsel %vm4905, %v6253, 0.0
    %6926 = vadd.xlane.f32.xlu0 %v6925
    %v6927 = vpop.xlane.xlu0 %6926
    %v6928 = vsel %vm4905, %v6255, 0.0
    %6929 = vadd.xlane.f32.xlu0 %v6928
    %v6930 = vpop.xlane.xlu0 %6929
    %v6931 = vsel %vm4905, %v6257, 0.0
    %6932 = vadd.xlane.f32.xlu0 %v6931
    %v6933 = vpop.xlane.xlu0 %6932
    %v6934 = vsel %vm4905, %v6259, 0.0
    %6935 = vadd.xlane.f32.xlu0 %v6934
    %v6936 = vpop.xlane.xlu0 %6935
    %v6937 = vsel %vm4905, %v6261, 0.0
    %6938 = vadd.xlane.f32.xlu0 %v6937
    %v6939 = vpop.xlane.xlu0 %6938
    %v6940 = vsel %vm4905, %v6263, 0.0
    %6941 = vadd.xlane.f32.xlu0 %v6940
    %v6942 = vpop.xlane.xlu0 %6941
    %v6943 = vsel %vm4905, %v6265, 0.0
    %6944 = vadd.xlane.f32.xlu0 %v6943
    %v6945 = vpop.xlane.xlu0 %6944
    %v6946 = vsel %vm4905, %v6267, 0.0
    %6947 = vadd.xlane.f32.xlu0 %v6946
    %v6948 = vpop.xlane.xlu0 %6947
    %v6949 = vsel %vm4905, %v6269, 0.0
    %6950 = vadd.xlane.f32.xlu0 %v6949
    %v6951 = vpop.xlane.xlu0 %6950
    %v6952 = vsel %vm4905, %v6271, 0.0
    %6953 = vadd.xlane.f32.xlu0 %v6952
    %v6954 = vpop.xlane.xlu0 %6953
    %v6955 = vsel %vm4905, %v6273, 0.0
    %6956 = vadd.xlane.f32.xlu0 %v6955
    %v6957 = vpop.xlane.xlu0 %6956
    %v6958 = vsel %vm4905, %v6275, 0.0
    %6959 = vadd.xlane.f32.xlu0 %v6958
    %v6960 = vpop.xlane.xlu0 %6959
    %v6961 = vsel %vm4905, %v6277, 0.0
    %6962 = vadd.xlane.f32.xlu0 %v6961
    %v6963 = vpop.xlane.xlu0 %6962
    %v6964 = vsel %vm4905, %v6279, 0.0
    %6965 = vadd.xlane.f32.xlu0 %v6964
    %v6966 = vpop.xlane.xlu0 %6965
    %v6967 = vsel %vm4905, %v6281, 0.0
    %6968 = vadd.xlane.f32.xlu0 %v6967
    %v6969 = vpop.xlane.xlu0 %6968
    %v6970 = vsel %vm4905, %v6283, 0.0
    %6971 = vadd.xlane.f32.xlu0 %v6970
    %v6972 = vpop.xlane.xlu0 %6971
    %v6973 = vsel %vm4905, %v6285, 0.0
    %6974 = vadd.xlane.f32.xlu0 %v6973
    %v6975 = vpop.xlane.xlu0 %6974
    %v6976 = vsel %vm4905, %v6287, 0.0
    %6977 = vadd.xlane.f32.xlu0 %v6976
    %v6978 = vpop.xlane.xlu0 %6977
    %v6979 = vsel %vm4905, %v6289, 0.0
    %6980 = vadd.xlane.f32.xlu0 %v6979
    %v6981 = vpop.xlane.xlu0 %6980
    %v6982 = vsel %vm4905, %v6291, 0.0
    %6983 = vadd.xlane.f32.xlu0 %v6982
    %v6984 = vpop.xlane.xlu0 %6983
    %v6985 = vsel %vm4905, %v6293, 0.0
    %6986 = vadd.xlane.f32.xlu0 %v6985
    %v6987 = vpop.xlane.xlu0 %6986
    %v6988 = vsel %vm4905, %v6295, 0.0
    %6989 = vadd.xlane.f32.xlu0 %v6988
    %v6990 = vpop.xlane.xlu0 %6989
    %v6991 = vsel %vm4905, %v6297, 0.0
    %6992 = vadd.xlane.f32.xlu0 %v6991
    %v6993 = vpop.xlane.xlu0 %6992
    %v6994 = vsel %vm4905, %v6299, 0.0
    %6995 = vadd.xlane.f32.xlu0 %v6994
    %v6996 = vpop.xlane.xlu0 %6995
    %v6997 = vsel %vm4905, %v6301, 0.0
    %6998 = vadd.xlane.f32.xlu0 %v6997
    %v6999 = vpop.xlane.xlu0 %6998
    %v7000 = vsel %vm4905, %v6303, 0.0
    %7001 = vadd.xlane.f32.xlu0 %v7000
    %v7002 = vpop.xlane.xlu0 %7001
    %v7003 = vsel %vm4905, %v6305, 0.0
    %7004 = vadd.xlane.f32.xlu0 %v7003
    %v7005 = vpop.xlane.xlu0 %7004
    %v7006 = vsel %vm4905, %v6307, 0.0
    %7007 = vadd.xlane.f32.xlu0 %v7006
    %v7008 = vpop.xlane.xlu0 %7007
    %v7009 = vsel %vm4905, %v6309, 0.0
    %7010 = vadd.xlane.f32.xlu0 %v7009
    %v7011 = vpop.xlane.xlu0 %7010
    %v7012 = vsel %vm4905, %v6311, 0.0
    %7013 = vadd.xlane.f32.xlu0 %v7012
    %v7014 = vpop.xlane.xlu0 %7013
    %v7015 = vsel %vm4905, %v6313, 0.0
    %7016 = vadd.xlane.f32.xlu0 %v7015
    %v7017 = vpop.xlane.xlu0 %7016
    %v7018 = vsel %vm4905, %v6315, 0.0
    %7019 = vadd.xlane.f32.xlu0 %v7018
    %v7020 = vpop.xlane.xlu0 %7019
    %v7021 = vsel %vm4905, %v6317, 0.0
    %7022 = vadd.xlane.f32.xlu0 %v7021
    %v7023 = vpop.xlane.xlu0 %7022
    %v7024 = vsel %vm4905, %v6319, 0.0
    %7025 = vadd.xlane.f32.xlu0 %v7024
    %v7026 = vpop.xlane.xlu0 %7025
    %v7027 = vsel %vm4905, %v6321, 0.0
    %7028 = vadd.xlane.f32.xlu0 %v7027
    %v7029 = vpop.xlane.xlu0 %7028
    %v7030 = vsel %vm4905, %v6323, 0.0
    %7031 = vadd.xlane.f32.xlu0 %v7030
    %v7032 = vpop.xlane.xlu0 %7031
    %v7033 = vsel %vm4905, %v6325, 0.0
    %7034 = vadd.xlane.f32.xlu0 %v7033
    %v7035 = vpop.xlane.xlu0 %7034
    %v7036 = vsel %vm4905, %v6327, 0.0
    %7037 = vadd.xlane.f32.xlu0 %v7036
    %v7038 = vpop.xlane.xlu0 %7037
    %v7039 = vsel %vm4905, %v6329, 0.0
    %7040 = vadd.xlane.f32.xlu0 %v7039
    %v7041 = vpop.xlane.xlu0 %7040
    %v7042 = vsel %vm4905, %v6331, 0.0
    %7043 = vadd.xlane.f32.xlu0 %v7042
    %v7044 = vpop.xlane.xlu0 %7043
    %v7045 = vsel %vm4905, %v6333, 0.0
    %7046 = vadd.xlane.f32.xlu0 %v7045
    %v7047 = vpop.xlane.xlu0 %7046
    %v7048 = vsel %vm4905, %v6335, 0.0
    %7049 = vadd.xlane.f32.xlu0 %v7048
    %v7050 = vpop.xlane.xlu0 %7049
    %v7051 = vsel %vm4905, %v6337, 0.0
    %7052 = vadd.xlane.f32.xlu0 %v7051
    %v7053 = vpop.xlane.xlu0 %7052
    %v7054 = vsel %vm4905, %v6339, 0.0
    %7055 = vadd.xlane.f32.xlu0 %v7054
    %v7056 = vpop.xlane.xlu0 %7055
    %v7057 = vsel %vm4905, %v6341, 0.0
    %7058 = vadd.xlane.f32.xlu0 %v7057
    %v7059 = vpop.xlane.xlu0 %7058
    %v7060 = vsel %vm4905, %v6343, 0.0
    %7061 = vadd.xlane.f32.xlu0 %v7060
    %v7062 = vpop.xlane.xlu0 %7061
    %v7063 = vsel %vm4905, %v6345, 0.0
    %7064 = vadd.xlane.f32.xlu0 %v7063
    %v7065 = vpop.xlane.xlu0 %7064
    %v7066 = vsel %vm4905, %v6347, 0.0
    %7067 = vadd.xlane.f32.xlu0 %v7066
    %v7068 = vpop.xlane.xlu0 %7067
    %v7069 = vsel %vm4905, %v6349, 0.0
    %7070 = vadd.xlane.f32.xlu0 %v7069
    %v7071 = vpop.xlane.xlu0 %7070
    %v7072 = vsel %vm4905, %v6351, 0.0
    %7073 = vadd.xlane.f32.xlu0 %v7072
    %v7074 = vpop.xlane.xlu0 %7073
    %v7075 = vsel %vm4905, %v6353, 0.0
    %7076 = vadd.xlane.f32.xlu0 %v7075
    %v7077 = vpop.xlane.xlu0 %7076
    %v7078 = vsel %vm4905, %v6355, 0.0
    %7079 = vadd.xlane.f32.xlu0 %v7078
    %v7080 = vpop.xlane.xlu0 %7079
    %v7081 = vsel %vm4905, %v6357, 0.0
    %7082 = vadd.xlane.f32.xlu0 %v7081
    %v7083 = vpop.xlane.xlu0 %7082
    %v7084 = vsel %vm4905, %v6359, 0.0
    %7085 = vadd.xlane.f32.xlu0 %v7084
    %v7086 = vpop.xlane.xlu0 %7085
    %v7087 = vsel %vm4905, %v6361, 0.0
    %7088 = vadd.xlane.f32.xlu0 %v7087
    %v7089 = vpop.xlane.xlu0 %7088
    %v7090 = vsel %vm4905, %v6363, 0.0
    %7091 = vadd.xlane.f32.xlu0 %v7090
    %v7092 = vpop.xlane.xlu0 %7091
    %v7093 = vsel %vm4905, %v6365, 0.0
    %7094 = vadd.xlane.f32.xlu0 %v7093
    %v7095 = vpop.xlane.xlu0 %7094
    %v7096 = vsel %vm4905, %v6367, 0.0
    %7097 = vadd.xlane.f32.xlu0 %v7096
    %v7098 = vpop.xlane.xlu0 %7097
    %v7099 = vsel %vm4905, %v6369, 0.0
    %7100 = vadd.xlane.f32.xlu0 %v7099
    %v7101 = vpop.xlane.xlu0 %7100
    %v7102 = vsel %vm4905, %v6371, 0.0
    %7103 = vadd.xlane.f32.xlu0 %v7102
    %v7104 = vpop.xlane.xlu0 %7103
    %v7105 = vsel %vm4905, %v6373, 0.0
    %7106 = vadd.xlane.f32.xlu0 %v7105
    %v7107 = vpop.xlane.xlu0 %7106
    %v7108 = vsel %vm4905, %v6375, 0.0
    %7109 = vadd.xlane.f32.xlu0 %v7108
    %v7110 = vpop.xlane.xlu0 %7109
    %v7111 = vsel %vm4905, %v6377, 0.0
    %7112 = vadd.xlane.f32.xlu0 %v7111
    %v7113 = vpop.xlane.xlu0 %7112
    %v7114 = vsel %vm4905, %v6379, 0.0
    %7115 = vadd.xlane.f32.xlu0 %v7114
    %v7116 = vpop.xlane.xlu0 %7115
    %v7117 = vsel %vm4905, %v6381, 0.0
    %7118 = vadd.xlane.f32.xlu0 %v7117
    %v7119 = vpop.xlane.xlu0 %7118
    %v7120 = vsel %vm4905, %v6383, 0.0
    %7121 = vadd.xlane.f32.xlu0 %v7120
    %v7122 = vpop.xlane.xlu0 %7121
    %v7123 = vsel %vm4905, %v6385, 0.0
    %7124 = vadd.xlane.f32.xlu0 %v7123
    %v7125 = vpop.xlane.xlu0 %7124
    %v7126 = vsel %vm4905, %v6387, 0.0
    %7127 = vadd.xlane.f32.xlu0 %v7126
    %v7128 = vpop.xlane.xlu0 %7127
    %v7129 = vsel %vm4905, %v6389, 0.0
    %7130 = vadd.xlane.f32.xlu0 %v7129
    %v7131 = vpop.xlane.xlu0 %7130
    %v7132 = vsel %vm4905, %v6391, 0.0
    %7133 = vadd.xlane.f32.xlu0 %v7132
    %v7134 = vpop.xlane.xlu0 %7133
    %v7135 = vsel %vm4905, %v6393, 0.0
    %7136 = vadd.xlane.f32.xlu0 %v7135
    %v7137 = vpop.xlane.xlu0 %7136
    %v7138 = vsel %vm4905, %v6395, 0.0
    %7139 = vadd.xlane.f32.xlu0 %v7138
    %v7140 = vpop.xlane.xlu0 %7139
    %v7141 = vsel %vm4905, %v6397, 0.0
    %7142 = vadd.xlane.f32.xlu0 %v7141
    %v7143 = vpop.xlane.xlu0 %7142
    %v7144 = vsel %vm4905, %v6399, 0.0
    %7145 = vadd.xlane.f32.xlu0 %v7144
    %v7146 = vpop.xlane.xlu0 %7145
    %v7147 = vsel %vm4905, %v6401, 0.0
    %7148 = vadd.xlane.f32.xlu0 %v7147
    %v7149 = vpop.xlane.xlu0 %7148
    %v7150 = vsel %vm4905, %v6403, 0.0
    %7151 = vadd.xlane.f32.xlu0 %v7150
    %v7152 = vpop.xlane.xlu0 %7151
    %v7153 = vsel %vm4905, %v6405, 0.0
    %7154 = vadd.xlane.f32.xlu0 %v7153
    %v7155 = vpop.xlane.xlu0 %7154
    %v7156 = vsel %vm4905, %v6407, 0.0
    %7157 = vadd.xlane.f32.xlu0 %v7156
    %v7158 = vpop.xlane.xlu0 %7157
    %v7159 = vsel %vm4905, %v6409, 0.0
    %7160 = vadd.xlane.f32.xlu0 %v7159
    %v7161 = vpop.xlane.xlu0 %7160
    %v7162 = vsel %vm4905, %v6411, 0.0
    %7163 = vadd.xlane.f32.xlu0 %v7162
    %v7164 = vpop.xlane.xlu0 %7163
    %v7165 = vsel %vm4905, %v6413, 0.0
    %7166 = vadd.xlane.f32.xlu0 %v7165
    %v7167 = vpop.xlane.xlu0 %7166
    %v7168 = vsel %vm4905, %v6415, 0.0
    %7169 = vadd.xlane.f32.xlu0 %v7168
    %v7170 = vpop.xlane.xlu0 %7169
    %v7171 = vsel %vm4905, %v6417, 0.0
    %7172 = vadd.xlane.f32.xlu0 %v7171
    %v7173 = vpop.xlane.xlu0 %7172
    %v7174 = vsel %vm4905, %v6419, 0.0
    %7175 = vadd.xlane.f32.xlu0 %v7174
    %v7176 = vpop.xlane.xlu0 %7175
    %v7177 = vsel %vm4905, %v6421, 0.0
    %7178 = vadd.xlane.f32.xlu0 %v7177
    %v7179 = vpop.xlane.xlu0 %7178
    %v7180 = vsel %vm4905, %v6423, 0.0
    %7181 = vadd.xlane.f32.xlu0 %v7180
    %v7182 = vpop.xlane.xlu0 %7181
    %v7183 = vsel %vm4905, %v6425, 0.0
    %7184 = vadd.xlane.f32.xlu0 %v7183
    %v7185 = vpop.xlane.xlu0 %7184
    %v7186 = vsel %vm4905, %v6427, 0.0
    %7187 = vadd.xlane.f32.xlu0 %v7186
    %v7188 = vpop.xlane.xlu0 %7187
    %v7189 = vsel %vm4905, %v6429, 0.0
    %7190 = vadd.xlane.f32.xlu0 %v7189
    %v7191 = vpop.xlane.xlu0 %7190
    %v7192 = vsel %vm4905, %v6431, 0.0
    %7193 = vadd.xlane.f32.xlu0 %v7192
    %v7194 = vpop.xlane.xlu0 %7193
    %v7195 = vsel %vm4905, %v6433, 0.0
    %7196 = vadd.xlane.f32.xlu0 %v7195
    %v7197 = vpop.xlane.xlu0 %7196
    %v7198 = vsel %vm4905, %v6435, 0.0
    %7199 = vadd.xlane.f32.xlu0 %v7198
    %v7200 = vpop.xlane.xlu0 %7199
    %v7201 = vsel %vm4905, %v6437, 0.0
    %7202 = vadd.xlane.f32.xlu0 %v7201
    %v7203 = vpop.xlane.xlu0 %7202
    %v7204 = vsel %vm4905, %v6439, 0.0
    %7205 = vadd.xlane.f32.xlu0 %v7204
    %v7206 = vpop.xlane.xlu0 %7205
    %v7207 = vsel %vm4905, %v6441, 0.0
    %7208 = vadd.xlane.f32.xlu0 %v7207
    %v7209 = vpop.xlane.xlu0 %7208
    %v7210 = vrcp.pop %v6444
    %v7211 = vrcp.pop %v6447
    %v7212 = vrcp.pop %v6450
    %v7213 = vrcp.pop %v6453
    %v7214 = vrcp.pop %v6456
    %v7215 = vrcp.pop %v6459
    %v7216 = vrcp.pop %v6462
    %v7217 = vrcp.pop %v6465
    %v7218 = vrcp.pop %v6468
    %v7219 = vrcp.pop %v6471
    %v7220 = vrcp.pop %v6474
    %v7221 = vrcp.pop %v6477
    %v7222 = vrcp.pop %v6480
    %v7223 = vrcp.pop %v6483
    %v7224 = vrcp.pop %v6486
    %v7225 = vrcp.pop %v6489
    %v7226 = vrcp.pop %v6492
    %v7227 = vrcp.pop %v6495
    %v7228 = vrcp.pop %v6498
    %v7229 = vrcp.pop %v6501
    %v7230 = vrcp.pop %v6504
    %v7231 = vrcp.pop %v6507
    %v7232 = vrcp.pop %v6510
    %v7233 = vrcp.pop %v6513
    %v7234 = vrcp.pop %v6516
    %v7235 = vrcp.pop %v6519
    %v7236 = vrcp.pop %v6522
    %v7237 = vrcp.pop %v6525
    %v7238 = vrcp.pop %v6528
    %v7239 = vrcp.pop %v6531
    %v7240 = vrcp.pop %v6534
    %v7241 = vrcp.pop %v6537
    %v7242 = vrcp.pop %v6540
    %v7243 = vrcp.pop %v6543
    %v7244 = vrcp.pop %v6546
    %v7245 = vrcp.pop %v6549
    %v7246 = vrcp.pop %v6552
    %v7247 = vrcp.pop %v6555
    %v7248 = vrcp.pop %v6558
    %v7249 = vrcp.pop %v6561
    %v7250 = vrcp.pop %v6564
    %v7251 = vrcp.pop %v6567
    %v7252 = vrcp.pop %v6570
    %v7253 = vrcp.pop %v6573
    %v7254 = vrcp.pop %v6576
    %v7255 = vrcp.pop %v6579
    %v7256 = vrcp.pop %v6582
    %v7257 = vrcp.pop %v6585
    %v7258 = vrcp.pop %v6588
    %v7259 = vrcp.pop %v6591
    %v7260 = vrcp.pop %v6594
    %v7261 = vrcp.pop %v6597
    %v7262 = vrcp.pop %v6600
    %v7263 = vrcp.pop %v6603
    %v7264 = vrcp.pop %v6606
    %v7265 = vrcp.pop %v6609
    %v7266 = vrcp.pop %v6612
    %v7267 = vrcp.pop %v6615
    %v7268 = vrcp.pop %v6618
    %v7269 = vrcp.pop %v6621
    %v7270 = vrcp.pop %v6624
    %v7271 = vrcp.pop %v6627
    %v7272 = vrcp.pop %v6630
    %v7273 = vrcp.pop %v6633
    %v7274 = vrcp.pop %v6636
    %v7275 = vrcp.pop %v6639
    %v7276 = vrcp.pop %v6642
    %v7277 = vrcp.pop %v6645
    %v7278 = vrcp.pop %v6648
    %v7279 = vrcp.pop %v6651
    %v7280 = vrcp.pop %v6654
    %v7281 = vrcp.pop %v6657
    %v7282 = vrcp.pop %v6660
    %v7283 = vrcp.pop %v6663
    %v7284 = vrcp.pop %v6666
    %v7285 = vrcp.pop %v6669
    %v7286 = vrcp.pop %v6672
    %v7287 = vrcp.pop %v6675
    %v7288 = vrcp.pop %v6678
    %v7289 = vrcp.pop %v6681
    %v7290 = vrcp.pop %v6684
    %v7291 = vrcp.pop %v6687
    %v7292 = vrcp.pop %v6690
    %v7293 = vrcp.pop %v6693
    %v7294 = vrcp.pop %v6696
    %v7295 = vrcp.pop %v6699
    %v7296 = vrcp.pop %v6702
    %v7297 = vrcp.pop %v6705
    %v7298 = vrcp.pop %v6708
    %v7299 = vrcp.pop %v6711
    %v7300 = vrcp.pop %v6714
    %v7301 = vrcp.pop %v6717
    %v7302 = vrcp.pop %v6720
    %v7303 = vrcp.pop %v6723
    %v7304 = vrcp.pop %v6726
    %v7305 = vrcp.pop %v6729
    %v7306 = vrcp.pop %v6732
    %v7307 = vrcp.pop %v6735
    %v7308 = vrcp.pop %v6738
    %v7309 = vrcp.pop %v6741
    %v7310 = vrcp.pop %v6744
    %v7311 = vrcp.pop %v6747
    %v7312 = vrcp.pop %v6750
    %v7313 = vrcp.pop %v6753
    %v7314 = vrcp.pop %v6756
    %v7315 = vrcp.pop %v6759
    %v7316 = vrcp.pop %v6762
    %v7317 = vrcp.pop %v6765
    %v7318 = vrcp.pop %v6768
    %v7319 = vrcp.pop %v6771
    %v7320 = vrcp.pop %v6774
    %v7321 = vrcp.pop %v6777
    %v7322 = vrcp.pop %v6780
    %v7323 = vrcp.pop %v6783
    %v7324 = vrcp.pop %v6786
    %v7325 = vrcp.pop %v6789
    %v7326 = vrcp.pop %v6792
    %v7327 = vrcp.pop %v6795
    %v7328 = vrcp.pop %v6798
    %v7329 = vrcp.pop %v6801
    %v7330 = vrcp.pop %v6804
    %v7331 = vrcp.pop %v6807
    %v7332 = vrcp.pop %v6810
    %v7333 = vrcp.pop %v6813
    %v7334 = vrcp.pop %v6816
    %v7335 = vrcp.pop %v6819
    %v7336 = vrcp.pop %v6822
    %v7337 = vrcp.pop %v6825
    %v7338 = vrcp.pop %v6828
    %v7339 = vrcp.pop %v6831
    %v7340 = vrcp.pop %v6834
    %v7341 = vrcp.pop %v6837
    %v7342 = vrcp.pop %v6840
    %v7343 = vrcp.pop %v6843
    %v7344 = vrcp.pop %v6846
    %v7345 = vrcp.pop %v6849
    %v7346 = vrcp.pop %v6852
    %v7347 = vrcp.pop %v6855
    %v7348 = vrcp.pop %v6858
    %v7349 = vrcp.pop %v6861
    %v7350 = vrcp.pop %v6864
    %v7351 = vrcp.pop %v6867
    %v7352 = vrcp.pop %v6870
    %v7353 = vrcp.pop %v6873
    %v7354 = vrcp.pop %v6876
    %v7355 = vrcp.pop %v6879
    %v7356 = vrcp.pop %v6882
    %v7357 = vrcp.pop %v6885
    %v7358 = vrcp.pop %v6888
    %v7359 = vrcp.pop %v6891
    %v7360 = vrcp.pop %v6894
    %v7361 = vrcp.pop %v6897
    %v7362 = vrcp.pop %v6900
    %v7363 = vrcp.pop %v6903
    %v7364 = vrcp.pop %v6906
    %v7365 = vrcp.pop %v6909
    %v7366 = vrcp.pop %v6912
    %v7367 = vrcp.pop %v6915
    %v7368 = vrcp.pop %v6918
    %v7369 = vrcp.pop %v6921
    %v7370 = vrcp.pop %v6924
    %v7371 = vrcp.pop %v6927
    %v7372 = vrcp.pop %v6930
    %v7373 = vrcp.pop %v6933
    %v7374 = vrcp.pop %v6936
    %v7375 = vrcp.pop %v6939
    %v7376 = vrcp.pop %v6942
    %v7377 = vrcp.pop %v6945
    %v7378 = vrcp.pop %v6948
    %v7379 = vrcp.pop %v6951
    %v7380 = vrcp.pop %v6954
    %v7381 = vrcp.pop %v6957
    %v7382 = vrcp.pop %v6960
    %v7383 = vrcp.pop %v6963
    %v7384 = vrcp.pop %v6966
    %v7385 = vrcp.pop %v6969
    %v7386 = vrcp.pop %v6972
    %v7387 = vrcp.pop %v6975
    %v7388 = vrcp.pop %v6978
    %v7389 = vrcp.pop %v6981
    %v7390 = vrcp.pop %v6984
    %v7391 = vrcp.pop %v6987
    %v7392 = vrcp.pop %v6990
    %v7393 = vrcp.pop %v6993
    %v7394 = vrcp.pop %v6996
    %v7395 = vrcp.pop %v6999
    %v7396 = vrcp.pop %v7002
    %v7397 = vrcp.pop %v7005
    %v7398 = vrcp.pop %v7008
    %v7399 = vrcp.pop %v7011
    %v7400 = vrcp.pop %v7014
    %v7401 = vrcp.pop %v7017
    %v7402 = vrcp.pop %v7020
    %v7403 = vrcp.pop %v7023
    %v7404 = vrcp.pop %v7026
    %v7405 = vrcp.pop %v7029
    %v7406 = vrcp.pop %v7032
    %v7407 = vrcp.pop %v7035
    %v7408 = vrcp.pop %v7038
    %v7409 = vrcp.pop %v7041
    %v7410 = vrcp.pop %v7044
    %v7411 = vrcp.pop %v7047
    %v7412 = vrcp.pop %v7050
    %v7413 = vrcp.pop %v7053
    %v7414 = vrcp.pop %v7056
    %v7415 = vrcp.pop %v7059
    %v7416 = vrcp.pop %v7062
    %v7417 = vrcp.pop %v7065
    %v7418 = vrcp.pop %v7068
    %v7419 = vrcp.pop %v7071
    %v7420 = vrcp.pop %v7074
    %v7421 = vrcp.pop %v7077
    %v7422 = vrcp.pop %v7080
    %v7423 = vrcp.pop %v7083
    %v7424 = vrcp.pop %v7086
    %v7425 = vrcp.pop %v7089
    %v7426 = vrcp.pop %v7092
    %v7427 = vrcp.pop %v7095
    %v7428 = vrcp.pop %v7098
    %v7429 = vrcp.pop %v7101
    %v7430 = vrcp.pop %v7104
    %v7431 = vrcp.pop %v7107
    %v7432 = vrcp.pop %v7110
    %v7433 = vrcp.pop %v7113
    %v7434 = vrcp.pop %v7116
    %v7435 = vrcp.pop %v7119
    %v7436 = vrcp.pop %v7122
    %v7437 = vrcp.pop %v7125
    %v7438 = vrcp.pop %v7128
    %v7439 = vrcp.pop %v7131
    %v7440 = vrcp.pop %v7134
    %v7441 = vrcp.pop %v7137
    %v7442 = vrcp.pop %v7140
    %v7443 = vrcp.pop %v7143
    %v7444 = vrcp.pop %v7146
    %v7445 = vrcp.pop %v7149
    %v7446 = vrcp.pop %v7152
    %v7447 = vrcp.pop %v7155
    %v7448 = vrcp.pop %v7158
    %v7449 = vrcp.pop %v7161
    %v7450 = vrcp.pop %v7164
    %v7451 = vrcp.pop %v7167
    %v7452 = vrcp.pop %v7170
    %v7453 = vrcp.pop %v7173
    %v7454 = vrcp.pop %v7176
    %v7455 = vrcp.pop %v7179
    %v7456 = vrcp.pop %v7182
    %v7457 = vrcp.pop %v7185
    %v7458 = vrcp.pop %v7188
    %v7459 = vrcp.pop %v7191
    %v7460 = vrcp.pop %v7194
    %v7461 = vrcp.pop %v7197
    %v7462 = vrcp.pop %v7200
    %v7463 = vrcp.pop %v7203
    %v7464 = vrcp.pop %v7206
    %v7465 = vrcp.pop %v7209
    %v7466 = vmul.f32 %v5931, %v7210
    %v7467 = vmul.f32 %v5933, %v7211
    %v7468 = vmul.f32 %v5935, %v7212
    %v7469 = vmul.f32 %v5937, %v7213
    %v7470 = vmul.f32 %v5939, %v7214
    %v7471 = vmul.f32 %v5941, %v7215
    %v7472 = vmul.f32 %v5943, %v7216
    %v7473 = vmul.f32 %v5945, %v7217
    %v7474 = vmul.f32 %v5947, %v7218
    %v7475 = vmul.f32 %v5949, %v7219
    %v7476 = vmul.f32 %v5951, %v7220
    %v7477 = vmul.f32 %v5953, %v7221
    %v7478 = vmul.f32 %v5955, %v7222
    %v7479 = vmul.f32 %v5957, %v7223
    %v7480 = vmul.f32 %v5959, %v7224
    %v7481 = vmul.f32 %v5961, %v7225
    %v7482 = vmul.f32 %v5963, %v7226
    %v7483 = vmul.f32 %v5965, %v7227
    %v7484 = vmul.f32 %v5967, %v7228
    %v7485 = vmul.f32 %v5969, %v7229
    %v7486 = vmul.f32 %v5971, %v7230
    %v7487 = vmul.f32 %v5973, %v7231
    %v7488 = vmul.f32 %v5975, %v7232
    %v7489 = vmul.f32 %v5977, %v7233
    %v7490 = vmul.f32 %v5979, %v7234
    %v7491 = vmul.f32 %v5981, %v7235
    %v7492 = vmul.f32 %v5983, %v7236
    %v7493 = vmul.f32 %v5985, %v7237
    %v7494 = vmul.f32 %v5987, %v7238
    %v7495 = vmul.f32 %v5989, %v7239
    %v7496 = vmul.f32 %v5991, %v7240
    %v7497 = vmul.f32 %v5993, %v7241
    %v7498 = vmul.f32 %v5995, %v7242
    %v7499 = vmul.f32 %v5997, %v7243
    %v7500 = vmul.f32 %v5999, %v7244
    %v7501 = vmul.f32 %v6001, %v7245
    %v7502 = vmul.f32 %v6003, %v7246
    %v7503 = vmul.f32 %v6005, %v7247
    %v7504 = vmul.f32 %v6007, %v7248
    %v7505 = vmul.f32 %v6009, %v7249
    %v7506 = vmul.f32 %v6011, %v7250
    %v7507 = vmul.f32 %v6013, %v7251
    %v7508 = vmul.f32 %v6015, %v7252
    %v7509 = vmul.f32 %v6017, %v7253
    %v7510 = vmul.f32 %v6019, %v7254
    %v7511 = vmul.f32 %v6021, %v7255
    %v7512 = vmul.f32 %v6023, %v7256
    %v7513 = vmul.f32 %v6025, %v7257
    %v7514 = vmul.f32 %v6027, %v7258
    %v7515 = vmul.f32 %v6029, %v7259
    %v7516 = vmul.f32 %v6031, %v7260
    %v7517 = vmul.f32 %v6033, %v7261
    %v7518 = vmul.f32 %v6035, %v7262
    %v7519 = vmul.f32 %v6037, %v7263
    %v7520 = vmul.f32 %v6039, %v7264
    %v7521 = vmul.f32 %v6041, %v7265
    %v7522 = vmul.f32 %v6043, %v7266
    %v7523 = vmul.f32 %v6045, %v7267
    %v7524 = vmul.f32 %v6047, %v7268
    %v7525 = vmul.f32 %v6049, %v7269
    %v7526 = vmul.f32 %v6051, %v7270
    %v7527 = vmul.f32 %v6053, %v7271
    %v7528 = vmul.f32 %v6055, %v7272
    %v7529 = vmul.f32 %v6057, %v7273
    %v7530 = vmul.f32 %v6059, %v7274
    %v7531 = vmul.f32 %v6061, %v7275
    %v7532 = vmul.f32 %v6063, %v7276
    %v7533 = vmul.f32 %v6065, %v7277
    %v7534 = vmul.f32 %v6067, %v7278
    %v7535 = vmul.f32 %v6069, %v7279
    %v7536 = vmul.f32 %v6071, %v7280
    %v7537 = vmul.f32 %v6073, %v7281
    %v7538 = vmul.f32 %v6075, %v7282
    %v7539 = vmul.f32 %v6077, %v7283
    %v7540 = vmul.f32 %v6079, %v7284
    %v7541 = vmul.f32 %v6081, %v7285
    %v7542 = vmul.f32 %v6083, %v7286
    %v7543 = vmul.f32 %v6085, %v7287
    %v7544 = vmul.f32 %v6087, %v7288
    %v7545 = vmul.f32 %v6089, %v7289
    %v7546 = vmul.f32 %v6091, %v7290
    %v7547 = vmul.f32 %v6093, %v7291
    %v7548 = vmul.f32 %v6095, %v7292
    %v7549 = vmul.f32 %v6097, %v7293
    %v7550 = vmul.f32 %v6099, %v7294
    %v7551 = vmul.f32 %v6101, %v7295
    %v7552 = vmul.f32 %v6103, %v7296
    %v7553 = vmul.f32 %v6105, %v7297
    %v7554 = vmul.f32 %v6107, %v7298
    %v7555 = vmul.f32 %v6109, %v7299
    %v7556 = vmul.f32 %v6111, %v7300
    %v7557 = vmul.f32 %v6113, %v7301
    %v7558 = vmul.f32 %v6115, %v7302
    %v7559 = vmul.f32 %v6117, %v7303
    %v7560 = vmul.f32 %v6119, %v7304
    %v7561 = vmul.f32 %v6121, %v7305
    %v7562 = vmul.f32 %v6123, %v7306
    %v7563 = vmul.f32 %v6125, %v7307
    %v7564 = vmul.f32 %v6127, %v7308
    %v7565 = vmul.f32 %v6129, %v7309
    %v7566 = vmul.f32 %v6131, %v7310
    %v7567 = vmul.f32 %v6133, %v7311
    %v7568 = vmul.f32 %v6135, %v7312
    %v7569 = vmul.f32 %v6137, %v7313
    %v7570 = vmul.f32 %v6139, %v7314
    %v7571 = vmul.f32 %v6141, %v7315
    %v7572 = vmul.f32 %v6143, %v7316
    %v7573 = vmul.f32 %v6145, %v7317
    %v7574 = vmul.f32 %v6147, %v7318
    %v7575 = vmul.f32 %v6149, %v7319
    %v7576 = vmul.f32 %v6151, %v7320
    %v7577 = vmul.f32 %v6153, %v7321
    %v7578 = vmul.f32 %v6155, %v7322
    %v7579 = vmul.f32 %v6157, %v7323
    %v7580 = vmul.f32 %v6159, %v7324
    %v7581 = vmul.f32 %v6161, %v7325
    %v7582 = vmul.f32 %v6163, %v7326
    %v7583 = vmul.f32 %v6165, %v7327
    %v7584 = vmul.f32 %v6167, %v7328
    %v7585 = vmul.f32 %v6169, %v7329
    %v7586 = vmul.f32 %v6171, %v7330
    %v7587 = vmul.f32 %v6173, %v7331
    %v7588 = vmul.f32 %v6175, %v7332
    %v7589 = vmul.f32 %v6177, %v7333
    %v7590 = vmul.f32 %v6179, %v7334
    %v7591 = vmul.f32 %v6181, %v7335
    %v7592 = vmul.f32 %v6183, %v7336
    %v7593 = vmul.f32 %v6185, %v7337
    %v7594 = vmul.f32 %v6187, %v7338
    %v7595 = vmul.f32 %v6189, %v7339
    %v7596 = vmul.f32 %v6191, %v7340
    %v7597 = vmul.f32 %v6193, %v7341
    %v7598 = vmul.f32 %v6195, %v7342
    %v7599 = vmul.f32 %v6197, %v7343
    %v7600 = vmul.f32 %v6199, %v7344
    %v7601 = vmul.f32 %v6201, %v7345
    %v7602 = vmul.f32 %v6203, %v7346
    %v7603 = vmul.f32 %v6205, %v7347
    %v7604 = vmul.f32 %v6207, %v7348
    %v7605 = vmul.f32 %v6209, %v7349
    %v7606 = vmul.f32 %v6211, %v7350
    %v7607 = vmul.f32 %v6213, %v7351
    %v7608 = vmul.f32 %v6215, %v7352
    %v7609 = vmul.f32 %v6217, %v7353
    %v7610 = vmul.f32 %v6219, %v7354
    %v7611 = vmul.f32 %v6221, %v7355
    %v7612 = vmul.f32 %v6223, %v7356
    %v7613 = vmul.f32 %v6225, %v7357
    %v7614 = vmul.f32 %v6227, %v7358
    %v7615 = vmul.f32 %v6229, %v7359
    %v7616 = vmul.f32 %v6231, %v7360
    %v7617 = vmul.f32 %v6233, %v7361
    %v7618 = vmul.f32 %v6235, %v7362
    %v7619 = vmul.f32 %v6237, %v7363
    %v7620 = vmul.f32 %v6239, %v7364
    %v7621 = vmul.f32 %v6241, %v7365
    %v7622 = vmul.f32 %v6243, %v7366
    %v7623 = vmul.f32 %v6245, %v7367
    %v7624 = vmul.f32 %v6247, %v7368
    %v7625 = vmul.f32 %v6249, %v7369
    %v7626 = vmul.f32 %v6251, %v7370
    %v7627 = vmul.f32 %v6253, %v7371
    %v7628 = vmul.f32 %v6255, %v7372
    %v7629 = vmul.f32 %v6257, %v7373
    %v7630 = vmul.f32 %v6259, %v7374
    %v7631 = vmul.f32 %v6261, %v7375
    %v7632 = vmul.f32 %v6263, %v7376
    %v7633 = vmul.f32 %v6265, %v7377
    %v7634 = vmul.f32 %v6267, %v7378
    %v7635 = vmul.f32 %v6269, %v7379
    %v7636 = vmul.f32 %v6271, %v7380
    %v7637 = vmul.f32 %v6273, %v7381
    %v7638 = vmul.f32 %v6275, %v7382
    %v7639 = vmul.f32 %v6277, %v7383
    %v7640 = vmul.f32 %v6279, %v7384
    %v7641 = vmul.f32 %v6281, %v7385
    %v7642 = vmul.f32 %v6283, %v7386
    %v7643 = vmul.f32 %v6285, %v7387
    %v7644 = vmul.f32 %v6287, %v7388
    %v7645 = vmul.f32 %v6289, %v7389
    %v7646 = vmul.f32 %v6291, %v7390
    %v7647 = vmul.f32 %v6293, %v7391
    %v7648 = vmul.f32 %v6295, %v7392
    %v7649 = vmul.f32 %v6297, %v7393
    %v7650 = vmul.f32 %v6299, %v7394
    %v7651 = vmul.f32 %v6301, %v7395
    %v7652 = vmul.f32 %v6303, %v7396
    %v7653 = vmul.f32 %v6305, %v7397
    %v7654 = vmul.f32 %v6307, %v7398
    %v7655 = vmul.f32 %v6309, %v7399
    %v7656 = vmul.f32 %v6311, %v7400
    %v7657 = vmul.f32 %v6313, %v7401
    %v7658 = vmul.f32 %v6315, %v7402
    %v7659 = vmul.f32 %v6317, %v7403
    %v7660 = vmul.f32 %v6319, %v7404
    %v7661 = vmul.f32 %v6321, %v7405
    %v7662 = vmul.f32 %v6323, %v7406
    %v7663 = vmul.f32 %v6325, %v7407
    %v7664 = vmul.f32 %v6327, %v7408
    %v7665 = vmul.f32 %v6329, %v7409
    %v7666 = vmul.f32 %v6331, %v7410
    %v7667 = vmul.f32 %v6333, %v7411
    %v7668 = vmul.f32 %v6335, %v7412
    %v7669 = vmul.f32 %v6337, %v7413
    %v7670 = vmul.f32 %v6339, %v7414
    %v7671 = vmul.f32 %v6341, %v7415
    %v7672 = vmul.f32 %v6343, %v7416
    %v7673 = vmul.f32 %v6345, %v7417
    %v7674 = vmul.f32 %v6347, %v7418
    %v7675 = vmul.f32 %v6349, %v7419
    %v7676 = vmul.f32 %v6351, %v7420
    %v7677 = vmul.f32 %v6353, %v7421
    %v7678 = vmul.f32 %v6355, %v7422
    %v7679 = vmul.f32 %v6357, %v7423
    %v7680 = vmul.f32 %v6359, %v7424
    %v7681 = vmul.f32 %v6361, %v7425
    %v7682 = vmul.f32 %v6363, %v7426
    %v7683 = vmul.f32 %v6365, %v7427
    %v7684 = vmul.f32 %v6367, %v7428
    %v7685 = vmul.f32 %v6369, %v7429
    %v7686 = vmul.f32 %v6371, %v7430
    %v7687 = vmul.f32 %v6373, %v7431
    %v7688 = vmul.f32 %v6375, %v7432
    %v7689 = vmul.f32 %v6377, %v7433
    %v7690 = vmul.f32 %v6379, %v7434
    %v7691 = vmul.f32 %v6381, %v7435
    %v7692 = vmul.f32 %v6383, %v7436
    %v7693 = vmul.f32 %v6385, %v7437
    %v7694 = vmul.f32 %v6387, %v7438
    %v7695 = vmul.f32 %v6389, %v7439
    %v7696 = vmul.f32 %v6391, %v7440
    %v7697 = vmul.f32 %v6393, %v7441
    %v7698 = vmul.f32 %v6395, %v7442
    %v7699 = vmul.f32 %v6397, %v7443
    %v7700 = vmul.f32 %v6399, %v7444
    %v7701 = vmul.f32 %v6401, %v7445
    %v7702 = vmul.f32 %v6403, %v7446
    %v7703 = vmul.f32 %v6405, %v7447
    %v7704 = vmul.f32 %v6407, %v7448
    %v7705 = vmul.f32 %v6409, %v7449
    %v7706 = vmul.f32 %v6411, %v7450
    %v7707 = vmul.f32 %v6413, %v7451
    %v7708 = vmul.f32 %v6415, %v7452
    %v7709 = vmul.f32 %v6417, %v7453
    %v7710 = vmul.f32 %v6419, %v7454
    %v7711 = vmul.f32 %v6421, %v7455
    %v7712 = vmul.f32 %v6423, %v7456
    %v7713 = vmul.f32 %v6425, %v7457
    %v7714 = vmul.f32 %v6427, %v7458
    %v7715 = vmul.f32 %v6429, %v7459
    %v7716 = vmul.f32 %v6431, %v7460
    %v7717 = vmul.f32 %v6433, %v7461
    %v7718 = vmul.f32 %v6435, %v7462
    %v7719 = vmul.f32 %v6437, %v7463
    %v7720 = vmul.f32 %v6439, %v7464
    %v7721 = vmul.f32 %v6441, %v7465
    %v7722 = vpack.c.bf16 %v7466, %v7466
    %v7723 = vpack.c.bf16 %v7467, %v7467
    %v7724 = vpack.c.bf16 %v7468, %v7468
    %v7725 = vpack.c.bf16 %v7469, %v7469
    %v7726 = vpack.c.bf16 %v7470, %v7470
    %v7727 = vpack.c.bf16 %v7471, %v7471
    %v7728 = vpack.c.bf16 %v7472, %v7472
    %v7729 = vpack.c.bf16 %v7473, %v7473
    %v7730 = vpack.c.bf16 %v7474, %v7474
    %v7731 = vpack.c.bf16 %v7475, %v7475
    %v7732 = vpack.c.bf16 %v7476, %v7476
    %v7733 = vpack.c.bf16 %v7477, %v7477
    %v7734 = vpack.c.bf16 %v7478, %v7478
    %v7735 = vpack.c.bf16 %v7479, %v7479
    %v7736 = vpack.c.bf16 %v7480, %v7480
    %v7737 = vpack.c.bf16 %v7481, %v7481
    %v7738 = vpack.c.bf16 %v7482, %v7482
    %v7739 = vpack.c.bf16 %v7483, %v7483
    %v7740 = vpack.c.bf16 %v7484, %v7484
    %v7741 = vpack.c.bf16 %v7485, %v7485
    %v7742 = vpack.c.bf16 %v7486, %v7486
    %v7743 = vpack.c.bf16 %v7487, %v7487
    %v7744 = vpack.c.bf16 %v7488, %v7488
    %v7745 = vpack.c.bf16 %v7489, %v7489
    %v7746 = vpack.c.bf16 %v7490, %v7490
    %v7747 = vpack.c.bf16 %v7491, %v7491
    %v7748 = vpack.c.bf16 %v7492, %v7492
    %v7749 = vpack.c.bf16 %v7493, %v7493
    %v7750 = vpack.c.bf16 %v7494, %v7494
    %v7751 = vpack.c.bf16 %v7495, %v7495
    %v7752 = vpack.c.bf16 %v7496, %v7496
    %v7753 = vpack.c.bf16 %v7497, %v7497
    %v7754 = vpack.c.bf16 %v7498, %v7498
    %v7755 = vpack.c.bf16 %v7499, %v7499
    %v7756 = vpack.c.bf16 %v7500, %v7500
    %v7757 = vpack.c.bf16 %v7501, %v7501
    %v7758 = vpack.c.bf16 %v7502, %v7502
    %v7759 = vpack.c.bf16 %v7503, %v7503
    %v7760 = vpack.c.bf16 %v7504, %v7504
    %v7761 = vpack.c.bf16 %v7505, %v7505
    %v7762 = vpack.c.bf16 %v7506, %v7506
    %v7763 = vpack.c.bf16 %v7507, %v7507
    %v7764 = vpack.c.bf16 %v7508, %v7508
    %v7765 = vpack.c.bf16 %v7509, %v7509
    %v7766 = vpack.c.bf16 %v7510, %v7510
    %v7767 = vpack.c.bf16 %v7511, %v7511
    %v7768 = vpack.c.bf16 %v7512, %v7512
    %v7769 = vpack.c.bf16 %v7513, %v7513
    %v7770 = vpack.c.bf16 %v7514, %v7514
    %v7771 = vpack.c.bf16 %v7515, %v7515
    %v7772 = vpack.c.bf16 %v7516, %v7516
    %v7773 = vpack.c.bf16 %v7517, %v7517
    %v7774 = vpack.c.bf16 %v7518, %v7518
    %v7775 = vpack.c.bf16 %v7519, %v7519
    %v7776 = vpack.c.bf16 %v7520, %v7520
    %v7777 = vpack.c.bf16 %v7521, %v7521
    %v7778 = vpack.c.bf16 %v7522, %v7522
    %v7779 = vpack.c.bf16 %v7523, %v7523
    %v7780 = vpack.c.bf16 %v7524, %v7524
    %v7781 = vpack.c.bf16 %v7525, %v7525
    %v7782 = vpack.c.bf16 %v7526, %v7526
    %v7783 = vpack.c.bf16 %v7527, %v7527
    %v7784 = vpack.c.bf16 %v7528, %v7528
    %v7785 = vpack.c.bf16 %v7529, %v7529
    %v7786 = vpack.c.bf16 %v7530, %v7530
    %v7787 = vpack.c.bf16 %v7531, %v7531
    %v7788 = vpack.c.bf16 %v7532, %v7532
    %v7789 = vpack.c.bf16 %v7533, %v7533
    %v7790 = vpack.c.bf16 %v7534, %v7534
    %v7791 = vpack.c.bf16 %v7535, %v7535
    %v7792 = vpack.c.bf16 %v7536, %v7536
    %v7793 = vpack.c.bf16 %v7537, %v7537
    %v7794 = vpack.c.bf16 %v7538, %v7538
    %v7795 = vpack.c.bf16 %v7539, %v7539
    %v7796 = vpack.c.bf16 %v7540, %v7540
    %v7797 = vpack.c.bf16 %v7541, %v7541
    %v7798 = vpack.c.bf16 %v7542, %v7542
    %v7799 = vpack.c.bf16 %v7543, %v7543
    %v7800 = vpack.c.bf16 %v7544, %v7544
    %v7801 = vpack.c.bf16 %v7545, %v7545
    %v7802 = vpack.c.bf16 %v7546, %v7546
    %v7803 = vpack.c.bf16 %v7547, %v7547
    %v7804 = vpack.c.bf16 %v7548, %v7548
    %v7805 = vpack.c.bf16 %v7549, %v7549
    %v7806 = vpack.c.bf16 %v7550, %v7550
    %v7807 = vpack.c.bf16 %v7551, %v7551
    %v7808 = vpack.c.bf16 %v7552, %v7552
    %v7809 = vpack.c.bf16 %v7553, %v7553
    %v7810 = vpack.c.bf16 %v7554, %v7554
    %v7811 = vpack.c.bf16 %v7555, %v7555
    %v7812 = vpack.c.bf16 %v7556, %v7556
    %v7813 = vpack.c.bf16 %v7557, %v7557
    %v7814 = vpack.c.bf16 %v7558, %v7558
    %v7815 = vpack.c.bf16 %v7559, %v7559
    %v7816 = vpack.c.bf16 %v7560, %v7560
    %v7817 = vpack.c.bf16 %v7561, %v7561
    %v7818 = vpack.c.bf16 %v7562, %v7562
    %v7819 = vpack.c.bf16 %v7563, %v7563
    %v7820 = vpack.c.bf16 %v7564, %v7564
    %v7821 = vpack.c.bf16 %v7565, %v7565
    %v7822 = vpack.c.bf16 %v7566, %v7566
    %v7823 = vpack.c.bf16 %v7567, %v7567
    %v7824 = vpack.c.bf16 %v7568, %v7568
    %v7825 = vpack.c.bf16 %v7569, %v7569
    %v7826 = vpack.c.bf16 %v7570, %v7570
    %v7827 = vpack.c.bf16 %v7571, %v7571
    %v7828 = vpack.c.bf16 %v7572, %v7572
    %v7829 = vpack.c.bf16 %v7573, %v7573
    %v7830 = vpack.c.bf16 %v7574, %v7574
    %v7831 = vpack.c.bf16 %v7575, %v7575
    %v7832 = vpack.c.bf16 %v7576, %v7576
    %v7833 = vpack.c.bf16 %v7577, %v7577
    %v7834 = vpack.c.bf16 %v7578, %v7578
    %v7835 = vpack.c.bf16 %v7579, %v7579
    %v7836 = vpack.c.bf16 %v7580, %v7580
    %v7837 = vpack.c.bf16 %v7581, %v7581
    %v7838 = vpack.c.bf16 %v7582, %v7582
    %v7839 = vpack.c.bf16 %v7583, %v7583
    %v7840 = vpack.c.bf16 %v7584, %v7584
    %v7841 = vpack.c.bf16 %v7585, %v7585
    %v7842 = vpack.c.bf16 %v7586, %v7586
    %v7843 = vpack.c.bf16 %v7587, %v7587
    %v7844 = vpack.c.bf16 %v7588, %v7588
    %v7845 = vpack.c.bf16 %v7589, %v7589
    %v7846 = vpack.c.bf16 %v7590, %v7590
    %v7847 = vpack.c.bf16 %v7591, %v7591
    %v7848 = vpack.c.bf16 %v7592, %v7592
    %v7849 = vpack.c.bf16 %v7593, %v7593
    %v7850 = vpack.c.bf16 %v7594, %v7594
    %v7851 = vpack.c.bf16 %v7595, %v7595
    %v7852 = vpack.c.bf16 %v7596, %v7596
    %v7853 = vpack.c.bf16 %v7597, %v7597
    %v7854 = vpack.c.bf16 %v7598, %v7598
    %v7855 = vpack.c.bf16 %v7599, %v7599
    %v7856 = vpack.c.bf16 %v7600, %v7600
    %v7857 = vpack.c.bf16 %v7601, %v7601
    %v7858 = vpack.c.bf16 %v7602, %v7602
    %v7859 = vpack.c.bf16 %v7603, %v7603
    %v7860 = vpack.c.bf16 %v7604, %v7604
    %v7861 = vpack.c.bf16 %v7605, %v7605
    %v7862 = vpack.c.bf16 %v7606, %v7606
    %v7863 = vpack.c.bf16 %v7607, %v7607
    %v7864 = vpack.c.bf16 %v7608, %v7608
    %v7865 = vpack.c.bf16 %v7609, %v7609
    %v7866 = vpack.c.bf16 %v7610, %v7610
    %v7867 = vpack.c.bf16 %v7611, %v7611
    %v7868 = vpack.c.bf16 %v7612, %v7612
    %v7869 = vpack.c.bf16 %v7613, %v7613
    %v7870 = vpack.c.bf16 %v7614, %v7614
    %v7871 = vpack.c.bf16 %v7615, %v7615
    %v7872 = vpack.c.bf16 %v7616, %v7616
    %v7873 = vpack.c.bf16 %v7617, %v7617
    %v7874 = vpack.c.bf16 %v7618, %v7618
    %v7875 = vpack.c.bf16 %v7619, %v7619
    %v7876 = vpack.c.bf16 %v7620, %v7620
    %v7877 = vpack.c.bf16 %v7621, %v7621
    %v7878 = vpack.c.bf16 %v7622, %v7622
    %v7879 = vpack.c.bf16 %v7623, %v7623
    %v7880 = vpack.c.bf16 %v7624, %v7624
    %v7881 = vpack.c.bf16 %v7625, %v7625
    %v7882 = vpack.c.bf16 %v7626, %v7626
    %v7883 = vpack.c.bf16 %v7627, %v7627
    %v7884 = vpack.c.bf16 %v7628, %v7628
    %v7885 = vpack.c.bf16 %v7629, %v7629
    %v7886 = vpack.c.bf16 %v7630, %v7630
    %v7887 = vpack.c.bf16 %v7631, %v7631
    %v7888 = vpack.c.bf16 %v7632, %v7632
    %v7889 = vpack.c.bf16 %v7633, %v7633
    %v7890 = vpack.c.bf16 %v7634, %v7634
    %v7891 = vpack.c.bf16 %v7635, %v7635
    %v7892 = vpack.c.bf16 %v7636, %v7636
    %v7893 = vpack.c.bf16 %v7637, %v7637
    %v7894 = vpack.c.bf16 %v7638, %v7638
    %v7895 = vpack.c.bf16 %v7639, %v7639
    %v7896 = vpack.c.bf16 %v7640, %v7640
    %v7897 = vpack.c.bf16 %v7641, %v7641
    %v7898 = vpack.c.bf16 %v7642, %v7642
    %v7899 = vpack.c.bf16 %v7643, %v7643
    %v7900 = vpack.c.bf16 %v7644, %v7644
    %v7901 = vpack.c.bf16 %v7645, %v7645
    %v7902 = vpack.c.bf16 %v7646, %v7646
    %v7903 = vpack.c.bf16 %v7647, %v7647
    %v7904 = vpack.c.bf16 %v7648, %v7648
    %v7905 = vpack.c.bf16 %v7649, %v7649
    %v7906 = vpack.c.bf16 %v7650, %v7650
    %v7907 = vpack.c.bf16 %v7651, %v7651
    %v7908 = vpack.c.bf16 %v7652, %v7652
    %v7909 = vpack.c.bf16 %v7653, %v7653
    %v7910 = vpack.c.bf16 %v7654, %v7654
    %v7911 = vpack.c.bf16 %v7655, %v7655
    %v7912 = vpack.c.bf16 %v7656, %v7656
    %v7913 = vpack.c.bf16 %v7657, %v7657
    %v7914 = vpack.c.bf16 %v7658, %v7658
    %v7915 = vpack.c.bf16 %v7659, %v7659
    %v7916 = vpack.c.bf16 %v7660, %v7660
    %v7917 = vpack.c.bf16 %v7661, %v7661
    %v7918 = vpack.c.bf16 %v7662, %v7662
    %v7919 = vpack.c.bf16 %v7663, %v7663
    %v7920 = vpack.c.bf16 %v7664, %v7664
    %v7921 = vpack.c.bf16 %v7665, %v7665
    %v7922 = vpack.c.bf16 %v7666, %v7666
    %v7923 = vpack.c.bf16 %v7667, %v7667
    %v7924 = vpack.c.bf16 %v7668, %v7668
    %v7925 = vpack.c.bf16 %v7669, %v7669
    %v7926 = vpack.c.bf16 %v7670, %v7670
    %v7927 = vpack.c.bf16 %v7671, %v7671
    %v7928 = vpack.c.bf16 %v7672, %v7672
    %v7929 = vpack.c.bf16 %v7673, %v7673
    %v7930 = vpack.c.bf16 %v7674, %v7674
    %v7931 = vpack.c.bf16 %v7675, %v7675
    %v7932 = vpack.c.bf16 %v7676, %v7676
    %v7933 = vpack.c.bf16 %v7677, %v7677
    %v7934 = vpack.c.bf16 %v7678, %v7678
    %v7935 = vpack.c.bf16 %v7679, %v7679
    %v7936 = vpack.c.bf16 %v7680, %v7680
    %v7937 = vpack.c.bf16 %v7681, %v7681
    %v7938 = vpack.c.bf16 %v7682, %v7682
    %v7939 = vpack.c.bf16 %v7683, %v7683
    %v7940 = vpack.c.bf16 %v7684, %v7684
    %v7941 = vpack.c.bf16 %v7685, %v7685
    %v7942 = vpack.c.bf16 %v7686, %v7686
    %v7943 = vpack.c.bf16 %v7687, %v7687
    %v7944 = vpack.c.bf16 %v7688, %v7688
    %v7945 = vpack.c.bf16 %v7689, %v7689
    %v7946 = vpack.c.bf16 %v7690, %v7690
    %v7947 = vpack.c.bf16 %v7691, %v7691
    %v7948 = vpack.c.bf16 %v7692, %v7692
    %v7949 = vpack.c.bf16 %v7693, %v7693
    %v7950 = vpack.c.bf16 %v7694, %v7694
    %v7951 = vpack.c.bf16 %v7695, %v7695
    %v7952 = vpack.c.bf16 %v7696, %v7696
    %v7953 = vpack.c.bf16 %v7697, %v7697
    %v7954 = vpack.c.bf16 %v7698, %v7698
    %v7955 = vpack.c.bf16 %v7699, %v7699
    %v7956 = vpack.c.bf16 %v7700, %v7700
    %v7957 = vpack.c.bf16 %v7701, %v7701
    %v7958 = vpack.c.bf16 %v7702, %v7702
    %v7959 = vpack.c.bf16 %v7703, %v7703
    %v7960 = vpack.c.bf16 %v7704, %v7704
    %v7961 = vpack.c.bf16 %v7705, %v7705
    %v7962 = vpack.c.bf16 %v7706, %v7706
    %v7963 = vpack.c.bf16 %v7707, %v7707
    %v7964 = vpack.c.bf16 %v7708, %v7708
    %v7965 = vpack.c.bf16 %v7709, %v7709
    %v7966 = vpack.c.bf16 %v7710, %v7710
    %v7967 = vpack.c.bf16 %v7711, %v7711
    %v7968 = vpack.c.bf16 %v7712, %v7712
    %v7969 = vpack.c.bf16 %v7713, %v7713
    %v7970 = vpack.c.bf16 %v7714, %v7714
    %v7971 = vpack.c.bf16 %v7715, %v7715
    %v7972 = vpack.c.bf16 %v7716, %v7716
    %v7973 = vpack.c.bf16 %v7717, %v7717
    %v7974 = vpack.c.bf16 %v7718, %v7718
    %v7975 = vpack.c.bf16 %v7719, %v7719
    %v7976 = vpack.c.bf16 %v7720, %v7720
    %v7977 = vpack.c.bf16 %v7721, %v7721
    %v7986 = vunpack.c.l.b16 %v7722
    %v7987 = vunpack.c.l.b16 %v7723
    %v7988 = vunpack.c.l.b16 %v7724
    %v7989 = vunpack.c.l.b16 %v7725
    %v7990 = vunpack.c.l.b16 %v7726
    %v7991 = vunpack.c.l.b16 %v7727
    %v7992 = vunpack.c.l.b16 %v7728
    %v7993 = vunpack.c.l.b16 %v7729
    %v7994 = vpack.c.b16 %v7987, %v7986
    %v7995 = vpack.c.b16 %v7989, %v7988
    %v7996 = vpack.c.b16 %v7991, %v7990
    %v7997 = vpack.c.b16 %v7993, %v7992
    %v7998 = vunpack.c.l.b16 %v873
    %v7999 = vunpack.c.l.b16 %v875
    %v8000 = vunpack.c.l.b16 %v877
    %v8001 = vunpack.c.l.b16 %v879
    %v8002 = vunpack.c.l.b16 %v881
    %v8003 = vunpack.c.l.b16 %v883
    %v8004 = vunpack.c.l.b16 %v885
    %v8005 = vunpack.c.l.b16 %v887
    %v8006 = vpack.c.b16 %v7999, %v7998
    %v8007 = vpack.c.b16 %v8001, %v8000
    %v8008 = vpack.c.b16 %v8003, %v8002
    %v8009 = vpack.c.b16 %v8005, %v8004
    %v8015 = vsel %vm4905, %v7994, 0
    %v8018 = vsel %vm4905, %v7995, 0
    %v8021 = vsel %vm4905, %v7996, 0
    %v8024 = vsel %vm4905, %v7997, 0
    %8026 = vmatpush.bf16.msra.mxu0 0
    %8027 = vmatpush.bf16.msra.mxu0 0
    %8028 = vmatpush.bf16.msra.mxu0 0
    %8029 = vmatpush.bf16.msra.mxu0 0
    %8030 = vmatpush.bf16.msra.mxu0 %v8009
    %8031 = vmatpush.bf16.msra.mxu0 %v8008
    %8032 = vmatpush.bf16.msra.mxu0 %v8007
    %8033 = vmatpush.bf16.msra.mxu0 %v8006
    %8034 = vmatmul.bf16.gmra.mxu0 %v8015
    %v8035 = vpop.f32.mrf.mxu0
    %v8036 = vadd.f32 0.0, %v8035
    %v8037 = vpop.f32.mrf.mxu0
    %v8038 = vadd.f32 0.0, %v8037
    %8039 = vmatmul.bf16.gmra.mxu0 %v8018
    %v8040 = vpop.f32.mrf.mxu0
    %v8041 = vadd.f32 0.0, %v8040
    %v8042 = vpop.f32.mrf.mxu0
    %v8043 = vadd.f32 0.0, %v8042
    %8044 = vmatmul.bf16.gmra.mxu0 %v8021
    %v8045 = vpop.f32.mrf.mxu0
    %v8046 = vadd.f32 0.0, %v8045
    %v8047 = vpop.f32.mrf.mxu0
    %v8048 = vadd.f32 0.0, %v8047
    %8049 = vmatmul.bf16.gmra.mxu0 %v8024
    %v8050 = vpop.f32.mrf.mxu0
    %v8051 = vadd.f32 0.0, %v8050
    %v8052 = vpop.f32.mrf.mxu0
    %v8053 = vadd.f32 0.0, %v8052
    %8054 = vdwg.mxu0
    %v8063 = vunpack.c.l.b16 %v7730
    %v8064 = vunpack.c.l.b16 %v7731
    %v8065 = vunpack.c.l.b16 %v7732
    %v8066 = vunpack.c.l.b16 %v7733
    %v8067 = vunpack.c.l.b16 %v7734
    %v8068 = vunpack.c.l.b16 %v7735
    %v8069 = vunpack.c.l.b16 %v7736
    %v8070 = vunpack.c.l.b16 %v7737
    %v8071 = vpack.c.b16 %v8064, %v8063
    %v8072 = vpack.c.b16 %v8066, %v8065
    %v8073 = vpack.c.b16 %v8068, %v8067
    %v8074 = vpack.c.b16 %v8070, %v8069
    %v8075 = vunpack.c.l.b16 %v889
    %v8076 = vunpack.c.l.b16 %v891
    %v8077 = vunpack.c.l.b16 %v893
    %v8078 = vunpack.c.l.b16 %v895
    %v8079 = vunpack.c.l.b16 %v897
    %v8080 = vunpack.c.l.b16 %v899
    %v8081 = vunpack.c.l.b16 %v901
    %v8082 = vunpack.c.l.b16 %v903
    %v8083 = vpack.c.b16 %v8076, %v8075
    %v8084 = vpack.c.b16 %v8078, %v8077
    %v8085 = vpack.c.b16 %v8080, %v8079
    %v8086 = vpack.c.b16 %v8082, %v8081
    %v8092 = vsel %vm4905, %v8071, 0
    %v8095 = vsel %vm4905, %v8072, 0
    %v8098 = vsel %vm4905, %v8073, 0
    %v8101 = vsel %vm4905, %v8074, 0
    %8103 = vmatpush.bf16.msra.mxu0 0
    %8104 = vmatpush.bf16.msra.mxu0 0
    %8105 = vmatpush.bf16.msra.mxu0 0
    %8106 = vmatpush.bf16.msra.mxu0 0
    %8107 = vmatpush.bf16.msra.mxu0 %v8086
    %8108 = vmatpush.bf16.msra.mxu0 %v8085
    %8109 = vmatpush.bf16.msra.mxu0 %v8084
    %8110 = vmatpush.bf16.msra.mxu0 %v8083
    %8111 = vmatmul.bf16.gmra.mxu0 %v8092
    %v8112 = vpop.f32.mrf.mxu0
    %v8113 = vadd.f32 0.0, %v8112
    %v8114 = vpop.f32.mrf.mxu0
    %v8115 = vadd.f32 0.0, %v8114
    %8116 = vmatmul.bf16.gmra.mxu0 %v8095
    %v8117 = vpop.f32.mrf.mxu0
    %v8118 = vadd.f32 0.0, %v8117
    %v8119 = vpop.f32.mrf.mxu0
    %v8120 = vadd.f32 0.0, %v8119
    %8121 = vmatmul.bf16.gmra.mxu0 %v8098
    %v8122 = vpop.f32.mrf.mxu0
    %v8123 = vadd.f32 0.0, %v8122
    %v8124 = vpop.f32.mrf.mxu0
    %v8125 = vadd.f32 0.0, %v8124
    %8126 = vmatmul.bf16.gmra.mxu0 %v8101
    %v8127 = vpop.f32.mrf.mxu0
    %v8128 = vadd.f32 0.0, %v8127
    %v8129 = vpop.f32.mrf.mxu0
    %v8130 = vadd.f32 0.0, %v8129
    %8131 = vdwg.mxu0
    %v8140 = vunpack.c.l.b16 %v7738
    %v8141 = vunpack.c.l.b16 %v7739
    %v8142 = vunpack.c.l.b16 %v7740
    %v8143 = vunpack.c.l.b16 %v7741
    %v8144 = vunpack.c.l.b16 %v7742
    %v8145 = vunpack.c.l.b16 %v7743
    %v8146 = vunpack.c.l.b16 %v7744
    %v8147 = vunpack.c.l.b16 %v7745
    %v8148 = vpack.c.b16 %v8141, %v8140
    %v8149 = vpack.c.b16 %v8143, %v8142
    %v8150 = vpack.c.b16 %v8145, %v8144
    %v8151 = vpack.c.b16 %v8147, %v8146
    %v8152 = vunpack.c.l.b16 %v905
    %v8153 = vunpack.c.l.b16 %v907
    %v8154 = vunpack.c.l.b16 %v909
    %v8155 = vunpack.c.l.b16 %v911
    %v8156 = vunpack.c.l.b16 %v913
    %v8157 = vunpack.c.l.b16 %v915
    %v8158 = vunpack.c.l.b16 %v917
    %v8159 = vunpack.c.l.b16 %v919
    %v8160 = vpack.c.b16 %v8153, %v8152
    %v8161 = vpack.c.b16 %v8155, %v8154
    %v8162 = vpack.c.b16 %v8157, %v8156
    %v8163 = vpack.c.b16 %v8159, %v8158
    %v8169 = vsel %vm4905, %v8148, 0
    %v8172 = vsel %vm4905, %v8149, 0
    %v8175 = vsel %vm4905, %v8150, 0
    %v8178 = vsel %vm4905, %v8151, 0
    %8180 = vmatpush.bf16.msra.mxu0 0
    %8181 = vmatpush.bf16.msra.mxu0 0
    %8182 = vmatpush.bf16.msra.mxu0 0
    %8183 = vmatpush.bf16.msra.mxu0 0
    %8184 = vmatpush.bf16.msra.mxu0 %v8163
    %8185 = vmatpush.bf16.msra.mxu0 %v8162
    %8186 = vmatpush.bf16.msra.mxu0 %v8161
    %8187 = vmatpush.bf16.msra.mxu0 %v8160
    %8188 = vmatmul.bf16.gmra.mxu0 %v8169
    %v8189 = vpop.f32.mrf.mxu0
    %v8190 = vadd.f32 0.0, %v8189
    %v8191 = vpop.f32.mrf.mxu0
    %v8192 = vadd.f32 0.0, %v8191
    %8193 = vmatmul.bf16.gmra.mxu0 %v8172
    %v8194 = vpop.f32.mrf.mxu0
    %v8195 = vadd.f32 0.0, %v8194
    %v8196 = vpop.f32.mrf.mxu0
    %v8197 = vadd.f32 0.0, %v8196
    %8198 = vmatmul.bf16.gmra.mxu0 %v8175
    %v8199 = vpop.f32.mrf.mxu0
    %v8200 = vadd.f32 0.0, %v8199
    %v8201 = vpop.f32.mrf.mxu0
    %v8202 = vadd.f32 0.0, %v8201
    %8203 = vmatmul.bf16.gmra.mxu0 %v8178
    %v8204 = vpop.f32.mrf.mxu0
    %v8205 = vadd.f32 0.0, %v8204
    %v8206 = vpop.f32.mrf.mxu0
    %v8207 = vadd.f32 0.0, %v8206
    %8208 = vdwg.mxu0
    %v8217 = vunpack.c.l.b16 %v7746
    %v8218 = vunpack.c.l.b16 %v7747
    %v8219 = vunpack.c.l.b16 %v7748
    %v8220 = vunpack.c.l.b16 %v7749
    %v8221 = vunpack.c.l.b16 %v7750
    %v8222 = vunpack.c.l.b16 %v7751
    %v8223 = vunpack.c.l.b16 %v7752
    %v8224 = vunpack.c.l.b16 %v7753
    %v8225 = vpack.c.b16 %v8218, %v8217
    %v8226 = vpack.c.b16 %v8220, %v8219
    %v8227 = vpack.c.b16 %v8222, %v8221
    %v8228 = vpack.c.b16 %v8224, %v8223
    %v8229 = vunpack.c.l.b16 %v921
    %v8230 = vunpack.c.l.b16 %v923
    %v8231 = vunpack.c.l.b16 %v925
    %v8232 = vunpack.c.l.b16 %v927
    %v8233 = vunpack.c.l.b16 %v929
    %v8234 = vunpack.c.l.b16 %v931
    %v8235 = vunpack.c.l.b16 %v933
    %v8236 = vunpack.c.l.b16 %v935
    %v8237 = vpack.c.b16 %v8230, %v8229
    %v8238 = vpack.c.b16 %v8232, %v8231
    %v8239 = vpack.c.b16 %v8234, %v8233
    %v8240 = vpack.c.b16 %v8236, %v8235
    %v8246 = vsel %vm4905, %v8225, 0
    %v8249 = vsel %vm4905, %v8226, 0
    %v8252 = vsel %vm4905, %v8227, 0
    %v8255 = vsel %vm4905, %v8228, 0
    %8257 = vmatpush.bf16.msra.mxu0 0
    %8258 = vmatpush.bf16.msra.mxu0 0
    %8259 = vmatpush.bf16.msra.mxu0 0
    %8260 = vmatpush.bf16.msra.mxu0 0
    %8261 = vmatpush.bf16.msra.mxu0 %v8240
    %8262 = vmatpush.bf16.msra.mxu0 %v8239
    %8263 = vmatpush.bf16.msra.mxu0 %v8238
    %8264 = vmatpush.bf16.msra.mxu0 %v8237
    %8265 = vmatmul.bf16.gmra.mxu0 %v8246
    %v8266 = vpop.f32.mrf.mxu0
    %v8267 = vadd.f32 0.0, %v8266
    %v8268 = vpop.f32.mrf.mxu0
    %v8269 = vadd.f32 0.0, %v8268
    %8270 = vmatmul.bf16.gmra.mxu0 %v8249
    %v8271 = vpop.f32.mrf.mxu0
    %v8272 = vadd.f32 0.0, %v8271
    %v8273 = vpop.f32.mrf.mxu0
    %v8274 = vadd.f32 0.0, %v8273
    %8275 = vmatmul.bf16.gmra.mxu0 %v8252
    %v8276 = vpop.f32.mrf.mxu0
    %v8277 = vadd.f32 0.0, %v8276
    %v8278 = vpop.f32.mrf.mxu0
    %v8279 = vadd.f32 0.0, %v8278
    %8280 = vmatmul.bf16.gmra.mxu0 %v8255
    %v8281 = vpop.f32.mrf.mxu0
    %v8282 = vadd.f32 0.0, %v8281
    %v8283 = vpop.f32.mrf.mxu0
    %v8284 = vadd.f32 0.0, %v8283
    %8285 = vdwg.mxu0
    %v8294 = vunpack.c.l.b16 %v7754
    %v8295 = vunpack.c.l.b16 %v7755
    %v8296 = vunpack.c.l.b16 %v7756
    %v8297 = vunpack.c.l.b16 %v7757
    %v8298 = vunpack.c.l.b16 %v7758
    %v8299 = vunpack.c.l.b16 %v7759
    %v8300 = vunpack.c.l.b16 %v7760
    %v8301 = vunpack.c.l.b16 %v7761
    %v8302 = vpack.c.b16 %v8295, %v8294
    %v8303 = vpack.c.b16 %v8297, %v8296
    %v8304 = vpack.c.b16 %v8299, %v8298
    %v8305 = vpack.c.b16 %v8301, %v8300
    %v8306 = vunpack.c.l.b16 %v937
    %v8307 = vunpack.c.l.b16 %v939
    %v8308 = vunpack.c.l.b16 %v941
    %v8309 = vunpack.c.l.b16 %v943
    %v8310 = vunpack.c.l.b16 %v945
    %v8311 = vunpack.c.l.b16 %v947
    %v8312 = vunpack.c.l.b16 %v949
    %v8313 = vunpack.c.l.b16 %v951
    %v8314 = vpack.c.b16 %v8307, %v8306
    %v8315 = vpack.c.b16 %v8309, %v8308
    %v8316 = vpack.c.b16 %v8311, %v8310
    %v8317 = vpack.c.b16 %v8313, %v8312
    %v8323 = vsel %vm4905, %v8302, 0
    %v8326 = vsel %vm4905, %v8303, 0
    %v8329 = vsel %vm4905, %v8304, 0
    %v8332 = vsel %vm4905, %v8305, 0
    %8334 = vmatpush.bf16.msra.mxu0 0
    %8335 = vmatpush.bf16.msra.mxu0 0
    %8336 = vmatpush.bf16.msra.mxu0 0
    %8337 = vmatpush.bf16.msra.mxu0 0
    %8338 = vmatpush.bf16.msra.mxu0 %v8317
    %8339 = vmatpush.bf16.msra.mxu0 %v8316
    %8340 = vmatpush.bf16.msra.mxu0 %v8315
    %8341 = vmatpush.bf16.msra.mxu0 %v8314
    %8342 = vmatmul.bf16.gmra.mxu0 %v8323
    %v8343 = vpop.f32.mrf.mxu0
    %v8344 = vadd.f32 0.0, %v8343
    %v8345 = vpop.f32.mrf.mxu0
    %v8346 = vadd.f32 0.0, %v8345
    %8347 = vmatmul.bf16.gmra.mxu0 %v8326
    %v8348 = vpop.f32.mrf.mxu0
    %v8349 = vadd.f32 0.0, %v8348
    %v8350 = vpop.f32.mrf.mxu0
    %v8351 = vadd.f32 0.0, %v8350
    %8352 = vmatmul.bf16.gmra.mxu0 %v8329
    %v8353 = vpop.f32.mrf.mxu0
    %v8354 = vadd.f32 0.0, %v8353
    %v8355 = vpop.f32.mrf.mxu0
    %v8356 = vadd.f32 0.0, %v8355
    %8357 = vmatmul.bf16.gmra.mxu0 %v8332
    %v8358 = vpop.f32.mrf.mxu0
    %v8359 = vadd.f32 0.0, %v8358
    %v8360 = vpop.f32.mrf.mxu0
    %v8361 = vadd.f32 0.0, %v8360
    %8362 = vdwg.mxu0
    %v8371 = vunpack.c.l.b16 %v7762
    %v8372 = vunpack.c.l.b16 %v7763
    %v8373 = vunpack.c.l.b16 %v7764
    %v8374 = vunpack.c.l.b16 %v7765
    %v8375 = vunpack.c.l.b16 %v7766
    %v8376 = vunpack.c.l.b16 %v7767
    %v8377 = vunpack.c.l.b16 %v7768
    %v8378 = vunpack.c.l.b16 %v7769
    %v8379 = vpack.c.b16 %v8372, %v8371
    %v8380 = vpack.c.b16 %v8374, %v8373
    %v8381 = vpack.c.b16 %v8376, %v8375
    %v8382 = vpack.c.b16 %v8378, %v8377
    %v8383 = vunpack.c.l.b16 %v953
    %v8384 = vunpack.c.l.b16 %v955
    %v8385 = vunpack.c.l.b16 %v957
    %v8386 = vunpack.c.l.b16 %v959
    %v8387 = vunpack.c.l.b16 %v961
    %v8388 = vunpack.c.l.b16 %v963
    %v8389 = vunpack.c.l.b16 %v965
    %v8390 = vunpack.c.l.b16 %v967
    %v8391 = vpack.c.b16 %v8384, %v8383
    %v8392 = vpack.c.b16 %v8386, %v8385
    %v8393 = vpack.c.b16 %v8388, %v8387
    %v8394 = vpack.c.b16 %v8390, %v8389
    %v8400 = vsel %vm4905, %v8379, 0
    %v8403 = vsel %vm4905, %v8380, 0
    %v8406 = vsel %vm4905, %v8381, 0
    %v8409 = vsel %vm4905, %v8382, 0
    %8411 = vmatpush.bf16.msra.mxu0 0
    %8412 = vmatpush.bf16.msra.mxu0 0
    %8413 = vmatpush.bf16.msra.mxu0 0
    %8414 = vmatpush.bf16.msra.mxu0 0
    %8415 = vmatpush.bf16.msra.mxu0 %v8394
    %8416 = vmatpush.bf16.msra.mxu0 %v8393
    %8417 = vmatpush.bf16.msra.mxu0 %v8392
    %8418 = vmatpush.bf16.msra.mxu0 %v8391
    %8419 = vmatmul.bf16.gmra.mxu0 %v8400
    %v8420 = vpop.f32.mrf.mxu0
    %v8421 = vadd.f32 0.0, %v8420
    %v8422 = vpop.f32.mrf.mxu0
    %v8423 = vadd.f32 0.0, %v8422
    %8424 = vmatmul.bf16.gmra.mxu0 %v8403
    %v8425 = vpop.f32.mrf.mxu0
    %v8426 = vadd.f32 0.0, %v8425
    %v8427 = vpop.f32.mrf.mxu0
    %v8428 = vadd.f32 0.0, %v8427
    %8429 = vmatmul.bf16.gmra.mxu0 %v8406
    %v8430 = vpop.f32.mrf.mxu0
    %v8431 = vadd.f32 0.0, %v8430
    %v8432 = vpop.f32.mrf.mxu0
    %v8433 = vadd.f32 0.0, %v8432
    %8434 = vmatmul.bf16.gmra.mxu0 %v8409
    %v8435 = vpop.f32.mrf.mxu0
    %v8436 = vadd.f32 0.0, %v8435
    %v8437 = vpop.f32.mrf.mxu0
    %v8438 = vadd.f32 0.0, %v8437
    %8439 = vdwg.mxu0
    %v8448 = vunpack.c.l.b16 %v7770
    %v8449 = vunpack.c.l.b16 %v7771
    %v8450 = vunpack.c.l.b16 %v7772
    %v8451 = vunpack.c.l.b16 %v7773
    %v8452 = vunpack.c.l.b16 %v7774
    %v8453 = vunpack.c.l.b16 %v7775
    %v8454 = vunpack.c.l.b16 %v7776
    %v8455 = vunpack.c.l.b16 %v7777
    %v8456 = vpack.c.b16 %v8449, %v8448
    %v8457 = vpack.c.b16 %v8451, %v8450
    %v8458 = vpack.c.b16 %v8453, %v8452
    %v8459 = vpack.c.b16 %v8455, %v8454
    %v8460 = vunpack.c.l.b16 %v969
    %v8461 = vunpack.c.l.b16 %v971
    %v8462 = vunpack.c.l.b16 %v973
    %v8463 = vunpack.c.l.b16 %v975
    %v8464 = vunpack.c.l.b16 %v977
    %v8465 = vunpack.c.l.b16 %v979
    %v8466 = vunpack.c.l.b16 %v981
    %v8467 = vunpack.c.l.b16 %v983
    %v8468 = vpack.c.b16 %v8461, %v8460
    %v8469 = vpack.c.b16 %v8463, %v8462
    %v8470 = vpack.c.b16 %v8465, %v8464
    %v8471 = vpack.c.b16 %v8467, %v8466
    %v8477 = vsel %vm4905, %v8456, 0
    %v8480 = vsel %vm4905, %v8457, 0
    %v8483 = vsel %vm4905, %v8458, 0
    %v8486 = vsel %vm4905, %v8459, 0
    %8488 = vmatpush.bf16.msra.mxu0 0
    %8489 = vmatpush.bf16.msra.mxu0 0
    %8490 = vmatpush.bf16.msra.mxu0 0
    %8491 = vmatpush.bf16.msra.mxu0 0
    %8492 = vmatpush.bf16.msra.mxu0 %v8471
    %8493 = vmatpush.bf16.msra.mxu0 %v8470
    %8494 = vmatpush.bf16.msra.mxu0 %v8469
    %8495 = vmatpush.bf16.msra.mxu0 %v8468
    %8496 = vmatmul.bf16.gmra.mxu0 %v8477
    %v8497 = vpop.f32.mrf.mxu0
    %v8498 = vadd.f32 0.0, %v8497
    %v8499 = vpop.f32.mrf.mxu0
    %v8500 = vadd.f32 0.0, %v8499
    %8501 = vmatmul.bf16.gmra.mxu0 %v8480
    %v8502 = vpop.f32.mrf.mxu0
    %v8503 = vadd.f32 0.0, %v8502
    %v8504 = vpop.f32.mrf.mxu0
    %v8505 = vadd.f32 0.0, %v8504
    %8506 = vmatmul.bf16.gmra.mxu0 %v8483
    %v8507 = vpop.f32.mrf.mxu0
    %v8508 = vadd.f32 0.0, %v8507
    %v8509 = vpop.f32.mrf.mxu0
    %v8510 = vadd.f32 0.0, %v8509
    %8511 = vmatmul.bf16.gmra.mxu0 %v8486
    %v8512 = vpop.f32.mrf.mxu0
    %v8513 = vadd.f32 0.0, %v8512
    %v8514 = vpop.f32.mrf.mxu0
    %v8515 = vadd.f32 0.0, %v8514
    %8516 = vdwg.mxu0
    %v8525 = vunpack.c.l.b16 %v7778
    %v8526 = vunpack.c.l.b16 %v7779
    %v8527 = vunpack.c.l.b16 %v7780
    %v8528 = vunpack.c.l.b16 %v7781
    %v8529 = vunpack.c.l.b16 %v7782
    %v8530 = vunpack.c.l.b16 %v7783
    %v8531 = vunpack.c.l.b16 %v7784
    %v8532 = vunpack.c.l.b16 %v7785
    %v8533 = vpack.c.b16 %v8526, %v8525
    %v8534 = vpack.c.b16 %v8528, %v8527
    %v8535 = vpack.c.b16 %v8530, %v8529
    %v8536 = vpack.c.b16 %v8532, %v8531
    %v8537 = vunpack.c.l.b16 %v985
    %v8538 = vunpack.c.l.b16 %v987
    %v8539 = vunpack.c.l.b16 %v989
    %v8540 = vunpack.c.l.b16 %v991
    %v8541 = vunpack.c.l.b16 %v993
    %v8542 = vunpack.c.l.b16 %v995
    %v8543 = vunpack.c.l.b16 %v997
    %v8544 = vunpack.c.l.b16 %v999
    %v8545 = vpack.c.b16 %v8538, %v8537
    %v8546 = vpack.c.b16 %v8540, %v8539
    %v8547 = vpack.c.b16 %v8542, %v8541
    %v8548 = vpack.c.b16 %v8544, %v8543
    %v8554 = vsel %vm4905, %v8533, 0
    %v8557 = vsel %vm4905, %v8534, 0
    %v8560 = vsel %vm4905, %v8535, 0
    %v8563 = vsel %vm4905, %v8536, 0
    %8565 = vmatpush.bf16.msra.mxu0 0
    %8566 = vmatpush.bf16.msra.mxu0 0
    %8567 = vmatpush.bf16.msra.mxu0 0
    %8568 = vmatpush.bf16.msra.mxu0 0
    %8569 = vmatpush.bf16.msra.mxu0 %v8548
    %8570 = vmatpush.bf16.msra.mxu0 %v8547
    %8571 = vmatpush.bf16.msra.mxu0 %v8546
    %8572 = vmatpush.bf16.msra.mxu0 %v8545
    %8573 = vmatmul.bf16.gmra.mxu0 %v8554
    %v8574 = vpop.f32.mrf.mxu0
    %v8575 = vadd.f32 0.0, %v8574
    %v8576 = vpop.f32.mrf.mxu0
    %v8577 = vadd.f32 0.0, %v8576
    %8578 = vmatmul.bf16.gmra.mxu0 %v8557
    %v8579 = vpop.f32.mrf.mxu0
    %v8580 = vadd.f32 0.0, %v8579
    %v8581 = vpop.f32.mrf.mxu0
    %v8582 = vadd.f32 0.0, %v8581
    %8583 = vmatmul.bf16.gmra.mxu0 %v8560
    %v8584 = vpop.f32.mrf.mxu0
    %v8585 = vadd.f32 0.0, %v8584
    %v8586 = vpop.f32.mrf.mxu0
    %v8587 = vadd.f32 0.0, %v8586
    %8588 = vmatmul.bf16.gmra.mxu0 %v8563
    %v8589 = vpop.f32.mrf.mxu0
    %v8590 = vadd.f32 0.0, %v8589
    %v8591 = vpop.f32.mrf.mxu0
    %v8592 = vadd.f32 0.0, %v8591
    %8593 = vdwg.mxu0
    %v8602 = vunpack.c.l.b16 %v7786
    %v8603 = vunpack.c.l.b16 %v7787
    %v8604 = vunpack.c.l.b16 %v7788
    %v8605 = vunpack.c.l.b16 %v7789
    %v8606 = vunpack.c.l.b16 %v7790
    %v8607 = vunpack.c.l.b16 %v7791
    %v8608 = vunpack.c.l.b16 %v7792
    %v8609 = vunpack.c.l.b16 %v7793
    %v8610 = vpack.c.b16 %v8603, %v8602
    %v8611 = vpack.c.b16 %v8605, %v8604
    %v8612 = vpack.c.b16 %v8607, %v8606
    %v8613 = vpack.c.b16 %v8609, %v8608
    %v8614 = vunpack.c.l.b16 %v1769
    %v8615 = vunpack.c.l.b16 %v1771
    %v8616 = vunpack.c.l.b16 %v1773
    %v8617 = vunpack.c.l.b16 %v1775
    %v8618 = vunpack.c.l.b16 %v1777
    %v8619 = vunpack.c.l.b16 %v1779
    %v8620 = vunpack.c.l.b16 %v1781
    %v8621 = vunpack.c.l.b16 %v1783
    %v8622 = vpack.c.b16 %v8615, %v8614
    %v8623 = vpack.c.b16 %v8617, %v8616
    %v8624 = vpack.c.b16 %v8619, %v8618
    %v8625 = vpack.c.b16 %v8621, %v8620
    %v8631 = vsel %vm4905, %v8610, 0
    %v8634 = vsel %vm4905, %v8611, 0
    %v8637 = vsel %vm4905, %v8612, 0
    %v8640 = vsel %vm4905, %v8613, 0
    %8642 = vmatpush.bf16.msra.mxu0 0
    %8643 = vmatpush.bf16.msra.mxu0 0
    %8644 = vmatpush.bf16.msra.mxu0 0
    %8645 = vmatpush.bf16.msra.mxu0 0
    %8646 = vmatpush.bf16.msra.mxu0 %v8625
    %8647 = vmatpush.bf16.msra.mxu0 %v8624
    %8648 = vmatpush.bf16.msra.mxu0 %v8623
    %8649 = vmatpush.bf16.msra.mxu0 %v8622
    %8650 = vmatmul.bf16.gmra.mxu0 %v8631
    %v8651 = vpop.f32.mrf.mxu0
    %v8652 = vadd.f32 0.0, %v8651
    %v8653 = vpop.f32.mrf.mxu0
    %v8654 = vadd.f32 0.0, %v8653
    %8655 = vmatmul.bf16.gmra.mxu0 %v8634
    %v8656 = vpop.f32.mrf.mxu0
    %v8657 = vadd.f32 0.0, %v8656
    %v8658 = vpop.f32.mrf.mxu0
    %v8659 = vadd.f32 0.0, %v8658
    %8660 = vmatmul.bf16.gmra.mxu0 %v8637
    %v8661 = vpop.f32.mrf.mxu0
    %v8662 = vadd.f32 0.0, %v8661
    %v8663 = vpop.f32.mrf.mxu0
    %v8664 = vadd.f32 0.0, %v8663
    %8665 = vmatmul.bf16.gmra.mxu0 %v8640
    %v8666 = vpop.f32.mrf.mxu0
    %v8667 = vadd.f32 0.0, %v8666
    %v8668 = vpop.f32.mrf.mxu0
    %v8669 = vadd.f32 0.0, %v8668
    %8670 = vdwg.mxu0
    %v8679 = vunpack.c.l.b16 %v7794
    %v8680 = vunpack.c.l.b16 %v7795
    %v8681 = vunpack.c.l.b16 %v7796
    %v8682 = vunpack.c.l.b16 %v7797
    %v8683 = vunpack.c.l.b16 %v7798
    %v8684 = vunpack.c.l.b16 %v7799
    %v8685 = vunpack.c.l.b16 %v7800
    %v8686 = vunpack.c.l.b16 %v7801
    %v8687 = vpack.c.b16 %v8680, %v8679
    %v8688 = vpack.c.b16 %v8682, %v8681
    %v8689 = vpack.c.b16 %v8684, %v8683
    %v8690 = vpack.c.b16 %v8686, %v8685
    %v8691 = vunpack.c.l.b16 %v1785
    %v8692 = vunpack.c.l.b16 %v1787
    %v8693 = vunpack.c.l.b16 %v1789
    %v8694 = vunpack.c.l.b16 %v1791
    %v8695 = vunpack.c.l.b16 %v1793
    %v8696 = vunpack.c.l.b16 %v1795
    %v8697 = vunpack.c.l.b16 %v1797
    %v8698 = vunpack.c.l.b16 %v1799
    %v8699 = vpack.c.b16 %v8692, %v8691
    %v8700 = vpack.c.b16 %v8694, %v8693
    %v8701 = vpack.c.b16 %v8696, %v8695
    %v8702 = vpack.c.b16 %v8698, %v8697
    %v8708 = vsel %vm4905, %v8687, 0
    %v8711 = vsel %vm4905, %v8688, 0
    %v8714 = vsel %vm4905, %v8689, 0
    %v8717 = vsel %vm4905, %v8690, 0
    %8719 = vmatpush.bf16.msra.mxu0 0
    %8720 = vmatpush.bf16.msra.mxu0 0
    %8721 = vmatpush.bf16.msra.mxu0 0
    %8722 = vmatpush.bf16.msra.mxu0 0
    %8723 = vmatpush.bf16.msra.mxu0 %v8702
    %8724 = vmatpush.bf16.msra.mxu0 %v8701
    %8725 = vmatpush.bf16.msra.mxu0 %v8700
    %8726 = vmatpush.bf16.msra.mxu0 %v8699
    %8727 = vmatmul.bf16.gmra.mxu0 %v8708
    %v8728 = vpop.f32.mrf.mxu0
    %v8729 = vadd.f32 0.0, %v8728
    %v8730 = vpop.f32.mrf.mxu0
    %v8731 = vadd.f32 0.0, %v8730
    %8732 = vmatmul.bf16.gmra.mxu0 %v8711
    %v8733 = vpop.f32.mrf.mxu0
    %v8734 = vadd.f32 0.0, %v8733
    %v8735 = vpop.f32.mrf.mxu0
    %v8736 = vadd.f32 0.0, %v8735
    %8737 = vmatmul.bf16.gmra.mxu0 %v8714
    %v8738 = vpop.f32.mrf.mxu0
    %v8739 = vadd.f32 0.0, %v8738
    %v8740 = vpop.f32.mrf.mxu0
    %v8741 = vadd.f32 0.0, %v8740
    %8742 = vmatmul.bf16.gmra.mxu0 %v8717
    %v8743 = vpop.f32.mrf.mxu0
    %v8744 = vadd.f32 0.0, %v8743
    %v8745 = vpop.f32.mrf.mxu0
    %v8746 = vadd.f32 0.0, %v8745
    %8747 = vdwg.mxu0
    %v8756 = vunpack.c.l.b16 %v7802
    %v8757 = vunpack.c.l.b16 %v7803
    %v8758 = vunpack.c.l.b16 %v7804
    %v8759 = vunpack.c.l.b16 %v7805
    %v8760 = vunpack.c.l.b16 %v7806
    %v8761 = vunpack.c.l.b16 %v7807
    %v8762 = vunpack.c.l.b16 %v7808
    %v8763 = vunpack.c.l.b16 %v7809
    %v8764 = vpack.c.b16 %v8757, %v8756
    %v8765 = vpack.c.b16 %v8759, %v8758
    %v8766 = vpack.c.b16 %v8761, %v8760
    %v8767 = vpack.c.b16 %v8763, %v8762
    %v8768 = vunpack.c.l.b16 %v1801
    %v8769 = vunpack.c.l.b16 %v1803
    %v8770 = vunpack.c.l.b16 %v1805
    %v8771 = vunpack.c.l.b16 %v1807
    %v8772 = vunpack.c.l.b16 %v1809
    %v8773 = vunpack.c.l.b16 %v1811
    %v8774 = vunpack.c.l.b16 %v1813
    %v8775 = vunpack.c.l.b16 %v1815
    %v8776 = vpack.c.b16 %v8769, %v8768
    %v8777 = vpack.c.b16 %v8771, %v8770
    %v8778 = vpack.c.b16 %v8773, %v8772
    %v8779 = vpack.c.b16 %v8775, %v8774
    %v8785 = vsel %vm4905, %v8764, 0
    %v8788 = vsel %vm4905, %v8765, 0
    %v8791 = vsel %vm4905, %v8766, 0
    %v8794 = vsel %vm4905, %v8767, 0
    %8796 = vmatpush.bf16.msra.mxu0 0
    %8797 = vmatpush.bf16.msra.mxu0 0
    %8798 = vmatpush.bf16.msra.mxu0 0
    %8799 = vmatpush.bf16.msra.mxu0 0
    %8800 = vmatpush.bf16.msra.mxu0 %v8779
    %8801 = vmatpush.bf16.msra.mxu0 %v8778
    %8802 = vmatpush.bf16.msra.mxu0 %v8777
    %8803 = vmatpush.bf16.msra.mxu0 %v8776
    %8804 = vmatmul.bf16.gmra.mxu0 %v8785
    %v8805 = vpop.f32.mrf.mxu0
    %v8806 = vadd.f32 0.0, %v8805
    %v8807 = vpop.f32.mrf.mxu0
    %v8808 = vadd.f32 0.0, %v8807
    %8809 = vmatmul.bf16.gmra.mxu0 %v8788
    %v8810 = vpop.f32.mrf.mxu0
    %v8811 = vadd.f32 0.0, %v8810
    %v8812 = vpop.f32.mrf.mxu0
    %v8813 = vadd.f32 0.0, %v8812
    %8814 = vmatmul.bf16.gmra.mxu0 %v8791
    %v8815 = vpop.f32.mrf.mxu0
    %v8816 = vadd.f32 0.0, %v8815
    %v8817 = vpop.f32.mrf.mxu0
    %v8818 = vadd.f32 0.0, %v8817
    %8819 = vmatmul.bf16.gmra.mxu0 %v8794
    %v8820 = vpop.f32.mrf.mxu0
    %v8821 = vadd.f32 0.0, %v8820
    %v8822 = vpop.f32.mrf.mxu0
    %v8823 = vadd.f32 0.0, %v8822
    %8824 = vdwg.mxu0
    %v8833 = vunpack.c.l.b16 %v7810
    %v8834 = vunpack.c.l.b16 %v7811
    %v8835 = vunpack.c.l.b16 %v7812
    %v8836 = vunpack.c.l.b16 %v7813
    %v8837 = vunpack.c.l.b16 %v7814
    %v8838 = vunpack.c.l.b16 %v7815
    %v8839 = vunpack.c.l.b16 %v7816
    %v8840 = vunpack.c.l.b16 %v7817
    %v8841 = vpack.c.b16 %v8834, %v8833
    %v8842 = vpack.c.b16 %v8836, %v8835
    %v8843 = vpack.c.b16 %v8838, %v8837
    %v8844 = vpack.c.b16 %v8840, %v8839
    %v8845 = vunpack.c.l.b16 %v1817
    %v8846 = vunpack.c.l.b16 %v1819
    %v8847 = vunpack.c.l.b16 %v1821
    %v8848 = vunpack.c.l.b16 %v1823
    %v8849 = vunpack.c.l.b16 %v1825
    %v8850 = vunpack.c.l.b16 %v1827
    %v8851 = vunpack.c.l.b16 %v1829
    %v8852 = vunpack.c.l.b16 %v1831
    %v8853 = vpack.c.b16 %v8846, %v8845
    %v8854 = vpack.c.b16 %v8848, %v8847
    %v8855 = vpack.c.b16 %v8850, %v8849
    %v8856 = vpack.c.b16 %v8852, %v8851
    %v8862 = vsel %vm4905, %v8841, 0
    %v8865 = vsel %vm4905, %v8842, 0
    %v8868 = vsel %vm4905, %v8843, 0
    %v8871 = vsel %vm4905, %v8844, 0
    %8873 = vmatpush.bf16.msra.mxu0 0
    %8874 = vmatpush.bf16.msra.mxu0 0
    %8875 = vmatpush.bf16.msra.mxu0 0
    %8876 = vmatpush.bf16.msra.mxu0 0
    %8877 = vmatpush.bf16.msra.mxu0 %v8856
    %8878 = vmatpush.bf16.msra.mxu0 %v8855
    %8879 = vmatpush.bf16.msra.mxu0 %v8854
    %8880 = vmatpush.bf16.msra.mxu0 %v8853
    %8881 = vmatmul.bf16.gmra.mxu0 %v8862
    %v8882 = vpop.f32.mrf.mxu0
    %v8883 = vadd.f32 0.0, %v8882
    %v8884 = vpop.f32.mrf.mxu0
    %v8885 = vadd.f32 0.0, %v8884
    %8886 = vmatmul.bf16.gmra.mxu0 %v8865
    %v8887 = vpop.f32.mrf.mxu0
    %v8888 = vadd.f32 0.0, %v8887
    %v8889 = vpop.f32.mrf.mxu0
    %v8890 = vadd.f32 0.0, %v8889
    %8891 = vmatmul.bf16.gmra.mxu0 %v8868
    %v8892 = vpop.f32.mrf.mxu0
    %v8893 = vadd.f32 0.0, %v8892
    %v8894 = vpop.f32.mrf.mxu0
    %v8895 = vadd.f32 0.0, %v8894
    %8896 = vmatmul.bf16.gmra.mxu0 %v8871
    %v8897 = vpop.f32.mrf.mxu0
    %v8898 = vadd.f32 0.0, %v8897
    %v8899 = vpop.f32.mrf.mxu0
    %v8900 = vadd.f32 0.0, %v8899
    %8901 = vdwg.mxu0
    %v8910 = vunpack.c.l.b16 %v7818
    %v8911 = vunpack.c.l.b16 %v7819
    %v8912 = vunpack.c.l.b16 %v7820
    %v8913 = vunpack.c.l.b16 %v7821
    %v8914 = vunpack.c.l.b16 %v7822
    %v8915 = vunpack.c.l.b16 %v7823
    %v8916 = vunpack.c.l.b16 %v7824
    %v8917 = vunpack.c.l.b16 %v7825
    %v8918 = vpack.c.b16 %v8911, %v8910
    %v8919 = vpack.c.b16 %v8913, %v8912
    %v8920 = vpack.c.b16 %v8915, %v8914
    %v8921 = vpack.c.b16 %v8917, %v8916
    %v8922 = vunpack.c.l.b16 %v1833
    %v8923 = vunpack.c.l.b16 %v1835
    %v8924 = vunpack.c.l.b16 %v1837
    %v8925 = vunpack.c.l.b16 %v1839
    %v8926 = vunpack.c.l.b16 %v1841
    %v8927 = vunpack.c.l.b16 %v1843
    %v8928 = vunpack.c.l.b16 %v1845
    %v8929 = vunpack.c.l.b16 %v1847
    %v8930 = vpack.c.b16 %v8923, %v8922
    %v8931 = vpack.c.b16 %v8925, %v8924
    %v8932 = vpack.c.b16 %v8927, %v8926
    %v8933 = vpack.c.b16 %v8929, %v8928
    %v8939 = vsel %vm4905, %v8918, 0
    %v8942 = vsel %vm4905, %v8919, 0
    %v8945 = vsel %vm4905, %v8920, 0
    %v8948 = vsel %vm4905, %v8921, 0
    %8950 = vmatpush.bf16.msra.mxu0 0
    %8951 = vmatpush.bf16.msra.mxu0 0
    %8952 = vmatpush.bf16.msra.mxu0 0
    %8953 = vmatpush.bf16.msra.mxu0 0
    %8954 = vmatpush.bf16.msra.mxu0 %v8933
    %8955 = vmatpush.bf16.msra.mxu0 %v8932
    %8956 = vmatpush.bf16.msra.mxu0 %v8931
    %8957 = vmatpush.bf16.msra.mxu0 %v8930
    %8958 = vmatmul.bf16.gmra.mxu0 %v8939
    %v8959 = vpop.f32.mrf.mxu0
    %v8960 = vadd.f32 0.0, %v8959
    %v8961 = vpop.f32.mrf.mxu0
    %v8962 = vadd.f32 0.0, %v8961
    %8963 = vmatmul.bf16.gmra.mxu0 %v8942
    %v8964 = vpop.f32.mrf.mxu0
    %v8965 = vadd.f32 0.0, %v8964
    %v8966 = vpop.f32.mrf.mxu0
    %v8967 = vadd.f32 0.0, %v8966
    %8968 = vmatmul.bf16.gmra.mxu0 %v8945
    %v8969 = vpop.f32.mrf.mxu0
    %v8970 = vadd.f32 0.0, %v8969
    %v8971 = vpop.f32.mrf.mxu0
    %v8972 = vadd.f32 0.0, %v8971
    %8973 = vmatmul.bf16.gmra.mxu0 %v8948
    %v8974 = vpop.f32.mrf.mxu0
    %v8975 = vadd.f32 0.0, %v8974
    %v8976 = vpop.f32.mrf.mxu0
    %v8977 = vadd.f32 0.0, %v8976
    %8978 = vdwg.mxu0
    %v8987 = vunpack.c.l.b16 %v7826
    %v8988 = vunpack.c.l.b16 %v7827
    %v8989 = vunpack.c.l.b16 %v7828
    %v8990 = vunpack.c.l.b16 %v7829
    %v8991 = vunpack.c.l.b16 %v7830
    %v8992 = vunpack.c.l.b16 %v7831
    %v8993 = vunpack.c.l.b16 %v7832
    %v8994 = vunpack.c.l.b16 %v7833
    %v8995 = vpack.c.b16 %v8988, %v8987
    %v8996 = vpack.c.b16 %v8990, %v8989
    %v8997 = vpack.c.b16 %v8992, %v8991
    %v8998 = vpack.c.b16 %v8994, %v8993
    %v8999 = vunpack.c.l.b16 %v1849
    %v9000 = vunpack.c.l.b16 %v1851
    %v9001 = vunpack.c.l.b16 %v1853
    %v9002 = vunpack.c.l.b16 %v1855
    %v9003 = vunpack.c.l.b16 %v1857
    %v9004 = vunpack.c.l.b16 %v1859
    %v9005 = vunpack.c.l.b16 %v1861
    %v9006 = vunpack.c.l.b16 %v1863
    %v9007 = vpack.c.b16 %v9000, %v8999
    %v9008 = vpack.c.b16 %v9002, %v9001
    %v9009 = vpack.c.b16 %v9004, %v9003
    %v9010 = vpack.c.b16 %v9006, %v9005
    %v9016 = vsel %vm4905, %v8995, 0
    %v9019 = vsel %vm4905, %v8996, 0
    %v9022 = vsel %vm4905, %v8997, 0
    %v9025 = vsel %vm4905, %v8998, 0
    %9027 = vmatpush.bf16.msra.mxu0 0
    %9028 = vmatpush.bf16.msra.mxu0 0
    %9029 = vmatpush.bf16.msra.mxu0 0
    %9030 = vmatpush.bf16.msra.mxu0 0
    %9031 = vmatpush.bf16.msra.mxu0 %v9010
    %9032 = vmatpush.bf16.msra.mxu0 %v9009
    %9033 = vmatpush.bf16.msra.mxu0 %v9008
    %9034 = vmatpush.bf16.msra.mxu0 %v9007
    %9035 = vmatmul.bf16.gmra.mxu0 %v9016
    %v9036 = vpop.f32.mrf.mxu0
    %v9037 = vadd.f32 0.0, %v9036
    %v9038 = vpop.f32.mrf.mxu0
    %v9039 = vadd.f32 0.0, %v9038
    %9040 = vmatmul.bf16.gmra.mxu0 %v9019
    %v9041 = vpop.f32.mrf.mxu0
    %v9042 = vadd.f32 0.0, %v9041
    %v9043 = vpop.f32.mrf.mxu0
    %v9044 = vadd.f32 0.0, %v9043
    %9045 = vmatmul.bf16.gmra.mxu0 %v9022
    %v9046 = vpop.f32.mrf.mxu0
    %v9047 = vadd.f32 0.0, %v9046
    %v9048 = vpop.f32.mrf.mxu0
    %v9049 = vadd.f32 0.0, %v9048
    %9050 = vmatmul.bf16.gmra.mxu0 %v9025
    %v9051 = vpop.f32.mrf.mxu0
    %v9052 = vadd.f32 0.0, %v9051
    %v9053 = vpop.f32.mrf.mxu0
    %v9054 = vadd.f32 0.0, %v9053
    %9055 = vdwg.mxu0
    %v9064 = vunpack.c.l.b16 %v7834
    %v9065 = vunpack.c.l.b16 %v7835
    %v9066 = vunpack.c.l.b16 %v7836
    %v9067 = vunpack.c.l.b16 %v7837
    %v9068 = vunpack.c.l.b16 %v7838
    %v9069 = vunpack.c.l.b16 %v7839
    %v9070 = vunpack.c.l.b16 %v7840
    %v9071 = vunpack.c.l.b16 %v7841
    %v9072 = vpack.c.b16 %v9065, %v9064
    %v9073 = vpack.c.b16 %v9067, %v9066
    %v9074 = vpack.c.b16 %v9069, %v9068
    %v9075 = vpack.c.b16 %v9071, %v9070
    %v9076 = vunpack.c.l.b16 %v1865
    %v9077 = vunpack.c.l.b16 %v1867
    %v9078 = vunpack.c.l.b16 %v1869
    %v9079 = vunpack.c.l.b16 %v1871
    %v9080 = vunpack.c.l.b16 %v1873
    %v9081 = vunpack.c.l.b16 %v1875
    %v9082 = vunpack.c.l.b16 %v1877
    %v9083 = vunpack.c.l.b16 %v1879
    %v9084 = vpack.c.b16 %v9077, %v9076
    %v9085 = vpack.c.b16 %v9079, %v9078
    %v9086 = vpack.c.b16 %v9081, %v9080
    %v9087 = vpack.c.b16 %v9083, %v9082
    %v9093 = vsel %vm4905, %v9072, 0
    %v9096 = vsel %vm4905, %v9073, 0
    %v9099 = vsel %vm4905, %v9074, 0
    %v9102 = vsel %vm4905, %v9075, 0
    %9104 = vmatpush.bf16.msra.mxu0 0
    %9105 = vmatpush.bf16.msra.mxu0 0
    %9106 = vmatpush.bf16.msra.mxu0 0
    %9107 = vmatpush.bf16.msra.mxu0 0
    %9108 = vmatpush.bf16.msra.mxu0 %v9087
    %9109 = vmatpush.bf16.msra.mxu0 %v9086
    %9110 = vmatpush.bf16.msra.mxu0 %v9085
    %9111 = vmatpush.bf16.msra.mxu0 %v9084
    %9112 = vmatmul.bf16.gmra.mxu0 %v9093
    %v9113 = vpop.f32.mrf.mxu0
    %v9114 = vadd.f32 0.0, %v9113
    %v9115 = vpop.f32.mrf.mxu0
    %v9116 = vadd.f32 0.0, %v9115
    %9117 = vmatmul.bf16.gmra.mxu0 %v9096
    %v9118 = vpop.f32.mrf.mxu0
    %v9119 = vadd.f32 0.0, %v9118
    %v9120 = vpop.f32.mrf.mxu0
    %v9121 = vadd.f32 0.0, %v9120
    %9122 = vmatmul.bf16.gmra.mxu0 %v9099
    %v9123 = vpop.f32.mrf.mxu0
    %v9124 = vadd.f32 0.0, %v9123
    %v9125 = vpop.f32.mrf.mxu0
    %v9126 = vadd.f32 0.0, %v9125
    %9127 = vmatmul.bf16.gmra.mxu0 %v9102
    %v9128 = vpop.f32.mrf.mxu0
    %v9129 = vadd.f32 0.0, %v9128
    %v9130 = vpop.f32.mrf.mxu0
    %v9131 = vadd.f32 0.0, %v9130
    %9132 = vdwg.mxu0
    %v9141 = vunpack.c.l.b16 %v7842
    %v9142 = vunpack.c.l.b16 %v7843
    %v9143 = vunpack.c.l.b16 %v7844
    %v9144 = vunpack.c.l.b16 %v7845
    %v9145 = vunpack.c.l.b16 %v7846
    %v9146 = vunpack.c.l.b16 %v7847
    %v9147 = vunpack.c.l.b16 %v7848
    %v9148 = vunpack.c.l.b16 %v7849
    %v9149 = vpack.c.b16 %v9142, %v9141
    %v9150 = vpack.c.b16 %v9144, %v9143
    %v9151 = vpack.c.b16 %v9146, %v9145
    %v9152 = vpack.c.b16 %v9148, %v9147
    %v9153 = vunpack.c.l.b16 %v1881
    %v9154 = vunpack.c.l.b16 %v1883
    %v9155 = vunpack.c.l.b16 %v1885
    %v9156 = vunpack.c.l.b16 %v1887
    %v9157 = vunpack.c.l.b16 %v1889
    %v9158 = vunpack.c.l.b16 %v1891
    %v9159 = vunpack.c.l.b16 %v1893
    %v9160 = vunpack.c.l.b16 %v1895
    %v9161 = vpack.c.b16 %v9154, %v9153
    %v9162 = vpack.c.b16 %v9156, %v9155
    %v9163 = vpack.c.b16 %v9158, %v9157
    %v9164 = vpack.c.b16 %v9160, %v9159
    %v9170 = vsel %vm4905, %v9149, 0
    %v9173 = vsel %vm4905, %v9150, 0
    %v9176 = vsel %vm4905, %v9151, 0
    %v9179 = vsel %vm4905, %v9152, 0
    %9181 = vmatpush.bf16.msra.mxu0 0
    %9182 = vmatpush.bf16.msra.mxu0 0
    %9183 = vmatpush.bf16.msra.mxu0 0
    %9184 = vmatpush.bf16.msra.mxu0 0
    %9185 = vmatpush.bf16.msra.mxu0 %v9164
    %9186 = vmatpush.bf16.msra.mxu0 %v9163
    %9187 = vmatpush.bf16.msra.mxu0 %v9162
    %9188 = vmatpush.bf16.msra.mxu0 %v9161
    %9189 = vmatmul.bf16.gmra.mxu0 %v9170
    %v9190 = vpop.f32.mrf.mxu0
    %v9191 = vadd.f32 0.0, %v9190
    %v9192 = vpop.f32.mrf.mxu0
    %v9193 = vadd.f32 0.0, %v9192
    %9194 = vmatmul.bf16.gmra.mxu0 %v9173
    %v9195 = vpop.f32.mrf.mxu0
    %v9196 = vadd.f32 0.0, %v9195
    %v9197 = vpop.f32.mrf.mxu0
    %v9198 = vadd.f32 0.0, %v9197
    %9199 = vmatmul.bf16.gmra.mxu0 %v9176
    %v9200 = vpop.f32.mrf.mxu0
    %v9201 = vadd.f32 0.0, %v9200
    %v9202 = vpop.f32.mrf.mxu0
    %v9203 = vadd.f32 0.0, %v9202
    %9204 = vmatmul.bf16.gmra.mxu0 %v9179
    %v9205 = vpop.f32.mrf.mxu0
    %v9206 = vadd.f32 0.0, %v9205
    %v9207 = vpop.f32.mrf.mxu0
    %v9208 = vadd.f32 0.0, %v9207
    %9209 = vdwg.mxu0
    %v9218 = vunpack.c.l.b16 %v7850
    %v9219 = vunpack.c.l.b16 %v7851
    %v9220 = vunpack.c.l.b16 %v7852
    %v9221 = vunpack.c.l.b16 %v7853
    %v9222 = vunpack.c.l.b16 %v7854
    %v9223 = vunpack.c.l.b16 %v7855
    %v9224 = vunpack.c.l.b16 %v7856
    %v9225 = vunpack.c.l.b16 %v7857
    %v9226 = vpack.c.b16 %v9219, %v9218
    %v9227 = vpack.c.b16 %v9221, %v9220
    %v9228 = vpack.c.b16 %v9223, %v9222
    %v9229 = vpack.c.b16 %v9225, %v9224
    %v9230 = vunpack.c.l.b16 %v1897
    %v9231 = vunpack.c.l.b16 %v1899
    %v9232 = vunpack.c.l.b16 %v1901
    %v9233 = vunpack.c.l.b16 %v1903
    %v9234 = vunpack.c.l.b16 %v1905
    %v9235 = vunpack.c.l.b16 %v1907
    %v9236 = vunpack.c.l.b16 %v1909
    %v9237 = vunpack.c.l.b16 %v1911
    %v9238 = vpack.c.b16 %v9231, %v9230
    %v9239 = vpack.c.b16 %v9233, %v9232
    %v9240 = vpack.c.b16 %v9235, %v9234
    %v9241 = vpack.c.b16 %v9237, %v9236
    %v9247 = vsel %vm4905, %v9226, 0
    %v9250 = vsel %vm4905, %v9227, 0
    %v9253 = vsel %vm4905, %v9228, 0
    %v9256 = vsel %vm4905, %v9229, 0
    %9258 = vmatpush.bf16.msra.mxu0 0
    %9259 = vmatpush.bf16.msra.mxu0 0
    %9260 = vmatpush.bf16.msra.mxu0 0
    %9261 = vmatpush.bf16.msra.mxu0 0
    %9262 = vmatpush.bf16.msra.mxu0 %v9241
    %9263 = vmatpush.bf16.msra.mxu0 %v9240
    %9264 = vmatpush.bf16.msra.mxu0 %v9239
    %9265 = vmatpush.bf16.msra.mxu0 %v9238
    %9266 = vmatmul.bf16.gmra.mxu0 %v9247
    %v9267 = vpop.f32.mrf.mxu0
    %v9268 = vadd.f32 0.0, %v9267
    %v9269 = vpop.f32.mrf.mxu0
    %v9270 = vadd.f32 0.0, %v9269
    %9271 = vmatmul.bf16.gmra.mxu0 %v9250
    %v9272 = vpop.f32.mrf.mxu0
    %v9273 = vadd.f32 0.0, %v9272
    %v9274 = vpop.f32.mrf.mxu0
    %v9275 = vadd.f32 0.0, %v9274
    %9276 = vmatmul.bf16.gmra.mxu0 %v9253
    %v9277 = vpop.f32.mrf.mxu0
    %v9278 = vadd.f32 0.0, %v9277
    %v9279 = vpop.f32.mrf.mxu0
    %v9280 = vadd.f32 0.0, %v9279
    %9281 = vmatmul.bf16.gmra.mxu0 %v9256
    %v9282 = vpop.f32.mrf.mxu0
    %v9283 = vadd.f32 0.0, %v9282
    %v9284 = vpop.f32.mrf.mxu0
    %v9285 = vadd.f32 0.0, %v9284
    %9286 = vdwg.mxu0
    %v9295 = vunpack.c.l.b16 %v7858
    %v9296 = vunpack.c.l.b16 %v7859
    %v9297 = vunpack.c.l.b16 %v7860
    %v9298 = vunpack.c.l.b16 %v7861
    %v9299 = vunpack.c.l.b16 %v7862
    %v9300 = vunpack.c.l.b16 %v7863
    %v9301 = vunpack.c.l.b16 %v7864
    %v9302 = vunpack.c.l.b16 %v7865
    %v9303 = vpack.c.b16 %v9296, %v9295
    %v9304 = vpack.c.b16 %v9298, %v9297
    %v9305 = vpack.c.b16 %v9300, %v9299
    %v9306 = vpack.c.b16 %v9302, %v9301
    %v9307 = vunpack.c.l.b16 %v1913
    %v9308 = vunpack.c.l.b16 %v1915
    %v9309 = vunpack.c.l.b16 %v1917
    %v9310 = vunpack.c.l.b16 %v1919
    %v9311 = vunpack.c.l.b16 %v1921
    %v9312 = vunpack.c.l.b16 %v1923
    %v9313 = vunpack.c.l.b16 %v1925
    %v9314 = vunpack.c.l.b16 %v1927
    %v9315 = vpack.c.b16 %v9308, %v9307
    %v9316 = vpack.c.b16 %v9310, %v9309
    %v9317 = vpack.c.b16 %v9312, %v9311
    %v9318 = vpack.c.b16 %v9314, %v9313
    %v9324 = vsel %vm4905, %v9303, 0
    %v9327 = vsel %vm4905, %v9304, 0
    %v9330 = vsel %vm4905, %v9305, 0
    %v9333 = vsel %vm4905, %v9306, 0
    %9335 = vmatpush.bf16.msra.mxu0 0
    %9336 = vmatpush.bf16.msra.mxu0 0
    %9337 = vmatpush.bf16.msra.mxu0 0
    %9338 = vmatpush.bf16.msra.mxu0 0
    %9339 = vmatpush.bf16.msra.mxu0 %v9318
    %9340 = vmatpush.bf16.msra.mxu0 %v9317
    %9341 = vmatpush.bf16.msra.mxu0 %v9316
    %9342 = vmatpush.bf16.msra.mxu0 %v9315
    %9343 = vmatmul.bf16.gmra.mxu0 %v9324
    %v9344 = vpop.f32.mrf.mxu0
    %v9345 = vadd.f32 0.0, %v9344
    %v9346 = vpop.f32.mrf.mxu0
    %v9347 = vadd.f32 0.0, %v9346
    %9348 = vmatmul.bf16.gmra.mxu0 %v9327
    %v9349 = vpop.f32.mrf.mxu0
    %v9350 = vadd.f32 0.0, %v9349
    %v9351 = vpop.f32.mrf.mxu0
    %v9352 = vadd.f32 0.0, %v9351
    %9353 = vmatmul.bf16.gmra.mxu0 %v9330
    %v9354 = vpop.f32.mrf.mxu0
    %v9355 = vadd.f32 0.0, %v9354
    %v9356 = vpop.f32.mrf.mxu0
    %v9357 = vadd.f32 0.0, %v9356
    %9358 = vmatmul.bf16.gmra.mxu0 %v9333
    %v9359 = vpop.f32.mrf.mxu0
    %v9360 = vadd.f32 0.0, %v9359
    %v9361 = vpop.f32.mrf.mxu0
    %v9362 = vadd.f32 0.0, %v9361
    %9363 = vdwg.mxu0
    %v9372 = vunpack.c.l.b16 %v7866
    %v9373 = vunpack.c.l.b16 %v7867
    %v9374 = vunpack.c.l.b16 %v7868
    %v9375 = vunpack.c.l.b16 %v7869
    %v9376 = vunpack.c.l.b16 %v7870
    %v9377 = vunpack.c.l.b16 %v7871
    %v9378 = vunpack.c.l.b16 %v7872
    %v9379 = vunpack.c.l.b16 %v7873
    %v9380 = vpack.c.b16 %v9373, %v9372
    %v9381 = vpack.c.b16 %v9375, %v9374
    %v9382 = vpack.c.b16 %v9377, %v9376
    %v9383 = vpack.c.b16 %v9379, %v9378
    %v9384 = vunpack.c.l.b16 %v1929
    %v9385 = vunpack.c.l.b16 %v1931
    %v9386 = vunpack.c.l.b16 %v1933
    %v9387 = vunpack.c.l.b16 %v1935
    %v9388 = vunpack.c.l.b16 %v1937
    %v9389 = vunpack.c.l.b16 %v1939
    %v9390 = vunpack.c.l.b16 %v1941
    %v9391 = vunpack.c.l.b16 %v1943
    %v9392 = vpack.c.b16 %v9385, %v9384
    %v9393 = vpack.c.b16 %v9387, %v9386
    %v9394 = vpack.c.b16 %v9389, %v9388
    %v9395 = vpack.c.b16 %v9391, %v9390
    %v9401 = vsel %vm4905, %v9380, 0
    %v9404 = vsel %vm4905, %v9381, 0
    %v9407 = vsel %vm4905, %v9382, 0
    %v9410 = vsel %vm4905, %v9383, 0
    %9412 = vmatpush.bf16.msra.mxu0 0
    %9413 = vmatpush.bf16.msra.mxu0 0
    %9414 = vmatpush.bf16.msra.mxu0 0
    %9415 = vmatpush.bf16.msra.mxu0 0
    %9416 = vmatpush.bf16.msra.mxu0 %v9395
    %9417 = vmatpush.bf16.msra.mxu0 %v9394
    %9418 = vmatpush.bf16.msra.mxu0 %v9393
    %9419 = vmatpush.bf16.msra.mxu0 %v9392
    %9420 = vmatmul.bf16.gmra.mxu0 %v9401
    %v9421 = vpop.f32.mrf.mxu0
    %v9422 = vadd.f32 0.0, %v9421
    %v9423 = vpop.f32.mrf.mxu0
    %v9424 = vadd.f32 0.0, %v9423
    %9425 = vmatmul.bf16.gmra.mxu0 %v9404
    %v9426 = vpop.f32.mrf.mxu0
    %v9427 = vadd.f32 0.0, %v9426
    %v9428 = vpop.f32.mrf.mxu0
    %v9429 = vadd.f32 0.0, %v9428
    %9430 = vmatmul.bf16.gmra.mxu0 %v9407
    %v9431 = vpop.f32.mrf.mxu0
    %v9432 = vadd.f32 0.0, %v9431
    %v9433 = vpop.f32.mrf.mxu0
    %v9434 = vadd.f32 0.0, %v9433
    %9435 = vmatmul.bf16.gmra.mxu0 %v9410
    %v9436 = vpop.f32.mrf.mxu0
    %v9437 = vadd.f32 0.0, %v9436
    %v9438 = vpop.f32.mrf.mxu0
    %v9439 = vadd.f32 0.0, %v9438
    %9440 = vdwg.mxu0
    %v9449 = vunpack.c.l.b16 %v7874
    %v9450 = vunpack.c.l.b16 %v7875
    %v9451 = vunpack.c.l.b16 %v7876
    %v9452 = vunpack.c.l.b16 %v7877
    %v9453 = vunpack.c.l.b16 %v7878
    %v9454 = vunpack.c.l.b16 %v7879
    %v9455 = vunpack.c.l.b16 %v7880
    %v9456 = vunpack.c.l.b16 %v7881
    %v9457 = vpack.c.b16 %v9450, %v9449
    %v9458 = vpack.c.b16 %v9452, %v9451
    %v9459 = vpack.c.b16 %v9454, %v9453
    %v9460 = vpack.c.b16 %v9456, %v9455
    %v9461 = vunpack.c.l.b16 %v1945
    %v9462 = vunpack.c.l.b16 %v1947
    %v9463 = vunpack.c.l.b16 %v1949
    %v9464 = vunpack.c.l.b16 %v1951
    %v9465 = vunpack.c.l.b16 %v1953
    %v9466 = vunpack.c.l.b16 %v1955
    %v9467 = vunpack.c.l.b16 %v1957
    %v9468 = vunpack.c.l.b16 %v1959
    %v9469 = vpack.c.b16 %v9462, %v9461
    %v9470 = vpack.c.b16 %v9464, %v9463
    %v9471 = vpack.c.b16 %v9466, %v9465
    %v9472 = vpack.c.b16 %v9468, %v9467
    %v9478 = vsel %vm4905, %v9457, 0
    %v9481 = vsel %vm4905, %v9458, 0
    %v9484 = vsel %vm4905, %v9459, 0
    %v9487 = vsel %vm4905, %v9460, 0
    %9489 = vmatpush.bf16.msra.mxu0 0
    %9490 = vmatpush.bf16.msra.mxu0 0
    %9491 = vmatpush.bf16.msra.mxu0 0
    %9492 = vmatpush.bf16.msra.mxu0 0
    %9493 = vmatpush.bf16.msra.mxu0 %v9472
    %9494 = vmatpush.bf16.msra.mxu0 %v9471
    %9495 = vmatpush.bf16.msra.mxu0 %v9470
    %9496 = vmatpush.bf16.msra.mxu0 %v9469
    %9497 = vmatmul.bf16.gmra.mxu0 %v9478
    %v9498 = vpop.f32.mrf.mxu0
    %v9499 = vadd.f32 0.0, %v9498
    %v9500 = vpop.f32.mrf.mxu0
    %v9501 = vadd.f32 0.0, %v9500
    %9502 = vmatmul.bf16.gmra.mxu0 %v9481
    %v9503 = vpop.f32.mrf.mxu0
    %v9504 = vadd.f32 0.0, %v9503
    %v9505 = vpop.f32.mrf.mxu0
    %v9506 = vadd.f32 0.0, %v9505
    %9507 = vmatmul.bf16.gmra.mxu0 %v9484
    %v9508 = vpop.f32.mrf.mxu0
    %v9509 = vadd.f32 0.0, %v9508
    %v9510 = vpop.f32.mrf.mxu0
    %v9511 = vadd.f32 0.0, %v9510
    %9512 = vmatmul.bf16.gmra.mxu0 %v9487
    %v9513 = vpop.f32.mrf.mxu0
    %v9514 = vadd.f32 0.0, %v9513
    %v9515 = vpop.f32.mrf.mxu0
    %v9516 = vadd.f32 0.0, %v9515
    %9517 = vdwg.mxu0
    %v9526 = vunpack.c.l.b16 %v7882
    %v9527 = vunpack.c.l.b16 %v7883
    %v9528 = vunpack.c.l.b16 %v7884
    %v9529 = vunpack.c.l.b16 %v7885
    %v9530 = vunpack.c.l.b16 %v7886
    %v9531 = vunpack.c.l.b16 %v7887
    %v9532 = vunpack.c.l.b16 %v7888
    %v9533 = vunpack.c.l.b16 %v7889
    %v9534 = vpack.c.b16 %v9527, %v9526
    %v9535 = vpack.c.b16 %v9529, %v9528
    %v9536 = vpack.c.b16 %v9531, %v9530
    %v9537 = vpack.c.b16 %v9533, %v9532
    %v9538 = vunpack.c.l.b16 %v1961
    %v9539 = vunpack.c.l.b16 %v1963
    %v9540 = vunpack.c.l.b16 %v1965
    %v9541 = vunpack.c.l.b16 %v1967
    %v9542 = vunpack.c.l.b16 %v1969
    %v9543 = vunpack.c.l.b16 %v1971
    %v9544 = vunpack.c.l.b16 %v1973
    %v9545 = vunpack.c.l.b16 %v1975
    %v9546 = vpack.c.b16 %v9539, %v9538
    %v9547 = vpack.c.b16 %v9541, %v9540
    %v9548 = vpack.c.b16 %v9543, %v9542
    %v9549 = vpack.c.b16 %v9545, %v9544
    %v9555 = vsel %vm4905, %v9534, 0
    %v9558 = vsel %vm4905, %v9535, 0
    %v9561 = vsel %vm4905, %v9536, 0
    %v9564 = vsel %vm4905, %v9537, 0
    %9566 = vmatpush.bf16.msra.mxu0 0
    %9567 = vmatpush.bf16.msra.mxu0 0
    %9568 = vmatpush.bf16.msra.mxu0 0
    %9569 = vmatpush.bf16.msra.mxu0 0
    %9570 = vmatpush.bf16.msra.mxu0 %v9549
    %9571 = vmatpush.bf16.msra.mxu0 %v9548
    %9572 = vmatpush.bf16.msra.mxu0 %v9547
    %9573 = vmatpush.bf16.msra.mxu0 %v9546
    %9574 = vmatmul.bf16.gmra.mxu0 %v9555
    %v9575 = vpop.f32.mrf.mxu0
    %v9576 = vadd.f32 0.0, %v9575
    %v9577 = vpop.f32.mrf.mxu0
    %v9578 = vadd.f32 0.0, %v9577
    %9579 = vmatmul.bf16.gmra.mxu0 %v9558
    %v9580 = vpop.f32.mrf.mxu0
    %v9581 = vadd.f32 0.0, %v9580
    %v9582 = vpop.f32.mrf.mxu0
    %v9583 = vadd.f32 0.0, %v9582
    %9584 = vmatmul.bf16.gmra.mxu0 %v9561
    %v9585 = vpop.f32.mrf.mxu0
    %v9586 = vadd.f32 0.0, %v9585
    %v9587 = vpop.f32.mrf.mxu0
    %v9588 = vadd.f32 0.0, %v9587
    %9589 = vmatmul.bf16.gmra.mxu0 %v9564
    %v9590 = vpop.f32.mrf.mxu0
    %v9591 = vadd.f32 0.0, %v9590
    %v9592 = vpop.f32.mrf.mxu0
    %v9593 = vadd.f32 0.0, %v9592
    %9594 = vdwg.mxu0
    %v9603 = vunpack.c.l.b16 %v7890
    %v9604 = vunpack.c.l.b16 %v7891
    %v9605 = vunpack.c.l.b16 %v7892
    %v9606 = vunpack.c.l.b16 %v7893
    %v9607 = vunpack.c.l.b16 %v7894
    %v9608 = vunpack.c.l.b16 %v7895
    %v9609 = vunpack.c.l.b16 %v7896
    %v9610 = vunpack.c.l.b16 %v7897
    %v9611 = vpack.c.b16 %v9604, %v9603
    %v9612 = vpack.c.b16 %v9606, %v9605
    %v9613 = vpack.c.b16 %v9608, %v9607
    %v9614 = vpack.c.b16 %v9610, %v9609
    %v9615 = vunpack.c.l.b16 %v1977
    %v9616 = vunpack.c.l.b16 %v1979
    %v9617 = vunpack.c.l.b16 %v1981
    %v9618 = vunpack.c.l.b16 %v1983
    %v9619 = vunpack.c.l.b16 %v1985
    %v9620 = vunpack.c.l.b16 %v1987
    %v9621 = vunpack.c.l.b16 %v1989
    %v9622 = vunpack.c.l.b16 %v1991
    %v9623 = vpack.c.b16 %v9616, %v9615
    %v9624 = vpack.c.b16 %v9618, %v9617
    %v9625 = vpack.c.b16 %v9620, %v9619
    %v9626 = vpack.c.b16 %v9622, %v9621
    %v9632 = vsel %vm4905, %v9611, 0
    %v9635 = vsel %vm4905, %v9612, 0
    %v9638 = vsel %vm4905, %v9613, 0
    %v9641 = vsel %vm4905, %v9614, 0
    %9643 = vmatpush.bf16.msra.mxu0 0
    %9644 = vmatpush.bf16.msra.mxu0 0
    %9645 = vmatpush.bf16.msra.mxu0 0
    %9646 = vmatpush.bf16.msra.mxu0 0
    %9647 = vmatpush.bf16.msra.mxu0 %v9626
    %9648 = vmatpush.bf16.msra.mxu0 %v9625
    %9649 = vmatpush.bf16.msra.mxu0 %v9624
    %9650 = vmatpush.bf16.msra.mxu0 %v9623
    %9651 = vmatmul.bf16.gmra.mxu0 %v9632
    %v9652 = vpop.f32.mrf.mxu0
    %v9653 = vadd.f32 0.0, %v9652
    %v9654 = vpop.f32.mrf.mxu0
    %v9655 = vadd.f32 0.0, %v9654
    %9656 = vmatmul.bf16.gmra.mxu0 %v9635
    %v9657 = vpop.f32.mrf.mxu0
    %v9658 = vadd.f32 0.0, %v9657
    %v9659 = vpop.f32.mrf.mxu0
    %v9660 = vadd.f32 0.0, %v9659
    %9661 = vmatmul.bf16.gmra.mxu0 %v9638
    %v9662 = vpop.f32.mrf.mxu0
    %v9663 = vadd.f32 0.0, %v9662
    %v9664 = vpop.f32.mrf.mxu0
    %v9665 = vadd.f32 0.0, %v9664
    %9666 = vmatmul.bf16.gmra.mxu0 %v9641
    %v9667 = vpop.f32.mrf.mxu0
    %v9668 = vadd.f32 0.0, %v9667
    %v9669 = vpop.f32.mrf.mxu0
    %v9670 = vadd.f32 0.0, %v9669
    %9671 = vdwg.mxu0
    %v9680 = vunpack.c.l.b16 %v7898
    %v9681 = vunpack.c.l.b16 %v7899
    %v9682 = vunpack.c.l.b16 %v7900
    %v9683 = vunpack.c.l.b16 %v7901
    %v9684 = vunpack.c.l.b16 %v7902
    %v9685 = vunpack.c.l.b16 %v7903
    %v9686 = vunpack.c.l.b16 %v7904
    %v9687 = vunpack.c.l.b16 %v7905
    %v9688 = vpack.c.b16 %v9681, %v9680
    %v9689 = vpack.c.b16 %v9683, %v9682
    %v9690 = vpack.c.b16 %v9685, %v9684
    %v9691 = vpack.c.b16 %v9687, %v9686
    %v9692 = vunpack.c.l.b16 %v1993
    %v9693 = vunpack.c.l.b16 %v1995
    %v9694 = vunpack.c.l.b16 %v1997
    %v9695 = vunpack.c.l.b16 %v1999
    %v9696 = vunpack.c.l.b16 %v2001
    %v9697 = vunpack.c.l.b16 %v2003
    %v9698 = vunpack.c.l.b16 %v2005
    %v9699 = vunpack.c.l.b16 %v2007
    %v9700 = vpack.c.b16 %v9693, %v9692
    %v9701 = vpack.c.b16 %v9695, %v9694
    %v9702 = vpack.c.b16 %v9697, %v9696
    %v9703 = vpack.c.b16 %v9699, %v9698
    %v9709 = vsel %vm4905, %v9688, 0
    %v9712 = vsel %vm4905, %v9689, 0
    %v9715 = vsel %vm4905, %v9690, 0
    %v9718 = vsel %vm4905, %v9691, 0
    %9720 = vmatpush.bf16.msra.mxu0 0
    %9721 = vmatpush.bf16.msra.mxu0 0
    %9722 = vmatpush.bf16.msra.mxu0 0
    %9723 = vmatpush.bf16.msra.mxu0 0
    %9724 = vmatpush.bf16.msra.mxu0 %v9703
    %9725 = vmatpush.bf16.msra.mxu0 %v9702
    %9726 = vmatpush.bf16.msra.mxu0 %v9701
    %9727 = vmatpush.bf16.msra.mxu0 %v9700
    %9728 = vmatmul.bf16.gmra.mxu0 %v9709
    %v9729 = vpop.f32.mrf.mxu0
    %v9730 = vadd.f32 0.0, %v9729
    %v9731 = vpop.f32.mrf.mxu0
    %v9732 = vadd.f32 0.0, %v9731
    %9733 = vmatmul.bf16.gmra.mxu0 %v9712
    %v9734 = vpop.f32.mrf.mxu0
    %v9735 = vadd.f32 0.0, %v9734
    %v9736 = vpop.f32.mrf.mxu0
    %v9737 = vadd.f32 0.0, %v9736
    %9738 = vmatmul.bf16.gmra.mxu0 %v9715
    %v9739 = vpop.f32.mrf.mxu0
    %v9740 = vadd.f32 0.0, %v9739
    %v9741 = vpop.f32.mrf.mxu0
    %v9742 = vadd.f32 0.0, %v9741
    %9743 = vmatmul.bf16.gmra.mxu0 %v9718
    %v9744 = vpop.f32.mrf.mxu0
    %v9745 = vadd.f32 0.0, %v9744
    %v9746 = vpop.f32.mrf.mxu0
    %v9747 = vadd.f32 0.0, %v9746
    %9748 = vdwg.mxu0
    %v9757 = vunpack.c.l.b16 %v7906
    %v9758 = vunpack.c.l.b16 %v7907
    %v9759 = vunpack.c.l.b16 %v7908
    %v9760 = vunpack.c.l.b16 %v7909
    %v9761 = vunpack.c.l.b16 %v7910
    %v9762 = vunpack.c.l.b16 %v7911
    %v9763 = vunpack.c.l.b16 %v7912
    %v9764 = vunpack.c.l.b16 %v7913
    %v9765 = vpack.c.b16 %v9758, %v9757
    %v9766 = vpack.c.b16 %v9760, %v9759
    %v9767 = vpack.c.b16 %v9762, %v9761
    %v9768 = vpack.c.b16 %v9764, %v9763
    %v9769 = vunpack.c.l.b16 %v2009
    %v9770 = vunpack.c.l.b16 %v2011
    %v9771 = vunpack.c.l.b16 %v2013
    %v9772 = vunpack.c.l.b16 %v2015
    %v9773 = vunpack.c.l.b16 %v2017
    %v9774 = vunpack.c.l.b16 %v2019
    %v9775 = vunpack.c.l.b16 %v2021
    %v9776 = vunpack.c.l.b16 %v2023
    %v9777 = vpack.c.b16 %v9770, %v9769
    %v9778 = vpack.c.b16 %v9772, %v9771
    %v9779 = vpack.c.b16 %v9774, %v9773
    %v9780 = vpack.c.b16 %v9776, %v9775
    %v9786 = vsel %vm4905, %v9765, 0
    %v9789 = vsel %vm4905, %v9766, 0
    %v9792 = vsel %vm4905, %v9767, 0
    %v9795 = vsel %vm4905, %v9768, 0
    %9797 = vmatpush.bf16.msra.mxu0 0
    %9798 = vmatpush.bf16.msra.mxu0 0
    %9799 = vmatpush.bf16.msra.mxu0 0
    %9800 = vmatpush.bf16.msra.mxu0 0
    %9801 = vmatpush.bf16.msra.mxu0 %v9780
    %9802 = vmatpush.bf16.msra.mxu0 %v9779
    %9803 = vmatpush.bf16.msra.mxu0 %v9778
    %9804 = vmatpush.bf16.msra.mxu0 %v9777
    %9805 = vmatmul.bf16.gmra.mxu0 %v9786
    %v9806 = vpop.f32.mrf.mxu0
    %v9807 = vadd.f32 0.0, %v9806
    %v9808 = vpop.f32.mrf.mxu0
    %v9809 = vadd.f32 0.0, %v9808
    %9810 = vmatmul.bf16.gmra.mxu0 %v9789
    %v9811 = vpop.f32.mrf.mxu0
    %v9812 = vadd.f32 0.0, %v9811
    %v9813 = vpop.f32.mrf.mxu0
    %v9814 = vadd.f32 0.0, %v9813
    %9815 = vmatmul.bf16.gmra.mxu0 %v9792
    %v9816 = vpop.f32.mrf.mxu0
    %v9817 = vadd.f32 0.0, %v9816
    %v9818 = vpop.f32.mrf.mxu0
    %v9819 = vadd.f32 0.0, %v9818
    %9820 = vmatmul.bf16.gmra.mxu0 %v9795
    %v9821 = vpop.f32.mrf.mxu0
    %v9822 = vadd.f32 0.0, %v9821
    %v9823 = vpop.f32.mrf.mxu0
    %v9824 = vadd.f32 0.0, %v9823
    %9825 = vdwg.mxu0
    %v9834 = vunpack.c.l.b16 %v7914
    %v9835 = vunpack.c.l.b16 %v7915
    %v9836 = vunpack.c.l.b16 %v7916
    %v9837 = vunpack.c.l.b16 %v7917
    %v9838 = vunpack.c.l.b16 %v7918
    %v9839 = vunpack.c.l.b16 %v7919
    %v9840 = vunpack.c.l.b16 %v7920
    %v9841 = vunpack.c.l.b16 %v7921
    %v9842 = vpack.c.b16 %v9835, %v9834
    %v9843 = vpack.c.b16 %v9837, %v9836
    %v9844 = vpack.c.b16 %v9839, %v9838
    %v9845 = vpack.c.b16 %v9841, %v9840
    %v9846 = vunpack.c.l.b16 %v2025
    %v9847 = vunpack.c.l.b16 %v2027
    %v9848 = vunpack.c.l.b16 %v2029
    %v9849 = vunpack.c.l.b16 %v2031
    %v9850 = vunpack.c.l.b16 %v2033
    %v9851 = vunpack.c.l.b16 %v2035
    %v9852 = vunpack.c.l.b16 %v2037
    %v9853 = vunpack.c.l.b16 %v2039
    %v9854 = vpack.c.b16 %v9847, %v9846
    %v9855 = vpack.c.b16 %v9849, %v9848
    %v9856 = vpack.c.b16 %v9851, %v9850
    %v9857 = vpack.c.b16 %v9853, %v9852
    %v9863 = vsel %vm4905, %v9842, 0
    %v9866 = vsel %vm4905, %v9843, 0
    %v9869 = vsel %vm4905, %v9844, 0
    %v9872 = vsel %vm4905, %v9845, 0
    %9874 = vmatpush.bf16.msra.mxu0 0
    %9875 = vmatpush.bf16.msra.mxu0 0
    %9876 = vmatpush.bf16.msra.mxu0 0
    %9877 = vmatpush.bf16.msra.mxu0 0
    %9878 = vmatpush.bf16.msra.mxu0 %v9857
    %9879 = vmatpush.bf16.msra.mxu0 %v9856
    %9880 = vmatpush.bf16.msra.mxu0 %v9855
    %9881 = vmatpush.bf16.msra.mxu0 %v9854
    %9882 = vmatmul.bf16.gmra.mxu0 %v9863
    %v9883 = vpop.f32.mrf.mxu0
    %v9884 = vadd.f32 0.0, %v9883
    %v9885 = vpop.f32.mrf.mxu0
    %v9886 = vadd.f32 0.0, %v9885
    %9887 = vmatmul.bf16.gmra.mxu0 %v9866
    %v9888 = vpop.f32.mrf.mxu0
    %v9889 = vadd.f32 0.0, %v9888
    %v9890 = vpop.f32.mrf.mxu0
    %v9891 = vadd.f32 0.0, %v9890
    %9892 = vmatmul.bf16.gmra.mxu0 %v9869
    %v9893 = vpop.f32.mrf.mxu0
    %v9894 = vadd.f32 0.0, %v9893
    %v9895 = vpop.f32.mrf.mxu0
    %v9896 = vadd.f32 0.0, %v9895
    %9897 = vmatmul.bf16.gmra.mxu0 %v9872
    %v9898 = vpop.f32.mrf.mxu0
    %v9899 = vadd.f32 0.0, %v9898
    %v9900 = vpop.f32.mrf.mxu0
    %v9901 = vadd.f32 0.0, %v9900
    %9902 = vdwg.mxu0
    %v9911 = vunpack.c.l.b16 %v7922
    %v9912 = vunpack.c.l.b16 %v7923
    %v9913 = vunpack.c.l.b16 %v7924
    %v9914 = vunpack.c.l.b16 %v7925
    %v9915 = vunpack.c.l.b16 %v7926
    %v9916 = vunpack.c.l.b16 %v7927
    %v9917 = vunpack.c.l.b16 %v7928
    %v9918 = vunpack.c.l.b16 %v7929
    %v9919 = vpack.c.b16 %v9912, %v9911
    %v9920 = vpack.c.b16 %v9914, %v9913
    %v9921 = vpack.c.b16 %v9916, %v9915
    %v9922 = vpack.c.b16 %v9918, %v9917
    %v9923 = vunpack.c.l.b16 %v2041
    %v9924 = vunpack.c.l.b16 %v2043
    %v9925 = vunpack.c.l.b16 %v2045
    %v9926 = vunpack.c.l.b16 %v2047
    %v9927 = vunpack.c.l.b16 %v2049
    %v9928 = vunpack.c.l.b16 %v2051
    %v9929 = vunpack.c.l.b16 %v2053
    %v9930 = vunpack.c.l.b16 %v2055
    %v9931 = vpack.c.b16 %v9924, %v9923
    %v9932 = vpack.c.b16 %v9926, %v9925
    %v9933 = vpack.c.b16 %v9928, %v9927
    %v9934 = vpack.c.b16 %v9930, %v9929
    %v9940 = vsel %vm4905, %v9919, 0
    %v9943 = vsel %vm4905, %v9920, 0
    %v9946 = vsel %vm4905, %v9921, 0
    %v9949 = vsel %vm4905, %v9922, 0
    %9951 = vmatpush.bf16.msra.mxu0 0
    %9952 = vmatpush.bf16.msra.mxu0 0
    %9953 = vmatpush.bf16.msra.mxu0 0
    %9954 = vmatpush.bf16.msra.mxu0 0
    %9955 = vmatpush.bf16.msra.mxu0 %v9934
    %9956 = vmatpush.bf16.msra.mxu0 %v9933
    %9957 = vmatpush.bf16.msra.mxu0 %v9932
    %9958 = vmatpush.bf16.msra.mxu0 %v9931
    %9959 = vmatmul.bf16.gmra.mxu0 %v9940
    %v9960 = vpop.f32.mrf.mxu0
    %v9961 = vadd.f32 0.0, %v9960
    %v9962 = vpop.f32.mrf.mxu0
    %v9963 = vadd.f32 0.0, %v9962
    %9964 = vmatmul.bf16.gmra.mxu0 %v9943
    %v9965 = vpop.f32.mrf.mxu0
    %v9966 = vadd.f32 0.0, %v9965
    %v9967 = vpop.f32.mrf.mxu0
    %v9968 = vadd.f32 0.0, %v9967
    %9969 = vmatmul.bf16.gmra.mxu0 %v9946
    %v9970 = vpop.f32.mrf.mxu0
    %v9971 = vadd.f32 0.0, %v9970
    %v9972 = vpop.f32.mrf.mxu0
    %v9973 = vadd.f32 0.0, %v9972
    %9974 = vmatmul.bf16.gmra.mxu0 %v9949
    %v9975 = vpop.f32.mrf.mxu0
    %v9976 = vadd.f32 0.0, %v9975
    %v9977 = vpop.f32.mrf.mxu0
    %v9978 = vadd.f32 0.0, %v9977
    %9979 = vdwg.mxu0
    %v9988 = vunpack.c.l.b16 %v7930
    %v9989 = vunpack.c.l.b16 %v7931
    %v9990 = vunpack.c.l.b16 %v7932
    %v9991 = vunpack.c.l.b16 %v7933
    %v9992 = vunpack.c.l.b16 %v7934
    %v9993 = vunpack.c.l.b16 %v7935
    %v9994 = vunpack.c.l.b16 %v7936
    %v9995 = vunpack.c.l.b16 %v7937
    %v9996 = vpack.c.b16 %v9989, %v9988
    %v9997 = vpack.c.b16 %v9991, %v9990
    %v9998 = vpack.c.b16 %v9993, %v9992
    %v9999 = vpack.c.b16 %v9995, %v9994
    %v10000 = vunpack.c.l.b16 %v2057
    %v10001 = vunpack.c.l.b16 %v2059
    %v10002 = vunpack.c.l.b16 %v2061
    %v10003 = vunpack.c.l.b16 %v2063
    %v10004 = vunpack.c.l.b16 %v2065
    %v10005 = vunpack.c.l.b16 %v2067
    %v10006 = vunpack.c.l.b16 %v2069
    %v10007 = vunpack.c.l.b16 %v2071
    %v10008 = vpack.c.b16 %v10001, %v10000
    %v10009 = vpack.c.b16 %v10003, %v10002
    %v10010 = vpack.c.b16 %v10005, %v10004
    %v10011 = vpack.c.b16 %v10007, %v10006
    %v10017 = vsel %vm4905, %v9996, 0
    %v10020 = vsel %vm4905, %v9997, 0
    %v10023 = vsel %vm4905, %v9998, 0
    %v10026 = vsel %vm4905, %v9999, 0
    %10028 = vmatpush.bf16.msra.mxu0 0
    %10029 = vmatpush.bf16.msra.mxu0 0
    %10030 = vmatpush.bf16.msra.mxu0 0
    %10031 = vmatpush.bf16.msra.mxu0 0
    %10032 = vmatpush.bf16.msra.mxu0 %v10011
    %10033 = vmatpush.bf16.msra.mxu0 %v10010
    %10034 = vmatpush.bf16.msra.mxu0 %v10009
    %10035 = vmatpush.bf16.msra.mxu0 %v10008
    %10036 = vmatmul.bf16.gmra.mxu0 %v10017
    %v10037 = vpop.f32.mrf.mxu0
    %v10038 = vadd.f32 0.0, %v10037
    %v10039 = vpop.f32.mrf.mxu0
    %v10040 = vadd.f32 0.0, %v10039
    %10041 = vmatmul.bf16.gmra.mxu0 %v10020
    %v10042 = vpop.f32.mrf.mxu0
    %v10043 = vadd.f32 0.0, %v10042
    %v10044 = vpop.f32.mrf.mxu0
    %v10045 = vadd.f32 0.0, %v10044
    %10046 = vmatmul.bf16.gmra.mxu0 %v10023
    %v10047 = vpop.f32.mrf.mxu0
    %v10048 = vadd.f32 0.0, %v10047
    %v10049 = vpop.f32.mrf.mxu0
    %v10050 = vadd.f32 0.0, %v10049
    %10051 = vmatmul.bf16.gmra.mxu0 %v10026
    %v10052 = vpop.f32.mrf.mxu0
    %v10053 = vadd.f32 0.0, %v10052
    %v10054 = vpop.f32.mrf.mxu0
    %v10055 = vadd.f32 0.0, %v10054
    %10056 = vdwg.mxu0
    %v10065 = vunpack.c.l.b16 %v7938
    %v10066 = vunpack.c.l.b16 %v7939
    %v10067 = vunpack.c.l.b16 %v7940
    %v10068 = vunpack.c.l.b16 %v7941
    %v10069 = vunpack.c.l.b16 %v7942
    %v10070 = vunpack.c.l.b16 %v7943
    %v10071 = vunpack.c.l.b16 %v7944
    %v10072 = vunpack.c.l.b16 %v7945
    %v10073 = vpack.c.b16 %v10066, %v10065
    %v10074 = vpack.c.b16 %v10068, %v10067
    %v10075 = vpack.c.b16 %v10070, %v10069
    %v10076 = vpack.c.b16 %v10072, %v10071
    %v10077 = vunpack.c.l.b16 %v2073
    %v10078 = vunpack.c.l.b16 %v2075
    %v10079 = vunpack.c.l.b16 %v2077
    %v10080 = vunpack.c.l.b16 %v2079
    %v10081 = vunpack.c.l.b16 %v2081
    %v10082 = vunpack.c.l.b16 %v2083
    %v10083 = vunpack.c.l.b16 %v2085
    %v10084 = vunpack.c.l.b16 %v2087
    %v10085 = vpack.c.b16 %v10078, %v10077
    %v10086 = vpack.c.b16 %v10080, %v10079
    %v10087 = vpack.c.b16 %v10082, %v10081
    %v10088 = vpack.c.b16 %v10084, %v10083
    %v10094 = vsel %vm4905, %v10073, 0
    %v10097 = vsel %vm4905, %v10074, 0
    %v10100 = vsel %vm4905, %v10075, 0
    %v10103 = vsel %vm4905, %v10076, 0
    %10105 = vmatpush.bf16.msra.mxu0 0
    %10106 = vmatpush.bf16.msra.mxu0 0
    %10107 = vmatpush.bf16.msra.mxu0 0
    %10108 = vmatpush.bf16.msra.mxu0 0
    %10109 = vmatpush.bf16.msra.mxu0 %v10088
    %10110 = vmatpush.bf16.msra.mxu0 %v10087
    %10111 = vmatpush.bf16.msra.mxu0 %v10086
    %10112 = vmatpush.bf16.msra.mxu0 %v10085
    %10113 = vmatmul.bf16.gmra.mxu0 %v10094
    %v10114 = vpop.f32.mrf.mxu0
    %v10115 = vadd.f32 0.0, %v10114
    %v10116 = vpop.f32.mrf.mxu0
    %v10117 = vadd.f32 0.0, %v10116
    %10118 = vmatmul.bf16.gmra.mxu0 %v10097
    %v10119 = vpop.f32.mrf.mxu0
    %v10120 = vadd.f32 0.0, %v10119
    %v10121 = vpop.f32.mrf.mxu0
    %v10122 = vadd.f32 0.0, %v10121
    %10123 = vmatmul.bf16.gmra.mxu0 %v10100
    %v10124 = vpop.f32.mrf.mxu0
    %v10125 = vadd.f32 0.0, %v10124
    %v10126 = vpop.f32.mrf.mxu0
    %v10127 = vadd.f32 0.0, %v10126
    %10128 = vmatmul.bf16.gmra.mxu0 %v10103
    %v10129 = vpop.f32.mrf.mxu0
    %v10130 = vadd.f32 0.0, %v10129
    %v10131 = vpop.f32.mrf.mxu0
    %v10132 = vadd.f32 0.0, %v10131
    %10133 = vdwg.mxu0
    %v10142 = vunpack.c.l.b16 %v7946
    %v10143 = vunpack.c.l.b16 %v7947
    %v10144 = vunpack.c.l.b16 %v7948
    %v10145 = vunpack.c.l.b16 %v7949
    %v10146 = vunpack.c.l.b16 %v7950
    %v10147 = vunpack.c.l.b16 %v7951
    %v10148 = vunpack.c.l.b16 %v7952
    %v10149 = vunpack.c.l.b16 %v7953
    %v10150 = vpack.c.b16 %v10143, %v10142
    %v10151 = vpack.c.b16 %v10145, %v10144
    %v10152 = vpack.c.b16 %v10147, %v10146
    %v10153 = vpack.c.b16 %v10149, %v10148
    %v10154 = vunpack.c.l.b16 %v2089
    %v10155 = vunpack.c.l.b16 %v2091
    %v10156 = vunpack.c.l.b16 %v2093
    %v10157 = vunpack.c.l.b16 %v2095
    %v10158 = vunpack.c.l.b16 %v2097
    %v10159 = vunpack.c.l.b16 %v2099
    %v10160 = vunpack.c.l.b16 %v2101
    %v10161 = vunpack.c.l.b16 %v2103
    %v10162 = vpack.c.b16 %v10155, %v10154
    %v10163 = vpack.c.b16 %v10157, %v10156
    %v10164 = vpack.c.b16 %v10159, %v10158
    %v10165 = vpack.c.b16 %v10161, %v10160
    %v10171 = vsel %vm4905, %v10150, 0
    %v10174 = vsel %vm4905, %v10151, 0
    %v10177 = vsel %vm4905, %v10152, 0
    %v10180 = vsel %vm4905, %v10153, 0
    %10182 = vmatpush.bf16.msra.mxu0 0
    %10183 = vmatpush.bf16.msra.mxu0 0
    %10184 = vmatpush.bf16.msra.mxu0 0
    %10185 = vmatpush.bf16.msra.mxu0 0
    %10186 = vmatpush.bf16.msra.mxu0 %v10165
    %10187 = vmatpush.bf16.msra.mxu0 %v10164
    %10188 = vmatpush.bf16.msra.mxu0 %v10163
    %10189 = vmatpush.bf16.msra.mxu0 %v10162
    %10190 = vmatmul.bf16.gmra.mxu0 %v10171
    %v10191 = vpop.f32.mrf.mxu0
    %v10192 = vadd.f32 0.0, %v10191
    %v10193 = vpop.f32.mrf.mxu0
    %v10194 = vadd.f32 0.0, %v10193
    %10195 = vmatmul.bf16.gmra.mxu0 %v10174
    %v10196 = vpop.f32.mrf.mxu0
    %v10197 = vadd.f32 0.0, %v10196
    %v10198 = vpop.f32.mrf.mxu0
    %v10199 = vadd.f32 0.0, %v10198
    %10200 = vmatmul.bf16.gmra.mxu0 %v10177
    %v10201 = vpop.f32.mrf.mxu0
    %v10202 = vadd.f32 0.0, %v10201
    %v10203 = vpop.f32.mrf.mxu0
    %v10204 = vadd.f32 0.0, %v10203
    %10205 = vmatmul.bf16.gmra.mxu0 %v10180
    %v10206 = vpop.f32.mrf.mxu0
    %v10207 = vadd.f32 0.0, %v10206
    %v10208 = vpop.f32.mrf.mxu0
    %v10209 = vadd.f32 0.0, %v10208
    %10210 = vdwg.mxu0
    %v10219 = vunpack.c.l.b16 %v7954
    %v10220 = vunpack.c.l.b16 %v7955
    %v10221 = vunpack.c.l.b16 %v7956
    %v10222 = vunpack.c.l.b16 %v7957
    %v10223 = vunpack.c.l.b16 %v7958
    %v10224 = vunpack.c.l.b16 %v7959
    %v10225 = vunpack.c.l.b16 %v7960
    %v10226 = vunpack.c.l.b16 %v7961
    %v10227 = vpack.c.b16 %v10220, %v10219
    %v10228 = vpack.c.b16 %v10222, %v10221
    %v10229 = vpack.c.b16 %v10224, %v10223
    %v10230 = vpack.c.b16 %v10226, %v10225
    %v10231 = vunpack.c.l.b16 %v2105
    %v10232 = vunpack.c.l.b16 %v2107
    %v10233 = vunpack.c.l.b16 %v2109
    %v10234 = vunpack.c.l.b16 %v2111
    %v10235 = vunpack.c.l.b16 %v2113
    %v10236 = vunpack.c.l.b16 %v2115
    %v10237 = vunpack.c.l.b16 %v2117
    %v10238 = vunpack.c.l.b16 %v2119
    %v10239 = vpack.c.b16 %v10232, %v10231
    %v10240 = vpack.c.b16 %v10234, %v10233
    %v10241 = vpack.c.b16 %v10236, %v10235
    %v10242 = vpack.c.b16 %v10238, %v10237
    %v10248 = vsel %vm4905, %v10227, 0
    %v10251 = vsel %vm4905, %v10228, 0
    %v10254 = vsel %vm4905, %v10229, 0
    %v10257 = vsel %vm4905, %v10230, 0
    %10259 = vmatpush.bf16.msra.mxu0 0
    %10260 = vmatpush.bf16.msra.mxu0 0
    %10261 = vmatpush.bf16.msra.mxu0 0
    %10262 = vmatpush.bf16.msra.mxu0 0
    %10263 = vmatpush.bf16.msra.mxu0 %v10242
    %10264 = vmatpush.bf16.msra.mxu0 %v10241
    %10265 = vmatpush.bf16.msra.mxu0 %v10240
    %10266 = vmatpush.bf16.msra.mxu0 %v10239
    %10267 = vmatmul.bf16.gmra.mxu0 %v10248
    %v10268 = vpop.f32.mrf.mxu0
    %v10269 = vadd.f32 0.0, %v10268
    %v10270 = vpop.f32.mrf.mxu0
    %v10271 = vadd.f32 0.0, %v10270
    %10272 = vmatmul.bf16.gmra.mxu0 %v10251
    %v10273 = vpop.f32.mrf.mxu0
    %v10274 = vadd.f32 0.0, %v10273
    %v10275 = vpop.f32.mrf.mxu0
    %v10276 = vadd.f32 0.0, %v10275
    %10277 = vmatmul.bf16.gmra.mxu0 %v10254
    %v10278 = vpop.f32.mrf.mxu0
    %v10279 = vadd.f32 0.0, %v10278
    %v10280 = vpop.f32.mrf.mxu0
    %v10281 = vadd.f32 0.0, %v10280
    %10282 = vmatmul.bf16.gmra.mxu0 %v10257
    %v10283 = vpop.f32.mrf.mxu0
    %v10284 = vadd.f32 0.0, %v10283
    %v10285 = vpop.f32.mrf.mxu0
    %v10286 = vadd.f32 0.0, %v10285
    %10287 = vdwg.mxu0
    %v10296 = vunpack.c.l.b16 %v7962
    %v10297 = vunpack.c.l.b16 %v7963
    %v10298 = vunpack.c.l.b16 %v7964
    %v10299 = vunpack.c.l.b16 %v7965
    %v10300 = vunpack.c.l.b16 %v7966
    %v10301 = vunpack.c.l.b16 %v7967
    %v10302 = vunpack.c.l.b16 %v7968
    %v10303 = vunpack.c.l.b16 %v7969
    %v10304 = vpack.c.b16 %v10297, %v10296
    %v10305 = vpack.c.b16 %v10299, %v10298
    %v10306 = vpack.c.b16 %v10301, %v10300
    %v10307 = vpack.c.b16 %v10303, %v10302
    %v10308 = vunpack.c.l.b16 %v2121
    %v10309 = vunpack.c.l.b16 %v2123
    %v10310 = vunpack.c.l.b16 %v2125
    %v10311 = vunpack.c.l.b16 %v2127
    %v10312 = vunpack.c.l.b16 %v2129
    %v10313 = vunpack.c.l.b16 %v2131
    %v10314 = vunpack.c.l.b16 %v2133
    %v10315 = vunpack.c.l.b16 %v2135
    %v10316 = vpack.c.b16 %v10309, %v10308
    %v10317 = vpack.c.b16 %v10311, %v10310
    %v10318 = vpack.c.b16 %v10313, %v10312
    %v10319 = vpack.c.b16 %v10315, %v10314
    %v10325 = vsel %vm4905, %v10304, 0
    %v10328 = vsel %vm4905, %v10305, 0
    %v10331 = vsel %vm4905, %v10306, 0
    %v10334 = vsel %vm4905, %v10307, 0
    %10336 = vmatpush.bf16.msra.mxu0 0
    %10337 = vmatpush.bf16.msra.mxu0 0
    %10338 = vmatpush.bf16.msra.mxu0 0
    %10339 = vmatpush.bf16.msra.mxu0 0
    %10340 = vmatpush.bf16.msra.mxu0 %v10319
    %10341 = vmatpush.bf16.msra.mxu0 %v10318
    %10342 = vmatpush.bf16.msra.mxu0 %v10317
    %10343 = vmatpush.bf16.msra.mxu0 %v10316
    %10344 = vmatmul.bf16.gmra.mxu0 %v10325
    %v10345 = vpop.f32.mrf.mxu0
    %v10346 = vadd.f32 0.0, %v10345
    %v10347 = vpop.f32.mrf.mxu0
    %v10348 = vadd.f32 0.0, %v10347
    %10349 = vmatmul.bf16.gmra.mxu0 %v10328
    %v10350 = vpop.f32.mrf.mxu0
    %v10351 = vadd.f32 0.0, %v10350
    %v10352 = vpop.f32.mrf.mxu0
    %v10353 = vadd.f32 0.0, %v10352
    %10354 = vmatmul.bf16.gmra.mxu0 %v10331
    %v10355 = vpop.f32.mrf.mxu0
    %v10356 = vadd.f32 0.0, %v10355
    %v10357 = vpop.f32.mrf.mxu0
    %v10358 = vadd.f32 0.0, %v10357
    %10359 = vmatmul.bf16.gmra.mxu0 %v10334
    %v10360 = vpop.f32.mrf.mxu0
    %v10361 = vadd.f32 0.0, %v10360
    %v10362 = vpop.f32.mrf.mxu0
    %v10363 = vadd.f32 0.0, %v10362
    %10364 = vdwg.mxu0
    %v10373 = vunpack.c.l.b16 %v7970
    %v10374 = vunpack.c.l.b16 %v7971
    %v10375 = vunpack.c.l.b16 %v7972
    %v10376 = vunpack.c.l.b16 %v7973
    %v10377 = vunpack.c.l.b16 %v7974
    %v10378 = vunpack.c.l.b16 %v7975
    %v10379 = vunpack.c.l.b16 %v7976
    %v10380 = vunpack.c.l.b16 %v7977
    %v10381 = vpack.c.b16 %v10374, %v10373
    %v10382 = vpack.c.b16 %v10376, %v10375
    %v10383 = vpack.c.b16 %v10378, %v10377
    %v10384 = vpack.c.b16 %v10380, %v10379
    %v10385 = vunpack.c.l.b16 %v2137
    %v10386 = vunpack.c.l.b16 %v2139
    %v10387 = vunpack.c.l.b16 %v2141
    %v10388 = vunpack.c.l.b16 %v2143
    %v10389 = vunpack.c.l.b16 %v2145
    %v10390 = vunpack.c.l.b16 %v2147
    %v10391 = vunpack.c.l.b16 %v2149
    %v10392 = vunpack.c.l.b16 %v2151
    %v10393 = vpack.c.b16 %v10386, %v10385
    %v10394 = vpack.c.b16 %v10388, %v10387
    %v10395 = vpack.c.b16 %v10390, %v10389
    %v10396 = vpack.c.b16 %v10392, %v10391
    %v10402 = vsel %vm4905, %v10381, 0
    %v10405 = vsel %vm4905, %v10382, 0
    %v10408 = vsel %vm4905, %v10383, 0
    %v10411 = vsel %vm4905, %v10384, 0
    %10413 = vmatpush.bf16.msra.mxu0 0
    %10414 = vmatpush.bf16.msra.mxu0 0
    %10415 = vmatpush.bf16.msra.mxu0 0
    %10416 = vmatpush.bf16.msra.mxu0 0
    %10417 = vmatpush.bf16.msra.mxu0 %v10396
    %10418 = vmatpush.bf16.msra.mxu0 %v10395
    %10419 = vmatpush.bf16.msra.mxu0 %v10394
    %10420 = vmatpush.bf16.msra.mxu0 %v10393
    %10421 = vmatmul.bf16.gmra.mxu0 %v10402
    %v10422 = vpop.f32.mrf.mxu0
    %v10423 = vadd.f32 0.0, %v10422
    %v10424 = vpop.f32.mrf.mxu0
    %v10425 = vadd.f32 0.0, %v10424
    %10426 = vmatmul.bf16.gmra.mxu0 %v10405
    %v10427 = vpop.f32.mrf.mxu0
    %v10428 = vadd.f32 0.0, %v10427
    %v10429 = vpop.f32.mrf.mxu0
    %v10430 = vadd.f32 0.0, %v10429
    %10431 = vmatmul.bf16.gmra.mxu0 %v10408
    %v10432 = vpop.f32.mrf.mxu0
    %v10433 = vadd.f32 0.0, %v10432
    %v10434 = vpop.f32.mrf.mxu0
    %v10435 = vadd.f32 0.0, %v10434
    %10436 = vmatmul.bf16.gmra.mxu0 %v10411
    %v10437 = vpop.f32.mrf.mxu0
    %v10438 = vadd.f32 0.0, %v10437
    %v10439 = vpop.f32.mrf.mxu0
    %v10440 = vadd.f32 0.0, %v10439
    %10441 = vdwg.mxu0
    %v10442 = vpack.c.bf16 %v8036, %v8036
    %v10443 = vpack.c.bf16 %v8038, %v8038
    %v10444 = vpack.c.bf16 %v8041, %v8041
    %v10445 = vpack.c.bf16 %v8043, %v8043
    %v10446 = vpack.c.bf16 %v8046, %v8046
    %v10447 = vpack.c.bf16 %v8048, %v8048
    %v10448 = vpack.c.bf16 %v8051, %v8051
    %v10449 = vpack.c.bf16 %v8053, %v8053
    %v10450 = vpack.c.bf16 %v8113, %v8113
    %v10451 = vpack.c.bf16 %v8115, %v8115
    %v10452 = vpack.c.bf16 %v8118, %v8118
    %v10453 = vpack.c.bf16 %v8120, %v8120
    %v10454 = vpack.c.bf16 %v8123, %v8123
    %v10455 = vpack.c.bf16 %v8125, %v8125
    %v10456 = vpack.c.bf16 %v8128, %v8128
    %v10457 = vpack.c.bf16 %v8130, %v8130
    %v10458 = vpack.c.bf16 %v8190, %v8190
    %v10459 = vpack.c.bf16 %v8192, %v8192
    %v10460 = vpack.c.bf16 %v8195, %v8195
    %v10461 = vpack.c.bf16 %v8197, %v8197
    %v10462 = vpack.c.bf16 %v8200, %v8200
    %v10463 = vpack.c.bf16 %v8202, %v8202
    %v10464 = vpack.c.bf16 %v8205, %v8205
    %v10465 = vpack.c.bf16 %v8207, %v8207
    %v10466 = vpack.c.bf16 %v8267, %v8267
    %v10467 = vpack.c.bf16 %v8269, %v8269
    %v10468 = vpack.c.bf16 %v8272, %v8272
    %v10469 = vpack.c.bf16 %v8274, %v8274
    %v10470 = vpack.c.bf16 %v8277, %v8277
    %v10471 = vpack.c.bf16 %v8279, %v8279
    %v10472 = vpack.c.bf16 %v8282, %v8282
    %v10473 = vpack.c.bf16 %v8284, %v8284
    %v10474 = vpack.c.bf16 %v8344, %v8344
    %v10475 = vpack.c.bf16 %v8346, %v8346
    %v10476 = vpack.c.bf16 %v8349, %v8349
    %v10477 = vpack.c.bf16 %v8351, %v8351
    %v10478 = vpack.c.bf16 %v8354, %v8354
    %v10479 = vpack.c.bf16 %v8356, %v8356
    %v10480 = vpack.c.bf16 %v8359, %v8359
    %v10481 = vpack.c.bf16 %v8361, %v8361
    %v10482 = vpack.c.bf16 %v8421, %v8421
    %v10483 = vpack.c.bf16 %v8423, %v8423
    %v10484 = vpack.c.bf16 %v8426, %v8426
    %v10485 = vpack.c.bf16 %v8428, %v8428
    %v10486 = vpack.c.bf16 %v8431, %v8431
    %v10487 = vpack.c.bf16 %v8433, %v8433
    %v10488 = vpack.c.bf16 %v8436, %v8436
    %v10489 = vpack.c.bf16 %v8438, %v8438
    %v10490 = vpack.c.bf16 %v8498, %v8498
    %v10491 = vpack.c.bf16 %v8500, %v8500
    %v10492 = vpack.c.bf16 %v8503, %v8503
    %v10493 = vpack.c.bf16 %v8505, %v8505
    %v10494 = vpack.c.bf16 %v8508, %v8508
    %v10495 = vpack.c.bf16 %v8510, %v8510
    %v10496 = vpack.c.bf16 %v8513, %v8513
    %v10497 = vpack.c.bf16 %v8515, %v8515
    %v10498 = vpack.c.bf16 %v8575, %v8575
    %v10499 = vpack.c.bf16 %v8577, %v8577
    %v10500 = vpack.c.bf16 %v8580, %v8580
    %v10501 = vpack.c.bf16 %v8582, %v8582
    %v10502 = vpack.c.bf16 %v8585, %v8585
    %v10503 = vpack.c.bf16 %v8587, %v8587
    %v10504 = vpack.c.bf16 %v8590, %v8590
    %v10505 = vpack.c.bf16 %v8592, %v8592
    %v10506 = vpack.c.bf16 %v8652, %v8652
    %v10507 = vpack.c.bf16 %v8654, %v8654
    %v10508 = vpack.c.bf16 %v8657, %v8657
    %v10509 = vpack.c.bf16 %v8659, %v8659
    %v10510 = vpack.c.bf16 %v8662, %v8662
    %v10511 = vpack.c.bf16 %v8664, %v8664
    %v10512 = vpack.c.bf16 %v8667, %v8667
    %v10513 = vpack.c.bf16 %v8669, %v8669
    %v10514 = vpack.c.bf16 %v8729, %v8729
    %v10515 = vpack.c.bf16 %v8731, %v8731
    %v10516 = vpack.c.bf16 %v8734, %v8734
    %v10517 = vpack.c.bf16 %v8736, %v8736
    %v10518 = vpack.c.bf16 %v8739, %v8739
    %v10519 = vpack.c.bf16 %v8741, %v8741
    %v10520 = vpack.c.bf16 %v8744, %v8744
    %v10521 = vpack.c.bf16 %v8746, %v8746
    %v10522 = vpack.c.bf16 %v8806, %v8806
    %v10523 = vpack.c.bf16 %v8808, %v8808
    %v10524 = vpack.c.bf16 %v8811, %v8811
    %v10525 = vpack.c.bf16 %v8813, %v8813
    %v10526 = vpack.c.bf16 %v8816, %v8816
    %v10527 = vpack.c.bf16 %v8818, %v8818
    %v10528 = vpack.c.bf16 %v8821, %v8821
    %v10529 = vpack.c.bf16 %v8823, %v8823
    %v10530 = vpack.c.bf16 %v8883, %v8883
    %v10531 = vpack.c.bf16 %v8885, %v8885
    %v10532 = vpack.c.bf16 %v8888, %v8888
    %v10533 = vpack.c.bf16 %v8890, %v8890
    %v10534 = vpack.c.bf16 %v8893, %v8893
    %v10535 = vpack.c.bf16 %v8895, %v8895
    %v10536 = vpack.c.bf16 %v8898, %v8898
    %v10537 = vpack.c.bf16 %v8900, %v8900
    %v10538 = vpack.c.bf16 %v8960, %v8960
    %v10539 = vpack.c.bf16 %v8962, %v8962
    %v10540 = vpack.c.bf16 %v8965, %v8965
    %v10541 = vpack.c.bf16 %v8967, %v8967
    %v10542 = vpack.c.bf16 %v8970, %v8970
    %v10543 = vpack.c.bf16 %v8972, %v8972
    %v10544 = vpack.c.bf16 %v8975, %v8975
    %v10545 = vpack.c.bf16 %v8977, %v8977
    %v10546 = vpack.c.bf16 %v9037, %v9037
    %v10547 = vpack.c.bf16 %v9039, %v9039
    %v10548 = vpack.c.bf16 %v9042, %v9042
    %v10549 = vpack.c.bf16 %v9044, %v9044
    %v10550 = vpack.c.bf16 %v9047, %v9047
    %v10551 = vpack.c.bf16 %v9049, %v9049
    %v10552 = vpack.c.bf16 %v9052, %v9052
    %v10553 = vpack.c.bf16 %v9054, %v9054
    %v10554 = vpack.c.bf16 %v9114, %v9114
    %v10555 = vpack.c.bf16 %v9116, %v9116
    %v10556 = vpack.c.bf16 %v9119, %v9119
    %v10557 = vpack.c.bf16 %v9121, %v9121
    %v10558 = vpack.c.bf16 %v9124, %v9124
    %v10559 = vpack.c.bf16 %v9126, %v9126
    %v10560 = vpack.c.bf16 %v9129, %v9129
    %v10561 = vpack.c.bf16 %v9131, %v9131
    %v10562 = vpack.c.bf16 %v9191, %v9191
    %v10563 = vpack.c.bf16 %v9193, %v9193
    %v10564 = vpack.c.bf16 %v9196, %v9196
    %v10565 = vpack.c.bf16 %v9198, %v9198
    %v10566 = vpack.c.bf16 %v9201, %v9201
    %v10567 = vpack.c.bf16 %v9203, %v9203
    %v10568 = vpack.c.bf16 %v9206, %v9206
    %v10569 = vpack.c.bf16 %v9208, %v9208
    %v10570 = vpack.c.bf16 %v9268, %v9268
    %v10571 = vpack.c.bf16 %v9270, %v9270
    %v10572 = vpack.c.bf16 %v9273, %v9273
    %v10573 = vpack.c.bf16 %v9275, %v9275
    %v10574 = vpack.c.bf16 %v9278, %v9278
    %v10575 = vpack.c.bf16 %v9280, %v9280
    %v10576 = vpack.c.bf16 %v9283, %v9283
    %v10577 = vpack.c.bf16 %v9285, %v9285
    %v10578 = vpack.c.bf16 %v9345, %v9345
    %v10579 = vpack.c.bf16 %v9347, %v9347
    %v10580 = vpack.c.bf16 %v9350, %v9350
    %v10581 = vpack.c.bf16 %v9352, %v9352
    %v10582 = vpack.c.bf16 %v9355, %v9355
    %v10583 = vpack.c.bf16 %v9357, %v9357
    %v10584 = vpack.c.bf16 %v9360, %v9360
    %v10585 = vpack.c.bf16 %v9362, %v9362
    %v10586 = vpack.c.bf16 %v9422, %v9422
    %v10587 = vpack.c.bf16 %v9424, %v9424
    %v10588 = vpack.c.bf16 %v9427, %v9427
    %v10589 = vpack.c.bf16 %v9429, %v9429
    %v10590 = vpack.c.bf16 %v9432, %v9432
    %v10591 = vpack.c.bf16 %v9434, %v9434
    %v10592 = vpack.c.bf16 %v9437, %v9437
    %v10593 = vpack.c.bf16 %v9439, %v9439
    %v10594 = vpack.c.bf16 %v9499, %v9499
    %v10595 = vpack.c.bf16 %v9501, %v9501
    %v10596 = vpack.c.bf16 %v9504, %v9504
    %v10597 = vpack.c.bf16 %v9506, %v9506
    %v10598 = vpack.c.bf16 %v9509, %v9509
    %v10599 = vpack.c.bf16 %v9511, %v9511
    %v10600 = vpack.c.bf16 %v9514, %v9514
    %v10601 = vpack.c.bf16 %v9516, %v9516
    %v10602 = vpack.c.bf16 %v9576, %v9576
    %v10603 = vpack.c.bf16 %v9578, %v9578
    %v10604 = vpack.c.bf16 %v9581, %v9581
    %v10605 = vpack.c.bf16 %v9583, %v9583
    %v10606 = vpack.c.bf16 %v9586, %v9586
    %v10607 = vpack.c.bf16 %v9588, %v9588
    %v10608 = vpack.c.bf16 %v9591, %v9591
    %v10609 = vpack.c.bf16 %v9593, %v9593
    %v10610 = vpack.c.bf16 %v9653, %v9653
    %v10611 = vpack.c.bf16 %v9655, %v9655
    %v10612 = vpack.c.bf16 %v9658, %v9658
    %v10613 = vpack.c.bf16 %v9660, %v9660
    %v10614 = vpack.c.bf16 %v9663, %v9663
    %v10615 = vpack.c.bf16 %v9665, %v9665
    %v10616 = vpack.c.bf16 %v9668, %v9668
    %v10617 = vpack.c.bf16 %v9670, %v9670
    %v10618 = vpack.c.bf16 %v9730, %v9730
    %v10619 = vpack.c.bf16 %v9732, %v9732
    %v10620 = vpack.c.bf16 %v9735, %v9735
    %v10621 = vpack.c.bf16 %v9737, %v9737
    %v10622 = vpack.c.bf16 %v9740, %v9740
    %v10623 = vpack.c.bf16 %v9742, %v9742
    %v10624 = vpack.c.bf16 %v9745, %v9745
    %v10625 = vpack.c.bf16 %v9747, %v9747
    %v10626 = vpack.c.bf16 %v9807, %v9807
    %v10627 = vpack.c.bf16 %v9809, %v9809
    %v10628 = vpack.c.bf16 %v9812, %v9812
    %v10629 = vpack.c.bf16 %v9814, %v9814
    %v10630 = vpack.c.bf16 %v9817, %v9817
    %v10631 = vpack.c.bf16 %v9819, %v9819
    %v10632 = vpack.c.bf16 %v9822, %v9822
    %v10633 = vpack.c.bf16 %v9824, %v9824
    %v10634 = vpack.c.bf16 %v9884, %v9884
    %v10635 = vpack.c.bf16 %v9886, %v9886
    %v10636 = vpack.c.bf16 %v9889, %v9889
    %v10637 = vpack.c.bf16 %v9891, %v9891
    %v10638 = vpack.c.bf16 %v9894, %v9894
    %v10639 = vpack.c.bf16 %v9896, %v9896
    %v10640 = vpack.c.bf16 %v9899, %v9899
    %v10641 = vpack.c.bf16 %v9901, %v9901
    %v10642 = vpack.c.bf16 %v9961, %v9961
    %v10643 = vpack.c.bf16 %v9963, %v9963
    %v10644 = vpack.c.bf16 %v9966, %v9966
    %v10645 = vpack.c.bf16 %v9968, %v9968
    %v10646 = vpack.c.bf16 %v9971, %v9971
    %v10647 = vpack.c.bf16 %v9973, %v9973
    %v10648 = vpack.c.bf16 %v9976, %v9976
    %v10649 = vpack.c.bf16 %v9978, %v9978
    %v10650 = vpack.c.bf16 %v10038, %v10038
    %v10651 = vpack.c.bf16 %v10040, %v10040
    %v10652 = vpack.c.bf16 %v10043, %v10043
    %v10653 = vpack.c.bf16 %v10045, %v10045
    %v10654 = vpack.c.bf16 %v10048, %v10048
    %v10655 = vpack.c.bf16 %v10050, %v10050
    %v10656 = vpack.c.bf16 %v10053, %v10053
    %v10657 = vpack.c.bf16 %v10055, %v10055
    %v10658 = vpack.c.bf16 %v10115, %v10115
    %v10659 = vpack.c.bf16 %v10117, %v10117
    %v10660 = vpack.c.bf16 %v10120, %v10120
    %v10661 = vpack.c.bf16 %v10122, %v10122
    %v10662 = vpack.c.bf16 %v10125, %v10125
    %v10663 = vpack.c.bf16 %v10127, %v10127
    %v10664 = vpack.c.bf16 %v10130, %v10130
    %v10665 = vpack.c.bf16 %v10132, %v10132
    %v10666 = vpack.c.bf16 %v10192, %v10192
    %v10667 = vpack.c.bf16 %v10194, %v10194
    %v10668 = vpack.c.bf16 %v10197, %v10197
    %v10669 = vpack.c.bf16 %v10199, %v10199
    %v10670 = vpack.c.bf16 %v10202, %v10202
    %v10671 = vpack.c.bf16 %v10204, %v10204
    %v10672 = vpack.c.bf16 %v10207, %v10207
    %v10673 = vpack.c.bf16 %v10209, %v10209
    %v10674 = vpack.c.bf16 %v10269, %v10269
    %v10675 = vpack.c.bf16 %v10271, %v10271
    %v10676 = vpack.c.bf16 %v10274, %v10274
    %v10677 = vpack.c.bf16 %v10276, %v10276
    %v10678 = vpack.c.bf16 %v10279, %v10279
    %v10679 = vpack.c.bf16 %v10281, %v10281
    %v10680 = vpack.c.bf16 %v10284, %v10284
    %v10681 = vpack.c.bf16 %v10286, %v10286
    %v10682 = vpack.c.bf16 %v10346, %v10346
    %v10683 = vpack.c.bf16 %v10348, %v10348
    %v10684 = vpack.c.bf16 %v10351, %v10351
    %v10685 = vpack.c.bf16 %v10353, %v10353
    %v10686 = vpack.c.bf16 %v10356, %v10356
    %v10687 = vpack.c.bf16 %v10358, %v10358
    %v10688 = vpack.c.bf16 %v10361, %v10361
    %v10689 = vpack.c.bf16 %v10363, %v10363
    %v10690 = vpack.c.bf16 %v10423, %v10423
    %v10691 = vpack.c.bf16 %v10425, %v10425
    %v10692 = vpack.c.bf16 %v10428, %v10428
    %v10693 = vpack.c.bf16 %v10430, %v10430
    %v10694 = vpack.c.bf16 %v10433, %v10433
    %v10695 = vpack.c.bf16 %v10435, %v10435
    %v10696 = vpack.c.bf16 %v10438, %v10438
    %v10697 = vpack.c.bf16 %v10440, %v10440
    %v10762 = vunpack.c.l.b16 %v10442
    %v10763 = vunpack.c.l.b16 %v10443
    %v10764 = vunpack.c.l.b16 %v10444
    %v10765 = vunpack.c.l.b16 %v10445
    %v10766 = vunpack.c.l.b16 %v10446
    %v10767 = vunpack.c.l.b16 %v10447
    %v10768 = vunpack.c.l.b16 %v10448
    %v10769 = vunpack.c.l.b16 %v10449
    %v10770 = vunpack.c.l.b16 %v10450
    %v10771 = vunpack.c.l.b16 %v10451
    %v10772 = vunpack.c.l.b16 %v10452
    %v10773 = vunpack.c.l.b16 %v10453
    %v10774 = vunpack.c.l.b16 %v10454
    %v10775 = vunpack.c.l.b16 %v10455
    %v10776 = vunpack.c.l.b16 %v10456
    %v10777 = vunpack.c.l.b16 %v10457
    %v10778 = vunpack.c.l.b16 %v10458
    %v10779 = vunpack.c.l.b16 %v10459
    %v10780 = vunpack.c.l.b16 %v10460
    %v10781 = vunpack.c.l.b16 %v10461
    %v10782 = vunpack.c.l.b16 %v10462
    %v10783 = vunpack.c.l.b16 %v10463
    %v10784 = vunpack.c.l.b16 %v10464
    %v10785 = vunpack.c.l.b16 %v10465
    %v10786 = vunpack.c.l.b16 %v10466
    %v10787 = vunpack.c.l.b16 %v10467
    %v10788 = vunpack.c.l.b16 %v10468
    %v10789 = vunpack.c.l.b16 %v10469
    %v10790 = vunpack.c.l.b16 %v10470
    %v10791 = vunpack.c.l.b16 %v10471
    %v10792 = vunpack.c.l.b16 %v10472
    %v10793 = vunpack.c.l.b16 %v10473
    %v10794 = vunpack.c.l.b16 %v10474
    %v10795 = vunpack.c.l.b16 %v10475
    %v10796 = vunpack.c.l.b16 %v10476
    %v10797 = vunpack.c.l.b16 %v10477
    %v10798 = vunpack.c.l.b16 %v10478
    %v10799 = vunpack.c.l.b16 %v10479
    %v10800 = vunpack.c.l.b16 %v10480
    %v10801 = vunpack.c.l.b16 %v10481
    %v10802 = vunpack.c.l.b16 %v10482
    %v10803 = vunpack.c.l.b16 %v10483
    %v10804 = vunpack.c.l.b16 %v10484
    %v10805 = vunpack.c.l.b16 %v10485
    %v10806 = vunpack.c.l.b16 %v10486
    %v10807 = vunpack.c.l.b16 %v10487
    %v10808 = vunpack.c.l.b16 %v10488
    %v10809 = vunpack.c.l.b16 %v10489
    %v10810 = vunpack.c.l.b16 %v10490
    %v10811 = vunpack.c.l.b16 %v10491
    %v10812 = vunpack.c.l.b16 %v10492
    %v10813 = vunpack.c.l.b16 %v10493
    %v10814 = vunpack.c.l.b16 %v10494
    %v10815 = vunpack.c.l.b16 %v10495
    %v10816 = vunpack.c.l.b16 %v10496
    %v10817 = vunpack.c.l.b16 %v10497
    %v10818 = vunpack.c.l.b16 %v10498
    %v10819 = vunpack.c.l.b16 %v10499
    %v10820 = vunpack.c.l.b16 %v10500
    %v10821 = vunpack.c.l.b16 %v10501
    %v10822 = vunpack.c.l.b16 %v10502
    %v10823 = vunpack.c.l.b16 %v10503
    %v10824 = vunpack.c.l.b16 %v10504
    %v10825 = vunpack.c.l.b16 %v10505
    %v10826 = vpack.c.b16 %v10763, %v10762
    %v10827 = vpack.c.b16 %v10765, %v10764
    %v10828 = vpack.c.b16 %v10767, %v10766
    %v10829 = vpack.c.b16 %v10769, %v10768
    %v10830 = vpack.c.b16 %v10771, %v10770
    %v10831 = vpack.c.b16 %v10773, %v10772
    %v10832 = vpack.c.b16 %v10775, %v10774
    %v10833 = vpack.c.b16 %v10777, %v10776
    %v10834 = vpack.c.b16 %v10779, %v10778
    %v10835 = vpack.c.b16 %v10781, %v10780
    %v10836 = vpack.c.b16 %v10783, %v10782
    %v10837 = vpack.c.b16 %v10785, %v10784
    %v10838 = vpack.c.b16 %v10787, %v10786
    %v10839 = vpack.c.b16 %v10789, %v10788
    %v10840 = vpack.c.b16 %v10791, %v10790
    %v10841 = vpack.c.b16 %v10793, %v10792
    %v10842 = vpack.c.b16 %v10795, %v10794
    %v10843 = vpack.c.b16 %v10797, %v10796
    %v10844 = vpack.c.b16 %v10799, %v10798
    %v10845 = vpack.c.b16 %v10801, %v10800
    %v10846 = vpack.c.b16 %v10803, %v10802
    %v10847 = vpack.c.b16 %v10805, %v10804
    %v10848 = vpack.c.b16 %v10807, %v10806
    %v10849 = vpack.c.b16 %v10809, %v10808
    %v10850 = vpack.c.b16 %v10811, %v10810
    %v10851 = vpack.c.b16 %v10813, %v10812
    %v10852 = vpack.c.b16 %v10815, %v10814
    %v10853 = vpack.c.b16 %v10817, %v10816
    %v10854 = vpack.c.b16 %v10819, %v10818
    %v10855 = vpack.c.b16 %v10821, %v10820
    %v10856 = vpack.c.b16 %v10823, %v10822
    %v10857 = vpack.c.b16 %v10825, %v10824
    %v10922 = vunpack.c.l.b16 %v10506
    %v10923 = vunpack.c.l.b16 %v10507
    %v10924 = vunpack.c.l.b16 %v10508
    %v10925 = vunpack.c.l.b16 %v10509
    %v10926 = vunpack.c.l.b16 %v10510
    %v10927 = vunpack.c.l.b16 %v10511
    %v10928 = vunpack.c.l.b16 %v10512
    %v10929 = vunpack.c.l.b16 %v10513
    %v10930 = vunpack.c.l.b16 %v10514
    %v10931 = vunpack.c.l.b16 %v10515
    %v10932 = vunpack.c.l.b16 %v10516
    %v10933 = vunpack.c.l.b16 %v10517
    %v10934 = vunpack.c.l.b16 %v10518
    %v10935 = vunpack.c.l.b16 %v10519
    %v10936 = vunpack.c.l.b16 %v10520
    %v10937 = vunpack.c.l.b16 %v10521
    %v10938 = vunpack.c.l.b16 %v10522
    %v10939 = vunpack.c.l.b16 %v10523
    %v10940 = vunpack.c.l.b16 %v10524
    %v10941 = vunpack.c.l.b16 %v10525
    %v10942 = vunpack.c.l.b16 %v10526
    %v10943 = vunpack.c.l.b16 %v10527
    %v10944 = vunpack.c.l.b16 %v10528
    %v10945 = vunpack.c.l.b16 %v10529
    %v10946 = vunpack.c.l.b16 %v10530
    %v10947 = vunpack.c.l.b16 %v10531
    %v10948 = vunpack.c.l.b16 %v10532
    %v10949 = vunpack.c.l.b16 %v10533
    %v10950 = vunpack.c.l.b16 %v10534
    %v10951 = vunpack.c.l.b16 %v10535
    %v10952 = vunpack.c.l.b16 %v10536
    %v10953 = vunpack.c.l.b16 %v10537
    %v10954 = vunpack.c.l.b16 %v10538
    %v10955 = vunpack.c.l.b16 %v10539
    %v10956 = vunpack.c.l.b16 %v10540
    %v10957 = vunpack.c.l.b16 %v10541
    %v10958 = vunpack.c.l.b16 %v10542
    %v10959 = vunpack.c.l.b16 %v10543
    %v10960 = vunpack.c.l.b16 %v10544
    %v10961 = vunpack.c.l.b16 %v10545
    %v10962 = vunpack.c.l.b16 %v10546
    %v10963 = vunpack.c.l.b16 %v10547
    %v10964 = vunpack.c.l.b16 %v10548
    %v10965 = vunpack.c.l.b16 %v10549
    %v10966 = vunpack.c.l.b16 %v10550
    %v10967 = vunpack.c.l.b16 %v10551
    %v10968 = vunpack.c.l.b16 %v10552
    %v10969 = vunpack.c.l.b16 %v10553
    %v10970 = vunpack.c.l.b16 %v10554
    %v10971 = vunpack.c.l.b16 %v10555
    %v10972 = vunpack.c.l.b16 %v10556
    %v10973 = vunpack.c.l.b16 %v10557
    %v10974 = vunpack.c.l.b16 %v10558
    %v10975 = vunpack.c.l.b16 %v10559
    %v10976 = vunpack.c.l.b16 %v10560
    %v10977 = vunpack.c.l.b16 %v10561
    %v10978 = vunpack.c.l.b16 %v10562
    %v10979 = vunpack.c.l.b16 %v10563
    %v10980 = vunpack.c.l.b16 %v10564
    %v10981 = vunpack.c.l.b16 %v10565
    %v10982 = vunpack.c.l.b16 %v10566
    %v10983 = vunpack.c.l.b16 %v10567
    %v10984 = vunpack.c.l.b16 %v10568
    %v10985 = vunpack.c.l.b16 %v10569
    %v10986 = vpack.c.b16 %v10923, %v10922
    %v10987 = vpack.c.b16 %v10925, %v10924
    %v10988 = vpack.c.b16 %v10927, %v10926
    %v10989 = vpack.c.b16 %v10929, %v10928
    %v10990 = vpack.c.b16 %v10931, %v10930
    %v10991 = vpack.c.b16 %v10933, %v10932
    %v10992 = vpack.c.b16 %v10935, %v10934
    %v10993 = vpack.c.b16 %v10937, %v10936
    %v10994 = vpack.c.b16 %v10939, %v10938
    %v10995 = vpack.c.b16 %v10941, %v10940
    %v10996 = vpack.c.b16 %v10943, %v10942
    %v10997 = vpack.c.b16 %v10945, %v10944
    %v10998 = vpack.c.b16 %v10947, %v10946
    %v10999 = vpack.c.b16 %v10949, %v10948
    %v11000 = vpack.c.b16 %v10951, %v10950
    %v11001 = vpack.c.b16 %v10953, %v10952
    %v11002 = vpack.c.b16 %v10955, %v10954
    %v11003 = vpack.c.b16 %v10957, %v10956
    %v11004 = vpack.c.b16 %v10959, %v10958
    %v11005 = vpack.c.b16 %v10961, %v10960
    %v11006 = vpack.c.b16 %v10963, %v10962
    %v11007 = vpack.c.b16 %v10965, %v10964
    %v11008 = vpack.c.b16 %v10967, %v10966
    %v11009 = vpack.c.b16 %v10969, %v10968
    %v11010 = vpack.c.b16 %v10971, %v10970
    %v11011 = vpack.c.b16 %v10973, %v10972
    %v11012 = vpack.c.b16 %v10975, %v10974
    %v11013 = vpack.c.b16 %v10977, %v10976
    %v11014 = vpack.c.b16 %v10979, %v10978
    %v11015 = vpack.c.b16 %v10981, %v10980
    %v11016 = vpack.c.b16 %v10983, %v10982
    %v11017 = vpack.c.b16 %v10985, %v10984
    %11018 = vrot.lane.b32.xlu0 %v10986, 32
    %v11019 = vpop.permute.xlu0 %11018
    %11020 = vrot.lane.b32.xlu0 %v10987, 32
    %v11021 = vpop.permute.xlu0 %11020
    %11022 = vrot.lane.b32.xlu0 %v10988, 32
    %v11023 = vpop.permute.xlu0 %11022
    %11024 = vrot.lane.b32.xlu0 %v10989, 32
    %v11025 = vpop.permute.xlu0 %11024
    %11026 = vrot.lane.b32.xlu0 %v10990, 32
    %v11027 = vpop.permute.xlu0 %11026
    %11028 = vrot.lane.b32.xlu0 %v10991, 32
    %v11029 = vpop.permute.xlu0 %11028
    %11030 = vrot.lane.b32.xlu0 %v10992, 32
    %v11031 = vpop.permute.xlu0 %11030
    %11032 = vrot.lane.b32.xlu0 %v10993, 32
    %v11033 = vpop.permute.xlu0 %11032
    %11034 = vrot.lane.b32.xlu0 %v10994, 32
    %v11035 = vpop.permute.xlu0 %11034
    %11036 = vrot.lane.b32.xlu0 %v10995, 32
    %v11037 = vpop.permute.xlu0 %11036
    %11038 = vrot.lane.b32.xlu0 %v10996, 32
    %v11039 = vpop.permute.xlu0 %11038
    %11040 = vrot.lane.b32.xlu0 %v10997, 32
    %v11041 = vpop.permute.xlu0 %11040
    %11042 = vrot.lane.b32.xlu0 %v10998, 32
    %v11043 = vpop.permute.xlu0 %11042
    %11044 = vrot.lane.b32.xlu0 %v10999, 32
    %v11045 = vpop.permute.xlu0 %11044
    %11046 = vrot.lane.b32.xlu0 %v11000, 32
    %v11047 = vpop.permute.xlu0 %11046
    %11048 = vrot.lane.b32.xlu0 %v11001, 32
    %v11049 = vpop.permute.xlu0 %11048
    %11050 = vrot.lane.b32.xlu0 %v11002, 32
    %v11051 = vpop.permute.xlu0 %11050
    %11052 = vrot.lane.b32.xlu0 %v11003, 32
    %v11053 = vpop.permute.xlu0 %11052
    %11054 = vrot.lane.b32.xlu0 %v11004, 32
    %v11055 = vpop.permute.xlu0 %11054
    %11056 = vrot.lane.b32.xlu0 %v11005, 32
    %v11057 = vpop.permute.xlu0 %11056
    %11058 = vrot.lane.b32.xlu0 %v11006, 32
    %v11059 = vpop.permute.xlu0 %11058
    %11060 = vrot.lane.b32.xlu0 %v11007, 32
    %v11061 = vpop.permute.xlu0 %11060
    %11062 = vrot.lane.b32.xlu0 %v11008, 32
    %v11063 = vpop.permute.xlu0 %11062
    %11064 = vrot.lane.b32.xlu0 %v11009, 32
    %v11065 = vpop.permute.xlu0 %11064
    %11066 = vrot.lane.b32.xlu0 %v11010, 32
    %v11067 = vpop.permute.xlu0 %11066
    %11068 = vrot.lane.b32.xlu0 %v11011, 32
    %v11069 = vpop.permute.xlu0 %11068
    %11070 = vrot.lane.b32.xlu0 %v11012, 32
    %v11071 = vpop.permute.xlu0 %11070
    %11072 = vrot.lane.b32.xlu0 %v11013, 32
    %v11073 = vpop.permute.xlu0 %11072
    %11074 = vrot.lane.b32.xlu0 %v11014, 32
    %v11075 = vpop.permute.xlu0 %11074
    %11076 = vrot.lane.b32.xlu0 %v11015, 32
    %v11077 = vpop.permute.xlu0 %11076
    %11078 = vrot.lane.b32.xlu0 %v11016, 32
    %v11079 = vpop.permute.xlu0 %11078
    %11080 = vrot.lane.b32.xlu0 %v11017, 32
    %v11081 = vpop.permute.xlu0 %11080
    %v11146 = vunpack.c.l.b16 %v10570
    %v11147 = vunpack.c.l.b16 %v10571
    %v11148 = vunpack.c.l.b16 %v10572
    %v11149 = vunpack.c.l.b16 %v10573
    %v11150 = vunpack.c.l.b16 %v10574
    %v11151 = vunpack.c.l.b16 %v10575
    %v11152 = vunpack.c.l.b16 %v10576
    %v11153 = vunpack.c.l.b16 %v10577
    %v11154 = vunpack.c.l.b16 %v10578
    %v11155 = vunpack.c.l.b16 %v10579
    %v11156 = vunpack.c.l.b16 %v10580
    %v11157 = vunpack.c.l.b16 %v10581
    %v11158 = vunpack.c.l.b16 %v10582
    %v11159 = vunpack.c.l.b16 %v10583
    %v11160 = vunpack.c.l.b16 %v10584
    %v11161 = vunpack.c.l.b16 %v10585
    %v11162 = vunpack.c.l.b16 %v10586
    %v11163 = vunpack.c.l.b16 %v10587
    %v11164 = vunpack.c.l.b16 %v10588
    %v11165 = vunpack.c.l.b16 %v10589
    %v11166 = vunpack.c.l.b16 %v10590
    %v11167 = vunpack.c.l.b16 %v10591
    %v11168 = vunpack.c.l.b16 %v10592
    %v11169 = vunpack.c.l.b16 %v10593
    %v11170 = vunpack.c.l.b16 %v10594
    %v11171 = vunpack.c.l.b16 %v10595
    %v11172 = vunpack.c.l.b16 %v10596
    %v11173 = vunpack.c.l.b16 %v10597
    %v11174 = vunpack.c.l.b16 %v10598
    %v11175 = vunpack.c.l.b16 %v10599
    %v11176 = vunpack.c.l.b16 %v10600
    %v11177 = vunpack.c.l.b16 %v10601
    %v11178 = vunpack.c.l.b16 %v10602
    %v11179 = vunpack.c.l.b16 %v10603
    %v11180 = vunpack.c.l.b16 %v10604
    %v11181 = vunpack.c.l.b16 %v10605
    %v11182 = vunpack.c.l.b16 %v10606
    %v11183 = vunpack.c.l.b16 %v10607
    %v11184 = vunpack.c.l.b16 %v10608
    %v11185 = vunpack.c.l.b16 %v10609
    %v11186 = vunpack.c.l.b16 %v10610
    %v11187 = vunpack.c.l.b16 %v10611
    %v11188 = vunpack.c.l.b16 %v10612
    %v11189 = vunpack.c.l.b16 %v10613
    %v11190 = vunpack.c.l.b16 %v10614
    %v11191 = vunpack.c.l.b16 %v10615
    %v11192 = vunpack.c.l.b16 %v10616
    %v11193 = vunpack.c.l.b16 %v10617
    %v11194 = vunpack.c.l.b16 %v10618
    %v11195 = vunpack.c.l.b16 %v10619
    %v11196 = vunpack.c.l.b16 %v10620
    %v11197 = vunpack.c.l.b16 %v10621
    %v11198 = vunpack.c.l.b16 %v10622
    %v11199 = vunpack.c.l.b16 %v10623
    %v11200 = vunpack.c.l.b16 %v10624
    %v11201 = vunpack.c.l.b16 %v10625
    %v11202 = vunpack.c.l.b16 %v10626
    %v11203 = vunpack.c.l.b16 %v10627
    %v11204 = vunpack.c.l.b16 %v10628
    %v11205 = vunpack.c.l.b16 %v10629
    %v11206 = vunpack.c.l.b16 %v10630
    %v11207 = vunpack.c.l.b16 %v10631
    %v11208 = vunpack.c.l.b16 %v10632
    %v11209 = vunpack.c.l.b16 %v10633
    %v11210 = vpack.c.b16 %v11147, %v11146
    %v11211 = vpack.c.b16 %v11149, %v11148
    %v11212 = vpack.c.b16 %v11151, %v11150
    %v11213 = vpack.c.b16 %v11153, %v11152
    %v11214 = vpack.c.b16 %v11155, %v11154
    %v11215 = vpack.c.b16 %v11157, %v11156
    %v11216 = vpack.c.b16 %v11159, %v11158
    %v11217 = vpack.c.b16 %v11161, %v11160
    %v11218 = vpack.c.b16 %v11163, %v11162
    %v11219 = vpack.c.b16 %v11165, %v11164
    %v11220 = vpack.c.b16 %v11167, %v11166
    %v11221 = vpack.c.b16 %v11169, %v11168
    %v11222 = vpack.c.b16 %v11171, %v11170
    %v11223 = vpack.c.b16 %v11173, %v11172
    %v11224 = vpack.c.b16 %v11175, %v11174
    %v11225 = vpack.c.b16 %v11177, %v11176
    %v11226 = vpack.c.b16 %v11179, %v11178
    %v11227 = vpack.c.b16 %v11181, %v11180
    %v11228 = vpack.c.b16 %v11183, %v11182
    %v11229 = vpack.c.b16 %v11185, %v11184
    %v11230 = vpack.c.b16 %v11187, %v11186
    %v11231 = vpack.c.b16 %v11189, %v11188
    %v11232 = vpack.c.b16 %v11191, %v11190
    %v11233 = vpack.c.b16 %v11193, %v11192
    %v11234 = vpack.c.b16 %v11195, %v11194
    %v11235 = vpack.c.b16 %v11197, %v11196
    %v11236 = vpack.c.b16 %v11199, %v11198
    %v11237 = vpack.c.b16 %v11201, %v11200
    %v11238 = vpack.c.b16 %v11203, %v11202
    %v11239 = vpack.c.b16 %v11205, %v11204
    %v11240 = vpack.c.b16 %v11207, %v11206
    %v11241 = vpack.c.b16 %v11209, %v11208
    %11242 = vrot.lane.b32.xlu0 %v11210, 64
    %v11243 = vpop.permute.xlu0 %11242
    %11244 = vrot.lane.b32.xlu0 %v11211, 64
    %v11245 = vpop.permute.xlu0 %11244
    %11246 = vrot.lane.b32.xlu0 %v11212, 64
    %v11247 = vpop.permute.xlu0 %11246
    %11248 = vrot.lane.b32.xlu0 %v11213, 64
    %v11249 = vpop.permute.xlu0 %11248
    %11250 = vrot.lane.b32.xlu0 %v11214, 64
    %v11251 = vpop.permute.xlu0 %11250
    %11252 = vrot.lane.b32.xlu0 %v11215, 64
    %v11253 = vpop.permute.xlu0 %11252
    %11254 = vrot.lane.b32.xlu0 %v11216, 64
    %v11255 = vpop.permute.xlu0 %11254
    %11256 = vrot.lane.b32.xlu0 %v11217, 64
    %v11257 = vpop.permute.xlu0 %11256
    %11258 = vrot.lane.b32.xlu0 %v11218, 64
    %v11259 = vpop.permute.xlu0 %11258
    %11260 = vrot.lane.b32.xlu0 %v11219, 64
    %v11261 = vpop.permute.xlu0 %11260
    %11262 = vrot.lane.b32.xlu0 %v11220, 64
    %v11263 = vpop.permute.xlu0 %11262
    %11264 = vrot.lane.b32.xlu0 %v11221, 64
    %v11265 = vpop.permute.xlu0 %11264
    %11266 = vrot.lane.b32.xlu0 %v11222, 64
    %v11267 = vpop.permute.xlu0 %11266
    %11268 = vrot.lane.b32.xlu0 %v11223, 64
    %v11269 = vpop.permute.xlu0 %11268
    %11270 = vrot.lane.b32.xlu0 %v11224, 64
    %v11271 = vpop.permute.xlu0 %11270
    %11272 = vrot.lane.b32.xlu0 %v11225, 64
    %v11273 = vpop.permute.xlu0 %11272
    %11274 = vrot.lane.b32.xlu0 %v11226, 64
    %v11275 = vpop.permute.xlu0 %11274
    %11276 = vrot.lane.b32.xlu0 %v11227, 64
    %v11277 = vpop.permute.xlu0 %11276
    %11278 = vrot.lane.b32.xlu0 %v11228, 64
    %v11279 = vpop.permute.xlu0 %11278
    %11280 = vrot.lane.b32.xlu0 %v11229, 64
    %v11281 = vpop.permute.xlu0 %11280
    %11282 = vrot.lane.b32.xlu0 %v11230, 64
    %v11283 = vpop.permute.xlu0 %11282
    %11284 = vrot.lane.b32.xlu0 %v11231, 64
    %v11285 = vpop.permute.xlu0 %11284
    %11286 = vrot.lane.b32.xlu0 %v11232, 64
    %v11287 = vpop.permute.xlu0 %11286
    %11288 = vrot.lane.b32.xlu0 %v11233, 64
    %v11289 = vpop.permute.xlu0 %11288
    %11290 = vrot.lane.b32.xlu0 %v11234, 64
    %v11291 = vpop.permute.xlu0 %11290
    %11292 = vrot.lane.b32.xlu0 %v11235, 64
    %v11293 = vpop.permute.xlu0 %11292
    %11294 = vrot.lane.b32.xlu0 %v11236, 64
    %v11295 = vpop.permute.xlu0 %11294
    %11296 = vrot.lane.b32.xlu0 %v11237, 64
    %v11297 = vpop.permute.xlu0 %11296
    %11298 = vrot.lane.b32.xlu0 %v11238, 64
    %v11299 = vpop.permute.xlu0 %11298
    %11300 = vrot.lane.b32.xlu0 %v11239, 64
    %v11301 = vpop.permute.xlu0 %11300
    %11302 = vrot.lane.b32.xlu0 %v11240, 64
    %v11303 = vpop.permute.xlu0 %11302
    %11304 = vrot.lane.b32.xlu0 %v11241, 64
    %v11305 = vpop.permute.xlu0 %11304
    %v11370 = vunpack.c.l.b16 %v10634
    %v11371 = vunpack.c.l.b16 %v10635
    %v11372 = vunpack.c.l.b16 %v10636
    %v11373 = vunpack.c.l.b16 %v10637
    %v11374 = vunpack.c.l.b16 %v10638
    %v11375 = vunpack.c.l.b16 %v10639
    %v11376 = vunpack.c.l.b16 %v10640
    %v11377 = vunpack.c.l.b16 %v10641
    %v11378 = vunpack.c.l.b16 %v10642
    %v11379 = vunpack.c.l.b16 %v10643
    %v11380 = vunpack.c.l.b16 %v10644
    %v11381 = vunpack.c.l.b16 %v10645
    %v11382 = vunpack.c.l.b16 %v10646
    %v11383 = vunpack.c.l.b16 %v10647
    %v11384 = vunpack.c.l.b16 %v10648
    %v11385 = vunpack.c.l.b16 %v10649
    %v11386 = vunpack.c.l.b16 %v10650
    %v11387 = vunpack.c.l.b16 %v10651
    %v11388 = vunpack.c.l.b16 %v10652
    %v11389 = vunpack.c.l.b16 %v10653
    %v11390 = vunpack.c.l.b16 %v10654
    %v11391 = vunpack.c.l.b16 %v10655
    %v11392 = vunpack.c.l.b16 %v10656
    %v11393 = vunpack.c.l.b16 %v10657
    %v11394 = vunpack.c.l.b16 %v10658
    %v11395 = vunpack.c.l.b16 %v10659
    %v11396 = vunpack.c.l.b16 %v10660
    %v11397 = vunpack.c.l.b16 %v10661
    %v11398 = vunpack.c.l.b16 %v10662
    %v11399 = vunpack.c.l.b16 %v10663
    %v11400 = vunpack.c.l.b16 %v10664
    %v11401 = vunpack.c.l.b16 %v10665
    %v11402 = vunpack.c.l.b16 %v10666
    %v11403 = vunpack.c.l.b16 %v10667
    %v11404 = vunpack.c.l.b16 %v10668
    %v11405 = vunpack.c.l.b16 %v10669
    %v11406 = vunpack.c.l.b16 %v10670
    %v11407 = vunpack.c.l.b16 %v10671
    %v11408 = vunpack.c.l.b16 %v10672
    %v11409 = vunpack.c.l.b16 %v10673
    %v11410 = vunpack.c.l.b16 %v10674
    %v11411 = vunpack.c.l.b16 %v10675
    %v11412 = vunpack.c.l.b16 %v10676
    %v11413 = vunpack.c.l.b16 %v10677
    %v11414 = vunpack.c.l.b16 %v10678
    %v11415 = vunpack.c.l.b16 %v10679
    %v11416 = vunpack.c.l.b16 %v10680
    %v11417 = vunpack.c.l.b16 %v10681
    %v11418 = vunpack.c.l.b16 %v10682
    %v11419 = vunpack.c.l.b16 %v10683
    %v11420 = vunpack.c.l.b16 %v10684
    %v11421 = vunpack.c.l.b16 %v10685
    %v11422 = vunpack.c.l.b16 %v10686
    %v11423 = vunpack.c.l.b16 %v10687
    %v11424 = vunpack.c.l.b16 %v10688
    %v11425 = vunpack.c.l.b16 %v10689
    %v11426 = vunpack.c.l.b16 %v10690
    %v11427 = vunpack.c.l.b16 %v10691
    %v11428 = vunpack.c.l.b16 %v10692
    %v11429 = vunpack.c.l.b16 %v10693
    %v11430 = vunpack.c.l.b16 %v10694
    %v11431 = vunpack.c.l.b16 %v10695
    %v11432 = vunpack.c.l.b16 %v10696
    %v11433 = vunpack.c.l.b16 %v10697
    %v11434 = vpack.c.b16 %v11371, %v11370
    %v11435 = vpack.c.b16 %v11373, %v11372
    %v11436 = vpack.c.b16 %v11375, %v11374
    %v11437 = vpack.c.b16 %v11377, %v11376
    %v11438 = vpack.c.b16 %v11379, %v11378
    %v11439 = vpack.c.b16 %v11381, %v11380
    %v11440 = vpack.c.b16 %v11383, %v11382
    %v11441 = vpack.c.b16 %v11385, %v11384
    %v11442 = vpack.c.b16 %v11387, %v11386
    %v11443 = vpack.c.b16 %v11389, %v11388
    %v11444 = vpack.c.b16 %v11391, %v11390
    %v11445 = vpack.c.b16 %v11393, %v11392
    %v11446 = vpack.c.b16 %v11395, %v11394
    %v11447 = vpack.c.b16 %v11397, %v11396
    %v11448 = vpack.c.b16 %v11399, %v11398
    %v11449 = vpack.c.b16 %v11401, %v11400
    %v11450 = vpack.c.b16 %v11403, %v11402
    %v11451 = vpack.c.b16 %v11405, %v11404
    %v11452 = vpack.c.b16 %v11407, %v11406
    %v11453 = vpack.c.b16 %v11409, %v11408
    %v11454 = vpack.c.b16 %v11411, %v11410
    %v11455 = vpack.c.b16 %v11413, %v11412
    %v11456 = vpack.c.b16 %v11415, %v11414
    %v11457 = vpack.c.b16 %v11417, %v11416
    %v11458 = vpack.c.b16 %v11419, %v11418
    %v11459 = vpack.c.b16 %v11421, %v11420
    %v11460 = vpack.c.b16 %v11423, %v11422
    %v11461 = vpack.c.b16 %v11425, %v11424
    %v11462 = vpack.c.b16 %v11427, %v11426
    %v11463 = vpack.c.b16 %v11429, %v11428
    %v11464 = vpack.c.b16 %v11431, %v11430
    %v11465 = vpack.c.b16 %v11433, %v11432
    %11466 = vrot.lane.b32.xlu0 %v11434, 96
    %v11467 = vpop.permute.xlu0 %11466
    %11468 = vrot.lane.b32.xlu0 %v11435, 96
    %v11469 = vpop.permute.xlu0 %11468
    %11470 = vrot.lane.b32.xlu0 %v11436, 96
    %v11471 = vpop.permute.xlu0 %11470
    %11472 = vrot.lane.b32.xlu0 %v11437, 96
    %v11473 = vpop.permute.xlu0 %11472
    %11474 = vrot.lane.b32.xlu0 %v11438, 96
    %v11475 = vpop.permute.xlu0 %11474
    %11476 = vrot.lane.b32.xlu0 %v11439, 96
    %v11477 = vpop.permute.xlu0 %11476
    %11478 = vrot.lane.b32.xlu0 %v11440, 96
    %v11479 = vpop.permute.xlu0 %11478
    %11480 = vrot.lane.b32.xlu0 %v11441, 96
    %v11481 = vpop.permute.xlu0 %11480
    %11482 = vrot.lane.b32.xlu0 %v11442, 96
    %v11483 = vpop.permute.xlu0 %11482
    %11484 = vrot.lane.b32.xlu0 %v11443, 96
    %v11485 = vpop.permute.xlu0 %11484
    %11486 = vrot.lane.b32.xlu0 %v11444, 96
    %v11487 = vpop.permute.xlu0 %11486
    %11488 = vrot.lane.b32.xlu0 %v11445, 96
    %v11489 = vpop.permute.xlu0 %11488
    %11490 = vrot.lane.b32.xlu0 %v11446, 96
    %v11491 = vpop.permute.xlu0 %11490
    %11492 = vrot.lane.b32.xlu0 %v11447, 96
    %v11493 = vpop.permute.xlu0 %11492
    %11494 = vrot.lane.b32.xlu0 %v11448, 96
    %v11495 = vpop.permute.xlu0 %11494
    %11496 = vrot.lane.b32.xlu0 %v11449, 96
    %v11497 = vpop.permute.xlu0 %11496
    %11498 = vrot.lane.b32.xlu0 %v11450, 96
    %v11499 = vpop.permute.xlu0 %11498
    %11500 = vrot.lane.b32.xlu0 %v11451, 96
    %v11501 = vpop.permute.xlu0 %11500
    %11502 = vrot.lane.b32.xlu0 %v11452, 96
    %v11503 = vpop.permute.xlu0 %11502
    %11504 = vrot.lane.b32.xlu0 %v11453, 96
    %v11505 = vpop.permute.xlu0 %11504
    %11506 = vrot.lane.b32.xlu0 %v11454, 96
    %v11507 = vpop.permute.xlu0 %11506
    %11508 = vrot.lane.b32.xlu0 %v11455, 96
    %v11509 = vpop.permute.xlu0 %11508
    %11510 = vrot.lane.b32.xlu0 %v11456, 96
    %v11511 = vpop.permute.xlu0 %11510
    %11512 = vrot.lane.b32.xlu0 %v11457, 96
    %v11513 = vpop.permute.xlu0 %11512
    %11514 = vrot.lane.b32.xlu0 %v11458, 96
    %v11515 = vpop.permute.xlu0 %11514
    %11516 = vrot.lane.b32.xlu0 %v11459, 96
    %v11517 = vpop.permute.xlu0 %11516
    %11518 = vrot.lane.b32.xlu0 %v11460, 96
    %v11519 = vpop.permute.xlu0 %11518
    %11520 = vrot.lane.b32.xlu0 %v11461, 96
    %v11521 = vpop.permute.xlu0 %11520
    %11522 = vrot.lane.b32.xlu0 %v11462, 96
    %v11523 = vpop.permute.xlu0 %11522
    %11524 = vrot.lane.b32.xlu0 %v11463, 96
    %v11525 = vpop.permute.xlu0 %11524
    %11526 = vrot.lane.b32.xlu0 %v11464, 96
    %v11527 = vpop.permute.xlu0 %11526
    %11528 = vrot.lane.b32.xlu0 %v11465, 96
    %v11529 = vpop.permute.xlu0 %11528
    %v11532 = vsel %vm2176, %v10826, %v11019
    %v11535 = vsel %vm2176, %v10827, %v11021
    %v11538 = vsel %vm2176, %v10828, %v11023
    %v11541 = vsel %vm2176, %v10829, %v11025
    %v11544 = vsel %vm2176, %v10830, %v11027
    %v11547 = vsel %vm2176, %v10831, %v11029
    %v11550 = vsel %vm2176, %v10832, %v11031
    %v11553 = vsel %vm2176, %v10833, %v11033
    %v11556 = vsel %vm2176, %v10834, %v11035
    %v11559 = vsel %vm2176, %v10835, %v11037
    %v11562 = vsel %vm2176, %v10836, %v11039
    %v11565 = vsel %vm2176, %v10837, %v11041
    %v11568 = vsel %vm2176, %v10838, %v11043
    %v11571 = vsel %vm2176, %v10839, %v11045
    %v11574 = vsel %vm2176, %v10840, %v11047
    %v11577 = vsel %vm2176, %v10841, %v11049
    %v11580 = vsel %vm2176, %v10842, %v11051
    %v11583 = vsel %vm2176, %v10843, %v11053
    %v11586 = vsel %vm2176, %v10844, %v11055
    %v11589 = vsel %vm2176, %v10845, %v11057
    %v11592 = vsel %vm2176, %v10846, %v11059
    %v11595 = vsel %vm2176, %v10847, %v11061
    %v11598 = vsel %vm2176, %v10848, %v11063
    %v11601 = vsel %vm2176, %v10849, %v11065
    %v11604 = vsel %vm2176, %v10850, %v11067
    %v11607 = vsel %vm2176, %v10851, %v11069
    %v11610 = vsel %vm2176, %v10852, %v11071
    %v11613 = vsel %vm2176, %v10853, %v11073
    %v11616 = vsel %vm2176, %v10854, %v11075
    %v11619 = vsel %vm2176, %v10855, %v11077
    %v11622 = vsel %vm2176, %v10856, %v11079
    %v11625 = vsel %vm2176, %v10857, %v11081
    %v11627 = vsel %vm4905, %v11532, %v11243
    %v11629 = vsel %vm4905, %v11535, %v11245
    %v11631 = vsel %vm4905, %v11538, %v11247
    %v11633 = vsel %vm4905, %v11541, %v11249
    %v11635 = vsel %vm4905, %v11544, %v11251
    %v11637 = vsel %vm4905, %v11547, %v11253
    %v11639 = vsel %vm4905, %v11550, %v11255
    %v11641 = vsel %vm4905, %v11553, %v11257
    %v11643 = vsel %vm4905, %v11556, %v11259
    %v11645 = vsel %vm4905, %v11559, %v11261
    %v11647 = vsel %vm4905, %v11562, %v11263
    %v11649 = vsel %vm4905, %v11565, %v11265
    %v11651 = vsel %vm4905, %v11568, %v11267
    %v11653 = vsel %vm4905, %v11571, %v11269
    %v11655 = vsel %vm4905, %v11574, %v11271
    %v11657 = vsel %vm4905, %v11577, %v11273
    %v11659 = vsel %vm4905, %v11580, %v11275
    %v11661 = vsel %vm4905, %v11583, %v11277
    %v11663 = vsel %vm4905, %v11586, %v11279
    %v11665 = vsel %vm4905, %v11589, %v11281
    %v11667 = vsel %vm4905, %v11592, %v11283
    %v11669 = vsel %vm4905, %v11595, %v11285
    %v11671 = vsel %vm4905, %v11598, %v11287
    %v11673 = vsel %vm4905, %v11601, %v11289
    %v11675 = vsel %vm4905, %v11604, %v11291
    %v11677 = vsel %vm4905, %v11607, %v11293
    %v11679 = vsel %vm4905, %v11610, %v11295
    %v11681 = vsel %vm4905, %v11613, %v11297
    %v11683 = vsel %vm4905, %v11616, %v11299
    %v11685 = vsel %vm4905, %v11619, %v11301
    %v11687 = vsel %vm4905, %v11622, %v11303
    %v11689 = vsel %vm4905, %v11625, %v11305
    %vm11690 = vcmask 785408
    %v11692 = vsel %vm11690, %v11627, %v11467
    %v11695 = vsel %vm11690, %v11629, %v11469
    %v11698 = vsel %vm11690, %v11631, %v11471
    %v11701 = vsel %vm11690, %v11633, %v11473
    %v11704 = vsel %vm11690, %v11635, %v11475
    %v11707 = vsel %vm11690, %v11637, %v11477
    %v11710 = vsel %vm11690, %v11639, %v11479
    %v11713 = vsel %vm11690, %v11641, %v11481
    %v11716 = vsel %vm11690, %v11643, %v11483
    %v11719 = vsel %vm11690, %v11645, %v11485
    %v11722 = vsel %vm11690, %v11647, %v11487
    %v11725 = vsel %vm11690, %v11649, %v11489
    %v11728 = vsel %vm11690, %v11651, %v11491
    %v11731 = vsel %vm11690, %v11653, %v11493
    %v11734 = vsel %vm11690, %v11655, %v11495
    %v11737 = vsel %vm11690, %v11657, %v11497
    %v11740 = vsel %vm11690, %v11659, %v11499
    %v11743 = vsel %vm11690, %v11661, %v11501
    %v11746 = vsel %vm11690, %v11663, %v11503
    %v11749 = vsel %vm11690, %v11665, %v11505
    %v11752 = vsel %vm11690, %v11667, %v11507
    %v11755 = vsel %vm11690, %v11669, %v11509
    %v11758 = vsel %vm11690, %v11671, %v11511
    %v11761 = vsel %vm11690, %v11673, %v11513
    %v11764 = vsel %vm11690, %v11675, %v11515
    %v11767 = vsel %vm11690, %v11677, %v11517
    %v11770 = vsel %vm11690, %v11679, %v11519
    %v11773 = vsel %vm11690, %v11681, %v11521
    %v11776 = vsel %vm11690, %v11683, %v11523
    %v11779 = vsel %vm11690, %v11685, %v11525
    %v11782 = vsel %vm11690, %v11687, %v11527
    %v11785 = vsel %vm11690, %v11689, %v11529
    %v11787 = vld [vmem:[#allocation10] sm:$0xf]
    %v11788 = vld [vmem:[#allocation10 + $0x4] sm:$0xf]
    %v11789 = vld [vmem:[#allocation10 + $0x8] sm:$0xf]
    %v11790 = vld [vmem:[#allocation10 + $0xc] sm:$0xf]
    %v11791 = vld [vmem:[#allocation10 + $0x10] sm:$0xf]
    %v11792 = vld [vmem:[#allocation10 + $0x14] sm:$0xf]
    %v11793 = vld [vmem:[#allocation10 + $0x18] sm:$0xf]
    %v11794 = vld [vmem:[#allocation10 + $0x1c] sm:$0xf]
    %v11795 = vld [vmem:[#allocation10 + $0x20] sm:$0xf]
    %v11796 = vld [vmem:[#allocation10 + $0x24] sm:$0xf]
    %v11797 = vld [vmem:[#allocation10 + $0x28] sm:$0xf]
    %v11798 = vld [vmem:[#allocation10 + $0x2c] sm:$0xf]
    %v11799 = vld [vmem:[#allocation10 + $0x30] sm:$0xf]
    %v11800 = vld [vmem:[#allocation10 + $0x34] sm:$0xf]
    %v11801 = vld [vmem:[#allocation10 + $0x38] sm:$0xf]
    %v11802 = vld [vmem:[#allocation10 + $0x3c] sm:$0xf]
    %v11803 = vld [vmem:[%s5] sm:$0x1]
    %v11805 = vperm.slane %v11803, 0
    %v11823 = vunpack.c.l.b16 %v11787
    %v11824 = vunpack.c.l.b16 %v11788
    %v11825 = vunpack.c.l.b16 %v11789
    %v11826 = vunpack.c.l.b16 %v11790
    %v11827 = vunpack.c.l.b16 %v11791
    %v11828 = vunpack.c.l.b16 %v11792
    %v11829 = vunpack.c.l.b16 %v11793
    %v11830 = vunpack.c.l.b16 %v11794
    %v11831 = vunpack.c.l.b16 %v11795
    %v11832 = vunpack.c.l.b16 %v11796
    %v11833 = vunpack.c.l.b16 %v11797
    %v11834 = vunpack.c.l.b16 %v11798
    %v11835 = vunpack.c.l.b16 %v11799
    %v11836 = vunpack.c.l.b16 %v11800
    %v11837 = vunpack.c.l.b16 %v11801
    %v11838 = vunpack.c.l.b16 %v11802
    %v11839 = vpack.c.b16 %v11824, %v11823
    %v11840 = vpack.c.b16 %v11826, %v11825
    %v11841 = vpack.c.b16 %v11828, %v11827
    %v11842 = vpack.c.b16 %v11830, %v11829
    %v11843 = vpack.c.b16 %v11832, %v11831
    %v11844 = vpack.c.b16 %v11834, %v11833
    %v11845 = vpack.c.b16 %v11836, %v11835
    %v11846 = vpack.c.b16 %v11838, %v11837
    %11855 = vmatpush.bf16.msra.mxu0 %v11846
    %11856 = vmatpush.bf16.msra.mxu0 %v11845
    %11857 = vmatpush.bf16.msra.mxu0 %v11844
    %11858 = vmatpush.bf16.msra.mxu0 %v11843
    %11859 = vmatpush.bf16.msra.mxu0 %v11842
    %11860 = vmatpush.bf16.msra.mxu0 %v11841
    %11861 = vmatpush.bf16.msra.mxu0 %v11840
    %11862 = vmatpush.bf16.msra.mxu0 %v11839
    %11863 = vmatmul.bf16.gmra.mxu0 %v11692
    %v11864 = vpop.f32.mrf.mxu0
    %v11865 = vadd.f32 %v11805, %v11864
    %v11866 = vpop.f32.mrf.mxu0
    %v11867 = vadd.f32 %v11805, %v11866
    %11868 = vmatmul.bf16.gmra.mxu0 %v11695
    %v11869 = vpop.f32.mrf.mxu0
    %v11870 = vadd.f32 %v11805, %v11869
    %v11871 = vpop.f32.mrf.mxu0
    %v11872 = vadd.f32 %v11805, %v11871
    %11873 = vmatmul.bf16.gmra.mxu0 %v11698
    %v11874 = vpop.f32.mrf.mxu0
    %v11875 = vadd.f32 %v11805, %v11874
    %v11876 = vpop.f32.mrf.mxu0
    %v11877 = vadd.f32 %v11805, %v11876
    %11878 = vmatmul.bf16.gmra.mxu0 %v11701
    %v11879 = vpop.f32.mrf.mxu0
    %v11880 = vadd.f32 %v11805, %v11879
    %v11881 = vpop.f32.mrf.mxu0
    %v11882 = vadd.f32 %v11805, %v11881
    %11883 = vmatmul.bf16.gmra.mxu0 %v11704
    %v11884 = vpop.f32.mrf.mxu0
    %v11885 = vadd.f32 %v11805, %v11884
    %v11886 = vpop.f32.mrf.mxu0
    %v11887 = vadd.f32 %v11805, %v11886
    %11888 = vmatmul.bf16.gmra.mxu0 %v11707
    %v11889 = vpop.f32.mrf.mxu0
    %v11890 = vadd.f32 %v11805, %v11889
    %v11891 = vpop.f32.mrf.mxu0
    %v11892 = vadd.f32 %v11805, %v11891
    %11893 = vmatmul.bf16.gmra.mxu0 %v11710
    %v11894 = vpop.f32.mrf.mxu0
    %v11895 = vadd.f32 %v11805, %v11894
    %v11896 = vpop.f32.mrf.mxu0
    %v11897 = vadd.f32 %v11805, %v11896
    %11898 = vmatmul.bf16.gmra.mxu0 %v11713
    %v11899 = vpop.f32.mrf.mxu0
    %v11900 = vadd.f32 %v11805, %v11899
    %v11901 = vpop.f32.mrf.mxu0
    %v11902 = vadd.f32 %v11805, %v11901
    %11903 = vmatmul.bf16.gmra.mxu0 %v11716
    %v11904 = vpop.f32.mrf.mxu0
    %v11905 = vadd.f32 %v11805, %v11904
    %v11906 = vpop.f32.mrf.mxu0
    %v11907 = vadd.f32 %v11805, %v11906
    %11908 = vmatmul.bf16.gmra.mxu0 %v11719
    %v11909 = vpop.f32.mrf.mxu0
    %v11910 = vadd.f32 %v11805, %v11909
    %v11911 = vpop.f32.mrf.mxu0
    %v11912 = vadd.f32 %v11805, %v11911
    %11913 = vmatmul.bf16.gmra.mxu0 %v11722
    %v11914 = vpop.f32.mrf.mxu0
    %v11915 = vadd.f32 %v11805, %v11914
    %v11916 = vpop.f32.mrf.mxu0
    %v11917 = vadd.f32 %v11805, %v11916
    %11918 = vmatmul.bf16.gmra.mxu0 %v11725
    %v11919 = vpop.f32.mrf.mxu0
    %v11920 = vadd.f32 %v11805, %v11919
    %v11921 = vpop.f32.mrf.mxu0
    %v11922 = vadd.f32 %v11805, %v11921
    %11923 = vmatmul.bf16.gmra.mxu0 %v11728
    %v11924 = vpop.f32.mrf.mxu0
    %v11925 = vadd.f32 %v11805, %v11924
    %v11926 = vpop.f32.mrf.mxu0
    %v11927 = vadd.f32 %v11805, %v11926
    %11928 = vmatmul.bf16.gmra.mxu0 %v11731
    %v11929 = vpop.f32.mrf.mxu0
    %v11930 = vadd.f32 %v11805, %v11929
    %v11931 = vpop.f32.mrf.mxu0
    %v11932 = vadd.f32 %v11805, %v11931
    %11933 = vmatmul.bf16.gmra.mxu0 %v11734
    %v11934 = vpop.f32.mrf.mxu0
    %v11935 = vadd.f32 %v11805, %v11934
    %v11936 = vpop.f32.mrf.mxu0
    %v11937 = vadd.f32 %v11805, %v11936
    %11938 = vmatmul.bf16.gmra.mxu0 %v11737
    %v11939 = vpop.f32.mrf.mxu0
    %v11940 = vadd.f32 %v11805, %v11939
    %v11941 = vpop.f32.mrf.mxu0
    %v11942 = vadd.f32 %v11805, %v11941
    %11943 = vmatmul.bf16.gmra.mxu0 %v11740
    %v11944 = vpop.f32.mrf.mxu0
    %v11945 = vadd.f32 %v11805, %v11944
    %v11946 = vpop.f32.mrf.mxu0
    %v11947 = vadd.f32 %v11805, %v11946
    %11948 = vmatmul.bf16.gmra.mxu0 %v11743
    %v11949 = vpop.f32.mrf.mxu0
    %v11950 = vadd.f32 %v11805, %v11949
    %v11951 = vpop.f32.mrf.mxu0
    %v11952 = vadd.f32 %v11805, %v11951
    %11953 = vmatmul.bf16.gmra.mxu0 %v11746
    %v11954 = vpop.f32.mrf.mxu0
    %v11955 = vadd.f32 %v11805, %v11954
    %v11956 = vpop.f32.mrf.mxu0
    %v11957 = vadd.f32 %v11805, %v11956
    %11958 = vmatmul.bf16.gmra.mxu0 %v11749
    %v11959 = vpop.f32.mrf.mxu0
    %v11960 = vadd.f32 %v11805, %v11959
    %v11961 = vpop.f32.mrf.mxu0
    %v11962 = vadd.f32 %v11805, %v11961
    %11963 = vmatmul.bf16.gmra.mxu0 %v11752
    %v11964 = vpop.f32.mrf.mxu0
    %v11965 = vadd.f32 %v11805, %v11964
    %v11966 = vpop.f32.mrf.mxu0
    %v11967 = vadd.f32 %v11805, %v11966
    %11968 = vmatmul.bf16.gmra.mxu0 %v11755
    %v11969 = vpop.f32.mrf.mxu0
    %v11970 = vadd.f32 %v11805, %v11969
    %v11971 = vpop.f32.mrf.mxu0
    %v11972 = vadd.f32 %v11805, %v11971
    %11973 = vmatmul.bf16.gmra.mxu0 %v11758
    %v11974 = vpop.f32.mrf.mxu0
    %v11975 = vadd.f32 %v11805, %v11974
    %v11976 = vpop.f32.mrf.mxu0
    %v11977 = vadd.f32 %v11805, %v11976
    %11978 = vmatmul.bf16.gmra.mxu0 %v11761
    %v11979 = vpop.f32.mrf.mxu0
    %v11980 = vadd.f32 %v11805, %v11979
    %v11981 = vpop.f32.mrf.mxu0
    %v11982 = vadd.f32 %v11805, %v11981
    %11983 = vmatmul.bf16.gmra.mxu0 %v11764
    %v11984 = vpop.f32.mrf.mxu0
    %v11985 = vadd.f32 %v11805, %v11984
    %v11986 = vpop.f32.mrf.mxu0
    %v11987 = vadd.f32 %v11805, %v11986
    %11988 = vmatmul.bf16.gmra.mxu0 %v11767
    %v11989 = vpop.f32.mrf.mxu0
    %v11990 = vadd.f32 %v11805, %v11989
    %v11991 = vpop.f32.mrf.mxu0
    %v11992 = vadd.f32 %v11805, %v11991
    %11993 = vmatmul.bf16.gmra.mxu0 %v11770
    %v11994 = vpop.f32.mrf.mxu0
    %v11995 = vadd.f32 %v11805, %v11994
    %v11996 = vpop.f32.mrf.mxu0
    %v11997 = vadd.f32 %v11805, %v11996
    %11998 = vmatmul.bf16.gmra.mxu0 %v11773
    %v11999 = vpop.f32.mrf.mxu0
    %v12000 = vadd.f32 %v11805, %v11999
    %v12001 = vpop.f32.mrf.mxu0
    %v12002 = vadd.f32 %v11805, %v12001
    %12003 = vmatmul.bf16.gmra.mxu0 %v11776
    %v12004 = vpop.f32.mrf.mxu0
    %v12005 = vadd.f32 %v11805, %v12004
    %v12006 = vpop.f32.mrf.mxu0
    %v12007 = vadd.f32 %v11805, %v12006
    %12008 = vmatmul.bf16.gmra.mxu0 %v11779
    %v12009 = vpop.f32.mrf.mxu0
    %v12010 = vadd.f32 %v11805, %v12009
    %v12011 = vpop.f32.mrf.mxu0
    %v12012 = vadd.f32 %v11805, %v12011
    %12013 = vmatmul.bf16.gmra.mxu0 %v11782
    %v12014 = vpop.f32.mrf.mxu0
    %v12015 = vadd.f32 %v11805, %v12014
    %v12016 = vpop.f32.mrf.mxu0
    %v12017 = vadd.f32 %v11805, %v12016
    %12018 = vmatmul.bf16.gmra.mxu0 %v11785
    %v12019 = vpop.f32.mrf.mxu0
    %v12020 = vadd.f32 %v11805, %v12019
    %v12021 = vpop.f32.mrf.mxu0
    %v12022 = vadd.f32 %v11805, %v12021
    %12023 = vdwg.mxu0
    %12024 = vst [vmem:[#allocation11] sm:$0xff] %v11865
    %12025 = vst [vmem:[#allocation11 + $0x8] sm:$0xff] %v11867
    %12026 = vst [vmem:[#allocation11 + $0x10] sm:$0xff] %v11870
    %12027 = vst [vmem:[#allocation11 + $0x18] sm:$0xff] %v11872
    %12028 = vst [vmem:[#allocation11 + $0x20] sm:$0xff] %v11875
    %12029 = vst [vmem:[#allocation11 + $0x28] sm:$0xff] %v11877
    %12030 = vst [vmem:[#allocation11 + $0x30] sm:$0xff] %v11880
    %12031 = vst [vmem:[#allocation11 + $0x38] sm:$0xff] %v11882
    %12032 = vst [vmem:[#allocation11 + $0x40] sm:$0xff] %v11885
    %12033 = vst [vmem:[#allocation11 + $0x48] sm:$0xff] %v11887
    %12034 = vst [vmem:[#allocation11 + $0x50] sm:$0xff] %v11890
    %12035 = vst [vmem:[#allocation11 + $0x58] sm:$0xff] %v11892
    %12036 = vst [vmem:[#allocation11 + $0x60] sm:$0xff] %v11895
    %12037 = vst [vmem:[#allocation11 + $0x68] sm:$0xff] %v11897
    %12038 = vst [vmem:[#allocation11 + $0x70] sm:$0xff] %v11900
    %12039 = vst [vmem:[#allocation11 + $0x78] sm:$0xff] %v11902
    %12040 = vst [vmem:[#allocation11 + $0x80] sm:$0xff] %v11905
    %12041 = vst [vmem:[#allocation11 + $0x88] sm:$0xff] %v11907
    %12042 = vst [vmem:[#allocation11 + $0x90] sm:$0xff] %v11910
    %12043 = vst [vmem:[#allocation11 + $0x98] sm:$0xff] %v11912
    %12044 = vst [vmem:[#allocation11 + $0xa0] sm:$0xff] %v11915
    %12045 = vst [vmem:[#allocation11 + $0xa8] sm:$0xff] %v11917
    %12046 = vst [vmem:[#allocation11 + $0xb0] sm:$0xff] %v11920
    %12047 = vst [vmem:[#allocation11 + $0xb8] sm:$0xff] %v11922
    %12048 = vst [vmem:[#allocation11 + $0xc0] sm:$0xff] %v11925
    %12049 = vst [vmem:[#allocation11 + $0xc8] sm:$0xff] %v11927
    %12050 = vst [vmem:[#allocation11 + $0xd0] sm:$0xff] %v11930
    %12051 = vst [vmem:[#allocation11 + $0xd8] sm:$0xff] %v11932
    %12052 = vst [vmem:[#allocation11 + $0xe0] sm:$0xff] %v11935
    %12053 = vst [vmem:[#allocation11 + $0xe8] sm:$0xff] %v11937
    %12054 = vst [vmem:[#allocation11 + $0xf0] sm:$0xff] %v11940
    %12055 = vst [vmem:[#allocation11 + $0xf8] sm:$0xff] %v11942
    %12056 = vst [vmem:[#allocation11 + $0x100] sm:$0xff] %v11945
    %12057 = vst [vmem:[#allocation11 + $0x108] sm:$0xff] %v11947
    %12058 = vst [vmem:[#allocation11 + $0x110] sm:$0xff] %v11950
    %12059 = vst [vmem:[#allocation11 + $0x118] sm:$0xff] %v11952
    %12060 = vst [vmem:[#allocation11 + $0x120] sm:$0xff] %v11955
    %12061 = vst [vmem:[#allocation11 + $0x128] sm:$0xff] %v11957
    %12062 = vst [vmem:[#allocation11 + $0x130] sm:$0xff] %v11960
    %12063 = vst [vmem:[#allocation11 + $0x138] sm:$0xff] %v11962
    %12064 = vst [vmem:[#allocation11 + $0x140] sm:$0xff] %v11965
    %12065 = vst [vmem:[#allocation11 + $0x148] sm:$0xff] %v11967
    %12066 = vst [vmem:[#allocation11 + $0x150] sm:$0xff] %v11970
    %12067 = vst [vmem:[#allocation11 + $0x158] sm:$0xff] %v11972
    %12068 = vst [vmem:[#allocation11 + $0x160] sm:$0xff] %v11975
    %12069 = vst [vmem:[#allocation11 + $0x168] sm:$0xff] %v11977
    %12070 = vst [vmem:[#allocation11 + $0x170] sm:$0xff] %v11980
    %12071 = vst [vmem:[#allocation11 + $0x178] sm:$0xff] %v11982
    %12072 = vst [vmem:[#allocation11 + $0x180] sm:$0xff] %v11985
    %12073 = vst [vmem:[#allocation11 + $0x188] sm:$0xff] %v11987
    %12074 = vst [vmem:[#allocation11 + $0x190] sm:$0xff] %v11990
    %12075 = vst [vmem:[#allocation11 + $0x198] sm:$0xff] %v11992
    %12076 = vst [vmem:[#allocation11 + $0x1a0] sm:$0xff] %v11995
    %12077 = vst [vmem:[#allocation11 + $0x1a8] sm:$0xff] %v11997
    %12078 = vst [vmem:[#allocation11 + $0x1b0] sm:$0xff] %v12000
    %12079 = vst [vmem:[#allocation11 + $0x1b8] sm:$0xff] %v12002
    %12080 = vst [vmem:[#allocation11 + $0x1c0] sm:$0xff] %v12005
    %12081 = vst [vmem:[#allocation11 + $0x1c8] sm:$0xff] %v12007
    %12082 = vst [vmem:[#allocation11 + $0x1d0] sm:$0xff] %v12010
    %12083 = vst [vmem:[#allocation11 + $0x1d8] sm:$0xff] %v12012
    %12084 = vst [vmem:[#allocation11 + $0x1e0] sm:$0xff] %v12015
    %12085 = vst [vmem:[#allocation11 + $0x1e8] sm:$0xff] %v12017
    %12086 = vst [vmem:[#allocation11 + $0x1f0] sm:$0xff] %v12020
    %12087 = vst [vmem:[#allocation11 + $0x1f8] sm:$0xff] %v12022
    // Predicated region
    $region46: #{tpu_custom_call.1} parent=1 // pred_check
      _
    $region47: #{tpu_custom_call.1} parent=1 // pred_check_branch
      %12089 = sbr.rel (0) target = $region49
    $region48: #{tpu_custom_call.1} parent=1 // pred_region
      %12091 = vsyncadd [#allocation4], 0
      %s12092 = sshll.u32 [#allocation11], 4
      %s12093 = int_to_ptr.vmem [resolvable:$true] %s12092
      %s12094 = sshll.u32 %s6, 4
      %s12095 = int_to_ptr.hbm [resolvable:$true] %s12094
      %12100 = dma.vmem_to_hbm [thread:$0]  %s12093, 8192, %s12095, [#allocation4], 128, 128, 8
    $region49: #{tpu_custom_call.1} parent=1 // pred_fallthru
      _
    // Predicated region
    $region50: #{tpu_custom_call.1} parent=1 // pred_check
      _
    $region51: #{tpu_custom_call.1} parent=1 // pred_check_branch
      %12102 = sbr.rel (0) target = $region53
    $region52: #{tpu_custom_call.1} parent=1 // pred_region
      %12104 = dma.done [#allocation4], 8192
    $region53: #{tpu_custom_call.1} parent=1 // pred_fallthru
      _
    %12105 = vsyncpa [#allocation3], 1
    %12106 = vsyncpa [#allocation6], 1
    %12107 = vsyncpa [#allocation9], 1
    %12108 = vsyncpa [#allocation4], 1

</llo_original>
